<compile_context>
chip_gen: v7x
topology: tpu7x:2x2x1
jax: 0.10.0
libtpu: 0.0.40
codegen_flags: <defaults>
</compile_context>

<pallas_src>
import numpy as np

import jax
import jax.numpy as jnp
from jax.experimental import pallas as pl
from jax.experimental.pallas import tpu as pltpu


def _round_up(x, m):
    return ((x + m - 1) // m) * m


# ----------------------------------------------------------------------------
# Fused whole-network kernel (one grid step = one image)
# ----------------------------------------------------------------------------
def _make_kernel(meta):
    """meta: list of dicts (kh, oh) for the 5 row-GEMM conv layers."""
    n_l = len(meta)

    def kernel(x_ref, *refs):
        lay = refs[: 3 * n_l]                    # (S, T, bias) per layer
        w6_ref = refs[3 * n_l]                   # (4, 4*Cin)  final conv weight
        b6_ref = refs[3 * n_l + 1]               # (1, 1)      final conv bias
        out_ref = refs[3 * n_l + 2]              # (1, 8, 128) f32 output block
        scr = refs[3 * n_l + 3:]                 # per-layer activation scratch

        # Zero scratches: rows >= H of each activation act as the H-padding
        # rows selected by the one-hot gather matrices, so they must be zero.
        for a in scr:
            a[...] = jnp.zeros_like(a)

        src = x_ref[0]                           # (R0, RL0) bf16 padded image
        for l in range(n_l):
            s_ref, t_ref, b_ref = lay[3 * l: 3 * l + 3]
            kh, oh = meta[l]["kh"], meta[l]["oh"]
            owc = t_ref.shape[2]
            acc = jnp.zeros((oh, owc), jnp.float32)
            for i in range(kh):
                # one-hot row gather (exact in bf16), then Toeplitz-W matmul
                g = jnp.dot(s_ref[i], src,
                            preferred_element_type=jnp.float32
                            ).astype(jnp.bfloat16)
                acc = acc + jnp.dot(g, t_ref[i],
                                    preferred_element_type=jnp.float32)
            # f32 epilogue: folded-BN bias + ReLU, one bf16 cast, lane-dense store
            y = jnp.maximum(acc + b_ref[...], 0.0).astype(jnp.bfloat16)
            scr[l][0:oh, :] = y
            src = scr[l][...]

        # Final 4x4 valid conv -> scalar logit; eval-mode lastReLU.
        kf = w6_ref.shape[0]
        prod = src[0:kf, :].astype(jnp.float32) * w6_ref[...].astype(jnp.float32)
        tot = jnp.sum(jnp.sum(prod, axis=1, keepdims=True),
                      axis=0, keepdims=True)                 # (1, 1)
        yfin = jnp.maximum(tot + b6_ref[...], 0.0)           # lastReLU (eval)
        out_ref[...] = jnp.broadcast_to(yfin.reshape(1, 1, 1), out_ref.shape)

    return kernel


# ----------------------------------------------------------------------------
# One-time parameter preparation: fold BN, build Toeplitz-W / one-hot-H weights
# ----------------------------------------------------------------------------
def _fold_bn_np(w, b, bn):
    Wf = np.asarray(w, np.float32)
    bf = np.asarray(b, np.float32)
    if bn is not None:
        gamma, beta, mean, var, eps = bn
        gamma = np.asarray(gamma, np.float32)
        beta = np.asarray(beta, np.float32)
        mean = np.asarray(mean, np.float32)
        var = np.asarray(var, np.float32)
        scale = gamma / np.sqrt(var + float(eps))
        Wf = Wf * scale[:, None, None, None]
        bf = (bf - mean) * scale + beta
    return Wf, bf


def prepare_network(params, nc, ndf, spatial):
    bf16 = jnp.bfloat16
    conv_cfg = [  # (weight, bias, bn, stride, pad)
        (params["w1"], params["b1"], None,          1, 0),   # FirstConvolution k=5
        (params["w2"], params["b2"], params["bn2"], 2, 1),   # NextConvolution  k=4
        (params["w3"], params["b3"], params["bn3"], 2, 1),
        (params["w4"], params["b4"], params["bn4"], 2, 1),
        (params["w5"], params["b5"], params["bn5"], 2, 1),   # NextConvolutionEps
        (params["w6"], params["b6"], None,          1, 0),   # LastConvolutionEps
    ]
    folded = [_fold_bn_np(w, b, bn) + (s, p) for (w, b, bn, s, p) in conv_cfg]

    # Reference layers (lax.conv with the SAME folded bf16 weights).
    ref_layers = [
        dict(w_hwio=jnp.asarray(Wf.transpose(2, 3, 1, 0), bf16),
             b=jnp.asarray(bf_.reshape(1, 1, 1, -1), jnp.float32),
             stride=s, pad=p)
        for (Wf, bf_, s, p) in folded
    ]

    kernel_args, meta, scratch_shapes = [], [], []
    H, Cin = spatial, nc
    rl_pad = _round_up(H * Cin, 128)    # padded row length of kernel input (204->256)
    r_pad = _round_up(H, 8)             # padded row count of kernel input (68->72)
    in_rows, in_rl = r_pad, rl_pad

    for li in range(5):                 # the 5 conv(+BN)+ReLU row-GEMM layers
        Wf, bf_, s, p = folded[li]
        Cout, _, KH, KW = Wf.shape
        OH = (H + 2 * p - KH) // s + 1
        OW = (H + 2 * p - KW) // s + 1  # square
        OWC = OW * Cout

        # W-direction Toeplitz: T[i] maps one full input row (W*Cin, zero-padded
        # to rl_pad lanes) to one full output row (OW*Cout). W padding handled
        # by simply omitting out-of-range columns (their rows stay zero).
        T = np.zeros((KH, rl_pad, OWC), np.float32)
        for i in range(KH):
            for ow in range(OW):
                for j in range(KW):
                    w_in = s * ow - p + j
                    if 0 <= w_in < H:
                        T[i, w_in * Cin:(w_in + 1) * Cin,
                          ow * Cout:(ow + 1) * Cout] = Wf[:, :, i, j].T

        # H-direction one-hot gather: S[i] @ act selects row s*oh - p + i for
        # every output row oh; out-of-range rows hit guaranteed-zero row H.
        S = np.zeros((KH, OH, r_pad), np.float32)
        for i in range(KH):
            for oh in range(OH):
                r = s * oh - p + i
                S[i, oh, r if 0 <= r < H else H] = 1.0

        bias = np.tile(bf_, OW).reshape(1, OWC).astype(np.float32)
        kernel_args += [jnp.asarray(S, bf16), jnp.asarray(T, bf16),
                        jnp.asarray(bias)]
        meta.append(dict(kh=KH, oh=OH))

        next_pad = folded[li + 1][3]
        out_rows_pad = _round_up(OH + next_pad, 8)   # room for one zero pad row
        scratch_shapes.append(pltpu.VMEM((out_rows_pad, OWC), bf16))

        H, Cin, rl_pad, r_pad = OH, Cout, OWC, out_rows_pad

    # Final 4x4 valid conv -> dense (kh, kw*Cin) weight, rows laid out (kw, cin)
    Wf, bf_, s, p = folded[5]
    KH = Wf.shape[2]
    W6 = Wf[0].transpose(1, 2, 0).reshape(KH, KH * Wf.shape[1])
    kernel_args += [jnp.asarray(W6, bf16),
                    jnp.asarray(bf_.reshape(1, 1), jnp.float32)]

    return dict(kernel_args=kernel_args, meta=meta,
                scratch_shapes=scratch_shapes, ref_layers=ref_layers,
                in_rows=in_rows, in_rl=in_rl, spatial=spatial, nc=nc)


def init_params(key, nc, ndf):
    def conv_w(k, cout, cin, ksz):
        return 0.02 * jax.random.normal(k, (cout, cin, ksz, ksz), jnp.float32)

    def conv_b(k, cout):
        return 0.02 * jax.random.normal(k, (cout,), jnp.float32)

    def bn_params(k, c):
        k1, k2, k3 = jax.random.split(k, 3)
        gamma = 1.0 + 0.1 * jax.random.normal(k1, (c,), jnp.float32)
        beta = 0.1 * jax.random.normal(k2, (c,), jnp.float32)
        mean = 0.1 * jax.random.normal(k3, (c,), jnp.float32)
        var = jnp.ones((c,), jnp.float32)
        return (gamma, beta, mean, var, 1e-5)

    keys = jax.random.split(key, 16)
    p = {}
    p["w1"], p["b1"] = conv_w(keys[0], ndf, nc, 5), conv_b(keys[1], ndf)
    p["w2"], p["b2"] = conv_w(keys[2], ndf, ndf, 4), conv_b(keys[3], ndf)
    p["bn2"] = bn_params(keys[4], ndf)
    p["w3"], p["b3"] = conv_w(keys[5], ndf * 2, ndf, 4), conv_b(keys[6], ndf * 2)
    p["bn3"] = bn_params(keys[7], ndf * 2)
    p["w4"], p["b4"] = conv_w(keys[8], ndf * 4, ndf * 2, 4), conv_b(keys[9], ndf * 4)
    p["bn4"] = bn_params(keys[10], ndf * 4)
    p["w5"], p["b5"] = conv_w(keys[11], ndf * 8, ndf * 4, 4), conv_b(keys[12], ndf * 8)
    p["bn5"] = bn_params(keys[13], ndf * 8)
    p["w6"], p["b6"] = conv_w(keys[14], 1, ndf * 8, 4), conv_b(keys[15], 1)
    return p


# ----------------------------------------------------------------------------
# Forward pass wrapper: one pallas_call for the whole network
# ----------------------------------------------------------------------------
def build_forward(net, batch):
    kernel = _make_kernel(net["meta"])
    in_rows, in_rl = net["in_rows"], net["in_rl"]
    spatial, nc = net["spatial"], net["nc"]
    kargs = net["kernel_args"]

    def _const_spec(arr):
        zeros = (0,) * arr.ndim
        return pl.BlockSpec(arr.shape, lambda n, _z=zeros: _z)

    in_specs = [pl.BlockSpec((1, in_rows, in_rl), lambda n: (n, 0, 0))]
    in_specs += [_const_spec(a) for a in kargs]

    call = pl.pallas_call(
        kernel,
        out_shape=jax.ShapeDtypeStruct((batch, 8, 128), jnp.float32),
        grid_spec=pltpu.PrefetchScalarGridSpec(
            num_scalar_prefetch=0,
            grid=(batch,),
            in_specs=in_specs,
            out_specs=pl.BlockSpec((1, 8, 128), lambda n: (n, 0, 0)),
            scratch_shapes=list(net["scratch_shapes"]),
        ),
        compiler_params=pltpu.CompilerParams(
            dimension_semantics=("parallel",),       # 2 steps -> both v7x cores
            vmem_limit_bytes=32 * 1024 * 1024,
        ),
    )

    def forward(x_nchw):
        n = x_nchw.shape[0]
        # Only the tiny (<=70 KiB) network input is touched by XLA: NCHW->NHWC,
        # row-flatten, and a one-time pad to aligned (rows, lanes).
        xh = jnp.transpose(x_nchw, (0, 2, 3, 1)).astype(jnp.bfloat16)
        xr = xh.reshape(n, spatial, spatial * nc)
        xp = jnp.pad(xr, ((0, 0), (0, in_rows - spatial),
                          (0, in_rl - spatial * nc)))
        out = call(xp, *kargs)
        return out[:, 0, 0]                          # output.view(-1,1).squeeze(1)

    return forward


# ----------------------------------------------------------------------------
# Reference (lax.conv, identical folded bf16 weights / f32 accumulation)
# ----------------------------------------------------------------------------
def ref_forward(x_nchw, ref_layers):
    h = jnp.transpose(x_nchw, (0, 2, 3, 1)).astype(jnp.bfloat16)
    last = len(ref_layers) - 1
    for idx, layer in enumerate(ref_layers):
        y = jax.lax.conv_general_dilated(
            h, layer["w_hwio"], (layer["stride"], layer["stride"]),
            [(layer["pad"], layer["pad"]), (layer["pad"], layer["pad"])],
            dimension_numbers=("NHWC", "HWIO", "NHWC"),
            preferred_element_type=jnp.float32,
        ) + layer["b"]
        y = jnp.maximum(y, 0.0)           # ReLU each layer; last = eval lastReLU
        h = y if idx == last else y.astype(jnp.bfloat16)
    return h.reshape(-1)


if __name__ == "__main__":
    # Minimal valid spatial chain: 68 -> 64 -> 32 -> 16 -> 8 -> 4 -> 1
    nc, ndf, batch, spatial = 3, 8, 2, 68
    key = jax.random.PRNGKey(0)
    kx, kp = jax.random.split(key)
    x = jax.random.normal(kx, (batch, nc, spatial, spatial), jnp.float32)

    params = init_params(kp, nc, ndf)
    net = prepare_network(params, nc, ndf, spatial)

    fwd = jax.jit(build_forward(net, batch))
    out = jax.block_until_ready(fwd(x))

    ref = jax.block_until_ready(ref_forward(x, net["ref_layers"]))
    assert out.shape == (batch,)
    assert jnp.allclose(out, ref, rtol=2e-2, atol=2e-2), (out, ref)

    print("KERNEL_OK")
</pallas_src>

<mosaic_0001>
module attributes {stable_mosaic.version = 11 : i64} {
  func.func @kernel(%arg0: i32, %arg1: memref<1x72x256xbf16, #tpu.memory_space<vmem>>, %arg2: memref<5x64x72xbf16, #tpu.memory_space<vmem>>, %arg3: memref<5x256x512xbf16, #tpu.memory_space<vmem>>, %arg4: memref<1x512xf32, #tpu.memory_space<vmem>>, %arg5: memref<4x32x72xbf16, #tpu.memory_space<vmem>>, %arg6: memref<4x512x256xbf16, #tpu.memory_space<vmem>>, %arg7: memref<1x256xf32, #tpu.memory_space<vmem>>, %arg8: memref<4x16x40xbf16, #tpu.memory_space<vmem>>, %arg9: memref<4x256x256xbf16, #tpu.memory_space<vmem>>, %arg10: memref<1x256xf32, #tpu.memory_space<vmem>>, %arg11: memref<4x8x24xbf16, #tpu.memory_space<vmem>>, %arg12: memref<4x256x256xbf16, #tpu.memory_space<vmem>>, %arg13: memref<1x256xf32, #tpu.memory_space<vmem>>, %arg14: memref<4x4x16xbf16, #tpu.memory_space<vmem>>, %arg15: memref<4x256x256xbf16, #tpu.memory_space<vmem>>, %arg16: memref<1x256xf32, #tpu.memory_space<vmem>>, %arg17: memref<4x256xbf16, #tpu.memory_space<vmem>>, %arg18: memref<1x1xf32, #tpu.memory_space<vmem>>, %arg19: memref<1x8x128xf32, #tpu.memory_space<vmem>>, %arg20: memref<72x512xbf16, #tpu.memory_space<vmem>>, %arg21: memref<40x256xbf16, #tpu.memory_space<vmem>>, %arg22: memref<24x256xbf16, #tpu.memory_space<vmem>>, %arg23: memref<16x256xbf16, #tpu.memory_space<vmem>>, %arg24: memref<8x256xbf16, #tpu.memory_space<vmem>>) attributes {dimension_semantics = [#tpu.dimension_semantics<parallel>], iteration_bounds = array<i64: 2>, scalar_prefetch = 0 : i64, scratch_operands = 5 : i64, tpu.core_type = #tpu.core_type<tc>, window_params = [{transform_indices = @transform_0, window_bounds = array<i64: 1, 72, 256>}, {pipeline_mode = #tpu.pipeline_mode<synchronous>, transform_indices = @transform_1, window_bounds = array<i64: 5, 64, 72>}, {pipeline_mode = #tpu.pipeline_mode<synchronous>, transform_indices = @transform_2, window_bounds = array<i64: 5, 256, 512>}, {pipeline_mode = #tpu.pipeline_mode<synchronous>, transform_indices = @transform_3, window_bounds = array<i64: 1, 512>}, {pipeline_mode = #tpu.pipeline_mode<synchronous>, transform_indices = @transform_4, window_bounds = array<i64: 4, 32, 72>}, {pipeline_mode = #tpu.pipeline_mode<synchronous>, transform_indices = @transform_5, window_bounds = array<i64: 4, 512, 256>}, {pipeline_mode = #tpu.pipeline_mode<synchronous>, transform_indices = @transform_6, window_bounds = array<i64: 1, 256>}, {pipeline_mode = #tpu.pipeline_mode<synchronous>, transform_indices = @transform_7, window_bounds = array<i64: 4, 16, 40>}, {pipeline_mode = #tpu.pipeline_mode<synchronous>, transform_indices = @transform_8, window_bounds = array<i64: 4, 256, 256>}, {pipeline_mode = #tpu.pipeline_mode<synchronous>, transform_indices = @transform_9, window_bounds = array<i64: 1, 256>}, {pipeline_mode = #tpu.pipeline_mode<synchronous>, transform_indices = @transform_10, window_bounds = array<i64: 4, 8, 24>}, {pipeline_mode = #tpu.pipeline_mode<synchronous>, transform_indices = @transform_11, window_bounds = array<i64: 4, 256, 256>}, {pipeline_mode = #tpu.pipeline_mode<synchronous>, transform_indices = @transform_12, window_bounds = array<i64: 1, 256>}, {pipeline_mode = #tpu.pipeline_mode<synchronous>, transform_indices = @transform_13, window_bounds = array<i64: 4, 4, 16>}, {pipeline_mode = #tpu.pipeline_mode<synchronous>, transform_indices = @transform_14, window_bounds = array<i64: 4, 256, 256>}, {pipeline_mode = #tpu.pipeline_mode<synchronous>, transform_indices = @transform_15, window_bounds = array<i64: 1, 256>}, {pipeline_mode = #tpu.pipeline_mode<synchronous>, transform_indices = @transform_16, window_bounds = array<i64: 4, 256>}, {pipeline_mode = #tpu.pipeline_mode<synchronous>, transform_indices = @transform_17, window_bounds = array<i64: 1, 1>}, {transform_indices = @transform_18, window_bounds = array<i64: 1, 8, 128>}]} {
    %cst = arith.constant 0.000000e+00 : bf16
    %0 = vector.broadcast %cst : bf16 to vector<72x512xbf16>
    %c0 = arith.constant 0 : index
    %c0_0 = arith.constant 0 : index
    %1 = vector.load %arg20[%c0, %c0_0] : memref<72x512xbf16, #tpu.memory_space<vmem>>, vector<72x512xbf16>
    tpu.vector_store %arg20[%c0, %c0_0], %0 {strides = array<i32>} : memref<72x512xbf16, #tpu.memory_space<vmem>>, vector<72x512xbf16>,
    %cst_1 = arith.constant 0.000000e+00 : bf16
    %2 = vector.broadcast %cst_1 : bf16 to vector<40x256xbf16>
    %c0_2 = arith.constant 0 : index
    %c0_3 = arith.constant 0 : index
    %3 = vector.load %arg21[%c0_2, %c0_3] : memref<40x256xbf16, #tpu.memory_space<vmem>>, vector<40x256xbf16>
    tpu.vector_store %arg21[%c0_2, %c0_3], %2 {strides = array<i32>} : memref<40x256xbf16, #tpu.memory_space<vmem>>, vector<40x256xbf16>,
    %cst_4 = arith.constant 0.000000e+00 : bf16
    %4 = vector.broadcast %cst_4 : bf16 to vector<24x256xbf16>
    %c0_5 = arith.constant 0 : index
    %c0_6 = arith.constant 0 : index
    %5 = vector.load %arg22[%c0_5, %c0_6] : memref<24x256xbf16, #tpu.memory_space<vmem>>, vector<24x256xbf16>
    tpu.vector_store %arg22[%c0_5, %c0_6], %4 {strides = array<i32>} : memref<24x256xbf16, #tpu.memory_space<vmem>>, vector<24x256xbf16>,
    %cst_7 = arith.constant 0.000000e+00 : bf16
    %6 = vector.broadcast %cst_7 : bf16 to vector<16x256xbf16>
    %c0_8 = arith.constant 0 : index
    %c0_9 = arith.constant 0 : index
    %7 = vector.load %arg23[%c0_8, %c0_9] : memref<16x256xbf16, #tpu.memory_space<vmem>>, vector<16x256xbf16>
    tpu.vector_store %arg23[%c0_8, %c0_9], %6 {strides = array<i32>} : memref<16x256xbf16, #tpu.memory_space<vmem>>, vector<16x256xbf16>,
    %cst_10 = arith.constant 0.000000e+00 : bf16
    %8 = vector.broadcast %cst_10 : bf16 to vector<8x256xbf16>
    %c0_11 = arith.constant 0 : index
    %c0_12 = arith.constant 0 : index
    %9 = vector.load %arg24[%c0_11, %c0_12] : memref<8x256xbf16, #tpu.memory_space<vmem>>, vector<8x256xbf16>
    tpu.vector_store %arg24[%c0_11, %c0_12], %8 {strides = array<i32>} : memref<8x256xbf16, #tpu.memory_space<vmem>>, vector<8x256xbf16>,
    %c0_13 = arith.constant 0 : index
    %c0_14 = arith.constant 0 : index
    %c0_15 = arith.constant 0 : index
    %10 = vector.load %arg1[%c0_13, %c0_14, %c0_15] : memref<1x72x256xbf16, #tpu.memory_space<vmem>>, vector<1x72x256xbf16>
    %11 = vector.shape_cast %10 : vector<1x72x256xbf16> to vector<72x256xbf16>
    %cst_16 = arith.constant 0.000000e+00 : f32
    %12 = vector.broadcast %cst_16 : f32 to vector<64x512xf32>
    %c0_17 = arith.constant 0 : index
    %c0_18 = arith.constant 0 : index
    %c0_19 = arith.constant 0 : index
    %13 = vector.load %arg2[%c0_17, %c0_18, %c0_19] : memref<5x64x72xbf16, #tpu.memory_space<vmem>>, vector<1x64x72xbf16>
    %14 = vector.shape_cast %13 : vector<1x64x72xbf16> to vector<64x72xbf16>
    %cst_20 = arith.constant dense<0.000000e+00> : vector<64x256xf32>
    %15 = tpu.matmul %14, %11, %cst_20 {dimension_numbers = #tpu.dot_dimension_numbers<[1], [0], [0], [1], [0, 0, 1, 1], [], []>} : vector<64x72xbf16>, vector<72x256xbf16>, vector<64x256xf32> -> vector<64x256xf32>
    %16 = arith.truncf %15 : vector<64x256xf32> to vector<64x256xbf16>
    %c0_21 = arith.constant 0 : index
    %c0_22 = arith.constant 0 : index
    %c0_23 = arith.constant 0 : index
    %17 = vector.load %arg3[%c0_21, %c0_22, %c0_23] : memref<5x256x512xbf16, #tpu.memory_space<vmem>>, vector<1x256x512xbf16>
    %18 = vector.shape_cast %17 : vector<1x256x512xbf16> to vector<256x512xbf16>
    %cst_24 = arith.constant dense<0.000000e+00> : vector<64x512xf32>
    %19 = tpu.matmul %16, %18, %cst_24 {dimension_numbers = #tpu.dot_dimension_numbers<[1], [0], [0], [1], [0, 0, 1, 1], [], []>} : vector<64x256xbf16>, vector<256x512xbf16>, vector<64x512xf32> -> vector<64x512xf32>
    %20 = arith.addf %12, %19 : vector<64x512xf32>
    %c1 = arith.constant 1 : index
    %c0_25 = arith.constant 0 : index
    %c0_26 = arith.constant 0 : index
    %21 = vector.load %arg2[%c1, %c0_25, %c0_26] : memref<5x64x72xbf16, #tpu.memory_space<vmem>>, vector<1x64x72xbf16>
    %22 = vector.shape_cast %21 : vector<1x64x72xbf16> to vector<64x72xbf16>
    %cst_27 = arith.constant dense<0.000000e+00> : vector<64x256xf32>
    %23 = tpu.matmul %22, %11, %cst_27 {dimension_numbers = #tpu.dot_dimension_numbers<[1], [0], [0], [1], [0, 0, 1, 1], [], []>} : vector<64x72xbf16>, vector<72x256xbf16>, vector<64x256xf32> -> vector<64x256xf32>
    %24 = arith.truncf %23 : vector<64x256xf32> to vector<64x256xbf16>
    %c1_28 = arith.constant 1 : index
    %c0_29 = arith.constant 0 : index
    %c0_30 = arith.constant 0 : index
    %25 = vector.load %arg3[%c1_28, %c0_29, %c0_30] : memref<5x256x512xbf16, #tpu.memory_space<vmem>>, vector<1x256x512xbf16>
    %26 = vector.shape_cast %25 : vector<1x256x512xbf16> to vector<256x512xbf16>
    %cst_31 = arith.constant dense<0.000000e+00> : vector<64x512xf32>
    %27 = tpu.matmul %24, %26, %cst_31 {dimension_numbers = #tpu.dot_dimension_numbers<[1], [0], [0], [1], [0, 0, 1, 1], [], []>} : vector<64x256xbf16>, vector<256x512xbf16>, vector<64x512xf32> -> vector<64x512xf32>
    %28 = arith.addf %20, %27 : vector<64x512xf32>
    %c2 = arith.constant 2 : index
    %c0_32 = arith.constant 0 : index
    %c0_33 = arith.constant 0 : index
    %29 = vector.load %arg2[%c2, %c0_32, %c0_33] : memref<5x64x72xbf16, #tpu.memory_space<vmem>>, vector<1x64x72xbf16>
    %30 = vector.shape_cast %29 : vector<1x64x72xbf16> to vector<64x72xbf16>
    %cst_34 = arith.constant dense<0.000000e+00> : vector<64x256xf32>
    %31 = tpu.matmul %30, %11, %cst_34 {dimension_numbers = #tpu.dot_dimension_numbers<[1], [0], [0], [1], [0, 0, 1, 1], [], []>} : vector<64x72xbf16>, vector<72x256xbf16>, vector<64x256xf32> -> vector<64x256xf32>
    %32 = arith.truncf %31 : vector<64x256xf32> to vector<64x256xbf16>
    %c2_35 = arith.constant 2 : index
    %c0_36 = arith.constant 0 : index
    %c0_37 = arith.constant 0 : index
    %33 = vector.load %arg3[%c2_35, %c0_36, %c0_37] : memref<5x256x512xbf16, #tpu.memory_space<vmem>>, vector<1x256x512xbf16>
    %34 = vector.shape_cast %33 : vector<1x256x512xbf16> to vector<256x512xbf16>
    %cst_38 = arith.constant dense<0.000000e+00> : vector<64x512xf32>
    %35 = tpu.matmul %32, %34, %cst_38 {dimension_numbers = #tpu.dot_dimension_numbers<[1], [0], [0], [1], [0, 0, 1, 1], [], []>} : vector<64x256xbf16>, vector<256x512xbf16>, vector<64x512xf32> -> vector<64x512xf32>
    %36 = arith.addf %28, %35 : vector<64x512xf32>
    %c3 = arith.constant 3 : index
    %c0_39 = arith.constant 0 : index
    %c0_40 = arith.constant 0 : index
    %37 = vector.load %arg2[%c3, %c0_39, %c0_40] : memref<5x64x72xbf16, #tpu.memory_space<vmem>>, vector<1x64x72xbf16>
    %38 = vector.shape_cast %37 : vector<1x64x72xbf16> to vector<64x72xbf16>
    %cst_41 = arith.constant dense<0.000000e+00> : vector<64x256xf32>
    %39 = tpu.matmul %38, %11, %cst_41 {dimension_numbers = #tpu.dot_dimension_numbers<[1], [0], [0], [1], [0, 0, 1, 1], [], []>} : vector<64x72xbf16>, vector<72x256xbf16>, vector<64x256xf32> -> vector<64x256xf32>
    %40 = arith.truncf %39 : vector<64x256xf32> to vector<64x256xbf16>
    %c3_42 = arith.constant 3 : index
    %c0_43 = arith.constant 0 : index
    %c0_44 = arith.constant 0 : index
    %41 = vector.load %arg3[%c3_42, %c0_43, %c0_44] : memref<5x256x512xbf16, #tpu.memory_space<vmem>>, vector<1x256x512xbf16>
    %42 = vector.shape_cast %41 : vector<1x256x512xbf16> to vector<256x512xbf16>
    %cst_45 = arith.constant dense<0.000000e+00> : vector<64x512xf32>
    %43 = tpu.matmul %40, %42, %cst_45 {dimension_numbers = #tpu.dot_dimension_numbers<[1], [0], [0], [1], [0, 0, 1, 1], [], []>} : vector<64x256xbf16>, vector<256x512xbf16>, vector<64x512xf32> -> vector<64x512xf32>
    %44 = arith.addf %36, %43 : vector<64x512xf32>
    %c4 = arith.constant 4 : index
    %c0_46 = arith.constant 0 : index
    %c0_47 = arith.constant 0 : index
    %45 = vector.load %arg2[%c4, %c0_46, %c0_47] : memref<5x64x72xbf16, #tpu.memory_space<vmem>>, vector<1x64x72xbf16>
    %46 = vector.shape_cast %45 : vector<1x64x72xbf16> to vector<64x72xbf16>
    %cst_48 = arith.constant dense<0.000000e+00> : vector<64x256xf32>
    %47 = tpu.matmul %46, %11, %cst_48 {dimension_numbers = #tpu.dot_dimension_numbers<[1], [0], [0], [1], [0, 0, 1, 1], [], []>} : vector<64x72xbf16>, vector<72x256xbf16>, vector<64x256xf32> -> vector<64x256xf32>
    %48 = arith.truncf %47 : vector<64x256xf32> to vector<64x256xbf16>
    %c4_49 = arith.constant 4 : index
    %c0_50 = arith.constant 0 : index
    %c0_51 = arith.constant 0 : index
    %49 = vector.load %arg3[%c4_49, %c0_50, %c0_51] : memref<5x256x512xbf16, #tpu.memory_space<vmem>>, vector<1x256x512xbf16>
    %50 = vector.shape_cast %49 : vector<1x256x512xbf16> to vector<256x512xbf16>
    %cst_52 = arith.constant dense<0.000000e+00> : vector<64x512xf32>
    %51 = tpu.matmul %48, %50, %cst_52 {dimension_numbers = #tpu.dot_dimension_numbers<[1], [0], [0], [1], [0, 0, 1, 1], [], []>} : vector<64x256xbf16>, vector<256x512xbf16>, vector<64x512xf32> -> vector<64x512xf32>
    %52 = arith.addf %44, %51 : vector<64x512xf32>
    %c0_53 = arith.constant 0 : index
    %c0_54 = arith.constant 0 : index
    %53 = vector.load %arg4[%c0_53, %c0_54] : memref<1x512xf32, #tpu.memory_space<vmem>>, vector<1x512xf32>
    %54 = vector.broadcast %53 : vector<1x512xf32> to vector<64x512xf32>
    %55 = arith.addf %52, %54 : vector<64x512xf32>
    %cst_55 = arith.constant 0.000000e+00 : f32
    %56 = vector.broadcast %cst_55 : f32 to vector<64x512xf32>
    %57 = arith.maximumf %55, %56 : vector<64x512xf32>
    %58 = arith.truncf %57 : vector<64x512xf32> to vector<64x512xbf16>
    %c0_56 = arith.constant 0 : index
    %c0_57 = arith.constant 0 : index
    %59 = vector.load %arg20[%c0_56, %c0_57] : memref<72x512xbf16, #tpu.memory_space<vmem>>, vector<64x512xbf16>
    tpu.vector_store %arg20[%c0_56, %c0_57], %58 {strides = array<i32>} : memref<72x512xbf16, #tpu.memory_space<vmem>>, vector<64x512xbf16>,
    %c0_58 = arith.constant 0 : index
    %c0_59 = arith.constant 0 : index
    %60 = vector.load %arg20[%c0_58, %c0_59] : memref<72x512xbf16, #tpu.memory_space<vmem>>, vector<72x512xbf16>
    %cst_60 = arith.constant 0.000000e+00 : f32
    %61 = vector.broadcast %cst_60 : f32 to vector<32x256xf32>
    %c0_61 = arith.constant 0 : index
    %c0_62 = arith.constant 0 : index
    %c0_63 = arith.constant 0 : index
    %62 = vector.load %arg5[%c0_61, %c0_62, %c0_63] : memref<4x32x72xbf16, #tpu.memory_space<vmem>>, vector<1x32x72xbf16>
    %63 = vector.shape_cast %62 : vector<1x32x72xbf16> to vector<32x72xbf16>
    %cst_64 = arith.constant dense<0.000000e+00> : vector<32x512xf32>
    %64 = tpu.matmul %63, %60, %cst_64 {dimension_numbers = #tpu.dot_dimension_numbers<[1], [0], [0], [1], [0, 0, 1, 1], [], []>} : vector<32x72xbf16>, vector<72x512xbf16>, vector<32x512xf32> -> vector<32x512xf32>
    %65 = arith.truncf %64 : vector<32x512xf32> to vector<32x512xbf16>
    %c0_65 = arith.constant 0 : index
    %c0_66 = arith.constant 0 : index
    %c0_67 = arith.constant 0 : index
    %66 = vector.load %arg6[%c0_65, %c0_66, %c0_67] : memref<4x512x256xbf16, #tpu.memory_space<vmem>>, vector<1x512x256xbf16>
    %67 = vector.shape_cast %66 : vector<1x512x256xbf16> to vector<512x256xbf16>
    %cst_68 = arith.constant dense<0.000000e+00> : vector<32x256xf32>
    %68 = tpu.matmul %65, %67, %cst_68 {dimension_numbers = #tpu.dot_dimension_numbers<[1], [0], [0], [1], [0, 0, 1, 1], [], []>} : vector<32x512xbf16>, vector<512x256xbf16>, vector<32x256xf32> -> vector<32x256xf32>
    %69 = arith.addf %61, %68 : vector<32x256xf32>
    %c1_69 = arith.constant 1 : index
    %c0_70 = arith.constant 0 : index
    %c0_71 = arith.constant 0 : index
    %70 = vector.load %arg5[%c1_69, %c0_70, %c0_71] : memref<4x32x72xbf16, #tpu.memory_space<vmem>>, vector<1x32x72xbf16>
    %71 = vector.shape_cast %70 : vector<1x32x72xbf16> to vector<32x72xbf16>
    %cst_72 = arith.constant dense<0.000000e+00> : vector<32x512xf32>
    %72 = tpu.matmul %71, %60, %cst_72 {dimension_numbers = #tpu.dot_dimension_numbers<[1], [0], [0], [1], [0, 0, 1, 1], [], []>} : vector<32x72xbf16>, vector<72x512xbf16>, vector<32x512xf32> -> vector<32x512xf32>
    %73 = arith.truncf %72 : vector<32x512xf32> to vector<32x512xbf16>
    %c1_73 = arith.constant 1 : index
    %c0_74 = arith.constant 0 : index
    %c0_75 = arith.constant 0 : index
    %74 = vector.load %arg6[%c1_73, %c0_74, %c0_75] : memref<4x512x256xbf16, #tpu.memory_space<vmem>>, vector<1x512x256xbf16>
    %75 = vector.shape_cast %74 : vector<1x512x256xbf16> to vector<512x256xbf16>
    %cst_76 = arith.constant dense<0.000000e+00> : vector<32x256xf32>
    %76 = tpu.matmul %73, %75, %cst_76 {dimension_numbers = #tpu.dot_dimension_numbers<[1], [0], [0], [1], [0, 0, 1, 1], [], []>} : vector<32x512xbf16>, vector<512x256xbf16>, vector<32x256xf32> -> vector<32x256xf32>
    %77 = arith.addf %69, %76 : vector<32x256xf32>
    %c2_77 = arith.constant 2 : index
    %c0_78 = arith.constant 0 : index
    %c0_79 = arith.constant 0 : index
    %78 = vector.load %arg5[%c2_77, %c0_78, %c0_79] : memref<4x32x72xbf16, #tpu.memory_space<vmem>>, vector<1x32x72xbf16>
    %79 = vector.shape_cast %78 : vector<1x32x72xbf16> to vector<32x72xbf16>
    %cst_80 = arith.constant dense<0.000000e+00> : vector<32x512xf32>
    %80 = tpu.matmul %79, %60, %cst_80 {dimension_numbers = #tpu.dot_dimension_numbers<[1], [0], [0], [1], [0, 0, 1, 1], [], []>} : vector<32x72xbf16>, vector<72x512xbf16>, vector<32x512xf32> -> vector<32x512xf32>
    %81 = arith.truncf %80 : vector<32x512xf32> to vector<32x512xbf16>
    %c2_81 = arith.constant 2 : index
    %c0_82 = arith.constant 0 : index
    %c0_83 = arith.constant 0 : index
    %82 = vector.load %arg6[%c2_81, %c0_82, %c0_83] : memref<4x512x256xbf16, #tpu.memory_space<vmem>>, vector<1x512x256xbf16>
    %83 = vector.shape_cast %82 : vector<1x512x256xbf16> to vector<512x256xbf16>
    %cst_84 = arith.constant dense<0.000000e+00> : vector<32x256xf32>
    %84 = tpu.matmul %81, %83, %cst_84 {dimension_numbers = #tpu.dot_dimension_numbers<[1], [0], [0], [1], [0, 0, 1, 1], [], []>} : vector<32x512xbf16>, vector<512x256xbf16>, vector<32x256xf32> -> vector<32x256xf32>
    %85 = arith.addf %77, %84 : vector<32x256xf32>
    %c3_85 = arith.constant 3 : index
    %c0_86 = arith.constant 0 : index
    %c0_87 = arith.constant 0 : index
    %86 = vector.load %arg5[%c3_85, %c0_86, %c0_87] : memref<4x32x72xbf16, #tpu.memory_space<vmem>>, vector<1x32x72xbf16>
    %87 = vector.shape_cast %86 : vector<1x32x72xbf16> to vector<32x72xbf16>
    %cst_88 = arith.constant dense<0.000000e+00> : vector<32x512xf32>
    %88 = tpu.matmul %87, %60, %cst_88 {dimension_numbers = #tpu.dot_dimension_numbers<[1], [0], [0], [1], [0, 0, 1, 1], [], []>} : vector<32x72xbf16>, vector<72x512xbf16>, vector<32x512xf32> -> vector<32x512xf32>
    %89 = arith.truncf %88 : vector<32x512xf32> to vector<32x512xbf16>
    %c3_89 = arith.constant 3 : index
    %c0_90 = arith.constant 0 : index
    %c0_91 = arith.constant 0 : index
    %90 = vector.load %arg6[%c3_89, %c0_90, %c0_91] : memref<4x512x256xbf16, #tpu.memory_space<vmem>>, vector<1x512x256xbf16>
    %91 = vector.shape_cast %90 : vector<1x512x256xbf16> to vector<512x256xbf16>
    %cst_92 = arith.constant dense<0.000000e+00> : vector<32x256xf32>
    %92 = tpu.matmul %89, %91, %cst_92 {dimension_numbers = #tpu.dot_dimension_numbers<[1], [0], [0], [1], [0, 0, 1, 1], [], []>} : vector<32x512xbf16>, vector<512x256xbf16>, vector<32x256xf32> -> vector<32x256xf32>
    %93 = arith.addf %85, %92 : vector<32x256xf32>
    %c0_93 = arith.constant 0 : index
    %c0_94 = arith.constant 0 : index
    %94 = vector.load %arg7[%c0_93, %c0_94] : memref<1x256xf32, #tpu.memory_space<vmem>>, vector<1x256xf32>
    %95 = vector.broadcast %94 : vector<1x256xf32> to vector<32x256xf32>
    %96 = arith.addf %93, %95 : vector<32x256xf32>
    %cst_95 = arith.constant 0.000000e+00 : f32
    %97 = vector.broadcast %cst_95 : f32 to vector<32x256xf32>
    %98 = arith.maximumf %96, %97 : vector<32x256xf32>
    %99 = arith.truncf %98 : vector<32x256xf32> to vector<32x256xbf16>
    %c0_96 = arith.constant 0 : index
    %c0_97 = arith.constant 0 : index
    %100 = vector.load %arg21[%c0_96, %c0_97] : memref<40x256xbf16, #tpu.memory_space<vmem>>, vector<32x256xbf16>
    tpu.vector_store %arg21[%c0_96, %c0_97], %99 {strides = array<i32>} : memref<40x256xbf16, #tpu.memory_space<vmem>>, vector<32x256xbf16>,
    %c0_98 = arith.constant 0 : index
    %c0_99 = arith.constant 0 : index
    %101 = vector.load %arg21[%c0_98, %c0_99] : memref<40x256xbf16, #tpu.memory_space<vmem>>, vector<40x256xbf16>
    %cst_100 = arith.constant 0.000000e+00 : f32
    %102 = vector.broadcast %cst_100 : f32 to vector<16x256xf32>
    %c0_101 = arith.constant 0 : index
    %c0_102 = arith.constant 0 : index
    %c0_103 = arith.constant 0 : index
    %103 = vector.load %arg8[%c0_101, %c0_102, %c0_103] : memref<4x16x40xbf16, #tpu.memory_space<vmem>>, vector<1x16x40xbf16>
    %104 = vector.shape_cast %103 : vector<1x16x40xbf16> to vector<16x40xbf16>
    %cst_104 = arith.constant dense<0.000000e+00> : vector<16x256xf32>
    %105 = tpu.matmul %104, %101, %cst_104 {dimension_numbers = #tpu.dot_dimension_numbers<[1], [0], [0], [1], [0, 0, 1, 1], [], []>} : vector<16x40xbf16>, vector<40x256xbf16>, vector<16x256xf32> -> vector<16x256xf32>
    %106 = arith.truncf %105 : vector<16x256xf32> to vector<16x256xbf16>
    %c0_105 = arith.constant 0 : index
    %c0_106 = arith.constant 0 : index
    %c0_107 = arith.constant 0 : index
    %107 = vector.load %arg9[%c0_105, %c0_106, %c0_107] : memref<4x256x256xbf16, #tpu.memory_space<vmem>>, vector<1x256x256xbf16>
    %108 = vector.shape_cast %107 : vector<1x256x256xbf16> to vector<256x256xbf16>
    %cst_108 = arith.constant dense<0.000000e+00> : vector<16x256xf32>
    %109 = tpu.matmul %106, %108, %cst_108 {dimension_numbers = #tpu.dot_dimension_numbers<[1], [0], [0], [1], [0, 0, 1, 1], [], []>} : vector<16x256xbf16>, vector<256x256xbf16>, vector<16x256xf32> -> vector<16x256xf32>
    %110 = arith.addf %102, %109 : vector<16x256xf32>
    %c1_109 = arith.constant 1 : index
    %c0_110 = arith.constant 0 : index
    %c0_111 = arith.constant 0 : index
    %111 = vector.load %arg8[%c1_109, %c0_110, %c0_111] : memref<4x16x40xbf16, #tpu.memory_space<vmem>>, vector<1x16x40xbf16>
    %112 = vector.shape_cast %111 : vector<1x16x40xbf16> to vector<16x40xbf16>
    %cst_112 = arith.constant dense<0.000000e+00> : vector<16x256xf32>
    %113 = tpu.matmul %112, %101, %cst_112 {dimension_numbers = #tpu.dot_dimension_numbers<[1], [0], [0], [1], [0, 0, 1, 1], [], []>} : vector<16x40xbf16>, vector<40x256xbf16>, vector<16x256xf32> -> vector<16x256xf32>
    %114 = arith.truncf %113 : vector<16x256xf32> to vector<16x256xbf16>
    %c1_113 = arith.constant 1 : index
    %c0_114 = arith.constant 0 : index
    %c0_115 = arith.constant 0 : index
    %115 = vector.load %arg9[%c1_113, %c0_114, %c0_115] : memref<4x256x256xbf16, #tpu.memory_space<vmem>>, vector<1x256x256xbf16>
    %116 = vector.shape_cast %115 : vector<1x256x256xbf16> to vector<256x256xbf16>
    %cst_116 = arith.constant dense<0.000000e+00> : vector<16x256xf32>
    %117 = tpu.matmul %114, %116, %cst_116 {dimension_numbers = #tpu.dot_dimension_numbers<[1], [0], [0], [1], [0, 0, 1, 1], [], []>} : vector<16x256xbf16>, vector<256x256xbf16>, vector<16x256xf32> -> vector<16x256xf32>
    %118 = arith.addf %110, %117 : vector<16x256xf32>
    %c2_117 = arith.constant 2 : index
    %c0_118 = arith.constant 0 : index
    %c0_119 = arith.constant 0 : index
    %119 = vector.load %arg8[%c2_117, %c0_118, %c0_119] : memref<4x16x40xbf16, #tpu.memory_space<vmem>>, vector<1x16x40xbf16>
    %120 = vector.shape_cast %119 : vector<1x16x40xbf16> to vector<16x40xbf16>
    %cst_120 = arith.constant dense<0.000000e+00> : vector<16x256xf32>
    %121 = tpu.matmul %120, %101, %cst_120 {dimension_numbers = #tpu.dot_dimension_numbers<[1], [0], [0], [1], [0, 0, 1, 1], [], []>} : vector<16x40xbf16>, vector<40x256xbf16>, vector<16x256xf32> -> vector<16x256xf32>
    %122 = arith.truncf %121 : vector<16x256xf32> to vector<16x256xbf16>
    %c2_121 = arith.constant 2 : index
    %c0_122 = arith.constant 0 : index
    %c0_123 = arith.constant 0 : index
    %123 = vector.load %arg9[%c2_121, %c0_122, %c0_123] : memref<4x256x256xbf16, #tpu.memory_space<vmem>>, vector<1x256x256xbf16>
    %124 = vector.shape_cast %123 : vector<1x256x256xbf16> to vector<256x256xbf16>
    %cst_124 = arith.constant dense<0.000000e+00> : vector<16x256xf32>
    %125 = tpu.matmul %122, %124, %cst_124 {dimension_numbers = #tpu.dot_dimension_numbers<[1], [0], [0], [1], [0, 0, 1, 1], [], []>} : vector<16x256xbf16>, vector<256x256xbf16>, vector<16x256xf32> -> vector<16x256xf32>
    %126 = arith.addf %118, %125 : vector<16x256xf32>
    %c3_125 = arith.constant 3 : index
    %c0_126 = arith.constant 0 : index
    %c0_127 = arith.constant 0 : index
    %127 = vector.load %arg8[%c3_125, %c0_126, %c0_127] : memref<4x16x40xbf16, #tpu.memory_space<vmem>>, vector<1x16x40xbf16>
    %128 = vector.shape_cast %127 : vector<1x16x40xbf16> to vector<16x40xbf16>
    %cst_128 = arith.constant dense<0.000000e+00> : vector<16x256xf32>
    %129 = tpu.matmul %128, %101, %cst_128 {dimension_numbers = #tpu.dot_dimension_numbers<[1], [0], [0], [1], [0, 0, 1, 1], [], []>} : vector<16x40xbf16>, vector<40x256xbf16>, vector<16x256xf32> -> vector<16x256xf32>
    %130 = arith.truncf %129 : vector<16x256xf32> to vector<16x256xbf16>
    %c3_129 = arith.constant 3 : index
    %c0_130 = arith.constant 0 : index
    %c0_131 = arith.constant 0 : index
    %131 = vector.load %arg9[%c3_129, %c0_130, %c0_131] : memref<4x256x256xbf16, #tpu.memory_space<vmem>>, vector<1x256x256xbf16>
    %132 = vector.shape_cast %131 : vector<1x256x256xbf16> to vector<256x256xbf16>
    %cst_132 = arith.constant dense<0.000000e+00> : vector<16x256xf32>
    %133 = tpu.matmul %130, %132, %cst_132 {dimension_numbers = #tpu.dot_dimension_numbers<[1], [0], [0], [1], [0, 0, 1, 1], [], []>} : vector<16x256xbf16>, vector<256x256xbf16>, vector<16x256xf32> -> vector<16x256xf32>
    %134 = arith.addf %126, %133 : vector<16x256xf32>
    %c0_133 = arith.constant 0 : index
    %c0_134 = arith.constant 0 : index
    %135 = vector.load %arg10[%c0_133, %c0_134] : memref<1x256xf32, #tpu.memory_space<vmem>>, vector<1x256xf32>
    %136 = vector.broadcast %135 : vector<1x256xf32> to vector<16x256xf32>
    %137 = arith.addf %134, %136 : vector<16x256xf32>
    %cst_135 = arith.constant 0.000000e+00 : f32
    %138 = vector.broadcast %cst_135 : f32 to vector<16x256xf32>
    %139 = arith.maximumf %137, %138 : vector<16x256xf32>
    %140 = arith.truncf %139 : vector<16x256xf32> to vector<16x256xbf16>
    %c0_136 = arith.constant 0 : index
    %c0_137 = arith.constant 0 : index
    %141 = vector.load %arg22[%c0_136, %c0_137] : memref<24x256xbf16, #tpu.memory_space<vmem>>, vector<16x256xbf16>
    tpu.vector_store %arg22[%c0_136, %c0_137], %140 {strides = array<i32>} : memref<24x256xbf16, #tpu.memory_space<vmem>>, vector<16x256xbf16>,
    %c0_138 = arith.constant 0 : index
    %c0_139 = arith.constant 0 : index
    %142 = vector.load %arg22[%c0_138, %c0_139] : memref<24x256xbf16, #tpu.memory_space<vmem>>, vector<24x256xbf16>
    %cst_140 = arith.constant 0.000000e+00 : f32
    %143 = vector.broadcast %cst_140 : f32 to vector<8x256xf32>
    %c0_141 = arith.constant 0 : index
    %c0_142 = arith.constant 0 : index
    %c0_143 = arith.constant 0 : index
    %144 = vector.load %arg11[%c0_141, %c0_142, %c0_143] : memref<4x8x24xbf16, #tpu.memory_space<vmem>>, vector<1x8x24xbf16>
    %145 = vector.shape_cast %144 : vector<1x8x24xbf16> to vector<8x24xbf16>
    %cst_144 = arith.constant dense<0.000000e+00> : vector<8x256xf32>
    %146 = tpu.matmul %145, %142, %cst_144 {dimension_numbers = #tpu.dot_dimension_numbers<[1], [0], [0], [1], [0, 0, 1, 1], [], []>} : vector<8x24xbf16>, vector<24x256xbf16>, vector<8x256xf32> -> vector<8x256xf32>
    %147 = arith.truncf %146 : vector<8x256xf32> to vector<8x256xbf16>
    %c0_145 = arith.constant 0 : index
    %c0_146 = arith.constant 0 : index
    %c0_147 = arith.constant 0 : index
    %148 = vector.load %arg12[%c0_145, %c0_146, %c0_147] : memref<4x256x256xbf16, #tpu.memory_space<vmem>>, vector<1x256x256xbf16>
    %149 = vector.shape_cast %148 : vector<1x256x256xbf16> to vector<256x256xbf16>
    %cst_148 = arith.constant dense<0.000000e+00> : vector<8x256xf32>
    %150 = tpu.matmul %147, %149, %cst_148 {dimension_numbers = #tpu.dot_dimension_numbers<[1], [0], [0], [1], [0, 0, 1, 1], [], []>} : vector<8x256xbf16>, vector<256x256xbf16>, vector<8x256xf32> -> vector<8x256xf32>
    %151 = arith.addf %143, %150 : vector<8x256xf32>
    %c1_149 = arith.constant 1 : index
    %c0_150 = arith.constant 0 : index
    %c0_151 = arith.constant 0 : index
    %152 = vector.load %arg11[%c1_149, %c0_150, %c0_151] : memref<4x8x24xbf16, #tpu.memory_space<vmem>>, vector<1x8x24xbf16>
    %153 = vector.shape_cast %152 : vector<1x8x24xbf16> to vector<8x24xbf16>
    %cst_152 = arith.constant dense<0.000000e+00> : vector<8x256xf32>
    %154 = tpu.matmul %153, %142, %cst_152 {dimension_numbers = #tpu.dot_dimension_numbers<[1], [0], [0], [1], [0, 0, 1, 1], [], []>} : vector<8x24xbf16>, vector<24x256xbf16>, vector<8x256xf32> -> vector<8x256xf32>
    %155 = arith.truncf %154 : vector<8x256xf32> to vector<8x256xbf16>
    %c1_153 = arith.constant 1 : index
    %c0_154 = arith.constant 0 : index
    %c0_155 = arith.constant 0 : index
    %156 = vector.load %arg12[%c1_153, %c0_154, %c0_155] : memref<4x256x256xbf16, #tpu.memory_space<vmem>>, vector<1x256x256xbf16>
    %157 = vector.shape_cast %156 : vector<1x256x256xbf16> to vector<256x256xbf16>
    %cst_156 = arith.constant dense<0.000000e+00> : vector<8x256xf32>
    %158 = tpu.matmul %155, %157, %cst_156 {dimension_numbers = #tpu.dot_dimension_numbers<[1], [0], [0], [1], [0, 0, 1, 1], [], []>} : vector<8x256xbf16>, vector<256x256xbf16>, vector<8x256xf32> -> vector<8x256xf32>
    %159 = arith.addf %151, %158 : vector<8x256xf32>
    %c2_157 = arith.constant 2 : index
    %c0_158 = arith.constant 0 : index
    %c0_159 = arith.constant 0 : index
    %160 = vector.load %arg11[%c2_157, %c0_158, %c0_159] : memref<4x8x24xbf16, #tpu.memory_space<vmem>>, vector<1x8x24xbf16>
    %161 = vector.shape_cast %160 : vector<1x8x24xbf16> to vector<8x24xbf16>
    %cst_160 = arith.constant dense<0.000000e+00> : vector<8x256xf32>
    %162 = tpu.matmul %161, %142, %cst_160 {dimension_numbers = #tpu.dot_dimension_numbers<[1], [0], [0], [1], [0, 0, 1, 1], [], []>} : vector<8x24xbf16>, vector<24x256xbf16>, vector<8x256xf32> -> vector<8x256xf32>
    %163 = arith.truncf %162 : vector<8x256xf32> to vector<8x256xbf16>
    %c2_161 = arith.constant 2 : index
    %c0_162 = arith.constant 0 : index
    %c0_163 = arith.constant 0 : index
    %164 = vector.load %arg12[%c2_161, %c0_162, %c0_163] : memref<4x256x256xbf16, #tpu.memory_space<vmem>>, vector<1x256x256xbf16>
    %165 = vector.shape_cast %164 : vector<1x256x256xbf16> to vector<256x256xbf16>
    %cst_164 = arith.constant dense<0.000000e+00> : vector<8x256xf32>
    %166 = tpu.matmul %163, %165, %cst_164 {dimension_numbers = #tpu.dot_dimension_numbers<[1], [0], [0], [1], [0, 0, 1, 1], [], []>} : vector<8x256xbf16>, vector<256x256xbf16>, vector<8x256xf32> -> vector<8x256xf32>
    %167 = arith.addf %159, %166 : vector<8x256xf32>
    %c3_165 = arith.constant 3 : index
    %c0_166 = arith.constant 0 : index
    %c0_167 = arith.constant 0 : index
    %168 = vector.load %arg11[%c3_165, %c0_166, %c0_167] : memref<4x8x24xbf16, #tpu.memory_space<vmem>>, vector<1x8x24xbf16>
    %169 = vector.shape_cast %168 : vector<1x8x24xbf16> to vector<8x24xbf16>
    %cst_168 = arith.constant dense<0.000000e+00> : vector<8x256xf32>
    %170 = tpu.matmul %169, %142, %cst_168 {dimension_numbers = #tpu.dot_dimension_numbers<[1], [0], [0], [1], [0, 0, 1, 1], [], []>} : vector<8x24xbf16>, vector<24x256xbf16>, vector<8x256xf32> -> vector<8x256xf32>
    %171 = arith.truncf %170 : vector<8x256xf32> to vector<8x256xbf16>
    %c3_169 = arith.constant 3 : index
    %c0_170 = arith.constant 0 : index
    %c0_171 = arith.constant 0 : index
    %172 = vector.load %arg12[%c3_169, %c0_170, %c0_171] : memref<4x256x256xbf16, #tpu.memory_space<vmem>>, vector<1x256x256xbf16>
    %173 = vector.shape_cast %172 : vector<1x256x256xbf16> to vector<256x256xbf16>
    %cst_172 = arith.constant dense<0.000000e+00> : vector<8x256xf32>
    %174 = tpu.matmul %171, %173, %cst_172 {dimension_numbers = #tpu.dot_dimension_numbers<[1], [0], [0], [1], [0, 0, 1, 1], [], []>} : vector<8x256xbf16>, vector<256x256xbf16>, vector<8x256xf32> -> vector<8x256xf32>
    %175 = arith.addf %167, %174 : vector<8x256xf32>
    %c0_173 = arith.constant 0 : index
    %c0_174 = arith.constant 0 : index
    %176 = vector.load %arg13[%c0_173, %c0_174] : memref<1x256xf32, #tpu.memory_space<vmem>>, vector<1x256xf32>
    %177 = vector.broadcast %176 : vector<1x256xf32> to vector<8x256xf32>
    %178 = arith.addf %175, %177 : vector<8x256xf32>
    %cst_175 = arith.constant 0.000000e+00 : f32
    %179 = vector.broadcast %cst_175 : f32 to vector<8x256xf32>
    %180 = arith.maximumf %178, %179 : vector<8x256xf32>
    %181 = arith.truncf %180 : vector<8x256xf32> to vector<8x256xbf16>
    %c0_176 = arith.constant 0 : index
    %c0_177 = arith.constant 0 : index
    %182 = vector.load %arg23[%c0_176, %c0_177] : memref<16x256xbf16, #tpu.memory_space<vmem>>, vector<8x256xbf16>
    tpu.vector_store %arg23[%c0_176, %c0_177], %181 {strides = array<i32>} : memref<16x256xbf16, #tpu.memory_space<vmem>>, vector<8x256xbf16>,
    %c0_178 = arith.constant 0 : index
    %c0_179 = arith.constant 0 : index
    %183 = vector.load %arg23[%c0_178, %c0_179] : memref<16x256xbf16, #tpu.memory_space<vmem>>, vector<16x256xbf16>
    %cst_180 = arith.constant 0.000000e+00 : f32
    %184 = vector.broadcast %cst_180 : f32 to vector<4x256xf32>
    %c0_181 = arith.constant 0 : index
    %c0_182 = arith.constant 0 : index
    %c0_183 = arith.constant 0 : index
    %185 = vector.load %arg14[%c0_181, %c0_182, %c0_183] : memref<4x4x16xbf16, #tpu.memory_space<vmem>>, vector<1x4x16xbf16>
    %186 = vector.shape_cast %185 : vector<1x4x16xbf16> to vector<4x16xbf16>
    %cst_184 = arith.constant dense<0.000000e+00> : vector<4x256xf32>
    %187 = tpu.matmul %186, %183, %cst_184 {dimension_numbers = #tpu.dot_dimension_numbers<[1], [0], [0], [1], [0, 0, 1, 1], [], []>} : vector<4x16xbf16>, vector<16x256xbf16>, vector<4x256xf32> -> vector<4x256xf32>
    %188 = arith.truncf %187 : vector<4x256xf32> to vector<4x256xbf16>
    %c0_185 = arith.constant 0 : index
    %c0_186 = arith.constant 0 : index
    %c0_187 = arith.constant 0 : index
    %189 = vector.load %arg15[%c0_185, %c0_186, %c0_187] : memref<4x256x256xbf16, #tpu.memory_space<vmem>>, vector<1x256x256xbf16>
    %190 = vector.shape_cast %189 : vector<1x256x256xbf16> to vector<256x256xbf16>
    %cst_188 = arith.constant dense<0.000000e+00> : vector<4x256xf32>
    %191 = tpu.matmul %188, %190, %cst_188 {dimension_numbers = #tpu.dot_dimension_numbers<[1], [0], [0], [1], [0, 0, 1, 1], [], []>} : vector<4x256xbf16>, vector<256x256xbf16>, vector<4x256xf32> -> vector<4x256xf32>
    %192 = arith.addf %184, %191 : vector<4x256xf32>
    %c1_189 = arith.constant 1 : index
    %c0_190 = arith.constant 0 : index
    %c0_191 = arith.constant 0 : index
    %193 = vector.load %arg14[%c1_189, %c0_190, %c0_191] : memref<4x4x16xbf16, #tpu.memory_space<vmem>>, vector<1x4x16xbf16>
    %194 = vector.shape_cast %193 : vector<1x4x16xbf16> to vector<4x16xbf16>
    %cst_192 = arith.constant dense<0.000000e+00> : vector<4x256xf32>
    %195 = tpu.matmul %194, %183, %cst_192 {dimension_numbers = #tpu.dot_dimension_numbers<[1], [0], [0], [1], [0, 0, 1, 1], [], []>} : vector<4x16xbf16>, vector<16x256xbf16>, vector<4x256xf32> -> vector<4x256xf32>
    %196 = arith.truncf %195 : vector<4x256xf32> to vector<4x256xbf16>
    %c1_193 = arith.constant 1 : index
    %c0_194 = arith.constant 0 : index
    %c0_195 = arith.constant 0 : index
    %197 = vector.load %arg15[%c1_193, %c0_194, %c0_195] : memref<4x256x256xbf16, #tpu.memory_space<vmem>>, vector<1x256x256xbf16>
    %198 = vector.shape_cast %197 : vector<1x256x256xbf16> to vector<256x256xbf16>
    %cst_196 = arith.constant dense<0.000000e+00> : vector<4x256xf32>
    %199 = tpu.matmul %196, %198, %cst_196 {dimension_numbers = #tpu.dot_dimension_numbers<[1], [0], [0], [1], [0, 0, 1, 1], [], []>} : vector<4x256xbf16>, vector<256x256xbf16>, vector<4x256xf32> -> vector<4x256xf32>
    %200 = arith.addf %192, %199 : vector<4x256xf32>
    %c2_197 = arith.constant 2 : index
    %c0_198 = arith.constant 0 : index
    %c0_199 = arith.constant 0 : index
    %201 = vector.load %arg14[%c2_197, %c0_198, %c0_199] : memref<4x4x16xbf16, #tpu.memory_space<vmem>>, vector<1x4x16xbf16>
    %202 = vector.shape_cast %201 : vector<1x4x16xbf16> to vector<4x16xbf16>
    %cst_200 = arith.constant dense<0.000000e+00> : vector<4x256xf32>
    %203 = tpu.matmul %202, %183, %cst_200 {dimension_numbers = #tpu.dot_dimension_numbers<[1], [0], [0], [1], [0, 0, 1, 1], [], []>} : vector<4x16xbf16>, vector<16x256xbf16>, vector<4x256xf32> -> vector<4x256xf32>
    %204 = arith.truncf %203 : vector<4x256xf32> to vector<4x256xbf16>
    %c2_201 = arith.constant 2 : index
    %c0_202 = arith.constant 0 : index
    %c0_203 = arith.constant 0 : index
    %205 = vector.load %arg15[%c2_201, %c0_202, %c0_203] : memref<4x256x256xbf16, #tpu.memory_space<vmem>>, vector<1x256x256xbf16>
    %206 = vector.shape_cast %205 : vector<1x256x256xbf16> to vector<256x256xbf16>
    %cst_204 = arith.constant dense<0.000000e+00> : vector<4x256xf32>
    %207 = tpu.matmul %204, %206, %cst_204 {dimension_numbers = #tpu.dot_dimension_numbers<[1], [0], [0], [1], [0, 0, 1, 1], [], []>} : vector<4x256xbf16>, vector<256x256xbf16>, vector<4x256xf32> -> vector<4x256xf32>
    %208 = arith.addf %200, %207 : vector<4x256xf32>
    %c3_205 = arith.constant 3 : index
    %c0_206 = arith.constant 0 : index
    %c0_207 = arith.constant 0 : index
    %209 = vector.load %arg14[%c3_205, %c0_206, %c0_207] : memref<4x4x16xbf16, #tpu.memory_space<vmem>>, vector<1x4x16xbf16>
    %210 = vector.shape_cast %209 : vector<1x4x16xbf16> to vector<4x16xbf16>
    %cst_208 = arith.constant dense<0.000000e+00> : vector<4x256xf32>
    %211 = tpu.matmul %210, %183, %cst_208 {dimension_numbers = #tpu.dot_dimension_numbers<[1], [0], [0], [1], [0, 0, 1, 1], [], []>} : vector<4x16xbf16>, vector<16x256xbf16>, vector<4x256xf32> -> vector<4x256xf32>
    %212 = arith.truncf %211 : vector<4x256xf32> to vector<4x256xbf16>
    %c3_209 = arith.constant 3 : index
    %c0_210 = arith.constant 0 : index
    %c0_211 = arith.constant 0 : index
    %213 = vector.load %arg15[%c3_209, %c0_210, %c0_211] : memref<4x256x256xbf16, #tpu.memory_space<vmem>>, vector<1x256x256xbf16>
    %214 = vector.shape_cast %213 : vector<1x256x256xbf16> to vector<256x256xbf16>
    %cst_212 = arith.constant dense<0.000000e+00> : vector<4x256xf32>
    %215 = tpu.matmul %212, %214, %cst_212 {dimension_numbers = #tpu.dot_dimension_numbers<[1], [0], [0], [1], [0, 0, 1, 1], [], []>} : vector<4x256xbf16>, vector<256x256xbf16>, vector<4x256xf32> -> vector<4x256xf32>
    %216 = arith.addf %208, %215 : vector<4x256xf32>
    %c0_213 = arith.constant 0 : index
    %c0_214 = arith.constant 0 : index
    %217 = vector.load %arg16[%c0_213, %c0_214] : memref<1x256xf32, #tpu.memory_space<vmem>>, vector<1x256xf32>
    %218 = vector.broadcast %217 : vector<1x256xf32> to vector<4x256xf32>
    %219 = arith.addf %216, %218 : vector<4x256xf32>
    %cst_215 = arith.constant 0.000000e+00 : f32
    %220 = vector.broadcast %cst_215 : f32 to vector<4x256xf32>
    %221 = arith.maximumf %219, %220 : vector<4x256xf32>
    %222 = arith.truncf %221 : vector<4x256xf32> to vector<4x256xbf16>
    %c0_216 = arith.constant 0 : index
    %c0_217 = arith.constant 0 : index
    %223 = vector.load %arg24[%c0_216, %c0_217] : memref<8x256xbf16, #tpu.memory_space<vmem>>, vector<4x256xbf16>
    tpu.vector_store %arg24[%c0_216, %c0_217], %222 {strides = array<i32>} : memref<8x256xbf16, #tpu.memory_space<vmem>>, vector<4x256xbf16>,
    %c0_218 = arith.constant 0 : index
    %c0_219 = arith.constant 0 : index
    %224 = vector.load %arg24[%c0_218, %c0_219] : memref<8x256xbf16, #tpu.memory_space<vmem>>, vector<8x256xbf16>
    %225 = vector.extract_strided_slice %224 {offsets = [0, 0], sizes = [4, 256], strides = [1, 1]} : vector<8x256xbf16> to vector<4x256xbf16>
    %226 = arith.extf %225 : vector<4x256xbf16> to vector<4x256xf32>
    %c0_220 = arith.constant 0 : index
    %c0_221 = arith.constant 0 : index
    %227 = vector.load %arg17[%c0_220, %c0_221] : memref<4x256xbf16, #tpu.memory_space<vmem>>, vector<4x256xbf16>
    %228 = arith.extf %227 : vector<4x256xbf16> to vector<4x256xf32>
    %229 = arith.mulf %226, %228 : vector<4x256xf32>
    %cst_222 = arith.constant dense<0.000000e+00> : vector<4xf32>
    %230 = vector.multi_reduction <add>, %229, %cst_222 [1] : vector<4x256xf32> to vector<4xf32>
    %231 = vector.shape_cast %230 : vector<4xf32> to vector<4x1xf32>
    %cst_223 = arith.constant dense<0.000000e+00> : vector<1xf32>
    %232 = vector.multi_reduction <add>, %231, %cst_223 [0] : vector<4x1xf32> to vector<1xf32>
    %233 = vector.shape_cast %232 : vector<1xf32> to vector<1x1xf32>
    %c0_224 = arith.constant 0 : index
    %c0_225 = arith.constant 0 : index
    %234 = vector.load %arg18[%c0_224, %c0_225] : memref<1x1xf32, #tpu.memory_space<vmem>>, vector<1x1xf32>
    %235 = arith.addf %233, %234 : vector<1x1xf32>
    %cst_226 = arith.constant 0.000000e+00 : f32
    %236 = vector.broadcast %cst_226 : f32 to vector<1x1xf32>
    %237 = arith.maximumf %235, %236 : vector<1x1xf32>
    %238 = vector.shape_cast %237 : vector<1x1xf32> to vector<1x1x1xf32>
    %239 = vector.shape_cast %238 : vector<1x1x1xf32> to vector<1x1x1xf32>
    %240 = vector.broadcast %239 : vector<1x1x1xf32> to vector<1x8x128xf32>
    %c0_227 = arith.constant 0 : index
    %c0_228 = arith.constant 0 : index
    %c0_229 = arith.constant 0 : index
    %241 = vector.load %arg19[%c0_227, %c0_228, %c0_229] : memref<1x8x128xf32, #tpu.memory_space<vmem>>, vector<1x8x128xf32>
    tpu.vector_store %arg19[%c0_227, %c0_228, %c0_229], %240 {strides = array<i32>} : memref<1x8x128xf32, #tpu.memory_space<vmem>>, vector<1x8x128xf32>,
    return
  }
  func.func @transform_0(%arg0: i32) -> (i32, i32, i32) {
    %c0_i32 = arith.constant 0 : i32
    %c0_i32_0 = arith.constant 0 : i32
    %c0_i32_1 = arith.constant 0 : i32
    return %arg0, %c0_i32, %c0_i32_0 : i32, i32, i32
  }
  func.func @transform_1(%arg0: i32) -> (i32, i32, i32) {
    %c0_i32 = arith.constant 0 : i32
    %c0_i32_0 = arith.constant 0 : i32
    %c0_i32_1 = arith.constant 0 : i32
    %c0_i32_2 = arith.constant 0 : i32
    return %c0_i32, %c0_i32_0, %c0_i32_1 : i32, i32, i32
  }
  func.func @transform_2(%arg0: i32) -> (i32, i32, i32) {
    %c0_i32 = arith.constant 0 : i32
    %c0_i32_0 = arith.constant 0 : i32
    %c0_i32_1 = arith.constant 0 : i32
    %c0_i32_2 = arith.constant 0 : i32
    return %c0_i32, %c0_i32_0, %c0_i32_1 : i32, i32, i32
  }
  func.func @transform_3(%arg0: i32) -> (i32, i32) {
    %c0_i32 = arith.constant 0 : i32
    %c0_i32_0 = arith.constant 0 : i32
    %c0_i32_1 = arith.constant 0 : i32
    return %c0_i32, %c0_i32_0 : i32, i32
  }
  func.func @transform_4(%arg0: i32) -> (i32, i32, i32) {
    %c0_i32 = arith.constant 0 : i32
    %c0_i32_0 = arith.constant 0 : i32
    %c0_i32_1 = arith.constant 0 : i32
    %c0_i32_2 = arith.constant 0 : i32
    return %c0_i32, %c0_i32_0, %c0_i32_1 : i32, i32, i32
  }
  func.func @transform_5(%arg0: i32) -> (i32, i32, i32) {
    %c0_i32 = arith.constant 0 : i32
    %c0_i32_0 = arith.constant 0 : i32
    %c0_i32_1 = arith.constant 0 : i32
    %c0_i32_2 = arith.constant 0 : i32
    return %c0_i32, %c0_i32_0, %c0_i32_1 : i32, i32, i32
  }
  func.func @transform_6(%arg0: i32) -> (i32, i32) {
    %c0_i32 = arith.constant 0 : i32
    %c0_i32_0 = arith.constant 0 : i32
    %c0_i32_1 = arith.constant 0 : i32
    return %c0_i32, %c0_i32_0 : i32, i32
  }
  func.func @transform_7(%arg0: i32) -> (i32, i32, i32) {
    %c0_i32 = arith.constant 0 : i32
    %c0_i32_0 = arith.constant 0 : i32
    %c0_i32_1 = arith.constant 0 : i32
    %c0_i32_2 = arith.constant 0 : i32
    return %c0_i32, %c0_i32_0, %c0_i32_1 : i32, i32, i32
  }
  func.func @transform_8(%arg0: i32) -> (i32, i32, i32) {
    %c0_i32 = arith.constant 0 : i32
    %c0_i32_0 = arith.constant 0 : i32
    %c0_i32_1 = arith.constant 0 : i32
    %c0_i32_2 = arith.constant 0 : i32
    return %c0_i32, %c0_i32_0, %c0_i32_1 : i32, i32, i32
  }
  func.func @transform_9(%arg0: i32) -> (i32, i32) {
    %c0_i32 = arith.constant 0 : i32
    %c0_i32_0 = arith.constant 0 : i32
    %c0_i32_1 = arith.constant 0 : i32
    return %c0_i32, %c0_i32_0 : i32, i32
  }
  func.func @transform_10(%arg0: i32) -> (i32, i32, i32) {
    %c0_i32 = arith.constant 0 : i32
    %c0_i32_0 = arith.constant 0 : i32
    %c0_i32_1 = arith.constant 0 : i32
    %c0_i32_2 = arith.constant 0 : i32
    return %c0_i32, %c0_i32_0, %c0_i32_1 : i32, i32, i32
  }
  func.func @transform_11(%arg0: i32) -> (i32, i32, i32) {
    %c0_i32 = arith.constant 0 : i32
    %c0_i32_0 = arith.constant 0 : i32
    %c0_i32_1 = arith.constant 0 : i32
    %c0_i32_2 = arith.constant 0 : i32
    return %c0_i32, %c0_i32_0, %c0_i32_1 : i32, i32, i32
  }
  func.func @transform_12(%arg0: i32) -> (i32, i32) {
    %c0_i32 = arith.constant 0 : i32
    %c0_i32_0 = arith.constant 0 : i32
    %c0_i32_1 = arith.constant 0 : i32
    return %c0_i32, %c0_i32_0 : i32, i32
  }
  func.func @transform_13(%arg0: i32) -> (i32, i32, i32) {
    %c0_i32 = arith.constant 0 : i32
    %c0_i32_0 = arith.constant 0 : i32
    %c0_i32_1 = arith.constant 0 : i32
    %c0_i32_2 = arith.constant 0 : i32
    return %c0_i32, %c0_i32_0, %c0_i32_1 : i32, i32, i32
  }
  func.func @transform_14(%arg0: i32) -> (i32, i32, i32) {
    %c0_i32 = arith.constant 0 : i32
    %c0_i32_0 = arith.constant 0 : i32
    %c0_i32_1 = arith.constant 0 : i32
    %c0_i32_2 = arith.constant 0 : i32
    return %c0_i32, %c0_i32_0, %c0_i32_1 : i32, i32, i32
  }
  func.func @transform_15(%arg0: i32) -> (i32, i32) {
    %c0_i32 = arith.constant 0 : i32
    %c0_i32_0 = arith.constant 0 : i32
    %c0_i32_1 = arith.constant 0 : i32
    return %c0_i32, %c0_i32_0 : i32, i32
  }
  func.func @transform_16(%arg0: i32) -> (i32, i32) {
    %c0_i32 = arith.constant 0 : i32
    %c0_i32_0 = arith.constant 0 : i32
    %c0_i32_1 = arith.constant 0 : i32
    return %c0_i32, %c0_i32_0 : i32, i32
  }
  func.func @transform_17(%arg0: i32) -> (i32, i32) {
    %c0_i32 = arith.constant 0 : i32
    %c0_i32_0 = arith.constant 0 : i32
    %c0_i32_1 = arith.constant 0 : i32
    return %c0_i32, %c0_i32_0 : i32, i32
  }
  func.func @transform_18(%arg0: i32) -> (i32, i32, i32) {
    %c0_i32 = arith.constant 0 : i32
    %c0_i32_0 = arith.constant 0 : i32
    %c0_i32_1 = arith.constant 0 : i32
    return %arg0, %c0_i32, %c0_i32_0 : i32, i32, i32
  }
}

</mosaic_0001>

<llo_original>
// kernel: forward.1
$region0: #{forward.1}
  #allocation0 [shape = 'u32[]', space=smem, size = 0x4, offset = 0x4, fixed_abs, tag = 'smem constant byte address 0x4 - core index']
  #allocation1 [shape = 'u32[144,128]{1,0:T(1,128)}', space=vmem, size = 0x12000, scoped, tag = 'internal scratch']
  #allocation2 [shape = 'bf16[72,512]{1,0:T(8,128)(2,1)}', space=vmem, size = 0x12000, scoped, tag = 'scratch operand']
  #allocation3 [shape = 'bf16[40,256]{1,0:T(8,128)(2,1)}', space=vmem, size = 0x5000, scoped, tag = 'scratch operand']
  #allocation4 [shape = 'bf16[24,256]{1,0:T(8,128)(2,1)}', space=vmem, size = 0x3000, scoped, tag = 'scratch operand']
  #allocation5 [shape = 'bf16[16,256]{1,0:T(16,128)(2,1)}', space=vmem, size = 0x2000, scoped, tag = 'scratch operand']
  #allocation6 [shape = 'bf16[8,256]{1,0:T(8,128)(2,1)}', space=vmem, size = 0x1000, scoped, tag = 'scratch operand']
  #allocation7 [shape = 'f32[1,1]{1,0:T(1,128)S(1)}', space=vmem, size = 0x200, scoped, tag = 'scoped memory for forward.1']
  %s0 = inlined_call_operand.vmem [shape: bf16[2,72,256], index: 0, kind: input, shape index: {}]
  %s1 = inlined_call_operand.vmem [shape: bf16[5,64,72], index: 1, kind: input, shape index: {}]
  %s2 = inlined_call_operand.vmem [shape: bf16[5,256,512], index: 2, kind: input, shape index: {}]
  %s3 = inlined_call_operand.vmem [shape: f32[1,512], index: 3, kind: input, shape index: {}]
  %s4 = inlined_call_operand.vmem [shape: bf16[4,32,72], index: 4, kind: input, shape index: {}]
  %s5 = inlined_call_operand.vmem [shape: bf16[4,512,256], index: 5, kind: input, shape index: {}]
  %s6 = inlined_call_operand.vmem [shape: f32[1,256], index: 6, kind: input, shape index: {}]
  %s7 = inlined_call_operand.vmem [shape: bf16[4,16,40], index: 7, kind: input, shape index: {}]
  %s8 = inlined_call_operand.vmem [shape: bf16[4,256,256], index: 8, kind: input, shape index: {}]
  %s9 = inlined_call_operand.vmem [shape: f32[1,256], index: 9, kind: input, shape index: {}]
  %s10 = inlined_call_operand.vmem [shape: bf16[4,8,24], index: 10, kind: input, shape index: {}]
  %s11 = inlined_call_operand.vmem [shape: bf16[4,256,256], index: 11, kind: input, shape index: {}]
  %s12 = inlined_call_operand.vmem [shape: f32[1,256], index: 12, kind: input, shape index: {}]
  %s13 = inlined_call_operand.vmem [shape: bf16[4,4,16], index: 13, kind: input, shape index: {}]
  %s14 = inlined_call_operand.vmem [shape: bf16[4,256,256], index: 14, kind: input, shape index: {}]
  %s15 = inlined_call_operand.vmem [shape: f32[1,256], index: 15, kind: input, shape index: {}]
  %s16 = inlined_call_operand.vmem [shape: bf16[4,256], index: 16, kind: input, shape index: {}]
  %s17 = inlined_call_operand.<no memory space> [shape: f32[1,1], index: 17, kind: input, shape index: {}]
  %s18 = inlined_call_operand.vmem [shape: f32[2,8,128], index: 18, kind: output, shape index: {}]
  %s19 = sld [smem:[#allocation0]]
  $region105: #{forward.1} parent=0
    _
  %s21 = ssub.s32 1, %s19
  %s22 = scalar_select 0, %s21, %s19
  %v23 = vstv %s17
  %24 = vst [vmem:[#allocation7] sm:$0x1] %v23
  loop: start=0, step=1, limit=4
  $region2: #{forward.1} parent=0 // loop_pre_header
    _
  $region3: #{forward.1} parent=0 // loop_header
    %s26 = sphi 0, %s30
    %p27 = scmp.ge.s32.totalorder %s26, 4
    %s36 = sphi 0, %s38
    %s39 = sphi 0, %s36
    %s40 = sphi 0, %s39
    %s56 = sphi 0, %s40
    %s60 = sphi 0, %s60
    %s62 = sphi 0, %s60
    %s63 = sphi 0, %s62
    %s77 = sphi 0, %s63
    %s81 = sphi 0, %s81
    %s83 = sphi 0, %s81
    %s84 = sphi 0, %s83
    %s98 = sphi 0, %s84
    %s102 = sphi 0, %s102
    %s104 = sphi 0, %s102
    %s105 = sphi 0, %s104
    %s119 = sphi 0, %s105
    %s123 = sphi 0, %s123
    %s125 = sphi 0, %s123
    %s126 = sphi 0, %s125
    %s140 = sphi 0, %s126
    %s144 = sphi 0, %s144
    %s146 = sphi 0, %s144
    %s147 = sphi 0, %s146
    %s161 = sphi 0, %s147
    %s165 = sphi 0, %s165
    %s167 = sphi 0, %s165
    %s168 = sphi 0, %s167
    %s182 = sphi 0, %s168
    %s186 = sphi 0, %s186
    %s188 = sphi 0, %s186
    %s189 = sphi 0, %s188
    %s203 = sphi 0, %s189
    %s207 = sphi 0, %s207
    %s209 = sphi 0, %s207
    %s210 = sphi 0, %s209
    %s224 = sphi 0, %s210
    %s228 = sphi 0, %s228
    %s230 = sphi 0, %s228
    %s231 = sphi 0, %s230
    %s245 = sphi 0, %s231
    %s249 = sphi 0, %s249
    %s251 = sphi 0, %s249
    %s252 = sphi 0, %s251
    %s266 = sphi 0, %s252
    %s270 = sphi 0, %s270
    %s272 = sphi 0, %s270
    %s273 = sphi 0, %s272
    %s287 = sphi 0, %s273
    %s291 = sphi 0, %s291
    %s293 = sphi 0, %s291
    %s294 = sphi 0, %s293
    %s308 = sphi 0, %s294
    %s312 = sphi 0, %s312
    %s314 = sphi 0, %s312
    %s315 = sphi 0, %s314
    %s329 = sphi 0, %s315
    %s333 = sphi 0, %s333
    %s335 = sphi 0, %s333
    %s336 = sphi 0, %s335
    %s350 = sphi 0, %s336
    %s354 = sphi 0, %s354
    %s356 = sphi 0, %s354
    %s357 = sphi 0, %s356
    %s371 = sphi 0, %s357
    %s375 = sphi 0, %s375
    %s377 = sphi 0, %s375
    %s378 = sphi 0, %s377
    %s392 = sphi 0, %s378
    %s396 = sphi 0, %s396
    %s398 = sphi 0, %s396
    %s399 = sphi 0, %s398
    %s413 = sphi 0, %s399
    %s419 = sphi 0, %s421
    %s422 = sphi 0, %s419
    %s423 = sphi 0, %s422
    %s439 = sphi 0, %s423
  $region4: #{forward.1} parent=0 // loop_header_branch
    %29 = sbr.rel (%p27) target = $region8
  $region5: #{forward.1} parent=0 // loop_body
    %s31 = ssub.s32 %s26, 1
    %s32 = ssub.s32 %s26, 2
    %s33 = sadd.s32 %s26, 1
    %s34 = ssub.s32 %s26, %s33
    %p35 = scmp.eq.s32.totalorder %s34, 0
    %s37 = sadd.s32 %s36, 1
    %s38 = scalar_select %p35, %s36, %s37
    %p41 = pneg %p35
    %p42 = scmp.eq.s32.totalorder %s26, 1
    %p43 = por %p41, %p42
    %p44 = scmp.ne.s32.totalorder %s36, %s39
    %p45 = scmp.eq.s32.totalorder %s26, 0
    %p46 = por %p44, %p45
    %p47 = scmp.ne.s32.totalorder %s36, %s39
    %p48 = scmp.eq.s32.totalorder %s31, 1
    %p49 = por %p47, %p48
    %p50 = scmp.ne.s32.totalorder %s39, %s40
    %p51 = scmp.eq.s32.totalorder %s31, 0
    %p52 = por %p50, %p51
    %p53 = scmp.ne.s32.totalorder %s39, %s40
    %p54 = scmp.eq.s32.totalorder %s32, 1
    %p55 = por %p53, %p54
    %p57 = scmp.ne.s32.totalorder %s40, %s56
    %p58 = scmp.eq.s32.totalorder %s32, 0
    %p59 = por %p57, %p58
    %s61 = sadd.s32 %s60, 1
    %p64 = scmp.eq.s32.totalorder %s26, 1
    %p65 = scmp.ne.s32.totalorder %s60, %s62
    %p66 = scmp.eq.s32.totalorder %s26, 0
    %p67 = por %p65, %p66
    %p68 = scmp.ne.s32.totalorder %s60, %s62
    %p69 = scmp.eq.s32.totalorder %s31, 1
    %p70 = por %p68, %p69
    %p71 = scmp.ne.s32.totalorder %s62, %s63
    %p72 = scmp.eq.s32.totalorder %s31, 0
    %p73 = por %p71, %p72
    %p74 = scmp.ne.s32.totalorder %s62, %s63
    %p75 = scmp.eq.s32.totalorder %s32, 1
    %p76 = por %p74, %p75
    %p78 = scmp.ne.s32.totalorder %s63, %s77
    %p79 = scmp.eq.s32.totalorder %s32, 0
    %p80 = por %p78, %p79
    %s82 = sadd.s32 %s81, 1
    %p85 = scmp.eq.s32.totalorder %s26, 1
    %p86 = scmp.ne.s32.totalorder %s81, %s83
    %p87 = scmp.eq.s32.totalorder %s26, 0
    %p88 = por %p86, %p87
    %p89 = scmp.ne.s32.totalorder %s81, %s83
    %p90 = scmp.eq.s32.totalorder %s31, 1
    %p91 = por %p89, %p90
    %p92 = scmp.ne.s32.totalorder %s83, %s84
    %p93 = scmp.eq.s32.totalorder %s31, 0
    %p94 = por %p92, %p93
    %p95 = scmp.ne.s32.totalorder %s83, %s84
    %p96 = scmp.eq.s32.totalorder %s32, 1
    %p97 = por %p95, %p96
    %p99 = scmp.ne.s32.totalorder %s84, %s98
    %p100 = scmp.eq.s32.totalorder %s32, 0
    %p101 = por %p99, %p100
    %s103 = sadd.s32 %s102, 1
    %p106 = scmp.eq.s32.totalorder %s26, 1
    %p107 = scmp.ne.s32.totalorder %s102, %s104
    %p108 = scmp.eq.s32.totalorder %s26, 0
    %p109 = por %p107, %p108
    %p110 = scmp.ne.s32.totalorder %s102, %s104
    %p111 = scmp.eq.s32.totalorder %s31, 1
    %p112 = por %p110, %p111
    %p113 = scmp.ne.s32.totalorder %s104, %s105
    %p114 = scmp.eq.s32.totalorder %s31, 0
    %p115 = por %p113, %p114
    %p116 = scmp.ne.s32.totalorder %s104, %s105
    %p117 = scmp.eq.s32.totalorder %s32, 1
    %p118 = por %p116, %p117
    %p120 = scmp.ne.s32.totalorder %s105, %s119
    %p121 = scmp.eq.s32.totalorder %s32, 0
    %p122 = por %p120, %p121
    %s124 = sadd.s32 %s123, 1
    %p127 = scmp.eq.s32.totalorder %s26, 1
    %p128 = scmp.ne.s32.totalorder %s123, %s125
    %p129 = scmp.eq.s32.totalorder %s26, 0
    %p130 = por %p128, %p129
    %p131 = scmp.ne.s32.totalorder %s123, %s125
    %p132 = scmp.eq.s32.totalorder %s31, 1
    %p133 = por %p131, %p132
    %p134 = scmp.ne.s32.totalorder %s125, %s126
    %p135 = scmp.eq.s32.totalorder %s31, 0
    %p136 = por %p134, %p135
    %p137 = scmp.ne.s32.totalorder %s125, %s126
    %p138 = scmp.eq.s32.totalorder %s32, 1
    %p139 = por %p137, %p138
    %p141 = scmp.ne.s32.totalorder %s126, %s140
    %p142 = scmp.eq.s32.totalorder %s32, 0
    %p143 = por %p141, %p142
    %s145 = sadd.s32 %s144, 1
    %p148 = scmp.eq.s32.totalorder %s26, 1
    %p149 = scmp.ne.s32.totalorder %s144, %s146
    %p150 = scmp.eq.s32.totalorder %s26, 0
    %p151 = por %p149, %p150
    %p152 = scmp.ne.s32.totalorder %s144, %s146
    %p153 = scmp.eq.s32.totalorder %s31, 1
    %p154 = por %p152, %p153
    %p155 = scmp.ne.s32.totalorder %s146, %s147
    %p156 = scmp.eq.s32.totalorder %s31, 0
    %p157 = por %p155, %p156
    %p158 = scmp.ne.s32.totalorder %s146, %s147
    %p159 = scmp.eq.s32.totalorder %s32, 1
    %p160 = por %p158, %p159
    %p162 = scmp.ne.s32.totalorder %s147, %s161
    %p163 = scmp.eq.s32.totalorder %s32, 0
    %p164 = por %p162, %p163
    %s166 = sadd.s32 %s165, 1
    %p169 = scmp.eq.s32.totalorder %s26, 1
    %p170 = scmp.ne.s32.totalorder %s165, %s167
    %p171 = scmp.eq.s32.totalorder %s26, 0
    %p172 = por %p170, %p171
    %p173 = scmp.ne.s32.totalorder %s165, %s167
    %p174 = scmp.eq.s32.totalorder %s31, 1
    %p175 = por %p173, %p174
    %p176 = scmp.ne.s32.totalorder %s167, %s168
    %p177 = scmp.eq.s32.totalorder %s31, 0
    %p178 = por %p176, %p177
    %p179 = scmp.ne.s32.totalorder %s167, %s168
    %p180 = scmp.eq.s32.totalorder %s32, 1
    %p181 = por %p179, %p180
    %p183 = scmp.ne.s32.totalorder %s168, %s182
    %p184 = scmp.eq.s32.totalorder %s32, 0
    %p185 = por %p183, %p184
    %s187 = sadd.s32 %s186, 1
    %p190 = scmp.eq.s32.totalorder %s26, 1
    %p191 = scmp.ne.s32.totalorder %s186, %s188
    %p192 = scmp.eq.s32.totalorder %s26, 0
    %p193 = por %p191, %p192
    %p194 = scmp.ne.s32.totalorder %s186, %s188
    %p195 = scmp.eq.s32.totalorder %s31, 1
    %p196 = por %p194, %p195
    %p197 = scmp.ne.s32.totalorder %s188, %s189
    %p198 = scmp.eq.s32.totalorder %s31, 0
    %p199 = por %p197, %p198
    %p200 = scmp.ne.s32.totalorder %s188, %s189
    %p201 = scmp.eq.s32.totalorder %s32, 1
    %p202 = por %p200, %p201
    %p204 = scmp.ne.s32.totalorder %s189, %s203
    %p205 = scmp.eq.s32.totalorder %s32, 0
    %p206 = por %p204, %p205
    %s208 = sadd.s32 %s207, 1
    %p211 = scmp.eq.s32.totalorder %s26, 1
    %p212 = scmp.ne.s32.totalorder %s207, %s209
    %p213 = scmp.eq.s32.totalorder %s26, 0
    %p214 = por %p212, %p213
    %p215 = scmp.ne.s32.totalorder %s207, %s209
    %p216 = scmp.eq.s32.totalorder %s31, 1
    %p217 = por %p215, %p216
    %p218 = scmp.ne.s32.totalorder %s209, %s210
    %p219 = scmp.eq.s32.totalorder %s31, 0
    %p220 = por %p218, %p219
    %p221 = scmp.ne.s32.totalorder %s209, %s210
    %p222 = scmp.eq.s32.totalorder %s32, 1
    %p223 = por %p221, %p222
    %p225 = scmp.ne.s32.totalorder %s210, %s224
    %p226 = scmp.eq.s32.totalorder %s32, 0
    %p227 = por %p225, %p226
    %s229 = sadd.s32 %s228, 1
    %p232 = scmp.eq.s32.totalorder %s26, 1
    %p233 = scmp.ne.s32.totalorder %s228, %s230
    %p234 = scmp.eq.s32.totalorder %s26, 0
    %p235 = por %p233, %p234
    %p236 = scmp.ne.s32.totalorder %s228, %s230
    %p237 = scmp.eq.s32.totalorder %s31, 1
    %p238 = por %p236, %p237
    %p239 = scmp.ne.s32.totalorder %s230, %s231
    %p240 = scmp.eq.s32.totalorder %s31, 0
    %p241 = por %p239, %p240
    %p242 = scmp.ne.s32.totalorder %s230, %s231
    %p243 = scmp.eq.s32.totalorder %s32, 1
    %p244 = por %p242, %p243
    %p246 = scmp.ne.s32.totalorder %s231, %s245
    %p247 = scmp.eq.s32.totalorder %s32, 0
    %p248 = por %p246, %p247
    %s250 = sadd.s32 %s249, 1
    %p253 = scmp.eq.s32.totalorder %s26, 1
    %p254 = scmp.ne.s32.totalorder %s249, %s251
    %p255 = scmp.eq.s32.totalorder %s26, 0
    %p256 = por %p254, %p255
    %p257 = scmp.ne.s32.totalorder %s249, %s251
    %p258 = scmp.eq.s32.totalorder %s31, 1
    %p259 = por %p257, %p258
    %p260 = scmp.ne.s32.totalorder %s251, %s252
    %p261 = scmp.eq.s32.totalorder %s31, 0
    %p262 = por %p260, %p261
    %p263 = scmp.ne.s32.totalorder %s251, %s252
    %p264 = scmp.eq.s32.totalorder %s32, 1
    %p265 = por %p263, %p264
    %p267 = scmp.ne.s32.totalorder %s252, %s266
    %p268 = scmp.eq.s32.totalorder %s32, 0
    %p269 = por %p267, %p268
    %s271 = sadd.s32 %s270, 1
    %p274 = scmp.eq.s32.totalorder %s26, 1
    %p275 = scmp.ne.s32.totalorder %s270, %s272
    %p276 = scmp.eq.s32.totalorder %s26, 0
    %p277 = por %p275, %p276
    %p278 = scmp.ne.s32.totalorder %s270, %s272
    %p279 = scmp.eq.s32.totalorder %s31, 1
    %p280 = por %p278, %p279
    %p281 = scmp.ne.s32.totalorder %s272, %s273
    %p282 = scmp.eq.s32.totalorder %s31, 0
    %p283 = por %p281, %p282
    %p284 = scmp.ne.s32.totalorder %s272, %s273
    %p285 = scmp.eq.s32.totalorder %s32, 1
    %p286 = por %p284, %p285
    %p288 = scmp.ne.s32.totalorder %s273, %s287
    %p289 = scmp.eq.s32.totalorder %s32, 0
    %p290 = por %p288, %p289
    %s292 = sadd.s32 %s291, 1
    %p295 = scmp.eq.s32.totalorder %s26, 1
    %p296 = scmp.ne.s32.totalorder %s291, %s293
    %p297 = scmp.eq.s32.totalorder %s26, 0
    %p298 = por %p296, %p297
    %p299 = scmp.ne.s32.totalorder %s291, %s293
    %p300 = scmp.eq.s32.totalorder %s31, 1
    %p301 = por %p299, %p300
    %p302 = scmp.ne.s32.totalorder %s293, %s294
    %p303 = scmp.eq.s32.totalorder %s31, 0
    %p304 = por %p302, %p303
    %p305 = scmp.ne.s32.totalorder %s293, %s294
    %p306 = scmp.eq.s32.totalorder %s32, 1
    %p307 = por %p305, %p306
    %p309 = scmp.ne.s32.totalorder %s294, %s308
    %p310 = scmp.eq.s32.totalorder %s32, 0
    %p311 = por %p309, %p310
    %s313 = sadd.s32 %s312, 1
    %p316 = scmp.eq.s32.totalorder %s26, 1
    %p317 = scmp.ne.s32.totalorder %s312, %s314
    %p318 = scmp.eq.s32.totalorder %s26, 0
    %p319 = por %p317, %p318
    %p320 = scmp.ne.s32.totalorder %s312, %s314
    %p321 = scmp.eq.s32.totalorder %s31, 1
    %p322 = por %p320, %p321
    %p323 = scmp.ne.s32.totalorder %s314, %s315
    %p324 = scmp.eq.s32.totalorder %s31, 0
    %p325 = por %p323, %p324
    %p326 = scmp.ne.s32.totalorder %s314, %s315
    %p327 = scmp.eq.s32.totalorder %s32, 1
    %p328 = por %p326, %p327
    %p330 = scmp.ne.s32.totalorder %s315, %s329
    %p331 = scmp.eq.s32.totalorder %s32, 0
    %p332 = por %p330, %p331
    %s334 = sadd.s32 %s333, 1
    %p337 = scmp.eq.s32.totalorder %s26, 1
    %p338 = scmp.ne.s32.totalorder %s333, %s335
    %p339 = scmp.eq.s32.totalorder %s26, 0
    %p340 = por %p338, %p339
    %p341 = scmp.ne.s32.totalorder %s333, %s335
    %p342 = scmp.eq.s32.totalorder %s31, 1
    %p343 = por %p341, %p342
    %p344 = scmp.ne.s32.totalorder %s335, %s336
    %p345 = scmp.eq.s32.totalorder %s31, 0
    %p346 = por %p344, %p345
    %p347 = scmp.ne.s32.totalorder %s335, %s336
    %p348 = scmp.eq.s32.totalorder %s32, 1
    %p349 = por %p347, %p348
    %p351 = scmp.ne.s32.totalorder %s336, %s350
    %p352 = scmp.eq.s32.totalorder %s32, 0
    %p353 = por %p351, %p352
    %s355 = sadd.s32 %s354, 1
    %p358 = scmp.eq.s32.totalorder %s26, 1
    %p359 = scmp.ne.s32.totalorder %s354, %s356
    %p360 = scmp.eq.s32.totalorder %s26, 0
    %p361 = por %p359, %p360
    %p362 = scmp.ne.s32.totalorder %s354, %s356
    %p363 = scmp.eq.s32.totalorder %s31, 1
    %p364 = por %p362, %p363
    %p365 = scmp.ne.s32.totalorder %s356, %s357
    %p366 = scmp.eq.s32.totalorder %s31, 0
    %p367 = por %p365, %p366
    %p368 = scmp.ne.s32.totalorder %s356, %s357
    %p369 = scmp.eq.s32.totalorder %s32, 1
    %p370 = por %p368, %p369
    %p372 = scmp.ne.s32.totalorder %s357, %s371
    %p373 = scmp.eq.s32.totalorder %s32, 0
    %p374 = por %p372, %p373
    %s376 = sadd.s32 %s375, 1
    %p379 = scmp.eq.s32.totalorder %s26, 1
    %p380 = scmp.ne.s32.totalorder %s375, %s377
    %p381 = scmp.eq.s32.totalorder %s26, 0
    %p382 = por %p380, %p381
    %p383 = scmp.ne.s32.totalorder %s375, %s377
    %p384 = scmp.eq.s32.totalorder %s31, 1
    %p385 = por %p383, %p384
    %p386 = scmp.ne.s32.totalorder %s377, %s378
    %p387 = scmp.eq.s32.totalorder %s31, 0
    %p388 = por %p386, %p387
    %p389 = scmp.ne.s32.totalorder %s377, %s378
    %p390 = scmp.eq.s32.totalorder %s32, 1
    %p391 = por %p389, %p390
    %p393 = scmp.ne.s32.totalorder %s378, %s392
    %p394 = scmp.eq.s32.totalorder %s32, 0
    %p395 = por %p393, %p394
    %s397 = sadd.s32 %s396, 1
    %p400 = scmp.eq.s32.totalorder %s26, 1
    %p401 = scmp.ne.s32.totalorder %s396, %s398
    %p402 = scmp.eq.s32.totalorder %s26, 0
    %p403 = por %p401, %p402
    %p404 = scmp.ne.s32.totalorder %s396, %s398
    %p405 = scmp.eq.s32.totalorder %s31, 1
    %p406 = por %p404, %p405
    %p407 = scmp.ne.s32.totalorder %s398, %s399
    %p408 = scmp.eq.s32.totalorder %s31, 0
    %p409 = por %p407, %p408
    %p410 = scmp.ne.s32.totalorder %s398, %s399
    %p411 = scmp.eq.s32.totalorder %s32, 1
    %p412 = por %p410, %p411
    %p414 = scmp.ne.s32.totalorder %s399, %s413
    %p415 = scmp.eq.s32.totalorder %s32, 0
    %p416 = por %p414, %p415
    %s417 = ssub.s32 %s26, %s33
    %p418 = scmp.eq.s32.totalorder %s417, 0
    %s420 = sadd.s32 %s419, 1
    %s421 = scalar_select %p418, %s419, %s420
    %p424 = pneg %p418
    %p425 = scmp.eq.s32.totalorder %s26, 1
    %p426 = por %p424, %p425
    %p427 = scmp.ne.s32.totalorder %s419, %s422
    %p428 = scmp.eq.s32.totalorder %s26, 0
    %p429 = por %p427, %p428
    %p430 = scmp.ne.s32.totalorder %s419, %s422
    %p431 = scmp.eq.s32.totalorder %s31, 1
    %p432 = por %p430, %p431
    %p433 = scmp.ne.s32.totalorder %s422, %s423
    %p434 = scmp.eq.s32.totalorder %s31, 0
    %p435 = por %p433, %p434
    %p436 = scmp.ne.s32.totalorder %s422, %s423
    %p437 = scmp.eq.s32.totalorder %s32, 1
    %p438 = por %p436, %p437
    %p440 = scmp.ne.s32.totalorder %s423, %s439
    %p441 = scmp.eq.s32.totalorder %s32, 0
    %p442 = por %p440, %p441
    %p443 = scmp.le.s32.totalorder 1, %s26
    %p444 = scmp.lt.s32.totalorder %s26, 3
    %p445 = pnand %p443, %p444
    %p446 = pneg %p445
    // Predicated region
    $region9: #{forward.1} parent=5 // pred_check
      _
    $region10: #{forward.1} parent=5 // pred_check_branch
      %448 = sbr.rel (%p445) target = $region12
    $region11: #{forward.1} parent=5 // pred_region
      %s449 = ssub.s32 %s26, 1
      // Predicated region
      $region13: #{forward.1} parent=11 // pred_check
        %p450 = pneg %p73
      $region14: #{forward.1} parent=11 // pred_check_branch
        %452 = sbr.rel (%p450) target = $region16
      $region15: #{forward.1} parent=11 // pred_region
        _
      $region16: #{forward.1} parent=11 // pred_fallthru
        _
      // Predicated region
      $region17: #{forward.1} parent=11 // pred_check
        %p453 = pneg %p94
      $region18: #{forward.1} parent=11 // pred_check_branch
        %455 = sbr.rel (%p453) target = $region20
      $region19: #{forward.1} parent=11 // pred_region
        _
      $region20: #{forward.1} parent=11 // pred_fallthru
        _
      // Predicated region
      $region21: #{forward.1} parent=11 // pred_check
        %p456 = pneg %p115
      $region22: #{forward.1} parent=11 // pred_check_branch
        %458 = sbr.rel (%p456) target = $region24
      $region23: #{forward.1} parent=11 // pred_region
        _
      $region24: #{forward.1} parent=11 // pred_fallthru
        _
      // Predicated region
      $region25: #{forward.1} parent=11 // pred_check
        %p459 = pneg %p136
      $region26: #{forward.1} parent=11 // pred_check_branch
        %461 = sbr.rel (%p459) target = $region28
      $region27: #{forward.1} parent=11 // pred_region
        _
      $region28: #{forward.1} parent=11 // pred_fallthru
        _
      // Predicated region
      $region29: #{forward.1} parent=11 // pred_check
        %p462 = pneg %p157
      $region30: #{forward.1} parent=11 // pred_check_branch
        %464 = sbr.rel (%p462) target = $region32
      $region31: #{forward.1} parent=11 // pred_region
        _
      $region32: #{forward.1} parent=11 // pred_fallthru
        _
      // Predicated region
      $region33: #{forward.1} parent=11 // pred_check
        %p465 = pneg %p178
      $region34: #{forward.1} parent=11 // pred_check_branch
        %467 = sbr.rel (%p465) target = $region36
      $region35: #{forward.1} parent=11 // pred_region
        _
      $region36: #{forward.1} parent=11 // pred_fallthru
        _
      // Predicated region
      $region37: #{forward.1} parent=11 // pred_check
        %p468 = pneg %p199
      $region38: #{forward.1} parent=11 // pred_check_branch
        %470 = sbr.rel (%p468) target = $region40
      $region39: #{forward.1} parent=11 // pred_region
        _
      $region40: #{forward.1} parent=11 // pred_fallthru
        _
      // Predicated region
      $region41: #{forward.1} parent=11 // pred_check
        %p471 = pneg %p220
      $region42: #{forward.1} parent=11 // pred_check_branch
        %473 = sbr.rel (%p471) target = $region44
      $region43: #{forward.1} parent=11 // pred_region
        _
      $region44: #{forward.1} parent=11 // pred_fallthru
        _
      // Predicated region
      $region45: #{forward.1} parent=11 // pred_check
        %p474 = pneg %p241
      $region46: #{forward.1} parent=11 // pred_check_branch
        %476 = sbr.rel (%p474) target = $region48
      $region47: #{forward.1} parent=11 // pred_region
        _
      $region48: #{forward.1} parent=11 // pred_fallthru
        _
      // Predicated region
      $region49: #{forward.1} parent=11 // pred_check
        %p477 = pneg %p262
      $region50: #{forward.1} parent=11 // pred_check_branch
        %479 = sbr.rel (%p477) target = $region52
      $region51: #{forward.1} parent=11 // pred_region
        _
      $region52: #{forward.1} parent=11 // pred_fallthru
        _
      // Predicated region
      $region53: #{forward.1} parent=11 // pred_check
        %p480 = pneg %p283
      $region54: #{forward.1} parent=11 // pred_check_branch
        %482 = sbr.rel (%p480) target = $region56
      $region55: #{forward.1} parent=11 // pred_region
        _
      $region56: #{forward.1} parent=11 // pred_fallthru
        _
      // Predicated region
      $region57: #{forward.1} parent=11 // pred_check
        %p483 = pneg %p304
      $region58: #{forward.1} parent=11 // pred_check_branch
        %485 = sbr.rel (%p483) target = $region60
      $region59: #{forward.1} parent=11 // pred_region
        _
      $region60: #{forward.1} parent=11 // pred_fallthru
        _
      // Predicated region
      $region61: #{forward.1} parent=11 // pred_check
        %p486 = pneg %p325
      $region62: #{forward.1} parent=11 // pred_check_branch
        %488 = sbr.rel (%p486) target = $region64
      $region63: #{forward.1} parent=11 // pred_region
        _
      $region64: #{forward.1} parent=11 // pred_fallthru
        _
      // Predicated region
      $region65: #{forward.1} parent=11 // pred_check
        %p489 = pneg %p346
      $region66: #{forward.1} parent=11 // pred_check_branch
        %491 = sbr.rel (%p489) target = $region68
      $region67: #{forward.1} parent=11 // pred_region
        _
      $region68: #{forward.1} parent=11 // pred_fallthru
        _
      // Predicated region
      $region69: #{forward.1} parent=11 // pred_check
        %p492 = pneg %p367
      $region70: #{forward.1} parent=11 // pred_check_branch
        %494 = sbr.rel (%p492) target = $region72
      $region71: #{forward.1} parent=11 // pred_region
        _
      $region72: #{forward.1} parent=11 // pred_fallthru
        _
      // Predicated region
      $region73: #{forward.1} parent=11 // pred_check
        %p495 = pneg %p388
      $region74: #{forward.1} parent=11 // pred_check_branch
        %497 = sbr.rel (%p495) target = $region76
      $region75: #{forward.1} parent=11 // pred_region
        _
      $region76: #{forward.1} parent=11 // pred_fallthru
        _
      // Predicated region
      $region77: #{forward.1} parent=11 // pred_check
        %p498 = pneg %p409
      $region78: #{forward.1} parent=11 // pred_check_branch
        %500 = sbr.rel (%p498) target = $region80
      $region79: #{forward.1} parent=11 // pred_region
        _
      $region80: #{forward.1} parent=11 // pred_fallthru
        _
    $region12: #{forward.1} parent=5 // pred_fallthru
      _
    %p501 = scmp.lt.s32.totalorder %s26, 2
    // Predicated region
    $region81: #{forward.1} parent=5 // pred_check
      %p502 = pneg %p501
    $region82: #{forward.1} parent=5 // pred_check_branch
      %504 = sbr.rel (%p502) target = $region84
    $region83: #{forward.1} parent=5 // pred_region
      // Predicated region
      $region85: #{forward.1} parent=83 // pred_check
        %p505 = pneg %p46
      $region86: #{forward.1} parent=83 // pred_check_branch
        %507 = sbr.rel (%p505) target = $region88
      $region87: #{forward.1} parent=83 // pred_region
        %p508 = scmp.lt.s32.totalorder %s26, 1
        %s509 = scalar_select %p508, %s26, 1
        %s510 = smul.addr %s509, 18
        %s511 = smul.addr %s510, 4
        %s512 = scalar_lea.vmem %s0, %s511
      $region88: #{forward.1} parent=83 // pred_fallthru
        _
    $region84: #{forward.1} parent=5 // pred_fallthru
      _
    %p513 = scmp.le.s32.totalorder 1, %s26
    %p514 = scmp.lt.s32.totalorder %s26, 3
    %p515 = pnand %p513, %p514
    %p516 = pneg %p515
    // Predicated region
    $region89: #{forward.1} parent=5 // pred_check
      _
    $region90: #{forward.1} parent=5 // pred_check_branch
      %518 = sbr.rel (%p515) target = $region92
    $region91: #{forward.1} parent=5 // pred_region
      %s519 = ssub.s32 %s26, 1
      %p520 = scmp.lt.s32.totalorder %s31, 1
      %s521 = scalar_select %p520, %s31, 1
      %s522 = smul.addr %s521, 18
      %s523 = smul.addr %s522, 4
      %s524 = scalar_lea.vmem %s0, %s523
      %p525 = pneg %p52
      %p526 = pneg %p49
      %p527 = pneg %p73
      %p528 = pneg %p70
      %p529 = pneg %p94
      %p530 = pneg %p91
      %p531 = pneg %p115
      %p532 = pneg %p112
      %p533 = pneg %p136
      %p534 = pneg %p133
      %p535 = pneg %p157
      %p536 = pneg %p154
      %p537 = pneg %p178
      %p538 = pneg %p175
      %p539 = pneg %p199
      %p540 = pneg %p196
      %p541 = pneg %p220
      %p542 = pneg %p217
      %p543 = pneg %p241
      %p544 = pneg %p238
      %p545 = pneg %p262
      %p546 = pneg %p259
      %p547 = pneg %p283
      %p548 = pneg %p280
      %p549 = pneg %p304
      %p550 = pneg %p301
      %p551 = pneg %p325
      %p552 = pneg %p322
      %p553 = pneg %p346
      %p554 = pneg %p343
      %p555 = pneg %p367
      %p556 = pneg %p364
      %p557 = pneg %p388
      %p558 = pneg %p385
      %p559 = pneg %p409
      %p560 = pneg %p406
      %p561 = pneg %p435
      %p562 = pneg %p432
      %p563 = scmp.lt.s32.totalorder %s31, 1
      %s564 = scalar_select %p563, %s31, 1
      %s565 = smul.addr %s564, 8
      %s566 = scalar_lea.vmem %s18, %s565
      %p567 = scmp.lt.s32.totalorder %s31, 1
      %s568 = scalar_select %p567, %s31, 1
      %s569 = smul.addr %s568, 18
      %s570 = smul.addr %s569, 4
      %s571 = scalar_lea.vmem %s0, %s570
      %p572 = scmp.lt.s32.totalorder %s31, 1
      %s573 = scalar_select %p572, %s31, 1
      %s574 = smul.addr %s573, 8
      %s575 = scalar_lea.vmem %s18, %s574
      %577 = vst [vmem:[#allocation2] sm:$0xff] 0
      %578 = vst [vmem:[#allocation2 + $0x8] sm:$0xff] 0
      %579 = vst [vmem:[#allocation2 + $0x10] sm:$0xff] 0
      %580 = vst [vmem:[#allocation2 + $0x18] sm:$0xff] 0
      %581 = vst [vmem:[#allocation2 + $0x20] sm:$0xff] 0
      %582 = vst [vmem:[#allocation2 + $0x28] sm:$0xff] 0
      %583 = vst [vmem:[#allocation2 + $0x30] sm:$0xff] 0
      %584 = vst [vmem:[#allocation2 + $0x38] sm:$0xff] 0
      %585 = vst [vmem:[#allocation2 + $0x40] sm:$0xff] 0
      %586 = vst [vmem:[#allocation2 + $0x48] sm:$0xff] 0
      %587 = vst [vmem:[#allocation2 + $0x50] sm:$0xff] 0
      %588 = vst [vmem:[#allocation2 + $0x58] sm:$0xff] 0
      %589 = vst [vmem:[#allocation2 + $0x60] sm:$0xff] 0
      %590 = vst [vmem:[#allocation2 + $0x68] sm:$0xff] 0
      %591 = vst [vmem:[#allocation2 + $0x70] sm:$0xff] 0
      %592 = vst [vmem:[#allocation2 + $0x78] sm:$0xff] 0
      %593 = vst [vmem:[#allocation2 + $0x80] sm:$0xff] 0
      %594 = vst [vmem:[#allocation2 + $0x88] sm:$0xff] 0
      %595 = vst [vmem:[#allocation3] sm:$0xff] 0
      %596 = vst [vmem:[#allocation3 + $0x8] sm:$0xff] 0
      %597 = vst [vmem:[#allocation3 + $0x10] sm:$0xff] 0
      %598 = vst [vmem:[#allocation3 + $0x18] sm:$0xff] 0
      %599 = vst [vmem:[#allocation3 + $0x20] sm:$0xff] 0
      %600 = vst [vmem:[#allocation4] sm:$0xff] 0
      %601 = vst [vmem:[#allocation4 + $0x8] sm:$0xff] 0
      %602 = vst [vmem:[#allocation4 + $0x10] sm:$0xff] 0
      %603 = vst [vmem:[#allocation5] sm:$0xff] 0
      %604 = vst [vmem:[#allocation5 + $0x8] sm:$0xff] 0
      %605 = vst [vmem:[#allocation6] sm:$0xff] 0
      %v606 = vld [vmem:[%s571] sm:$0xff]
      %v607 = vld [vmem:[%s571 + $0x8] sm:$0xff]
      %v608 = vld [vmem:[%s571 + $0x10] sm:$0xff]
      %v609 = vld [vmem:[%s571 + $0x18] sm:$0xff]
      %v610 = vld [vmem:[%s571 + $0x20] sm:$0xff]
      %v611 = vld [vmem:[%s571 + $0x28] sm:$0xff]
      %v612 = vld [vmem:[%s571 + $0x30] sm:$0xff]
      %v613 = vld [vmem:[%s571 + $0x38] sm:$0xff]
      %v614 = vld [vmem:[%s571 + $0x40] sm:$0xff]
      %v615 = vld [vmem:[%s1] sm:$0xf]
      %v616 = vld [vmem:[%s1 + $0x4] sm:$0xf]
      %v617 = vld [vmem:[%s1 + $0x8] sm:$0xf]
      %v618 = vld [vmem:[%s1 + $0xc] sm:$0xf]
      %v619 = vld [vmem:[%s1 + $0x10] sm:$0xf]
      %v620 = vld [vmem:[%s1 + $0x14] sm:$0xf]
      %v621 = vld [vmem:[%s1 + $0x18] sm:$0xf]
      %v622 = vld [vmem:[%s1 + $0x1c] sm:$0xf]
      %v631 = vunpack.c.l.b16 %v615
      %v632 = vunpack.c.l.b16 %v616
      %v633 = vunpack.c.l.b16 %v617
      %v634 = vunpack.c.l.b16 %v618
      %v635 = vunpack.c.l.b16 %v619
      %v636 = vunpack.c.l.b16 %v620
      %v637 = vunpack.c.l.b16 %v621
      %v638 = vunpack.c.l.b16 %v622
      %v639 = vpack.c.b16 %v632, %v631
      %v640 = vpack.c.b16 %v634, %v633
      %v641 = vpack.c.b16 %v636, %v635
      %v642 = vpack.c.b16 %v638, %v637
      %v652 = vunpack.c.l.b16 %v606
      %v653 = vunpack.c.h.b16 %v606
      %v654 = vunpack.c.l.b16 %v607
      %v655 = vunpack.c.h.b16 %v607
      %v656 = vunpack.c.l.b16 %v608
      %v657 = vunpack.c.h.b16 %v608
      %v658 = vunpack.c.l.b16 %v609
      %v659 = vunpack.c.h.b16 %v609
      %v660 = vunpack.c.l.b16 %v610
      %v661 = vunpack.c.h.b16 %v610
      %v662 = vunpack.c.l.b16 %v611
      %v663 = vunpack.c.h.b16 %v611
      %v664 = vunpack.c.l.b16 %v612
      %v665 = vunpack.c.h.b16 %v612
      %v666 = vunpack.c.l.b16 %v613
      %v667 = vunpack.c.h.b16 %v613
      %v668 = vunpack.c.l.b16 %v614
      %v669 = vunpack.c.h.b16 %v614
      %v670 = vpack.c.b16 %v654, %v652
      %v671 = vpack.c.b16 %v655, %v653
      %v672 = vpack.c.b16 %v658, %v656
      %v673 = vpack.c.b16 %v659, %v657
      %v674 = vpack.c.b16 %v662, %v660
      %v675 = vpack.c.b16 %v663, %v661
      %v676 = vpack.c.b16 %v666, %v664
      %v677 = vpack.c.b16 %v667, %v665
      %v678 = vpack.c.b16 %v668, %v668
      %v679 = vpack.c.b16 %v669, %v669
      %vm688 = vcmask 588800
      %v690 = vsel %vm688, %v639, 0
      %v693 = vsel %vm688, %v640, 0
      %v696 = vsel %vm688, %v641, 0
      %v699 = vsel %vm688, %v642, 0
      %vm701 = vcmask 1043456
      %v703 = vsel %vm701, %v678, 0
      %v706 = vsel %vm701, %v679, 0
      %708 = vmatprep.subr.bf16.mxu0 %v671
      %709 = vmatpush1.bf16.msra.mxu0 %v670
      %710 = vmatprep.subr.bf16.mxu0 %v673
      %711 = vmatpush1.bf16.msra.mxu0 %v672
      %712 = vmatprep.subr.bf16.mxu0 %v675
      %713 = vmatpush1.bf16.msra.mxu0 %v674
      %714 = vmatprep.subr.bf16.mxu0 %v677
      %715 = vmatpush1.bf16.msra.mxu0 %v676
      %716 = vmatprep.subr.bf16.mxu0 %v706
      %717 = vmatpush1.bf16.msra.mxu0 %v703
      %718 = vmatprep.subr.bf16.mxu0 0
      %719 = vmatpush1.bf16.msra.mxu0 0
      %720 = vmatprep.subr.bf16.mxu0 0
      %721 = vmatpush1.bf16.msra.mxu0 0
      %722 = vmatprep.subr.bf16.mxu0 0
      %723 = vmatpush1.bf16.msra.mxu0 0
      %724 = vmatprep.subr.bf16.mxu0 0
      %725 = vmatpush1.bf16.msra.mxu0 0
      %726 = vmatprep.subr.bf16.mxu0 0
      %727 = vmatpush1.bf16.msra.mxu0 0
      %728 = vmatprep.subr.bf16.mxu0 0
      %729 = vmatpush1.bf16.msra.mxu0 0
      %730 = vmatprep.subr.bf16.mxu0 0
      %731 = vmatpush1.bf16.msra.mxu0 0
      %732 = vmatprep.subr.bf16.mxu0 0
      %733 = vmatpush1.bf16.msra.mxu0 0
      %734 = vmatprep.subr.bf16.mxu0 0
      %735 = vmatpush1.bf16.msra.mxu0 0
      %736 = vmatprep.subr.bf16.mxu0 0
      %737 = vmatpush1.bf16.msra.mxu0 0
      %738 = vmatprep.subr.bf16.mxu0 0
      %739 = vmatpush1.bf16.msra.mxu0 0
      %740 = vmatprep.mubr.bf16.mxu0 0
      %741 = vmatmul.mubr.bf16.gmra.mrb[0].mxu0 %v690
      %v742 = vpop.f32.mrb[0].mxu0
      %v743 = vadd.f32 0.0, %v742
      %v744 = vpop.f32.mrb[0].mxu0
      %v745 = vadd.f32 0.0, %v744
      %v746 = vpop.f32.mrb[0].mxu0
      %v747 = vadd.f32 0.0, %v746
      %v748 = vpop.f32.mrb[0].mxu0
      %v749 = vadd.f32 0.0, %v748
      %750 = vmatprep.mubr.bf16.mxu0 0
      %751 = vmatmul.mubr.bf16.gmra.mrb[0].mxu0 %v693
      %v752 = vpop.f32.mrb[0].mxu0
      %v753 = vadd.f32 0.0, %v752
      %v754 = vpop.f32.mrb[0].mxu0
      %v755 = vadd.f32 0.0, %v754
      %v756 = vpop.f32.mrb[0].mxu0
      %v757 = vadd.f32 0.0, %v756
      %v758 = vpop.f32.mrb[0].mxu0
      %v759 = vadd.f32 0.0, %v758
      %760 = vmatprep.mubr.bf16.mxu0 0
      %761 = vmatmul.mubr.bf16.gmra.mrb[0].mxu0 %v696
      %v762 = vpop.f32.mrb[0].mxu0
      %v763 = vadd.f32 0.0, %v762
      %v764 = vpop.f32.mrb[0].mxu0
      %v765 = vadd.f32 0.0, %v764
      %v766 = vpop.f32.mrb[0].mxu0
      %v767 = vadd.f32 0.0, %v766
      %v768 = vpop.f32.mrb[0].mxu0
      %v769 = vadd.f32 0.0, %v768
      %770 = vmatprep.mubr.bf16.mxu0 0
      %771 = vmatmul.mubr.bf16.gmra.mrb[0].mxu0 %v699
      %v772 = vpop.f32.mrb[0].mxu0
      %v773 = vadd.f32 0.0, %v772
      %v774 = vpop.f32.mrb[0].mxu0
      %v775 = vadd.f32 0.0, %v774
      %v776 = vpop.f32.mrb[0].mxu0
      %v777 = vadd.f32 0.0, %v776
      %v778 = vpop.f32.mrb[0].mxu0
      %v779 = vadd.f32 0.0, %v778
      %780 = vdwg.mxu0
      %v781 = vpack.c.bf16 %v747, %v743
      %v782 = vpack.c.bf16 %v749, %v745
      %v783 = vpack.c.bf16 %v757, %v753
      %v784 = vpack.c.bf16 %v759, %v755
      %v785 = vpack.c.bf16 %v767, %v763
      %v786 = vpack.c.bf16 %v769, %v765
      %v787 = vpack.c.bf16 %v777, %v773
      %v788 = vpack.c.bf16 %v779, %v775
      %v789 = vld [vmem:[%s2] sm:$0xff]
      %v790 = vld [vmem:[%s2 + $0x8] sm:$0xff]
      %v791 = vld [vmem:[%s2 + $0x10] sm:$0xff]
      %v792 = vld [vmem:[%s2 + $0x18] sm:$0xff]
      %v793 = vld [vmem:[%s2 + $0x20] sm:$0xff]
      %v794 = vld [vmem:[%s2 + $0x28] sm:$0xff]
      %v795 = vld [vmem:[%s2 + $0x30] sm:$0xff]
      %v796 = vld [vmem:[%s2 + $0x38] sm:$0xff]
      %v797 = vld [vmem:[%s2 + $0x40] sm:$0xff]
      %v798 = vld [vmem:[%s2 + $0x48] sm:$0xff]
      %v799 = vld [vmem:[%s2 + $0x50] sm:$0xff]
      %v800 = vld [vmem:[%s2 + $0x58] sm:$0xff]
      %v801 = vld [vmem:[%s2 + $0x60] sm:$0xff]
      %v802 = vld [vmem:[%s2 + $0x68] sm:$0xff]
      %v803 = vld [vmem:[%s2 + $0x70] sm:$0xff]
      %v804 = vld [vmem:[%s2 + $0x78] sm:$0xff]
      %v805 = vld [vmem:[%s2 + $0x80] sm:$0xff]
      %v806 = vld [vmem:[%s2 + $0x88] sm:$0xff]
      %v807 = vld [vmem:[%s2 + $0x90] sm:$0xff]
      %v808 = vld [vmem:[%s2 + $0x98] sm:$0xff]
      %v809 = vld [vmem:[%s2 + $0xa0] sm:$0xff]
      %v810 = vld [vmem:[%s2 + $0xa8] sm:$0xff]
      %v811 = vld [vmem:[%s2 + $0xb0] sm:$0xff]
      %v812 = vld [vmem:[%s2 + $0xb8] sm:$0xff]
      %v813 = vld [vmem:[%s2 + $0xc0] sm:$0xff]
      %v814 = vld [vmem:[%s2 + $0xc8] sm:$0xff]
      %v815 = vld [vmem:[%s2 + $0xd0] sm:$0xff]
      %v816 = vld [vmem:[%s2 + $0xd8] sm:$0xff]
      %v817 = vld [vmem:[%s2 + $0xe0] sm:$0xff]
      %v818 = vld [vmem:[%s2 + $0xe8] sm:$0xff]
      %v819 = vld [vmem:[%s2 + $0xf0] sm:$0xff]
      %v820 = vld [vmem:[%s2 + $0xf8] sm:$0xff]
      %v821 = vld [vmem:[%s2 + $0x100] sm:$0xff]
      %v822 = vld [vmem:[%s2 + $0x108] sm:$0xff]
      %v823 = vld [vmem:[%s2 + $0x110] sm:$0xff]
      %v824 = vld [vmem:[%s2 + $0x118] sm:$0xff]
      %v825 = vld [vmem:[%s2 + $0x120] sm:$0xff]
      %v826 = vld [vmem:[%s2 + $0x128] sm:$0xff]
      %v827 = vld [vmem:[%s2 + $0x130] sm:$0xff]
      %v828 = vld [vmem:[%s2 + $0x138] sm:$0xff]
      %v829 = vld [vmem:[%s2 + $0x140] sm:$0xff]
      %v830 = vld [vmem:[%s2 + $0x148] sm:$0xff]
      %v831 = vld [vmem:[%s2 + $0x150] sm:$0xff]
      %v832 = vld [vmem:[%s2 + $0x158] sm:$0xff]
      %v833 = vld [vmem:[%s2 + $0x160] sm:$0xff]
      %v834 = vld [vmem:[%s2 + $0x168] sm:$0xff]
      %v835 = vld [vmem:[%s2 + $0x170] sm:$0xff]
      %v836 = vld [vmem:[%s2 + $0x178] sm:$0xff]
      %v837 = vld [vmem:[%s2 + $0x180] sm:$0xff]
      %v838 = vld [vmem:[%s2 + $0x188] sm:$0xff]
      %v839 = vld [vmem:[%s2 + $0x190] sm:$0xff]
      %v840 = vld [vmem:[%s2 + $0x198] sm:$0xff]
      %v841 = vld [vmem:[%s2 + $0x1a0] sm:$0xff]
      %v842 = vld [vmem:[%s2 + $0x1a8] sm:$0xff]
      %v843 = vld [vmem:[%s2 + $0x1b0] sm:$0xff]
      %v844 = vld [vmem:[%s2 + $0x1b8] sm:$0xff]
      %v845 = vld [vmem:[%s2 + $0x1c0] sm:$0xff]
      %v846 = vld [vmem:[%s2 + $0x1c8] sm:$0xff]
      %v847 = vld [vmem:[%s2 + $0x1d0] sm:$0xff]
      %v848 = vld [vmem:[%s2 + $0x1d8] sm:$0xff]
      %v849 = vld [vmem:[%s2 + $0x1e0] sm:$0xff]
      %v850 = vld [vmem:[%s2 + $0x1e8] sm:$0xff]
      %v851 = vld [vmem:[%s2 + $0x1f0] sm:$0xff]
      %v852 = vld [vmem:[%s2 + $0x1f8] sm:$0xff]
      %s853 = scalar_lea.vmem %s1, 32
      %v854 = vld [vmem:[%s853] sm:$0xf]
      %v855 = vld [vmem:[%s853 + $0x4] sm:$0xf]
      %v856 = vld [vmem:[%s853 + $0x8] sm:$0xf]
      %v857 = vld [vmem:[%s853 + $0xc] sm:$0xf]
      %v858 = vld [vmem:[%s853 + $0x10] sm:$0xf]
      %v859 = vld [vmem:[%s853 + $0x14] sm:$0xf]
      %v860 = vld [vmem:[%s853 + $0x18] sm:$0xf]
      %v861 = vld [vmem:[%s853 + $0x1c] sm:$0xf]
      %v870 = vunpack.c.l.b16 %v854
      %v871 = vunpack.c.l.b16 %v855
      %v872 = vunpack.c.l.b16 %v856
      %v873 = vunpack.c.l.b16 %v857
      %v874 = vunpack.c.l.b16 %v858
      %v875 = vunpack.c.l.b16 %v859
      %v876 = vunpack.c.l.b16 %v860
      %v877 = vunpack.c.l.b16 %v861
      %v878 = vpack.c.b16 %v871, %v870
      %v879 = vpack.c.b16 %v873, %v872
      %v880 = vpack.c.b16 %v875, %v874
      %v881 = vpack.c.b16 %v877, %v876
      %v883 = vsel %vm688, %v878, 0
      %v886 = vsel %vm688, %v879, 0
      %v889 = vsel %vm688, %v880, 0
      %v892 = vsel %vm688, %v881, 0
      %894 = vmatprep.subr.bf16.mxu0 %v671
      %895 = vmatpush1.bf16.msra.mxu0 %v670
      %896 = vmatprep.subr.bf16.mxu0 %v673
      %897 = vmatpush1.bf16.msra.mxu0 %v672
      %898 = vmatprep.subr.bf16.mxu0 %v675
      %899 = vmatpush1.bf16.msra.mxu0 %v674
      %900 = vmatprep.subr.bf16.mxu0 %v677
      %901 = vmatpush1.bf16.msra.mxu0 %v676
      %902 = vmatprep.subr.bf16.mxu0 %v706
      %903 = vmatpush1.bf16.msra.mxu0 %v703
      %904 = vmatprep.subr.bf16.mxu0 0
      %905 = vmatpush1.bf16.msra.mxu0 0
      %906 = vmatprep.subr.bf16.mxu0 0
      %907 = vmatpush1.bf16.msra.mxu0 0
      %908 = vmatprep.subr.bf16.mxu0 0
      %909 = vmatpush1.bf16.msra.mxu0 0
      %910 = vmatprep.subr.bf16.mxu0 0
      %911 = vmatpush1.bf16.msra.mxu0 0
      %912 = vmatprep.subr.bf16.mxu0 0
      %913 = vmatpush1.bf16.msra.mxu0 0
      %914 = vmatprep.subr.bf16.mxu0 0
      %915 = vmatpush1.bf16.msra.mxu0 0
      %916 = vmatprep.subr.bf16.mxu0 0
      %917 = vmatpush1.bf16.msra.mxu0 0
      %918 = vmatprep.subr.bf16.mxu0 0
      %919 = vmatpush1.bf16.msra.mxu0 0
      %920 = vmatprep.subr.bf16.mxu0 0
      %921 = vmatpush1.bf16.msra.mxu0 0
      %922 = vmatprep.subr.bf16.mxu0 0
      %923 = vmatpush1.bf16.msra.mxu0 0
      %924 = vmatprep.subr.bf16.mxu0 0
      %925 = vmatpush1.bf16.msra.mxu0 0
      %926 = vmatprep.mubr.bf16.mxu0 0
      %927 = vmatmul.mubr.bf16.gmra.mrb[0].mxu0 %v883
      %v928 = vpop.f32.mrb[0].mxu0
      %v929 = vadd.f32 0.0, %v928
      %v930 = vpop.f32.mrb[0].mxu0
      %v931 = vadd.f32 0.0, %v930
      %v932 = vpop.f32.mrb[0].mxu0
      %v933 = vadd.f32 0.0, %v932
      %v934 = vpop.f32.mrb[0].mxu0
      %v935 = vadd.f32 0.0, %v934
      %936 = vmatprep.mubr.bf16.mxu0 0
      %937 = vmatmul.mubr.bf16.gmra.mrb[0].mxu0 %v886
      %v938 = vpop.f32.mrb[0].mxu0
      %v939 = vadd.f32 0.0, %v938
      %v940 = vpop.f32.mrb[0].mxu0
      %v941 = vadd.f32 0.0, %v940
      %v942 = vpop.f32.mrb[0].mxu0
      %v943 = vadd.f32 0.0, %v942
      %v944 = vpop.f32.mrb[0].mxu0
      %v945 = vadd.f32 0.0, %v944
      %946 = vmatprep.mubr.bf16.mxu0 0
      %947 = vmatmul.mubr.bf16.gmra.mrb[0].mxu0 %v889
      %v948 = vpop.f32.mrb[0].mxu0
      %v949 = vadd.f32 0.0, %v948
      %v950 = vpop.f32.mrb[0].mxu0
      %v951 = vadd.f32 0.0, %v950
      %v952 = vpop.f32.mrb[0].mxu0
      %v953 = vadd.f32 0.0, %v952
      %v954 = vpop.f32.mrb[0].mxu0
      %v955 = vadd.f32 0.0, %v954
      %956 = vmatprep.mubr.bf16.mxu0 0
      %957 = vmatmul.mubr.bf16.gmra.mrb[0].mxu0 %v892
      %v958 = vpop.f32.mrb[0].mxu0
      %v959 = vadd.f32 0.0, %v958
      %v960 = vpop.f32.mrb[0].mxu0
      %v961 = vadd.f32 0.0, %v960
      %v962 = vpop.f32.mrb[0].mxu0
      %v963 = vadd.f32 0.0, %v962
      %v964 = vpop.f32.mrb[0].mxu0
      %v965 = vadd.f32 0.0, %v964
      %966 = vdwg.mxu0
      %v967 = vpack.c.bf16 %v933, %v929
      %v968 = vpack.c.bf16 %v935, %v931
      %v969 = vpack.c.bf16 %v943, %v939
      %v970 = vpack.c.bf16 %v945, %v941
      %v971 = vpack.c.bf16 %v953, %v949
      %v972 = vpack.c.bf16 %v955, %v951
      %v973 = vpack.c.bf16 %v963, %v959
      %v974 = vpack.c.bf16 %v965, %v961
      %s975 = scalar_lea.vmem %s2, 512
      %v976 = vld [vmem:[%s975] sm:$0xff]
      %v977 = vld [vmem:[%s975 + $0x8] sm:$0xff]
      %v978 = vld [vmem:[%s975 + $0x10] sm:$0xff]
      %v979 = vld [vmem:[%s975 + $0x18] sm:$0xff]
      %v980 = vld [vmem:[%s975 + $0x20] sm:$0xff]
      %v981 = vld [vmem:[%s975 + $0x28] sm:$0xff]
      %v982 = vld [vmem:[%s975 + $0x30] sm:$0xff]
      %v983 = vld [vmem:[%s975 + $0x38] sm:$0xff]
      %v984 = vld [vmem:[%s975 + $0x40] sm:$0xff]
      %v985 = vld [vmem:[%s975 + $0x48] sm:$0xff]
      %v986 = vld [vmem:[%s975 + $0x50] sm:$0xff]
      %v987 = vld [vmem:[%s975 + $0x58] sm:$0xff]
      %v988 = vld [vmem:[%s975 + $0x60] sm:$0xff]
      %v989 = vld [vmem:[%s975 + $0x68] sm:$0xff]
      %v990 = vld [vmem:[%s975 + $0x70] sm:$0xff]
      %v991 = vld [vmem:[%s975 + $0x78] sm:$0xff]
      %v992 = vld [vmem:[%s975 + $0x80] sm:$0xff]
      %v993 = vld [vmem:[%s975 + $0x88] sm:$0xff]
      %v994 = vld [vmem:[%s975 + $0x90] sm:$0xff]
      %v995 = vld [vmem:[%s975 + $0x98] sm:$0xff]
      %v996 = vld [vmem:[%s975 + $0xa0] sm:$0xff]
      %v997 = vld [vmem:[%s975 + $0xa8] sm:$0xff]
      %v998 = vld [vmem:[%s975 + $0xb0] sm:$0xff]
      %v999 = vld [vmem:[%s975 + $0xb8] sm:$0xff]
      %v1000 = vld [vmem:[%s975 + $0xc0] sm:$0xff]
      %v1001 = vld [vmem:[%s975 + $0xc8] sm:$0xff]
      %v1002 = vld [vmem:[%s975 + $0xd0] sm:$0xff]
      %v1003 = vld [vmem:[%s975 + $0xd8] sm:$0xff]
      %v1004 = vld [vmem:[%s975 + $0xe0] sm:$0xff]
      %v1005 = vld [vmem:[%s975 + $0xe8] sm:$0xff]
      %v1006 = vld [vmem:[%s975 + $0xf0] sm:$0xff]
      %v1007 = vld [vmem:[%s975 + $0xf8] sm:$0xff]
      %v1008 = vld [vmem:[%s975 + $0x100] sm:$0xff]
      %v1009 = vld [vmem:[%s975 + $0x108] sm:$0xff]
      %v1010 = vld [vmem:[%s975 + $0x110] sm:$0xff]
      %v1011 = vld [vmem:[%s975 + $0x118] sm:$0xff]
      %v1012 = vld [vmem:[%s975 + $0x120] sm:$0xff]
      %v1013 = vld [vmem:[%s975 + $0x128] sm:$0xff]
      %v1014 = vld [vmem:[%s975 + $0x130] sm:$0xff]
      %v1015 = vld [vmem:[%s975 + $0x138] sm:$0xff]
      %v1016 = vld [vmem:[%s975 + $0x140] sm:$0xff]
      %v1017 = vld [vmem:[%s975 + $0x148] sm:$0xff]
      %v1018 = vld [vmem:[%s975 + $0x150] sm:$0xff]
      %v1019 = vld [vmem:[%s975 + $0x158] sm:$0xff]
      %v1020 = vld [vmem:[%s975 + $0x160] sm:$0xff]
      %v1021 = vld [vmem:[%s975 + $0x168] sm:$0xff]
      %v1022 = vld [vmem:[%s975 + $0x170] sm:$0xff]
      %v1023 = vld [vmem:[%s975 + $0x178] sm:$0xff]
      %v1024 = vld [vmem:[%s975 + $0x180] sm:$0xff]
      %v1025 = vld [vmem:[%s975 + $0x188] sm:$0xff]
      %v1026 = vld [vmem:[%s975 + $0x190] sm:$0xff]
      %v1027 = vld [vmem:[%s975 + $0x198] sm:$0xff]
      %v1028 = vld [vmem:[%s975 + $0x1a0] sm:$0xff]
      %v1029 = vld [vmem:[%s975 + $0x1a8] sm:$0xff]
      %v1030 = vld [vmem:[%s975 + $0x1b0] sm:$0xff]
      %v1031 = vld [vmem:[%s975 + $0x1b8] sm:$0xff]
      %v1032 = vld [vmem:[%s975 + $0x1c0] sm:$0xff]
      %v1033 = vld [vmem:[%s975 + $0x1c8] sm:$0xff]
      %v1034 = vld [vmem:[%s975 + $0x1d0] sm:$0xff]
      %v1035 = vld [vmem:[%s975 + $0x1d8] sm:$0xff]
      %v1036 = vld [vmem:[%s975 + $0x1e0] sm:$0xff]
      %v1037 = vld [vmem:[%s975 + $0x1e8] sm:$0xff]
      %v1038 = vld [vmem:[%s975 + $0x1f0] sm:$0xff]
      %v1039 = vld [vmem:[%s975 + $0x1f8] sm:$0xff]
      %v1104 = vunpack.c.l.b16 %v976
      %v1105 = vunpack.c.h.b16 %v976
      %v1106 = vunpack.c.l.b16 %v977
      %v1107 = vunpack.c.h.b16 %v977
      %v1108 = vunpack.c.l.b16 %v978
      %v1109 = vunpack.c.h.b16 %v978
      %v1110 = vunpack.c.l.b16 %v979
      %v1111 = vunpack.c.h.b16 %v979
      %v1112 = vunpack.c.l.b16 %v980
      %v1113 = vunpack.c.h.b16 %v980
      %v1114 = vunpack.c.l.b16 %v981
      %v1115 = vunpack.c.h.b16 %v981
      %v1116 = vunpack.c.l.b16 %v982
      %v1117 = vunpack.c.h.b16 %v982
      %v1118 = vunpack.c.l.b16 %v983
      %v1119 = vunpack.c.h.b16 %v983
      %v1120 = vunpack.c.l.b16 %v984
      %v1121 = vunpack.c.h.b16 %v984
      %v1122 = vunpack.c.l.b16 %v985
      %v1123 = vunpack.c.h.b16 %v985
      %v1124 = vunpack.c.l.b16 %v986
      %v1125 = vunpack.c.h.b16 %v986
      %v1126 = vunpack.c.l.b16 %v987
      %v1127 = vunpack.c.h.b16 %v987
      %v1128 = vunpack.c.l.b16 %v988
      %v1129 = vunpack.c.h.b16 %v988
      %v1130 = vunpack.c.l.b16 %v989
      %v1131 = vunpack.c.h.b16 %v989
      %v1132 = vunpack.c.l.b16 %v990
      %v1133 = vunpack.c.h.b16 %v990
      %v1134 = vunpack.c.l.b16 %v991
      %v1135 = vunpack.c.h.b16 %v991
      %v1136 = vunpack.c.l.b16 %v992
      %v1137 = vunpack.c.h.b16 %v992
      %v1138 = vunpack.c.l.b16 %v993
      %v1139 = vunpack.c.h.b16 %v993
      %v1140 = vunpack.c.l.b16 %v994
      %v1141 = vunpack.c.h.b16 %v994
      %v1142 = vunpack.c.l.b16 %v995
      %v1143 = vunpack.c.h.b16 %v995
      %v1144 = vunpack.c.l.b16 %v996
      %v1145 = vunpack.c.h.b16 %v996
      %v1146 = vunpack.c.l.b16 %v997
      %v1147 = vunpack.c.h.b16 %v997
      %v1148 = vunpack.c.l.b16 %v998
      %v1149 = vunpack.c.h.b16 %v998
      %v1150 = vunpack.c.l.b16 %v999
      %v1151 = vunpack.c.h.b16 %v999
      %v1152 = vunpack.c.l.b16 %v1000
      %v1153 = vunpack.c.h.b16 %v1000
      %v1154 = vunpack.c.l.b16 %v1001
      %v1155 = vunpack.c.h.b16 %v1001
      %v1156 = vunpack.c.l.b16 %v1002
      %v1157 = vunpack.c.h.b16 %v1002
      %v1158 = vunpack.c.l.b16 %v1003
      %v1159 = vunpack.c.h.b16 %v1003
      %v1160 = vunpack.c.l.b16 %v1004
      %v1161 = vunpack.c.h.b16 %v1004
      %v1162 = vunpack.c.l.b16 %v1005
      %v1163 = vunpack.c.h.b16 %v1005
      %v1164 = vunpack.c.l.b16 %v1006
      %v1165 = vunpack.c.h.b16 %v1006
      %v1166 = vunpack.c.l.b16 %v1007
      %v1167 = vunpack.c.h.b16 %v1007
      %v1168 = vunpack.c.l.b16 %v1008
      %v1169 = vunpack.c.h.b16 %v1008
      %v1170 = vunpack.c.l.b16 %v1009
      %v1171 = vunpack.c.h.b16 %v1009
      %v1172 = vunpack.c.l.b16 %v1010
      %v1173 = vunpack.c.h.b16 %v1010
      %v1174 = vunpack.c.l.b16 %v1011
      %v1175 = vunpack.c.h.b16 %v1011
      %v1176 = vunpack.c.l.b16 %v1012
      %v1177 = vunpack.c.h.b16 %v1012
      %v1178 = vunpack.c.l.b16 %v1013
      %v1179 = vunpack.c.h.b16 %v1013
      %v1180 = vunpack.c.l.b16 %v1014
      %v1181 = vunpack.c.h.b16 %v1014
      %v1182 = vunpack.c.l.b16 %v1015
      %v1183 = vunpack.c.h.b16 %v1015
      %v1184 = vunpack.c.l.b16 %v1016
      %v1185 = vunpack.c.h.b16 %v1016
      %v1186 = vunpack.c.l.b16 %v1017
      %v1187 = vunpack.c.h.b16 %v1017
      %v1188 = vunpack.c.l.b16 %v1018
      %v1189 = vunpack.c.h.b16 %v1018
      %v1190 = vunpack.c.l.b16 %v1019
      %v1191 = vunpack.c.h.b16 %v1019
      %v1192 = vunpack.c.l.b16 %v1020
      %v1193 = vunpack.c.h.b16 %v1020
      %v1194 = vunpack.c.l.b16 %v1021
      %v1195 = vunpack.c.h.b16 %v1021
      %v1196 = vunpack.c.l.b16 %v1022
      %v1197 = vunpack.c.h.b16 %v1022
      %v1198 = vunpack.c.l.b16 %v1023
      %v1199 = vunpack.c.h.b16 %v1023
      %v1200 = vunpack.c.l.b16 %v1024
      %v1201 = vunpack.c.h.b16 %v1024
      %v1202 = vunpack.c.l.b16 %v1025
      %v1203 = vunpack.c.h.b16 %v1025
      %v1204 = vunpack.c.l.b16 %v1026
      %v1205 = vunpack.c.h.b16 %v1026
      %v1206 = vunpack.c.l.b16 %v1027
      %v1207 = vunpack.c.h.b16 %v1027
      %v1208 = vunpack.c.l.b16 %v1028
      %v1209 = vunpack.c.h.b16 %v1028
      %v1210 = vunpack.c.l.b16 %v1029
      %v1211 = vunpack.c.h.b16 %v1029
      %v1212 = vunpack.c.l.b16 %v1030
      %v1213 = vunpack.c.h.b16 %v1030
      %v1214 = vunpack.c.l.b16 %v1031
      %v1215 = vunpack.c.h.b16 %v1031
      %v1216 = vunpack.c.l.b16 %v1032
      %v1217 = vunpack.c.h.b16 %v1032
      %v1218 = vunpack.c.l.b16 %v1033
      %v1219 = vunpack.c.h.b16 %v1033
      %v1220 = vunpack.c.l.b16 %v1034
      %v1221 = vunpack.c.h.b16 %v1034
      %v1222 = vunpack.c.l.b16 %v1035
      %v1223 = vunpack.c.h.b16 %v1035
      %v1224 = vunpack.c.l.b16 %v1036
      %v1225 = vunpack.c.h.b16 %v1036
      %v1226 = vunpack.c.l.b16 %v1037
      %v1227 = vunpack.c.h.b16 %v1037
      %v1228 = vunpack.c.l.b16 %v1038
      %v1229 = vunpack.c.h.b16 %v1038
      %v1230 = vunpack.c.l.b16 %v1039
      %v1231 = vunpack.c.h.b16 %v1039
      %v1232 = vpack.c.b16 %v1108, %v1104
      %v1233 = vpack.c.b16 %v1109, %v1105
      %v1234 = vpack.c.b16 %v1110, %v1106
      %v1235 = vpack.c.b16 %v1111, %v1107
      %v1236 = vpack.c.b16 %v1116, %v1112
      %v1237 = vpack.c.b16 %v1117, %v1113
      %v1238 = vpack.c.b16 %v1118, %v1114
      %v1239 = vpack.c.b16 %v1119, %v1115
      %v1240 = vpack.c.b16 %v1124, %v1120
      %v1241 = vpack.c.b16 %v1125, %v1121
      %v1242 = vpack.c.b16 %v1126, %v1122
      %v1243 = vpack.c.b16 %v1127, %v1123
      %v1244 = vpack.c.b16 %v1132, %v1128
      %v1245 = vpack.c.b16 %v1133, %v1129
      %v1246 = vpack.c.b16 %v1134, %v1130
      %v1247 = vpack.c.b16 %v1135, %v1131
      %v1248 = vpack.c.b16 %v1140, %v1136
      %v1249 = vpack.c.b16 %v1141, %v1137
      %v1250 = vpack.c.b16 %v1142, %v1138
      %v1251 = vpack.c.b16 %v1143, %v1139
      %v1252 = vpack.c.b16 %v1148, %v1144
      %v1253 = vpack.c.b16 %v1149, %v1145
      %v1254 = vpack.c.b16 %v1150, %v1146
      %v1255 = vpack.c.b16 %v1151, %v1147
      %v1256 = vpack.c.b16 %v1156, %v1152
      %v1257 = vpack.c.b16 %v1157, %v1153
      %v1258 = vpack.c.b16 %v1158, %v1154
      %v1259 = vpack.c.b16 %v1159, %v1155
      %v1260 = vpack.c.b16 %v1164, %v1160
      %v1261 = vpack.c.b16 %v1165, %v1161
      %v1262 = vpack.c.b16 %v1166, %v1162
      %v1263 = vpack.c.b16 %v1167, %v1163
      %v1264 = vpack.c.b16 %v1172, %v1168
      %v1265 = vpack.c.b16 %v1173, %v1169
      %v1266 = vpack.c.b16 %v1174, %v1170
      %v1267 = vpack.c.b16 %v1175, %v1171
      %v1268 = vpack.c.b16 %v1180, %v1176
      %v1269 = vpack.c.b16 %v1181, %v1177
      %v1270 = vpack.c.b16 %v1182, %v1178
      %v1271 = vpack.c.b16 %v1183, %v1179
      %v1272 = vpack.c.b16 %v1188, %v1184
      %v1273 = vpack.c.b16 %v1189, %v1185
      %v1274 = vpack.c.b16 %v1190, %v1186
      %v1275 = vpack.c.b16 %v1191, %v1187
      %v1276 = vpack.c.b16 %v1196, %v1192
      %v1277 = vpack.c.b16 %v1197, %v1193
      %v1278 = vpack.c.b16 %v1198, %v1194
      %v1279 = vpack.c.b16 %v1199, %v1195
      %v1280 = vpack.c.b16 %v1204, %v1200
      %v1281 = vpack.c.b16 %v1205, %v1201
      %v1282 = vpack.c.b16 %v1206, %v1202
      %v1283 = vpack.c.b16 %v1207, %v1203
      %v1284 = vpack.c.b16 %v1212, %v1208
      %v1285 = vpack.c.b16 %v1213, %v1209
      %v1286 = vpack.c.b16 %v1214, %v1210
      %v1287 = vpack.c.b16 %v1215, %v1211
      %v1288 = vpack.c.b16 %v1220, %v1216
      %v1289 = vpack.c.b16 %v1221, %v1217
      %v1290 = vpack.c.b16 %v1222, %v1218
      %v1291 = vpack.c.b16 %v1223, %v1219
      %v1292 = vpack.c.b16 %v1228, %v1224
      %v1293 = vpack.c.b16 %v1229, %v1225
      %v1294 = vpack.c.b16 %v1230, %v1226
      %v1295 = vpack.c.b16 %v1231, %v1227
      %1360 = vmatprep.subr.bf16.mxu0 %v1233
      %1361 = vmatpush1.bf16.msra.mxu0 %v1232
      %1362 = vmatprep.subr.bf16.mxu0 %v1237
      %1363 = vmatpush1.bf16.msra.mxu0 %v1236
      %1364 = vmatprep.subr.bf16.mxu0 %v1241
      %1365 = vmatpush1.bf16.msra.mxu0 %v1240
      %1366 = vmatprep.subr.bf16.mxu0 %v1245
      %1367 = vmatpush1.bf16.msra.mxu0 %v1244
      %1368 = vmatprep.subr.bf16.mxu0 %v1249
      %1369 = vmatpush1.bf16.msra.mxu0 %v1248
      %1370 = vmatprep.subr.bf16.mxu0 %v1253
      %1371 = vmatpush1.bf16.msra.mxu0 %v1252
      %1372 = vmatprep.subr.bf16.mxu0 %v1257
      %1373 = vmatpush1.bf16.msra.mxu0 %v1256
      %1374 = vmatprep.subr.bf16.mxu0 %v1261
      %1375 = vmatpush1.bf16.msra.mxu0 %v1260
      %1376 = vmatprep.subr.bf16.mxu0 %v1265
      %1377 = vmatpush1.bf16.msra.mxu0 %v1264
      %1378 = vmatprep.subr.bf16.mxu0 %v1269
      %1379 = vmatpush1.bf16.msra.mxu0 %v1268
      %1380 = vmatprep.subr.bf16.mxu0 %v1273
      %1381 = vmatpush1.bf16.msra.mxu0 %v1272
      %1382 = vmatprep.subr.bf16.mxu0 %v1277
      %1383 = vmatpush1.bf16.msra.mxu0 %v1276
      %1384 = vmatprep.subr.bf16.mxu0 %v1281
      %1385 = vmatpush1.bf16.msra.mxu0 %v1280
      %1386 = vmatprep.subr.bf16.mxu0 %v1285
      %1387 = vmatpush1.bf16.msra.mxu0 %v1284
      %1388 = vmatprep.subr.bf16.mxu0 %v1289
      %1389 = vmatpush1.bf16.msra.mxu0 %v1288
      %1390 = vmatprep.subr.bf16.mxu0 %v1293
      %1391 = vmatpush1.bf16.msra.mxu0 %v1292
      %1392 = vmatprep.mubr.bf16.mxu0 %v968
      %1393 = vmatmul.mubr.bf16.gmra.mrb[0].mxu0 %v967
      %v1394 = vpop.f32.mrb[0].mxu0
      %v1395 = vadd.f32 0.0, %v1394
      %v1396 = vpop.f32.mrb[0].mxu0
      %v1397 = vadd.f32 0.0, %v1396
      %v1398 = vpop.f32.mrb[0].mxu0
      %v1399 = vadd.f32 0.0, %v1398
      %v1400 = vpop.f32.mrb[0].mxu0
      %v1401 = vadd.f32 0.0, %v1400
      %1402 = vmatprep.mubr.bf16.mxu0 %v970
      %1403 = vmatmul.mubr.bf16.gmra.mrb[0].mxu0 %v969
      %v1404 = vpop.f32.mrb[0].mxu0
      %v1405 = vadd.f32 0.0, %v1404
      %v1406 = vpop.f32.mrb[0].mxu0
      %v1407 = vadd.f32 0.0, %v1406
      %v1408 = vpop.f32.mrb[0].mxu0
      %v1409 = vadd.f32 0.0, %v1408
      %v1410 = vpop.f32.mrb[0].mxu0
      %v1411 = vadd.f32 0.0, %v1410
      %1412 = vmatprep.mubr.bf16.mxu0 %v972
      %1413 = vmatmul.mubr.bf16.gmra.mrb[0].mxu0 %v971
      %v1414 = vpop.f32.mrb[0].mxu0
      %v1415 = vadd.f32 0.0, %v1414
      %v1416 = vpop.f32.mrb[0].mxu0
      %v1417 = vadd.f32 0.0, %v1416
      %v1418 = vpop.f32.mrb[0].mxu0
      %v1419 = vadd.f32 0.0, %v1418
      %v1420 = vpop.f32.mrb[0].mxu0
      %v1421 = vadd.f32 0.0, %v1420
      %1422 = vmatprep.mubr.bf16.mxu0 %v974
      %1423 = vmatmul.mubr.bf16.gmra.mrb[0].mxu0 %v973
      %v1424 = vpop.f32.mrb[0].mxu0
      %v1425 = vadd.f32 0.0, %v1424
      %v1426 = vpop.f32.mrb[0].mxu0
      %v1427 = vadd.f32 0.0, %v1426
      %v1428 = vpop.f32.mrb[0].mxu0
      %v1429 = vadd.f32 0.0, %v1428
      %v1430 = vpop.f32.mrb[0].mxu0
      %v1431 = vadd.f32 0.0, %v1430
      %1432 = vdwg.mxu0
      %1433 = vmatprep.subr.bf16.mxu0 %v1235
      %1434 = vmatpush1.bf16.msra.mxu0 %v1234
      %1435 = vmatprep.subr.bf16.mxu0 %v1239
      %1436 = vmatpush1.bf16.msra.mxu0 %v1238
      %1437 = vmatprep.subr.bf16.mxu0 %v1243
      %1438 = vmatpush1.bf16.msra.mxu0 %v1242
      %1439 = vmatprep.subr.bf16.mxu0 %v1247
      %1440 = vmatpush1.bf16.msra.mxu0 %v1246
      %1441 = vmatprep.subr.bf16.mxu0 %v1251
      %1442 = vmatpush1.bf16.msra.mxu0 %v1250
      %1443 = vmatprep.subr.bf16.mxu0 %v1255
      %1444 = vmatpush1.bf16.msra.mxu0 %v1254
      %1445 = vmatprep.subr.bf16.mxu0 %v1259
      %1446 = vmatpush1.bf16.msra.mxu0 %v1258
      %1447 = vmatprep.subr.bf16.mxu0 %v1263
      %1448 = vmatpush1.bf16.msra.mxu0 %v1262
      %1449 = vmatprep.subr.bf16.mxu0 %v1267
      %1450 = vmatpush1.bf16.msra.mxu0 %v1266
      %1451 = vmatprep.subr.bf16.mxu0 %v1271
      %1452 = vmatpush1.bf16.msra.mxu0 %v1270
      %1453 = vmatprep.subr.bf16.mxu0 %v1275
      %1454 = vmatpush1.bf16.msra.mxu0 %v1274
      %1455 = vmatprep.subr.bf16.mxu0 %v1279
      %1456 = vmatpush1.bf16.msra.mxu0 %v1278
      %1457 = vmatprep.subr.bf16.mxu0 %v1283
      %1458 = vmatpush1.bf16.msra.mxu0 %v1282
      %1459 = vmatprep.subr.bf16.mxu0 %v1287
      %1460 = vmatpush1.bf16.msra.mxu0 %v1286
      %1461 = vmatprep.subr.bf16.mxu0 %v1291
      %1462 = vmatpush1.bf16.msra.mxu0 %v1290
      %1463 = vmatprep.subr.bf16.mxu0 %v1295
      %1464 = vmatpush1.bf16.msra.mxu0 %v1294
      %1465 = vmatprep.mubr.bf16.mxu0 %v968
      %1466 = vmatmul.mubr.bf16.gmra.mrb[0].mxu0 %v967
      %v1467 = vpop.f32.mrb[0].mxu0
      %v1468 = vadd.f32 0.0, %v1467
      %v1469 = vpop.f32.mrb[0].mxu0
      %v1470 = vadd.f32 0.0, %v1469
      %v1471 = vpop.f32.mrb[0].mxu0
      %v1472 = vadd.f32 0.0, %v1471
      %v1473 = vpop.f32.mrb[0].mxu0
      %v1474 = vadd.f32 0.0, %v1473
      %1475 = vmatprep.mubr.bf16.mxu0 %v970
      %1476 = vmatmul.mubr.bf16.gmra.mrb[0].mxu0 %v969
      %v1477 = vpop.f32.mrb[0].mxu0
      %v1478 = vadd.f32 0.0, %v1477
      %v1479 = vpop.f32.mrb[0].mxu0
      %v1480 = vadd.f32 0.0, %v1479
      %v1481 = vpop.f32.mrb[0].mxu0
      %v1482 = vadd.f32 0.0, %v1481
      %v1483 = vpop.f32.mrb[0].mxu0
      %v1484 = vadd.f32 0.0, %v1483
      %1485 = vmatprep.mubr.bf16.mxu0 %v972
      %1486 = vmatmul.mubr.bf16.gmra.mrb[0].mxu0 %v971
      %v1487 = vpop.f32.mrb[0].mxu0
      %v1488 = vadd.f32 0.0, %v1487
      %v1489 = vpop.f32.mrb[0].mxu0
      %v1490 = vadd.f32 0.0, %v1489
      %v1491 = vpop.f32.mrb[0].mxu0
      %v1492 = vadd.f32 0.0, %v1491
      %v1493 = vpop.f32.mrb[0].mxu0
      %v1494 = vadd.f32 0.0, %v1493
      %1495 = vmatprep.mubr.bf16.mxu0 %v974
      %1496 = vmatmul.mubr.bf16.gmra.mrb[0].mxu0 %v973
      %v1497 = vpop.f32.mrb[0].mxu0
      %v1498 = vadd.f32 0.0, %v1497
      %v1499 = vpop.f32.mrb[0].mxu0
      %v1500 = vadd.f32 0.0, %v1499
      %v1501 = vpop.f32.mrb[0].mxu0
      %v1502 = vadd.f32 0.0, %v1501
      %v1503 = vpop.f32.mrb[0].mxu0
      %v1504 = vadd.f32 0.0, %v1503
      %1505 = vdwg.mxu0
      %v1570 = vunpack.c.l.b16 %v789
      %v1571 = vunpack.c.h.b16 %v789
      %v1572 = vunpack.c.l.b16 %v790
      %v1573 = vunpack.c.h.b16 %v790
      %v1574 = vunpack.c.l.b16 %v791
      %v1575 = vunpack.c.h.b16 %v791
      %v1576 = vunpack.c.l.b16 %v792
      %v1577 = vunpack.c.h.b16 %v792
      %v1578 = vunpack.c.l.b16 %v793
      %v1579 = vunpack.c.h.b16 %v793
      %v1580 = vunpack.c.l.b16 %v794
      %v1581 = vunpack.c.h.b16 %v794
      %v1582 = vunpack.c.l.b16 %v795
      %v1583 = vunpack.c.h.b16 %v795
      %v1584 = vunpack.c.l.b16 %v796
      %v1585 = vunpack.c.h.b16 %v796
      %v1586 = vunpack.c.l.b16 %v797
      %v1587 = vunpack.c.h.b16 %v797
      %v1588 = vunpack.c.l.b16 %v798
      %v1589 = vunpack.c.h.b16 %v798
      %v1590 = vunpack.c.l.b16 %v799
      %v1591 = vunpack.c.h.b16 %v799
      %v1592 = vunpack.c.l.b16 %v800
      %v1593 = vunpack.c.h.b16 %v800
      %v1594 = vunpack.c.l.b16 %v801
      %v1595 = vunpack.c.h.b16 %v801
      %v1596 = vunpack.c.l.b16 %v802
      %v1597 = vunpack.c.h.b16 %v802
      %v1598 = vunpack.c.l.b16 %v803
      %v1599 = vunpack.c.h.b16 %v803
      %v1600 = vunpack.c.l.b16 %v804
      %v1601 = vunpack.c.h.b16 %v804
      %v1602 = vunpack.c.l.b16 %v805
      %v1603 = vunpack.c.h.b16 %v805
      %v1604 = vunpack.c.l.b16 %v806
      %v1605 = vunpack.c.h.b16 %v806
      %v1606 = vunpack.c.l.b16 %v807
      %v1607 = vunpack.c.h.b16 %v807
      %v1608 = vunpack.c.l.b16 %v808
      %v1609 = vunpack.c.h.b16 %v808
      %v1610 = vunpack.c.l.b16 %v809
      %v1611 = vunpack.c.h.b16 %v809
      %v1612 = vunpack.c.l.b16 %v810
      %v1613 = vunpack.c.h.b16 %v810
      %v1614 = vunpack.c.l.b16 %v811
      %v1615 = vunpack.c.h.b16 %v811
      %v1616 = vunpack.c.l.b16 %v812
      %v1617 = vunpack.c.h.b16 %v812
      %v1618 = vunpack.c.l.b16 %v813
      %v1619 = vunpack.c.h.b16 %v813
      %v1620 = vunpack.c.l.b16 %v814
      %v1621 = vunpack.c.h.b16 %v814
      %v1622 = vunpack.c.l.b16 %v815
      %v1623 = vunpack.c.h.b16 %v815
      %v1624 = vunpack.c.l.b16 %v816
      %v1625 = vunpack.c.h.b16 %v816
      %v1626 = vunpack.c.l.b16 %v817
      %v1627 = vunpack.c.h.b16 %v817
      %v1628 = vunpack.c.l.b16 %v818
      %v1629 = vunpack.c.h.b16 %v818
      %v1630 = vunpack.c.l.b16 %v819
      %v1631 = vunpack.c.h.b16 %v819
      %v1632 = vunpack.c.l.b16 %v820
      %v1633 = vunpack.c.h.b16 %v820
      %v1634 = vunpack.c.l.b16 %v821
      %v1635 = vunpack.c.h.b16 %v821
      %v1636 = vunpack.c.l.b16 %v822
      %v1637 = vunpack.c.h.b16 %v822
      %v1638 = vunpack.c.l.b16 %v823
      %v1639 = vunpack.c.h.b16 %v823
      %v1640 = vunpack.c.l.b16 %v824
      %v1641 = vunpack.c.h.b16 %v824
      %v1642 = vunpack.c.l.b16 %v825
      %v1643 = vunpack.c.h.b16 %v825
      %v1644 = vunpack.c.l.b16 %v826
      %v1645 = vunpack.c.h.b16 %v826
      %v1646 = vunpack.c.l.b16 %v827
      %v1647 = vunpack.c.h.b16 %v827
      %v1648 = vunpack.c.l.b16 %v828
      %v1649 = vunpack.c.h.b16 %v828
      %v1650 = vunpack.c.l.b16 %v829
      %v1651 = vunpack.c.h.b16 %v829
      %v1652 = vunpack.c.l.b16 %v830
      %v1653 = vunpack.c.h.b16 %v830
      %v1654 = vunpack.c.l.b16 %v831
      %v1655 = vunpack.c.h.b16 %v831
      %v1656 = vunpack.c.l.b16 %v832
      %v1657 = vunpack.c.h.b16 %v832
      %v1658 = vunpack.c.l.b16 %v833
      %v1659 = vunpack.c.h.b16 %v833
      %v1660 = vunpack.c.l.b16 %v834
      %v1661 = vunpack.c.h.b16 %v834
      %v1662 = vunpack.c.l.b16 %v835
      %v1663 = vunpack.c.h.b16 %v835
      %v1664 = vunpack.c.l.b16 %v836
      %v1665 = vunpack.c.h.b16 %v836
      %v1666 = vunpack.c.l.b16 %v837
      %v1667 = vunpack.c.h.b16 %v837
      %v1668 = vunpack.c.l.b16 %v838
      %v1669 = vunpack.c.h.b16 %v838
      %v1670 = vunpack.c.l.b16 %v839
      %v1671 = vunpack.c.h.b16 %v839
      %v1672 = vunpack.c.l.b16 %v840
      %v1673 = vunpack.c.h.b16 %v840
      %v1674 = vunpack.c.l.b16 %v841
      %v1675 = vunpack.c.h.b16 %v841
      %v1676 = vunpack.c.l.b16 %v842
      %v1677 = vunpack.c.h.b16 %v842
      %v1678 = vunpack.c.l.b16 %v843
      %v1679 = vunpack.c.h.b16 %v843
      %v1680 = vunpack.c.l.b16 %v844
      %v1681 = vunpack.c.h.b16 %v844
      %v1682 = vunpack.c.l.b16 %v845
      %v1683 = vunpack.c.h.b16 %v845
      %v1684 = vunpack.c.l.b16 %v846
      %v1685 = vunpack.c.h.b16 %v846
      %v1686 = vunpack.c.l.b16 %v847
      %v1687 = vunpack.c.h.b16 %v847
      %v1688 = vunpack.c.l.b16 %v848
      %v1689 = vunpack.c.h.b16 %v848
      %v1690 = vunpack.c.l.b16 %v849
      %v1691 = vunpack.c.h.b16 %v849
      %v1692 = vunpack.c.l.b16 %v850
      %v1693 = vunpack.c.h.b16 %v850
      %v1694 = vunpack.c.l.b16 %v851
      %v1695 = vunpack.c.h.b16 %v851
      %v1696 = vunpack.c.l.b16 %v852
      %v1697 = vunpack.c.h.b16 %v852
      %v1698 = vpack.c.b16 %v1574, %v1570
      %v1699 = vpack.c.b16 %v1575, %v1571
      %v1700 = vpack.c.b16 %v1576, %v1572
      %v1701 = vpack.c.b16 %v1577, %v1573
      %v1702 = vpack.c.b16 %v1582, %v1578
      %v1703 = vpack.c.b16 %v1583, %v1579
      %v1704 = vpack.c.b16 %v1584, %v1580
      %v1705 = vpack.c.b16 %v1585, %v1581
      %v1706 = vpack.c.b16 %v1590, %v1586
      %v1707 = vpack.c.b16 %v1591, %v1587
      %v1708 = vpack.c.b16 %v1592, %v1588
      %v1709 = vpack.c.b16 %v1593, %v1589
      %v1710 = vpack.c.b16 %v1598, %v1594
      %v1711 = vpack.c.b16 %v1599, %v1595
      %v1712 = vpack.c.b16 %v1600, %v1596
      %v1713 = vpack.c.b16 %v1601, %v1597
      %v1714 = vpack.c.b16 %v1606, %v1602
      %v1715 = vpack.c.b16 %v1607, %v1603
      %v1716 = vpack.c.b16 %v1608, %v1604
      %v1717 = vpack.c.b16 %v1609, %v1605
      %v1718 = vpack.c.b16 %v1614, %v1610
      %v1719 = vpack.c.b16 %v1615, %v1611
      %v1720 = vpack.c.b16 %v1616, %v1612
      %v1721 = vpack.c.b16 %v1617, %v1613
      %v1722 = vpack.c.b16 %v1622, %v1618
      %v1723 = vpack.c.b16 %v1623, %v1619
      %v1724 = vpack.c.b16 %v1624, %v1620
      %v1725 = vpack.c.b16 %v1625, %v1621
      %v1726 = vpack.c.b16 %v1630, %v1626
      %v1727 = vpack.c.b16 %v1631, %v1627
      %v1728 = vpack.c.b16 %v1632, %v1628
      %v1729 = vpack.c.b16 %v1633, %v1629
      %v1730 = vpack.c.b16 %v1638, %v1634
      %v1731 = vpack.c.b16 %v1639, %v1635
      %v1732 = vpack.c.b16 %v1640, %v1636
      %v1733 = vpack.c.b16 %v1641, %v1637
      %v1734 = vpack.c.b16 %v1646, %v1642
      %v1735 = vpack.c.b16 %v1647, %v1643
      %v1736 = vpack.c.b16 %v1648, %v1644
      %v1737 = vpack.c.b16 %v1649, %v1645
      %v1738 = vpack.c.b16 %v1654, %v1650
      %v1739 = vpack.c.b16 %v1655, %v1651
      %v1740 = vpack.c.b16 %v1656, %v1652
      %v1741 = vpack.c.b16 %v1657, %v1653
      %v1742 = vpack.c.b16 %v1662, %v1658
      %v1743 = vpack.c.b16 %v1663, %v1659
      %v1744 = vpack.c.b16 %v1664, %v1660
      %v1745 = vpack.c.b16 %v1665, %v1661
      %v1746 = vpack.c.b16 %v1670, %v1666
      %v1747 = vpack.c.b16 %v1671, %v1667
      %v1748 = vpack.c.b16 %v1672, %v1668
      %v1749 = vpack.c.b16 %v1673, %v1669
      %v1750 = vpack.c.b16 %v1678, %v1674
      %v1751 = vpack.c.b16 %v1679, %v1675
      %v1752 = vpack.c.b16 %v1680, %v1676
      %v1753 = vpack.c.b16 %v1681, %v1677
      %v1754 = vpack.c.b16 %v1686, %v1682
      %v1755 = vpack.c.b16 %v1687, %v1683
      %v1756 = vpack.c.b16 %v1688, %v1684
      %v1757 = vpack.c.b16 %v1689, %v1685
      %v1758 = vpack.c.b16 %v1694, %v1690
      %v1759 = vpack.c.b16 %v1695, %v1691
      %v1760 = vpack.c.b16 %v1696, %v1692
      %v1761 = vpack.c.b16 %v1697, %v1693
      %1826 = vmatprep.subr.bf16.mxu0 %v1699
      %1827 = vmatpush1.bf16.msra.mxu0 %v1698
      %1828 = vmatprep.subr.bf16.mxu0 %v1703
      %1829 = vmatpush1.bf16.msra.mxu0 %v1702
      %1830 = vmatprep.subr.bf16.mxu0 %v1707
      %1831 = vmatpush1.bf16.msra.mxu0 %v1706
      %1832 = vmatprep.subr.bf16.mxu0 %v1711
      %1833 = vmatpush1.bf16.msra.mxu0 %v1710
      %1834 = vmatprep.subr.bf16.mxu0 %v1715
      %1835 = vmatpush1.bf16.msra.mxu0 %v1714
      %1836 = vmatprep.subr.bf16.mxu0 %v1719
      %1837 = vmatpush1.bf16.msra.mxu0 %v1718
      %1838 = vmatprep.subr.bf16.mxu0 %v1723
      %1839 = vmatpush1.bf16.msra.mxu0 %v1722
      %1840 = vmatprep.subr.bf16.mxu0 %v1727
      %1841 = vmatpush1.bf16.msra.mxu0 %v1726
      %1842 = vmatprep.subr.bf16.mxu0 %v1731
      %1843 = vmatpush1.bf16.msra.mxu0 %v1730
      %1844 = vmatprep.subr.bf16.mxu0 %v1735
      %1845 = vmatpush1.bf16.msra.mxu0 %v1734
      %1846 = vmatprep.subr.bf16.mxu0 %v1739
      %1847 = vmatpush1.bf16.msra.mxu0 %v1738
      %1848 = vmatprep.subr.bf16.mxu0 %v1743
      %1849 = vmatpush1.bf16.msra.mxu0 %v1742
      %1850 = vmatprep.subr.bf16.mxu0 %v1747
      %1851 = vmatpush1.bf16.msra.mxu0 %v1746
      %1852 = vmatprep.subr.bf16.mxu0 %v1751
      %1853 = vmatpush1.bf16.msra.mxu0 %v1750
      %1854 = vmatprep.subr.bf16.mxu0 %v1755
      %1855 = vmatpush1.bf16.msra.mxu0 %v1754
      %1856 = vmatprep.subr.bf16.mxu0 %v1759
      %1857 = vmatpush1.bf16.msra.mxu0 %v1758
      %1858 = vmatprep.mubr.bf16.mxu0 %v782
      %1859 = vmatmul.mubr.bf16.gmra.mrb[0].mxu0 %v781
      %v1860 = vpop.f32.mrb[0].mxu0
      %v1861 = vadd.f32 %v1395, %v1860
      %v1862 = vpop.f32.mrb[0].mxu0
      %v1863 = vadd.f32 %v1397, %v1862
      %v1864 = vpop.f32.mrb[0].mxu0
      %v1865 = vadd.f32 %v1399, %v1864
      %v1866 = vpop.f32.mrb[0].mxu0
      %v1867 = vadd.f32 %v1401, %v1866
      %1868 = vmatprep.mubr.bf16.mxu0 %v784
      %1869 = vmatmul.mubr.bf16.gmra.mrb[0].mxu0 %v783
      %v1870 = vpop.f32.mrb[0].mxu0
      %v1871 = vadd.f32 %v1405, %v1870
      %v1872 = vpop.f32.mrb[0].mxu0
      %v1873 = vadd.f32 %v1407, %v1872
      %v1874 = vpop.f32.mrb[0].mxu0
      %v1875 = vadd.f32 %v1409, %v1874
      %v1876 = vpop.f32.mrb[0].mxu0
      %v1877 = vadd.f32 %v1411, %v1876
      %1878 = vmatprep.mubr.bf16.mxu0 %v786
      %1879 = vmatmul.mubr.bf16.gmra.mrb[0].mxu0 %v785
      %v1880 = vpop.f32.mrb[0].mxu0
      %v1881 = vadd.f32 %v1415, %v1880
      %v1882 = vpop.f32.mrb[0].mxu0
      %v1883 = vadd.f32 %v1417, %v1882
      %v1884 = vpop.f32.mrb[0].mxu0
      %v1885 = vadd.f32 %v1419, %v1884
      %v1886 = vpop.f32.mrb[0].mxu0
      %v1887 = vadd.f32 %v1421, %v1886
      %1888 = vmatprep.mubr.bf16.mxu0 %v788
      %1889 = vmatmul.mubr.bf16.gmra.mrb[0].mxu0 %v787
      %v1890 = vpop.f32.mrb[0].mxu0
      %v1891 = vadd.f32 %v1425, %v1890
      %v1892 = vpop.f32.mrb[0].mxu0
      %v1893 = vadd.f32 %v1427, %v1892
      %v1894 = vpop.f32.mrb[0].mxu0
      %v1895 = vadd.f32 %v1429, %v1894
      %v1896 = vpop.f32.mrb[0].mxu0
      %v1897 = vadd.f32 %v1431, %v1896
      %1898 = vdwg.mxu0
      %1899 = vmatprep.subr.bf16.mxu0 %v1701
      %1900 = vmatpush1.bf16.msra.mxu0 %v1700
      %1901 = vmatprep.subr.bf16.mxu0 %v1705
      %1902 = vmatpush1.bf16.msra.mxu0 %v1704
      %1903 = vmatprep.subr.bf16.mxu0 %v1709
      %1904 = vmatpush1.bf16.msra.mxu0 %v1708
      %1905 = vmatprep.subr.bf16.mxu0 %v1713
      %1906 = vmatpush1.bf16.msra.mxu0 %v1712
      %1907 = vmatprep.subr.bf16.mxu0 %v1717
      %1908 = vmatpush1.bf16.msra.mxu0 %v1716
      %1909 = vmatprep.subr.bf16.mxu0 %v1721
      %1910 = vmatpush1.bf16.msra.mxu0 %v1720
      %1911 = vmatprep.subr.bf16.mxu0 %v1725
      %1912 = vmatpush1.bf16.msra.mxu0 %v1724
      %1913 = vmatprep.subr.bf16.mxu0 %v1729
      %1914 = vmatpush1.bf16.msra.mxu0 %v1728
      %1915 = vmatprep.subr.bf16.mxu0 %v1733
      %1916 = vmatpush1.bf16.msra.mxu0 %v1732
      %1917 = vmatprep.subr.bf16.mxu0 %v1737
      %1918 = vmatpush1.bf16.msra.mxu0 %v1736
      %1919 = vmatprep.subr.bf16.mxu0 %v1741
      %1920 = vmatpush1.bf16.msra.mxu0 %v1740
      %1921 = vmatprep.subr.bf16.mxu0 %v1745
      %1922 = vmatpush1.bf16.msra.mxu0 %v1744
      %1923 = vmatprep.subr.bf16.mxu0 %v1749
      %1924 = vmatpush1.bf16.msra.mxu0 %v1748
      %1925 = vmatprep.subr.bf16.mxu0 %v1753
      %1926 = vmatpush1.bf16.msra.mxu0 %v1752
      %1927 = vmatprep.subr.bf16.mxu0 %v1757
      %1928 = vmatpush1.bf16.msra.mxu0 %v1756
      %1929 = vmatprep.subr.bf16.mxu0 %v1761
      %1930 = vmatpush1.bf16.msra.mxu0 %v1760
      %1931 = vmatprep.mubr.bf16.mxu0 %v782
      %1932 = vmatmul.mubr.bf16.gmra.mrb[0].mxu0 %v781
      %v1933 = vpop.f32.mrb[0].mxu0
      %v1934 = vadd.f32 %v1468, %v1933
      %v1935 = vpop.f32.mrb[0].mxu0
      %v1936 = vadd.f32 %v1470, %v1935
      %v1937 = vpop.f32.mrb[0].mxu0
      %v1938 = vadd.f32 %v1472, %v1937
      %v1939 = vpop.f32.mrb[0].mxu0
      %v1940 = vadd.f32 %v1474, %v1939
      %1941 = vmatprep.mubr.bf16.mxu0 %v784
      %1942 = vmatmul.mubr.bf16.gmra.mrb[0].mxu0 %v783
      %v1943 = vpop.f32.mrb[0].mxu0
      %v1944 = vadd.f32 %v1478, %v1943
      %v1945 = vpop.f32.mrb[0].mxu0
      %v1946 = vadd.f32 %v1480, %v1945
      %v1947 = vpop.f32.mrb[0].mxu0
      %v1948 = vadd.f32 %v1482, %v1947
      %v1949 = vpop.f32.mrb[0].mxu0
      %v1950 = vadd.f32 %v1484, %v1949
      %1951 = vmatprep.mubr.bf16.mxu0 %v786
      %1952 = vmatmul.mubr.bf16.gmra.mrb[0].mxu0 %v785
      %v1953 = vpop.f32.mrb[0].mxu0
      %v1954 = vadd.f32 %v1488, %v1953
      %v1955 = vpop.f32.mrb[0].mxu0
      %v1956 = vadd.f32 %v1490, %v1955
      %v1957 = vpop.f32.mrb[0].mxu0
      %v1958 = vadd.f32 %v1492, %v1957
      %v1959 = vpop.f32.mrb[0].mxu0
      %v1960 = vadd.f32 %v1494, %v1959
      %1961 = vmatprep.mubr.bf16.mxu0 %v788
      %1962 = vmatmul.mubr.bf16.gmra.mrb[0].mxu0 %v787
      %v1963 = vpop.f32.mrb[0].mxu0
      %v1964 = vadd.f32 %v1498, %v1963
      %v1965 = vpop.f32.mrb[0].mxu0
      %v1966 = vadd.f32 %v1500, %v1965
      %v1967 = vpop.f32.mrb[0].mxu0
      %v1968 = vadd.f32 %v1502, %v1967
      %v1969 = vpop.f32.mrb[0].mxu0
      %v1970 = vadd.f32 %v1504, %v1969
      %1971 = vdwg.mxu0
      %s1972 = scalar_lea.vmem %s1, 64
      %v1973 = vld [vmem:[%s1972] sm:$0xf]
      %v1974 = vld [vmem:[%s1972 + $0x4] sm:$0xf]
      %v1975 = vld [vmem:[%s1972 + $0x8] sm:$0xf]
      %v1976 = vld [vmem:[%s1972 + $0xc] sm:$0xf]
      %v1977 = vld [vmem:[%s1972 + $0x10] sm:$0xf]
      %v1978 = vld [vmem:[%s1972 + $0x14] sm:$0xf]
      %v1979 = vld [vmem:[%s1972 + $0x18] sm:$0xf]
      %v1980 = vld [vmem:[%s1972 + $0x1c] sm:$0xf]
      %v1989 = vunpack.c.l.b16 %v1973
      %v1990 = vunpack.c.l.b16 %v1974
      %v1991 = vunpack.c.l.b16 %v1975
      %v1992 = vunpack.c.l.b16 %v1976
      %v1993 = vunpack.c.l.b16 %v1977
      %v1994 = vunpack.c.l.b16 %v1978
      %v1995 = vunpack.c.l.b16 %v1979
      %v1996 = vunpack.c.l.b16 %v1980
      %v1997 = vpack.c.b16 %v1990, %v1989
      %v1998 = vpack.c.b16 %v1992, %v1991
      %v1999 = vpack.c.b16 %v1994, %v1993
      %v2000 = vpack.c.b16 %v1996, %v1995
      %v2002 = vsel %vm688, %v1997, 0
      %v2005 = vsel %vm688, %v1998, 0
      %v2008 = vsel %vm688, %v1999, 0
      %v2011 = vsel %vm688, %v2000, 0
      %2013 = vmatprep.subr.bf16.mxu0 %v671
      %2014 = vmatpush1.bf16.msra.mxu0 %v670
      %2015 = vmatprep.subr.bf16.mxu0 %v673
      %2016 = vmatpush1.bf16.msra.mxu0 %v672
      %2017 = vmatprep.subr.bf16.mxu0 %v675
      %2018 = vmatpush1.bf16.msra.mxu0 %v674
      %2019 = vmatprep.subr.bf16.mxu0 %v677
      %2020 = vmatpush1.bf16.msra.mxu0 %v676
      %2021 = vmatprep.subr.bf16.mxu0 %v706
      %2022 = vmatpush1.bf16.msra.mxu0 %v703
      %2023 = vmatprep.subr.bf16.mxu0 0
      %2024 = vmatpush1.bf16.msra.mxu0 0
      %2025 = vmatprep.subr.bf16.mxu0 0
      %2026 = vmatpush1.bf16.msra.mxu0 0
      %2027 = vmatprep.subr.bf16.mxu0 0
      %2028 = vmatpush1.bf16.msra.mxu0 0
      %2029 = vmatprep.subr.bf16.mxu0 0
      %2030 = vmatpush1.bf16.msra.mxu0 0
      %2031 = vmatprep.subr.bf16.mxu0 0
      %2032 = vmatpush1.bf16.msra.mxu0 0
      %2033 = vmatprep.subr.bf16.mxu0 0
      %2034 = vmatpush1.bf16.msra.mxu0 0
      %2035 = vmatprep.subr.bf16.mxu0 0
      %2036 = vmatpush1.bf16.msra.mxu0 0
      %2037 = vmatprep.subr.bf16.mxu0 0
      %2038 = vmatpush1.bf16.msra.mxu0 0
      %2039 = vmatprep.subr.bf16.mxu0 0
      %2040 = vmatpush1.bf16.msra.mxu0 0
      %2041 = vmatprep.subr.bf16.mxu0 0
      %2042 = vmatpush1.bf16.msra.mxu0 0
      %2043 = vmatprep.subr.bf16.mxu0 0
      %2044 = vmatpush1.bf16.msra.mxu0 0
      %2045 = vmatprep.mubr.bf16.mxu0 0
      %2046 = vmatmul.mubr.bf16.gmra.mrb[0].mxu0 %v2002
      %v2047 = vpop.f32.mrb[0].mxu0
      %v2048 = vadd.f32 0.0, %v2047
      %v2049 = vpop.f32.mrb[0].mxu0
      %v2050 = vadd.f32 0.0, %v2049
      %v2051 = vpop.f32.mrb[0].mxu0
      %v2052 = vadd.f32 0.0, %v2051
      %v2053 = vpop.f32.mrb[0].mxu0
      %v2054 = vadd.f32 0.0, %v2053
      %2055 = vmatprep.mubr.bf16.mxu0 0
      %2056 = vmatmul.mubr.bf16.gmra.mrb[0].mxu0 %v2005
      %v2057 = vpop.f32.mrb[0].mxu0
      %v2058 = vadd.f32 0.0, %v2057
      %v2059 = vpop.f32.mrb[0].mxu0
      %v2060 = vadd.f32 0.0, %v2059
      %v2061 = vpop.f32.mrb[0].mxu0
      %v2062 = vadd.f32 0.0, %v2061
      %v2063 = vpop.f32.mrb[0].mxu0
      %v2064 = vadd.f32 0.0, %v2063
      %2065 = vmatprep.mubr.bf16.mxu0 0
      %2066 = vmatmul.mubr.bf16.gmra.mrb[0].mxu0 %v2008
      %v2067 = vpop.f32.mrb[0].mxu0
      %v2068 = vadd.f32 0.0, %v2067
      %v2069 = vpop.f32.mrb[0].mxu0
      %v2070 = vadd.f32 0.0, %v2069
      %v2071 = vpop.f32.mrb[0].mxu0
      %v2072 = vadd.f32 0.0, %v2071
      %v2073 = vpop.f32.mrb[0].mxu0
      %v2074 = vadd.f32 0.0, %v2073
      %2075 = vmatprep.mubr.bf16.mxu0 0
      %2076 = vmatmul.mubr.bf16.gmra.mrb[0].mxu0 %v2011
      %v2077 = vpop.f32.mrb[0].mxu0
      %v2078 = vadd.f32 0.0, %v2077
      %v2079 = vpop.f32.mrb[0].mxu0
      %v2080 = vadd.f32 0.0, %v2079
      %v2081 = vpop.f32.mrb[0].mxu0
      %v2082 = vadd.f32 0.0, %v2081
      %v2083 = vpop.f32.mrb[0].mxu0
      %v2084 = vadd.f32 0.0, %v2083
      %2085 = vdwg.mxu0
      %v2086 = vpack.c.bf16 %v2052, %v2048
      %v2087 = vpack.c.bf16 %v2054, %v2050
      %v2088 = vpack.c.bf16 %v2062, %v2058
      %v2089 = vpack.c.bf16 %v2064, %v2060
      %v2090 = vpack.c.bf16 %v2072, %v2068
      %v2091 = vpack.c.bf16 %v2074, %v2070
      %v2092 = vpack.c.bf16 %v2082, %v2078
      %v2093 = vpack.c.bf16 %v2084, %v2080
      %s2094 = scalar_lea.vmem %s2, 1024
      %v2095 = vld [vmem:[%s2094] sm:$0xff]
      %v2096 = vld [vmem:[%s2094 + $0x8] sm:$0xff]
      %v2097 = vld [vmem:[%s2094 + $0x10] sm:$0xff]
      %v2098 = vld [vmem:[%s2094 + $0x18] sm:$0xff]
      %v2099 = vld [vmem:[%s2094 + $0x20] sm:$0xff]
      %v2100 = vld [vmem:[%s2094 + $0x28] sm:$0xff]
      %v2101 = vld [vmem:[%s2094 + $0x30] sm:$0xff]
      %v2102 = vld [vmem:[%s2094 + $0x38] sm:$0xff]
      %v2103 = vld [vmem:[%s2094 + $0x40] sm:$0xff]
      %v2104 = vld [vmem:[%s2094 + $0x48] sm:$0xff]
      %v2105 = vld [vmem:[%s2094 + $0x50] sm:$0xff]
      %v2106 = vld [vmem:[%s2094 + $0x58] sm:$0xff]
      %v2107 = vld [vmem:[%s2094 + $0x60] sm:$0xff]
      %v2108 = vld [vmem:[%s2094 + $0x68] sm:$0xff]
      %v2109 = vld [vmem:[%s2094 + $0x70] sm:$0xff]
      %v2110 = vld [vmem:[%s2094 + $0x78] sm:$0xff]
      %v2111 = vld [vmem:[%s2094 + $0x80] sm:$0xff]
      %v2112 = vld [vmem:[%s2094 + $0x88] sm:$0xff]
      %v2113 = vld [vmem:[%s2094 + $0x90] sm:$0xff]
      %v2114 = vld [vmem:[%s2094 + $0x98] sm:$0xff]
      %v2115 = vld [vmem:[%s2094 + $0xa0] sm:$0xff]
      %v2116 = vld [vmem:[%s2094 + $0xa8] sm:$0xff]
      %v2117 = vld [vmem:[%s2094 + $0xb0] sm:$0xff]
      %v2118 = vld [vmem:[%s2094 + $0xb8] sm:$0xff]
      %v2119 = vld [vmem:[%s2094 + $0xc0] sm:$0xff]
      %v2120 = vld [vmem:[%s2094 + $0xc8] sm:$0xff]
      %v2121 = vld [vmem:[%s2094 + $0xd0] sm:$0xff]
      %v2122 = vld [vmem:[%s2094 + $0xd8] sm:$0xff]
      %v2123 = vld [vmem:[%s2094 + $0xe0] sm:$0xff]
      %v2124 = vld [vmem:[%s2094 + $0xe8] sm:$0xff]
      %v2125 = vld [vmem:[%s2094 + $0xf0] sm:$0xff]
      %v2126 = vld [vmem:[%s2094 + $0xf8] sm:$0xff]
      %v2127 = vld [vmem:[%s2094 + $0x100] sm:$0xff]
      %v2128 = vld [vmem:[%s2094 + $0x108] sm:$0xff]
      %v2129 = vld [vmem:[%s2094 + $0x110] sm:$0xff]
      %v2130 = vld [vmem:[%s2094 + $0x118] sm:$0xff]
      %v2131 = vld [vmem:[%s2094 + $0x120] sm:$0xff]
      %v2132 = vld [vmem:[%s2094 + $0x128] sm:$0xff]
      %v2133 = vld [vmem:[%s2094 + $0x130] sm:$0xff]
      %v2134 = vld [vmem:[%s2094 + $0x138] sm:$0xff]
      %v2135 = vld [vmem:[%s2094 + $0x140] sm:$0xff]
      %v2136 = vld [vmem:[%s2094 + $0x148] sm:$0xff]
      %v2137 = vld [vmem:[%s2094 + $0x150] sm:$0xff]
      %v2138 = vld [vmem:[%s2094 + $0x158] sm:$0xff]
      %v2139 = vld [vmem:[%s2094 + $0x160] sm:$0xff]
      %v2140 = vld [vmem:[%s2094 + $0x168] sm:$0xff]
      %v2141 = vld [vmem:[%s2094 + $0x170] sm:$0xff]
      %v2142 = vld [vmem:[%s2094 + $0x178] sm:$0xff]
      %v2143 = vld [vmem:[%s2094 + $0x180] sm:$0xff]
      %v2144 = vld [vmem:[%s2094 + $0x188] sm:$0xff]
      %v2145 = vld [vmem:[%s2094 + $0x190] sm:$0xff]
      %v2146 = vld [vmem:[%s2094 + $0x198] sm:$0xff]
      %v2147 = vld [vmem:[%s2094 + $0x1a0] sm:$0xff]
      %v2148 = vld [vmem:[%s2094 + $0x1a8] sm:$0xff]
      %v2149 = vld [vmem:[%s2094 + $0x1b0] sm:$0xff]
      %v2150 = vld [vmem:[%s2094 + $0x1b8] sm:$0xff]
      %v2151 = vld [vmem:[%s2094 + $0x1c0] sm:$0xff]
      %v2152 = vld [vmem:[%s2094 + $0x1c8] sm:$0xff]
      %v2153 = vld [vmem:[%s2094 + $0x1d0] sm:$0xff]
      %v2154 = vld [vmem:[%s2094 + $0x1d8] sm:$0xff]
      %v2155 = vld [vmem:[%s2094 + $0x1e0] sm:$0xff]
      %v2156 = vld [vmem:[%s2094 + $0x1e8] sm:$0xff]
      %v2157 = vld [vmem:[%s2094 + $0x1f0] sm:$0xff]
      %v2158 = vld [vmem:[%s2094 + $0x1f8] sm:$0xff]
      %v2223 = vunpack.c.l.b16 %v2095
      %v2224 = vunpack.c.h.b16 %v2095
      %v2225 = vunpack.c.l.b16 %v2096
      %v2226 = vunpack.c.h.b16 %v2096
      %v2227 = vunpack.c.l.b16 %v2097
      %v2228 = vunpack.c.h.b16 %v2097
      %v2229 = vunpack.c.l.b16 %v2098
      %v2230 = vunpack.c.h.b16 %v2098
      %v2231 = vunpack.c.l.b16 %v2099
      %v2232 = vunpack.c.h.b16 %v2099
      %v2233 = vunpack.c.l.b16 %v2100
      %v2234 = vunpack.c.h.b16 %v2100
      %v2235 = vunpack.c.l.b16 %v2101
      %v2236 = vunpack.c.h.b16 %v2101
      %v2237 = vunpack.c.l.b16 %v2102
      %v2238 = vunpack.c.h.b16 %v2102
      %v2239 = vunpack.c.l.b16 %v2103
      %v2240 = vunpack.c.h.b16 %v2103
      %v2241 = vunpack.c.l.b16 %v2104
      %v2242 = vunpack.c.h.b16 %v2104
      %v2243 = vunpack.c.l.b16 %v2105
      %v2244 = vunpack.c.h.b16 %v2105
      %v2245 = vunpack.c.l.b16 %v2106
      %v2246 = vunpack.c.h.b16 %v2106
      %v2247 = vunpack.c.l.b16 %v2107
      %v2248 = vunpack.c.h.b16 %v2107
      %v2249 = vunpack.c.l.b16 %v2108
      %v2250 = vunpack.c.h.b16 %v2108
      %v2251 = vunpack.c.l.b16 %v2109
      %v2252 = vunpack.c.h.b16 %v2109
      %v2253 = vunpack.c.l.b16 %v2110
      %v2254 = vunpack.c.h.b16 %v2110
      %v2255 = vunpack.c.l.b16 %v2111
      %v2256 = vunpack.c.h.b16 %v2111
      %v2257 = vunpack.c.l.b16 %v2112
      %v2258 = vunpack.c.h.b16 %v2112
      %v2259 = vunpack.c.l.b16 %v2113
      %v2260 = vunpack.c.h.b16 %v2113
      %v2261 = vunpack.c.l.b16 %v2114
      %v2262 = vunpack.c.h.b16 %v2114
      %v2263 = vunpack.c.l.b16 %v2115
      %v2264 = vunpack.c.h.b16 %v2115
      %v2265 = vunpack.c.l.b16 %v2116
      %v2266 = vunpack.c.h.b16 %v2116
      %v2267 = vunpack.c.l.b16 %v2117
      %v2268 = vunpack.c.h.b16 %v2117
      %v2269 = vunpack.c.l.b16 %v2118
      %v2270 = vunpack.c.h.b16 %v2118
      %v2271 = vunpack.c.l.b16 %v2119
      %v2272 = vunpack.c.h.b16 %v2119
      %v2273 = vunpack.c.l.b16 %v2120
      %v2274 = vunpack.c.h.b16 %v2120
      %v2275 = vunpack.c.l.b16 %v2121
      %v2276 = vunpack.c.h.b16 %v2121
      %v2277 = vunpack.c.l.b16 %v2122
      %v2278 = vunpack.c.h.b16 %v2122
      %v2279 = vunpack.c.l.b16 %v2123
      %v2280 = vunpack.c.h.b16 %v2123
      %v2281 = vunpack.c.l.b16 %v2124
      %v2282 = vunpack.c.h.b16 %v2124
      %v2283 = vunpack.c.l.b16 %v2125
      %v2284 = vunpack.c.h.b16 %v2125
      %v2285 = vunpack.c.l.b16 %v2126
      %v2286 = vunpack.c.h.b16 %v2126
      %v2287 = vunpack.c.l.b16 %v2127
      %v2288 = vunpack.c.h.b16 %v2127
      %v2289 = vunpack.c.l.b16 %v2128
      %v2290 = vunpack.c.h.b16 %v2128
      %v2291 = vunpack.c.l.b16 %v2129
      %v2292 = vunpack.c.h.b16 %v2129
      %v2293 = vunpack.c.l.b16 %v2130
      %v2294 = vunpack.c.h.b16 %v2130
      %v2295 = vunpack.c.l.b16 %v2131
      %v2296 = vunpack.c.h.b16 %v2131
      %v2297 = vunpack.c.l.b16 %v2132
      %v2298 = vunpack.c.h.b16 %v2132
      %v2299 = vunpack.c.l.b16 %v2133
      %v2300 = vunpack.c.h.b16 %v2133
      %v2301 = vunpack.c.l.b16 %v2134
      %v2302 = vunpack.c.h.b16 %v2134
      %v2303 = vunpack.c.l.b16 %v2135
      %v2304 = vunpack.c.h.b16 %v2135
      %v2305 = vunpack.c.l.b16 %v2136
      %v2306 = vunpack.c.h.b16 %v2136
      %v2307 = vunpack.c.l.b16 %v2137
      %v2308 = vunpack.c.h.b16 %v2137
      %v2309 = vunpack.c.l.b16 %v2138
      %v2310 = vunpack.c.h.b16 %v2138
      %v2311 = vunpack.c.l.b16 %v2139
      %v2312 = vunpack.c.h.b16 %v2139
      %v2313 = vunpack.c.l.b16 %v2140
      %v2314 = vunpack.c.h.b16 %v2140
      %v2315 = vunpack.c.l.b16 %v2141
      %v2316 = vunpack.c.h.b16 %v2141
      %v2317 = vunpack.c.l.b16 %v2142
      %v2318 = vunpack.c.h.b16 %v2142
      %v2319 = vunpack.c.l.b16 %v2143
      %v2320 = vunpack.c.h.b16 %v2143
      %v2321 = vunpack.c.l.b16 %v2144
      %v2322 = vunpack.c.h.b16 %v2144
      %v2323 = vunpack.c.l.b16 %v2145
      %v2324 = vunpack.c.h.b16 %v2145
      %v2325 = vunpack.c.l.b16 %v2146
      %v2326 = vunpack.c.h.b16 %v2146
      %v2327 = vunpack.c.l.b16 %v2147
      %v2328 = vunpack.c.h.b16 %v2147
      %v2329 = vunpack.c.l.b16 %v2148
      %v2330 = vunpack.c.h.b16 %v2148
      %v2331 = vunpack.c.l.b16 %v2149
      %v2332 = vunpack.c.h.b16 %v2149
      %v2333 = vunpack.c.l.b16 %v2150
      %v2334 = vunpack.c.h.b16 %v2150
      %v2335 = vunpack.c.l.b16 %v2151
      %v2336 = vunpack.c.h.b16 %v2151
      %v2337 = vunpack.c.l.b16 %v2152
      %v2338 = vunpack.c.h.b16 %v2152
      %v2339 = vunpack.c.l.b16 %v2153
      %v2340 = vunpack.c.h.b16 %v2153
      %v2341 = vunpack.c.l.b16 %v2154
      %v2342 = vunpack.c.h.b16 %v2154
      %v2343 = vunpack.c.l.b16 %v2155
      %v2344 = vunpack.c.h.b16 %v2155
      %v2345 = vunpack.c.l.b16 %v2156
      %v2346 = vunpack.c.h.b16 %v2156
      %v2347 = vunpack.c.l.b16 %v2157
      %v2348 = vunpack.c.h.b16 %v2157
      %v2349 = vunpack.c.l.b16 %v2158
      %v2350 = vunpack.c.h.b16 %v2158
      %v2351 = vpack.c.b16 %v2227, %v2223
      %v2352 = vpack.c.b16 %v2228, %v2224
      %v2353 = vpack.c.b16 %v2229, %v2225
      %v2354 = vpack.c.b16 %v2230, %v2226
      %v2355 = vpack.c.b16 %v2235, %v2231
      %v2356 = vpack.c.b16 %v2236, %v2232
      %v2357 = vpack.c.b16 %v2237, %v2233
      %v2358 = vpack.c.b16 %v2238, %v2234
      %v2359 = vpack.c.b16 %v2243, %v2239
      %v2360 = vpack.c.b16 %v2244, %v2240
      %v2361 = vpack.c.b16 %v2245, %v2241
      %v2362 = vpack.c.b16 %v2246, %v2242
      %v2363 = vpack.c.b16 %v2251, %v2247
      %v2364 = vpack.c.b16 %v2252, %v2248
      %v2365 = vpack.c.b16 %v2253, %v2249
      %v2366 = vpack.c.b16 %v2254, %v2250
      %v2367 = vpack.c.b16 %v2259, %v2255
      %v2368 = vpack.c.b16 %v2260, %v2256
      %v2369 = vpack.c.b16 %v2261, %v2257
      %v2370 = vpack.c.b16 %v2262, %v2258
      %v2371 = vpack.c.b16 %v2267, %v2263
      %v2372 = vpack.c.b16 %v2268, %v2264
      %v2373 = vpack.c.b16 %v2269, %v2265
      %v2374 = vpack.c.b16 %v2270, %v2266
      %v2375 = vpack.c.b16 %v2275, %v2271
      %v2376 = vpack.c.b16 %v2276, %v2272
      %v2377 = vpack.c.b16 %v2277, %v2273
      %v2378 = vpack.c.b16 %v2278, %v2274
      %v2379 = vpack.c.b16 %v2283, %v2279
      %v2380 = vpack.c.b16 %v2284, %v2280
      %v2381 = vpack.c.b16 %v2285, %v2281
      %v2382 = vpack.c.b16 %v2286, %v2282
      %v2383 = vpack.c.b16 %v2291, %v2287
      %v2384 = vpack.c.b16 %v2292, %v2288
      %v2385 = vpack.c.b16 %v2293, %v2289
      %v2386 = vpack.c.b16 %v2294, %v2290
      %v2387 = vpack.c.b16 %v2299, %v2295
      %v2388 = vpack.c.b16 %v2300, %v2296
      %v2389 = vpack.c.b16 %v2301, %v2297
      %v2390 = vpack.c.b16 %v2302, %v2298
      %v2391 = vpack.c.b16 %v2307, %v2303
      %v2392 = vpack.c.b16 %v2308, %v2304
      %v2393 = vpack.c.b16 %v2309, %v2305
      %v2394 = vpack.c.b16 %v2310, %v2306
      %v2395 = vpack.c.b16 %v2315, %v2311
      %v2396 = vpack.c.b16 %v2316, %v2312
      %v2397 = vpack.c.b16 %v2317, %v2313
      %v2398 = vpack.c.b16 %v2318, %v2314
      %v2399 = vpack.c.b16 %v2323, %v2319
      %v2400 = vpack.c.b16 %v2324, %v2320
      %v2401 = vpack.c.b16 %v2325, %v2321
      %v2402 = vpack.c.b16 %v2326, %v2322
      %v2403 = vpack.c.b16 %v2331, %v2327
      %v2404 = vpack.c.b16 %v2332, %v2328
      %v2405 = vpack.c.b16 %v2333, %v2329
      %v2406 = vpack.c.b16 %v2334, %v2330
      %v2407 = vpack.c.b16 %v2339, %v2335
      %v2408 = vpack.c.b16 %v2340, %v2336
      %v2409 = vpack.c.b16 %v2341, %v2337
      %v2410 = vpack.c.b16 %v2342, %v2338
      %v2411 = vpack.c.b16 %v2347, %v2343
      %v2412 = vpack.c.b16 %v2348, %v2344
      %v2413 = vpack.c.b16 %v2349, %v2345
      %v2414 = vpack.c.b16 %v2350, %v2346
      %2479 = vmatprep.subr.bf16.mxu0 %v2352
      %2480 = vmatpush1.bf16.msra.mxu0 %v2351
      %2481 = vmatprep.subr.bf16.mxu0 %v2356
      %2482 = vmatpush1.bf16.msra.mxu0 %v2355
      %2483 = vmatprep.subr.bf16.mxu0 %v2360
      %2484 = vmatpush1.bf16.msra.mxu0 %v2359
      %2485 = vmatprep.subr.bf16.mxu0 %v2364
      %2486 = vmatpush1.bf16.msra.mxu0 %v2363
      %2487 = vmatprep.subr.bf16.mxu0 %v2368
      %2488 = vmatpush1.bf16.msra.mxu0 %v2367
      %2489 = vmatprep.subr.bf16.mxu0 %v2372
      %2490 = vmatpush1.bf16.msra.mxu0 %v2371
      %2491 = vmatprep.subr.bf16.mxu0 %v2376
      %2492 = vmatpush1.bf16.msra.mxu0 %v2375
      %2493 = vmatprep.subr.bf16.mxu0 %v2380
      %2494 = vmatpush1.bf16.msra.mxu0 %v2379
      %2495 = vmatprep.subr.bf16.mxu0 %v2384
      %2496 = vmatpush1.bf16.msra.mxu0 %v2383
      %2497 = vmatprep.subr.bf16.mxu0 %v2388
      %2498 = vmatpush1.bf16.msra.mxu0 %v2387
      %2499 = vmatprep.subr.bf16.mxu0 %v2392
      %2500 = vmatpush1.bf16.msra.mxu0 %v2391
      %2501 = vmatprep.subr.bf16.mxu0 %v2396
      %2502 = vmatpush1.bf16.msra.mxu0 %v2395
      %2503 = vmatprep.subr.bf16.mxu0 %v2400
      %2504 = vmatpush1.bf16.msra.mxu0 %v2399
      %2505 = vmatprep.subr.bf16.mxu0 %v2404
      %2506 = vmatpush1.bf16.msra.mxu0 %v2403
      %2507 = vmatprep.subr.bf16.mxu0 %v2408
      %2508 = vmatpush1.bf16.msra.mxu0 %v2407
      %2509 = vmatprep.subr.bf16.mxu0 %v2412
      %2510 = vmatpush1.bf16.msra.mxu0 %v2411
      %2511 = vmatprep.mubr.bf16.mxu0 %v2087
      %2512 = vmatmul.mubr.bf16.gmra.mrb[0].mxu0 %v2086
      %v2513 = vpop.f32.mrb[0].mxu0
      %v2514 = vadd.f32 0.0, %v2513
      %v2515 = vpop.f32.mrb[0].mxu0
      %v2516 = vadd.f32 0.0, %v2515
      %v2517 = vpop.f32.mrb[0].mxu0
      %v2518 = vadd.f32 0.0, %v2517
      %v2519 = vpop.f32.mrb[0].mxu0
      %v2520 = vadd.f32 0.0, %v2519
      %2521 = vmatprep.mubr.bf16.mxu0 %v2089
      %2522 = vmatmul.mubr.bf16.gmra.mrb[0].mxu0 %v2088
      %v2523 = vpop.f32.mrb[0].mxu0
      %v2524 = vadd.f32 0.0, %v2523
      %v2525 = vpop.f32.mrb[0].mxu0
      %v2526 = vadd.f32 0.0, %v2525
      %v2527 = vpop.f32.mrb[0].mxu0
      %v2528 = vadd.f32 0.0, %v2527
      %v2529 = vpop.f32.mrb[0].mxu0
      %v2530 = vadd.f32 0.0, %v2529
      %2531 = vmatprep.mubr.bf16.mxu0 %v2091
      %2532 = vmatmul.mubr.bf16.gmra.mrb[0].mxu0 %v2090
      %v2533 = vpop.f32.mrb[0].mxu0
      %v2534 = vadd.f32 0.0, %v2533
      %v2535 = vpop.f32.mrb[0].mxu0
      %v2536 = vadd.f32 0.0, %v2535
      %v2537 = vpop.f32.mrb[0].mxu0
      %v2538 = vadd.f32 0.0, %v2537
      %v2539 = vpop.f32.mrb[0].mxu0
      %v2540 = vadd.f32 0.0, %v2539
      %2541 = vmatprep.mubr.bf16.mxu0 %v2093
      %2542 = vmatmul.mubr.bf16.gmra.mrb[0].mxu0 %v2092
      %v2543 = vpop.f32.mrb[0].mxu0
      %v2544 = vadd.f32 0.0, %v2543
      %v2545 = vpop.f32.mrb[0].mxu0
      %v2546 = vadd.f32 0.0, %v2545
      %v2547 = vpop.f32.mrb[0].mxu0
      %v2548 = vadd.f32 0.0, %v2547
      %v2549 = vpop.f32.mrb[0].mxu0
      %v2550 = vadd.f32 0.0, %v2549
      %2551 = vdwg.mxu0
      %2552 = vmatprep.subr.bf16.mxu0 %v2354
      %2553 = vmatpush1.bf16.msra.mxu0 %v2353
      %2554 = vmatprep.subr.bf16.mxu0 %v2358
      %2555 = vmatpush1.bf16.msra.mxu0 %v2357
      %2556 = vmatprep.subr.bf16.mxu0 %v2362
      %2557 = vmatpush1.bf16.msra.mxu0 %v2361
      %2558 = vmatprep.subr.bf16.mxu0 %v2366
      %2559 = vmatpush1.bf16.msra.mxu0 %v2365
      %2560 = vmatprep.subr.bf16.mxu0 %v2370
      %2561 = vmatpush1.bf16.msra.mxu0 %v2369
      %2562 = vmatprep.subr.bf16.mxu0 %v2374
      %2563 = vmatpush1.bf16.msra.mxu0 %v2373
      %2564 = vmatprep.subr.bf16.mxu0 %v2378
      %2565 = vmatpush1.bf16.msra.mxu0 %v2377
      %2566 = vmatprep.subr.bf16.mxu0 %v2382
      %2567 = vmatpush1.bf16.msra.mxu0 %v2381
      %2568 = vmatprep.subr.bf16.mxu0 %v2386
      %2569 = vmatpush1.bf16.msra.mxu0 %v2385
      %2570 = vmatprep.subr.bf16.mxu0 %v2390
      %2571 = vmatpush1.bf16.msra.mxu0 %v2389
      %2572 = vmatprep.subr.bf16.mxu0 %v2394
      %2573 = vmatpush1.bf16.msra.mxu0 %v2393
      %2574 = vmatprep.subr.bf16.mxu0 %v2398
      %2575 = vmatpush1.bf16.msra.mxu0 %v2397
      %2576 = vmatprep.subr.bf16.mxu0 %v2402
      %2577 = vmatpush1.bf16.msra.mxu0 %v2401
      %2578 = vmatprep.subr.bf16.mxu0 %v2406
      %2579 = vmatpush1.bf16.msra.mxu0 %v2405
      %2580 = vmatprep.subr.bf16.mxu0 %v2410
      %2581 = vmatpush1.bf16.msra.mxu0 %v2409
      %2582 = vmatprep.subr.bf16.mxu0 %v2414
      %2583 = vmatpush1.bf16.msra.mxu0 %v2413
      %2584 = vmatprep.mubr.bf16.mxu0 %v2087
      %2585 = vmatmul.mubr.bf16.gmra.mrb[0].mxu0 %v2086
      %v2586 = vpop.f32.mrb[0].mxu0
      %v2587 = vadd.f32 0.0, %v2586
      %v2588 = vpop.f32.mrb[0].mxu0
      %v2589 = vadd.f32 0.0, %v2588
      %v2590 = vpop.f32.mrb[0].mxu0
      %v2591 = vadd.f32 0.0, %v2590
      %v2592 = vpop.f32.mrb[0].mxu0
      %v2593 = vadd.f32 0.0, %v2592
      %2594 = vmatprep.mubr.bf16.mxu0 %v2089
      %2595 = vmatmul.mubr.bf16.gmra.mrb[0].mxu0 %v2088
      %v2596 = vpop.f32.mrb[0].mxu0
      %v2597 = vadd.f32 0.0, %v2596
      %v2598 = vpop.f32.mrb[0].mxu0
      %v2599 = vadd.f32 0.0, %v2598
      %v2600 = vpop.f32.mrb[0].mxu0
      %v2601 = vadd.f32 0.0, %v2600
      %v2602 = vpop.f32.mrb[0].mxu0
      %v2603 = vadd.f32 0.0, %v2602
      %2604 = vmatprep.mubr.bf16.mxu0 %v2091
      %2605 = vmatmul.mubr.bf16.gmra.mrb[0].mxu0 %v2090
      %v2606 = vpop.f32.mrb[0].mxu0
      %v2607 = vadd.f32 0.0, %v2606
      %v2608 = vpop.f32.mrb[0].mxu0
      %v2609 = vadd.f32 0.0, %v2608
      %v2610 = vpop.f32.mrb[0].mxu0
      %v2611 = vadd.f32 0.0, %v2610
      %v2612 = vpop.f32.mrb[0].mxu0
      %v2613 = vadd.f32 0.0, %v2612
      %2614 = vmatprep.mubr.bf16.mxu0 %v2093
      %2615 = vmatmul.mubr.bf16.gmra.mrb[0].mxu0 %v2092
      %v2616 = vpop.f32.mrb[0].mxu0
      %v2617 = vadd.f32 0.0, %v2616
      %v2618 = vpop.f32.mrb[0].mxu0
      %v2619 = vadd.f32 0.0, %v2618
      %v2620 = vpop.f32.mrb[0].mxu0
      %v2621 = vadd.f32 0.0, %v2620
      %v2622 = vpop.f32.mrb[0].mxu0
      %v2623 = vadd.f32 0.0, %v2622
      %2624 = vdwg.mxu0
      %v2625 = vadd.f32 %v1861, %v2514
      %v2626 = vadd.f32 %v1863, %v2516
      %v2627 = vadd.f32 %v1934, %v2587
      %v2628 = vadd.f32 %v1936, %v2589
      %v2629 = vadd.f32 %v1865, %v2518
      %v2630 = vadd.f32 %v1867, %v2520
      %v2631 = vadd.f32 %v1938, %v2591
      %v2632 = vadd.f32 %v1940, %v2593
      %v2633 = vadd.f32 %v1871, %v2524
      %v2634 = vadd.f32 %v1873, %v2526
      %v2635 = vadd.f32 %v1944, %v2597
      %v2636 = vadd.f32 %v1946, %v2599
      %v2637 = vadd.f32 %v1875, %v2528
      %v2638 = vadd.f32 %v1877, %v2530
      %v2639 = vadd.f32 %v1948, %v2601
      %v2640 = vadd.f32 %v1950, %v2603
      %v2641 = vadd.f32 %v1881, %v2534
      %v2642 = vadd.f32 %v1883, %v2536
      %v2643 = vadd.f32 %v1954, %v2607
      %v2644 = vadd.f32 %v1956, %v2609
      %v2645 = vadd.f32 %v1885, %v2538
      %v2646 = vadd.f32 %v1887, %v2540
      %v2647 = vadd.f32 %v1958, %v2611
      %v2648 = vadd.f32 %v1960, %v2613
      %v2649 = vadd.f32 %v1891, %v2544
      %v2650 = vadd.f32 %v1893, %v2546
      %v2651 = vadd.f32 %v1964, %v2617
      %v2652 = vadd.f32 %v1966, %v2619
      %v2653 = vadd.f32 %v1895, %v2548
      %v2654 = vadd.f32 %v1897, %v2550
      %v2655 = vadd.f32 %v1968, %v2621
      %v2656 = vadd.f32 %v1970, %v2623
      %s2657 = scalar_lea.vmem %s1, 96
      %v2658 = vld [vmem:[%s2657] sm:$0xf]
      %v2659 = vld [vmem:[%s2657 + $0x4] sm:$0xf]
      %v2660 = vld [vmem:[%s2657 + $0x8] sm:$0xf]
      %v2661 = vld [vmem:[%s2657 + $0xc] sm:$0xf]
      %v2662 = vld [vmem:[%s2657 + $0x10] sm:$0xf]
      %v2663 = vld [vmem:[%s2657 + $0x14] sm:$0xf]
      %v2664 = vld [vmem:[%s2657 + $0x18] sm:$0xf]
      %v2665 = vld [vmem:[%s2657 + $0x1c] sm:$0xf]
      %v2674 = vunpack.c.l.b16 %v2658
      %v2675 = vunpack.c.l.b16 %v2659
      %v2676 = vunpack.c.l.b16 %v2660
      %v2677 = vunpack.c.l.b16 %v2661
      %v2678 = vunpack.c.l.b16 %v2662
      %v2679 = vunpack.c.l.b16 %v2663
      %v2680 = vunpack.c.l.b16 %v2664
      %v2681 = vunpack.c.l.b16 %v2665
      %v2682 = vpack.c.b16 %v2675, %v2674
      %v2683 = vpack.c.b16 %v2677, %v2676
      %v2684 = vpack.c.b16 %v2679, %v2678
      %v2685 = vpack.c.b16 %v2681, %v2680
      %v2687 = vsel %vm688, %v2682, 0
      %v2690 = vsel %vm688, %v2683, 0
      %v2693 = vsel %vm688, %v2684, 0
      %v2696 = vsel %vm688, %v2685, 0
      %2698 = vmatprep.subr.bf16.mxu0 %v671
      %2699 = vmatpush1.bf16.msra.mxu0 %v670
      %2700 = vmatprep.subr.bf16.mxu0 %v673
      %2701 = vmatpush1.bf16.msra.mxu0 %v672
      %2702 = vmatprep.subr.bf16.mxu0 %v675
      %2703 = vmatpush1.bf16.msra.mxu0 %v674
      %2704 = vmatprep.subr.bf16.mxu0 %v677
      %2705 = vmatpush1.bf16.msra.mxu0 %v676
      %2706 = vmatprep.subr.bf16.mxu0 %v706
      %2707 = vmatpush1.bf16.msra.mxu0 %v703
      %2708 = vmatprep.subr.bf16.mxu0 0
      %2709 = vmatpush1.bf16.msra.mxu0 0
      %2710 = vmatprep.subr.bf16.mxu0 0
      %2711 = vmatpush1.bf16.msra.mxu0 0
      %2712 = vmatprep.subr.bf16.mxu0 0
      %2713 = vmatpush1.bf16.msra.mxu0 0
      %2714 = vmatprep.subr.bf16.mxu0 0
      %2715 = vmatpush1.bf16.msra.mxu0 0
      %2716 = vmatprep.subr.bf16.mxu0 0
      %2717 = vmatpush1.bf16.msra.mxu0 0
      %2718 = vmatprep.subr.bf16.mxu0 0
      %2719 = vmatpush1.bf16.msra.mxu0 0
      %2720 = vmatprep.subr.bf16.mxu0 0
      %2721 = vmatpush1.bf16.msra.mxu0 0
      %2722 = vmatprep.subr.bf16.mxu0 0
      %2723 = vmatpush1.bf16.msra.mxu0 0
      %2724 = vmatprep.subr.bf16.mxu0 0
      %2725 = vmatpush1.bf16.msra.mxu0 0
      %2726 = vmatprep.subr.bf16.mxu0 0
      %2727 = vmatpush1.bf16.msra.mxu0 0
      %2728 = vmatprep.subr.bf16.mxu0 0
      %2729 = vmatpush1.bf16.msra.mxu0 0
      %2730 = vmatprep.mubr.bf16.mxu0 0
      %2731 = vmatmul.mubr.bf16.gmra.mrb[0].mxu0 %v2687
      %v2732 = vpop.f32.mrb[0].mxu0
      %v2733 = vadd.f32 0.0, %v2732
      %v2734 = vpop.f32.mrb[0].mxu0
      %v2735 = vadd.f32 0.0, %v2734
      %v2736 = vpop.f32.mrb[0].mxu0
      %v2737 = vadd.f32 0.0, %v2736
      %v2738 = vpop.f32.mrb[0].mxu0
      %v2739 = vadd.f32 0.0, %v2738
      %2740 = vmatprep.mubr.bf16.mxu0 0
      %2741 = vmatmul.mubr.bf16.gmra.mrb[0].mxu0 %v2690
      %v2742 = vpop.f32.mrb[0].mxu0
      %v2743 = vadd.f32 0.0, %v2742
      %v2744 = vpop.f32.mrb[0].mxu0
      %v2745 = vadd.f32 0.0, %v2744
      %v2746 = vpop.f32.mrb[0].mxu0
      %v2747 = vadd.f32 0.0, %v2746
      %v2748 = vpop.f32.mrb[0].mxu0
      %v2749 = vadd.f32 0.0, %v2748
      %2750 = vmatprep.mubr.bf16.mxu0 0
      %2751 = vmatmul.mubr.bf16.gmra.mrb[0].mxu0 %v2693
      %v2752 = vpop.f32.mrb[0].mxu0
      %v2753 = vadd.f32 0.0, %v2752
      %v2754 = vpop.f32.mrb[0].mxu0
      %v2755 = vadd.f32 0.0, %v2754
      %v2756 = vpop.f32.mrb[0].mxu0
      %v2757 = vadd.f32 0.0, %v2756
      %v2758 = vpop.f32.mrb[0].mxu0
      %v2759 = vadd.f32 0.0, %v2758
      %2760 = vmatprep.mubr.bf16.mxu0 0
      %2761 = vmatmul.mubr.bf16.gmra.mrb[0].mxu0 %v2696
      %v2762 = vpop.f32.mrb[0].mxu0
      %v2763 = vadd.f32 0.0, %v2762
      %v2764 = vpop.f32.mrb[0].mxu0
      %v2765 = vadd.f32 0.0, %v2764
      %v2766 = vpop.f32.mrb[0].mxu0
      %v2767 = vadd.f32 0.0, %v2766
      %v2768 = vpop.f32.mrb[0].mxu0
      %v2769 = vadd.f32 0.0, %v2768
      %2770 = vdwg.mxu0
      %v2771 = vpack.c.bf16 %v2737, %v2733
      %v2772 = vpack.c.bf16 %v2739, %v2735
      %v2773 = vpack.c.bf16 %v2747, %v2743
      %v2774 = vpack.c.bf16 %v2749, %v2745
      %v2775 = vpack.c.bf16 %v2757, %v2753
      %v2776 = vpack.c.bf16 %v2759, %v2755
      %v2777 = vpack.c.bf16 %v2767, %v2763
      %v2778 = vpack.c.bf16 %v2769, %v2765
      %s2779 = scalar_lea.vmem %s2, 1536
      %v2780 = vld [vmem:[%s2779] sm:$0xff]
      %v2781 = vld [vmem:[%s2779 + $0x8] sm:$0xff]
      %v2782 = vld [vmem:[%s2779 + $0x10] sm:$0xff]
      %v2783 = vld [vmem:[%s2779 + $0x18] sm:$0xff]
      %v2784 = vld [vmem:[%s2779 + $0x20] sm:$0xff]
      %v2785 = vld [vmem:[%s2779 + $0x28] sm:$0xff]
      %v2786 = vld [vmem:[%s2779 + $0x30] sm:$0xff]
      %v2787 = vld [vmem:[%s2779 + $0x38] sm:$0xff]
      %v2788 = vld [vmem:[%s2779 + $0x40] sm:$0xff]
      %v2789 = vld [vmem:[%s2779 + $0x48] sm:$0xff]
      %v2790 = vld [vmem:[%s2779 + $0x50] sm:$0xff]
      %v2791 = vld [vmem:[%s2779 + $0x58] sm:$0xff]
      %v2792 = vld [vmem:[%s2779 + $0x60] sm:$0xff]
      %v2793 = vld [vmem:[%s2779 + $0x68] sm:$0xff]
      %v2794 = vld [vmem:[%s2779 + $0x70] sm:$0xff]
      %v2795 = vld [vmem:[%s2779 + $0x78] sm:$0xff]
      %v2796 = vld [vmem:[%s2779 + $0x80] sm:$0xff]
      %v2797 = vld [vmem:[%s2779 + $0x88] sm:$0xff]
      %v2798 = vld [vmem:[%s2779 + $0x90] sm:$0xff]
      %v2799 = vld [vmem:[%s2779 + $0x98] sm:$0xff]
      %v2800 = vld [vmem:[%s2779 + $0xa0] sm:$0xff]
      %v2801 = vld [vmem:[%s2779 + $0xa8] sm:$0xff]
      %v2802 = vld [vmem:[%s2779 + $0xb0] sm:$0xff]
      %v2803 = vld [vmem:[%s2779 + $0xb8] sm:$0xff]
      %v2804 = vld [vmem:[%s2779 + $0xc0] sm:$0xff]
      %v2805 = vld [vmem:[%s2779 + $0xc8] sm:$0xff]
      %v2806 = vld [vmem:[%s2779 + $0xd0] sm:$0xff]
      %v2807 = vld [vmem:[%s2779 + $0xd8] sm:$0xff]
      %v2808 = vld [vmem:[%s2779 + $0xe0] sm:$0xff]
      %v2809 = vld [vmem:[%s2779 + $0xe8] sm:$0xff]
      %v2810 = vld [vmem:[%s2779 + $0xf0] sm:$0xff]
      %v2811 = vld [vmem:[%s2779 + $0xf8] sm:$0xff]
      %v2812 = vld [vmem:[%s2779 + $0x100] sm:$0xff]
      %v2813 = vld [vmem:[%s2779 + $0x108] sm:$0xff]
      %v2814 = vld [vmem:[%s2779 + $0x110] sm:$0xff]
      %v2815 = vld [vmem:[%s2779 + $0x118] sm:$0xff]
      %v2816 = vld [vmem:[%s2779 + $0x120] sm:$0xff]
      %v2817 = vld [vmem:[%s2779 + $0x128] sm:$0xff]
      %v2818 = vld [vmem:[%s2779 + $0x130] sm:$0xff]
      %v2819 = vld [vmem:[%s2779 + $0x138] sm:$0xff]
      %v2820 = vld [vmem:[%s2779 + $0x140] sm:$0xff]
      %v2821 = vld [vmem:[%s2779 + $0x148] sm:$0xff]
      %v2822 = vld [vmem:[%s2779 + $0x150] sm:$0xff]
      %v2823 = vld [vmem:[%s2779 + $0x158] sm:$0xff]
      %v2824 = vld [vmem:[%s2779 + $0x160] sm:$0xff]
      %v2825 = vld [vmem:[%s2779 + $0x168] sm:$0xff]
      %v2826 = vld [vmem:[%s2779 + $0x170] sm:$0xff]
      %v2827 = vld [vmem:[%s2779 + $0x178] sm:$0xff]
      %v2828 = vld [vmem:[%s2779 + $0x180] sm:$0xff]
      %v2829 = vld [vmem:[%s2779 + $0x188] sm:$0xff]
      %v2830 = vld [vmem:[%s2779 + $0x190] sm:$0xff]
      %v2831 = vld [vmem:[%s2779 + $0x198] sm:$0xff]
      %v2832 = vld [vmem:[%s2779 + $0x1a0] sm:$0xff]
      %v2833 = vld [vmem:[%s2779 + $0x1a8] sm:$0xff]
      %v2834 = vld [vmem:[%s2779 + $0x1b0] sm:$0xff]
      %v2835 = vld [vmem:[%s2779 + $0x1b8] sm:$0xff]
      %v2836 = vld [vmem:[%s2779 + $0x1c0] sm:$0xff]
      %v2837 = vld [vmem:[%s2779 + $0x1c8] sm:$0xff]
      %v2838 = vld [vmem:[%s2779 + $0x1d0] sm:$0xff]
      %v2839 = vld [vmem:[%s2779 + $0x1d8] sm:$0xff]
      %v2840 = vld [vmem:[%s2779 + $0x1e0] sm:$0xff]
      %v2841 = vld [vmem:[%s2779 + $0x1e8] sm:$0xff]
      %v2842 = vld [vmem:[%s2779 + $0x1f0] sm:$0xff]
      %v2843 = vld [vmem:[%s2779 + $0x1f8] sm:$0xff]
      %v2908 = vunpack.c.l.b16 %v2780
      %v2909 = vunpack.c.h.b16 %v2780
      %v2910 = vunpack.c.l.b16 %v2781
      %v2911 = vunpack.c.h.b16 %v2781
      %v2912 = vunpack.c.l.b16 %v2782
      %v2913 = vunpack.c.h.b16 %v2782
      %v2914 = vunpack.c.l.b16 %v2783
      %v2915 = vunpack.c.h.b16 %v2783
      %v2916 = vunpack.c.l.b16 %v2784
      %v2917 = vunpack.c.h.b16 %v2784
      %v2918 = vunpack.c.l.b16 %v2785
      %v2919 = vunpack.c.h.b16 %v2785
      %v2920 = vunpack.c.l.b16 %v2786
      %v2921 = vunpack.c.h.b16 %v2786
      %v2922 = vunpack.c.l.b16 %v2787
      %v2923 = vunpack.c.h.b16 %v2787
      %v2924 = vunpack.c.l.b16 %v2788
      %v2925 = vunpack.c.h.b16 %v2788
      %v2926 = vunpack.c.l.b16 %v2789
      %v2927 = vunpack.c.h.b16 %v2789
      %v2928 = vunpack.c.l.b16 %v2790
      %v2929 = vunpack.c.h.b16 %v2790
      %v2930 = vunpack.c.l.b16 %v2791
      %v2931 = vunpack.c.h.b16 %v2791
      %v2932 = vunpack.c.l.b16 %v2792
      %v2933 = vunpack.c.h.b16 %v2792
      %v2934 = vunpack.c.l.b16 %v2793
      %v2935 = vunpack.c.h.b16 %v2793
      %v2936 = vunpack.c.l.b16 %v2794
      %v2937 = vunpack.c.h.b16 %v2794
      %v2938 = vunpack.c.l.b16 %v2795
      %v2939 = vunpack.c.h.b16 %v2795
      %v2940 = vunpack.c.l.b16 %v2796
      %v2941 = vunpack.c.h.b16 %v2796
      %v2942 = vunpack.c.l.b16 %v2797
      %v2943 = vunpack.c.h.b16 %v2797
      %v2944 = vunpack.c.l.b16 %v2798
      %v2945 = vunpack.c.h.b16 %v2798
      %v2946 = vunpack.c.l.b16 %v2799
      %v2947 = vunpack.c.h.b16 %v2799
      %v2948 = vunpack.c.l.b16 %v2800
      %v2949 = vunpack.c.h.b16 %v2800
      %v2950 = vunpack.c.l.b16 %v2801
      %v2951 = vunpack.c.h.b16 %v2801
      %v2952 = vunpack.c.l.b16 %v2802
      %v2953 = vunpack.c.h.b16 %v2802
      %v2954 = vunpack.c.l.b16 %v2803
      %v2955 = vunpack.c.h.b16 %v2803
      %v2956 = vunpack.c.l.b16 %v2804
      %v2957 = vunpack.c.h.b16 %v2804
      %v2958 = vunpack.c.l.b16 %v2805
      %v2959 = vunpack.c.h.b16 %v2805
      %v2960 = vunpack.c.l.b16 %v2806
      %v2961 = vunpack.c.h.b16 %v2806
      %v2962 = vunpack.c.l.b16 %v2807
      %v2963 = vunpack.c.h.b16 %v2807
      %v2964 = vunpack.c.l.b16 %v2808
      %v2965 = vunpack.c.h.b16 %v2808
      %v2966 = vunpack.c.l.b16 %v2809
      %v2967 = vunpack.c.h.b16 %v2809
      %v2968 = vunpack.c.l.b16 %v2810
      %v2969 = vunpack.c.h.b16 %v2810
      %v2970 = vunpack.c.l.b16 %v2811
      %v2971 = vunpack.c.h.b16 %v2811
      %v2972 = vunpack.c.l.b16 %v2812
      %v2973 = vunpack.c.h.b16 %v2812
      %v2974 = vunpack.c.l.b16 %v2813
      %v2975 = vunpack.c.h.b16 %v2813
      %v2976 = vunpack.c.l.b16 %v2814
      %v2977 = vunpack.c.h.b16 %v2814
      %v2978 = vunpack.c.l.b16 %v2815
      %v2979 = vunpack.c.h.b16 %v2815
      %v2980 = vunpack.c.l.b16 %v2816
      %v2981 = vunpack.c.h.b16 %v2816
      %v2982 = vunpack.c.l.b16 %v2817
      %v2983 = vunpack.c.h.b16 %v2817
      %v2984 = vunpack.c.l.b16 %v2818
      %v2985 = vunpack.c.h.b16 %v2818
      %v2986 = vunpack.c.l.b16 %v2819
      %v2987 = vunpack.c.h.b16 %v2819
      %v2988 = vunpack.c.l.b16 %v2820
      %v2989 = vunpack.c.h.b16 %v2820
      %v2990 = vunpack.c.l.b16 %v2821
      %v2991 = vunpack.c.h.b16 %v2821
      %v2992 = vunpack.c.l.b16 %v2822
      %v2993 = vunpack.c.h.b16 %v2822
      %v2994 = vunpack.c.l.b16 %v2823
      %v2995 = vunpack.c.h.b16 %v2823
      %v2996 = vunpack.c.l.b16 %v2824
      %v2997 = vunpack.c.h.b16 %v2824
      %v2998 = vunpack.c.l.b16 %v2825
      %v2999 = vunpack.c.h.b16 %v2825
      %v3000 = vunpack.c.l.b16 %v2826
      %v3001 = vunpack.c.h.b16 %v2826
      %v3002 = vunpack.c.l.b16 %v2827
      %v3003 = vunpack.c.h.b16 %v2827
      %v3004 = vunpack.c.l.b16 %v2828
      %v3005 = vunpack.c.h.b16 %v2828
      %v3006 = vunpack.c.l.b16 %v2829
      %v3007 = vunpack.c.h.b16 %v2829
      %v3008 = vunpack.c.l.b16 %v2830
      %v3009 = vunpack.c.h.b16 %v2830
      %v3010 = vunpack.c.l.b16 %v2831
      %v3011 = vunpack.c.h.b16 %v2831
      %v3012 = vunpack.c.l.b16 %v2832
      %v3013 = vunpack.c.h.b16 %v2832
      %v3014 = vunpack.c.l.b16 %v2833
      %v3015 = vunpack.c.h.b16 %v2833
      %v3016 = vunpack.c.l.b16 %v2834
      %v3017 = vunpack.c.h.b16 %v2834
      %v3018 = vunpack.c.l.b16 %v2835
      %v3019 = vunpack.c.h.b16 %v2835
      %v3020 = vunpack.c.l.b16 %v2836
      %v3021 = vunpack.c.h.b16 %v2836
      %v3022 = vunpack.c.l.b16 %v2837
      %v3023 = vunpack.c.h.b16 %v2837
      %v3024 = vunpack.c.l.b16 %v2838
      %v3025 = vunpack.c.h.b16 %v2838
      %v3026 = vunpack.c.l.b16 %v2839
      %v3027 = vunpack.c.h.b16 %v2839
      %v3028 = vunpack.c.l.b16 %v2840
      %v3029 = vunpack.c.h.b16 %v2840
      %v3030 = vunpack.c.l.b16 %v2841
      %v3031 = vunpack.c.h.b16 %v2841
      %v3032 = vunpack.c.l.b16 %v2842
      %v3033 = vunpack.c.h.b16 %v2842
      %v3034 = vunpack.c.l.b16 %v2843
      %v3035 = vunpack.c.h.b16 %v2843
      %v3036 = vpack.c.b16 %v2912, %v2908
      %v3037 = vpack.c.b16 %v2913, %v2909
      %v3038 = vpack.c.b16 %v2914, %v2910
      %v3039 = vpack.c.b16 %v2915, %v2911
      %v3040 = vpack.c.b16 %v2920, %v2916
      %v3041 = vpack.c.b16 %v2921, %v2917
      %v3042 = vpack.c.b16 %v2922, %v2918
      %v3043 = vpack.c.b16 %v2923, %v2919
      %v3044 = vpack.c.b16 %v2928, %v2924
      %v3045 = vpack.c.b16 %v2929, %v2925
      %v3046 = vpack.c.b16 %v2930, %v2926
      %v3047 = vpack.c.b16 %v2931, %v2927
      %v3048 = vpack.c.b16 %v2936, %v2932
      %v3049 = vpack.c.b16 %v2937, %v2933
      %v3050 = vpack.c.b16 %v2938, %v2934
      %v3051 = vpack.c.b16 %v2939, %v2935
      %v3052 = vpack.c.b16 %v2944, %v2940
      %v3053 = vpack.c.b16 %v2945, %v2941
      %v3054 = vpack.c.b16 %v2946, %v2942
      %v3055 = vpack.c.b16 %v2947, %v2943
      %v3056 = vpack.c.b16 %v2952, %v2948
      %v3057 = vpack.c.b16 %v2953, %v2949
      %v3058 = vpack.c.b16 %v2954, %v2950
      %v3059 = vpack.c.b16 %v2955, %v2951
      %v3060 = vpack.c.b16 %v2960, %v2956
      %v3061 = vpack.c.b16 %v2961, %v2957
      %v3062 = vpack.c.b16 %v2962, %v2958
      %v3063 = vpack.c.b16 %v2963, %v2959
      %v3064 = vpack.c.b16 %v2968, %v2964
      %v3065 = vpack.c.b16 %v2969, %v2965
      %v3066 = vpack.c.b16 %v2970, %v2966
      %v3067 = vpack.c.b16 %v2971, %v2967
      %v3068 = vpack.c.b16 %v2976, %v2972
      %v3069 = vpack.c.b16 %v2977, %v2973
      %v3070 = vpack.c.b16 %v2978, %v2974
      %v3071 = vpack.c.b16 %v2979, %v2975
      %v3072 = vpack.c.b16 %v2984, %v2980
      %v3073 = vpack.c.b16 %v2985, %v2981
      %v3074 = vpack.c.b16 %v2986, %v2982
      %v3075 = vpack.c.b16 %v2987, %v2983
      %v3076 = vpack.c.b16 %v2992, %v2988
      %v3077 = vpack.c.b16 %v2993, %v2989
      %v3078 = vpack.c.b16 %v2994, %v2990
      %v3079 = vpack.c.b16 %v2995, %v2991
      %v3080 = vpack.c.b16 %v3000, %v2996
      %v3081 = vpack.c.b16 %v3001, %v2997
      %v3082 = vpack.c.b16 %v3002, %v2998
      %v3083 = vpack.c.b16 %v3003, %v2999
      %v3084 = vpack.c.b16 %v3008, %v3004
      %v3085 = vpack.c.b16 %v3009, %v3005
      %v3086 = vpack.c.b16 %v3010, %v3006
      %v3087 = vpack.c.b16 %v3011, %v3007
      %v3088 = vpack.c.b16 %v3016, %v3012
      %v3089 = vpack.c.b16 %v3017, %v3013
      %v3090 = vpack.c.b16 %v3018, %v3014
      %v3091 = vpack.c.b16 %v3019, %v3015
      %v3092 = vpack.c.b16 %v3024, %v3020
      %v3093 = vpack.c.b16 %v3025, %v3021
      %v3094 = vpack.c.b16 %v3026, %v3022
      %v3095 = vpack.c.b16 %v3027, %v3023
      %v3096 = vpack.c.b16 %v3032, %v3028
      %v3097 = vpack.c.b16 %v3033, %v3029
      %v3098 = vpack.c.b16 %v3034, %v3030
      %v3099 = vpack.c.b16 %v3035, %v3031
      %3164 = vmatprep.subr.bf16.mxu0 %v3037
      %3165 = vmatpush1.bf16.msra.mxu0 %v3036
      %3166 = vmatprep.subr.bf16.mxu0 %v3041
      %3167 = vmatpush1.bf16.msra.mxu0 %v3040
      %3168 = vmatprep.subr.bf16.mxu0 %v3045
      %3169 = vmatpush1.bf16.msra.mxu0 %v3044
      %3170 = vmatprep.subr.bf16.mxu0 %v3049
      %3171 = vmatpush1.bf16.msra.mxu0 %v3048
      %3172 = vmatprep.subr.bf16.mxu0 %v3053
      %3173 = vmatpush1.bf16.msra.mxu0 %v3052
      %3174 = vmatprep.subr.bf16.mxu0 %v3057
      %3175 = vmatpush1.bf16.msra.mxu0 %v3056
      %3176 = vmatprep.subr.bf16.mxu0 %v3061
      %3177 = vmatpush1.bf16.msra.mxu0 %v3060
      %3178 = vmatprep.subr.bf16.mxu0 %v3065
      %3179 = vmatpush1.bf16.msra.mxu0 %v3064
      %3180 = vmatprep.subr.bf16.mxu0 %v3069
      %3181 = vmatpush1.bf16.msra.mxu0 %v3068
      %3182 = vmatprep.subr.bf16.mxu0 %v3073
      %3183 = vmatpush1.bf16.msra.mxu0 %v3072
      %3184 = vmatprep.subr.bf16.mxu0 %v3077
      %3185 = vmatpush1.bf16.msra.mxu0 %v3076
      %3186 = vmatprep.subr.bf16.mxu0 %v3081
      %3187 = vmatpush1.bf16.msra.mxu0 %v3080
      %3188 = vmatprep.subr.bf16.mxu0 %v3085
      %3189 = vmatpush1.bf16.msra.mxu0 %v3084
      %3190 = vmatprep.subr.bf16.mxu0 %v3089
      %3191 = vmatpush1.bf16.msra.mxu0 %v3088
      %3192 = vmatprep.subr.bf16.mxu0 %v3093
      %3193 = vmatpush1.bf16.msra.mxu0 %v3092
      %3194 = vmatprep.subr.bf16.mxu0 %v3097
      %3195 = vmatpush1.bf16.msra.mxu0 %v3096
      %3196 = vmatprep.mubr.bf16.mxu0 %v2772
      %3197 = vmatmul.mubr.bf16.gmra.mrb[0].mxu0 %v2771
      %v3198 = vpop.f32.mrb[0].mxu0
      %v3199 = vadd.f32 0.0, %v3198
      %v3200 = vpop.f32.mrb[0].mxu0
      %v3201 = vadd.f32 0.0, %v3200
      %v3202 = vpop.f32.mrb[0].mxu0
      %v3203 = vadd.f32 0.0, %v3202
      %v3204 = vpop.f32.mrb[0].mxu0
      %v3205 = vadd.f32 0.0, %v3204
      %3206 = vmatprep.mubr.bf16.mxu0 %v2774
      %3207 = vmatmul.mubr.bf16.gmra.mrb[0].mxu0 %v2773
      %v3208 = vpop.f32.mrb[0].mxu0
      %v3209 = vadd.f32 0.0, %v3208
      %v3210 = vpop.f32.mrb[0].mxu0
      %v3211 = vadd.f32 0.0, %v3210
      %v3212 = vpop.f32.mrb[0].mxu0
      %v3213 = vadd.f32 0.0, %v3212
      %v3214 = vpop.f32.mrb[0].mxu0
      %v3215 = vadd.f32 0.0, %v3214
      %3216 = vmatprep.mubr.bf16.mxu0 %v2776
      %3217 = vmatmul.mubr.bf16.gmra.mrb[0].mxu0 %v2775
      %v3218 = vpop.f32.mrb[0].mxu0
      %v3219 = vadd.f32 0.0, %v3218
      %v3220 = vpop.f32.mrb[0].mxu0
      %v3221 = vadd.f32 0.0, %v3220
      %v3222 = vpop.f32.mrb[0].mxu0
      %v3223 = vadd.f32 0.0, %v3222
      %v3224 = vpop.f32.mrb[0].mxu0
      %v3225 = vadd.f32 0.0, %v3224
      %3226 = vmatprep.mubr.bf16.mxu0 %v2778
      %3227 = vmatmul.mubr.bf16.gmra.mrb[0].mxu0 %v2777
      %v3228 = vpop.f32.mrb[0].mxu0
      %v3229 = vadd.f32 0.0, %v3228
      %v3230 = vpop.f32.mrb[0].mxu0
      %v3231 = vadd.f32 0.0, %v3230
      %v3232 = vpop.f32.mrb[0].mxu0
      %v3233 = vadd.f32 0.0, %v3232
      %v3234 = vpop.f32.mrb[0].mxu0
      %v3235 = vadd.f32 0.0, %v3234
      %3236 = vdwg.mxu0
      %3237 = vmatprep.subr.bf16.mxu0 %v3039
      %3238 = vmatpush1.bf16.msra.mxu0 %v3038
      %3239 = vmatprep.subr.bf16.mxu0 %v3043
      %3240 = vmatpush1.bf16.msra.mxu0 %v3042
      %3241 = vmatprep.subr.bf16.mxu0 %v3047
      %3242 = vmatpush1.bf16.msra.mxu0 %v3046
      %3243 = vmatprep.subr.bf16.mxu0 %v3051
      %3244 = vmatpush1.bf16.msra.mxu0 %v3050
      %3245 = vmatprep.subr.bf16.mxu0 %v3055
      %3246 = vmatpush1.bf16.msra.mxu0 %v3054
      %3247 = vmatprep.subr.bf16.mxu0 %v3059
      %3248 = vmatpush1.bf16.msra.mxu0 %v3058
      %3249 = vmatprep.subr.bf16.mxu0 %v3063
      %3250 = vmatpush1.bf16.msra.mxu0 %v3062
      %3251 = vmatprep.subr.bf16.mxu0 %v3067
      %3252 = vmatpush1.bf16.msra.mxu0 %v3066
      %3253 = vmatprep.subr.bf16.mxu0 %v3071
      %3254 = vmatpush1.bf16.msra.mxu0 %v3070
      %3255 = vmatprep.subr.bf16.mxu0 %v3075
      %3256 = vmatpush1.bf16.msra.mxu0 %v3074
      %3257 = vmatprep.subr.bf16.mxu0 %v3079
      %3258 = vmatpush1.bf16.msra.mxu0 %v3078
      %3259 = vmatprep.subr.bf16.mxu0 %v3083
      %3260 = vmatpush1.bf16.msra.mxu0 %v3082
      %3261 = vmatprep.subr.bf16.mxu0 %v3087
      %3262 = vmatpush1.bf16.msra.mxu0 %v3086
      %3263 = vmatprep.subr.bf16.mxu0 %v3091
      %3264 = vmatpush1.bf16.msra.mxu0 %v3090
      %3265 = vmatprep.subr.bf16.mxu0 %v3095
      %3266 = vmatpush1.bf16.msra.mxu0 %v3094
      %3267 = vmatprep.subr.bf16.mxu0 %v3099
      %3268 = vmatpush1.bf16.msra.mxu0 %v3098
      %3269 = vmatprep.mubr.bf16.mxu0 %v2772
      %3270 = vmatmul.mubr.bf16.gmra.mrb[0].mxu0 %v2771
      %v3271 = vpop.f32.mrb[0].mxu0
      %v3272 = vadd.f32 0.0, %v3271
      %v3273 = vpop.f32.mrb[0].mxu0
      %v3274 = vadd.f32 0.0, %v3273
      %v3275 = vpop.f32.mrb[0].mxu0
      %v3276 = vadd.f32 0.0, %v3275
      %v3277 = vpop.f32.mrb[0].mxu0
      %v3278 = vadd.f32 0.0, %v3277
      %3279 = vmatprep.mubr.bf16.mxu0 %v2774
      %3280 = vmatmul.mubr.bf16.gmra.mrb[0].mxu0 %v2773
      %v3281 = vpop.f32.mrb[0].mxu0
      %v3282 = vadd.f32 0.0, %v3281
      %v3283 = vpop.f32.mrb[0].mxu0
      %v3284 = vadd.f32 0.0, %v3283
      %v3285 = vpop.f32.mrb[0].mxu0
      %v3286 = vadd.f32 0.0, %v3285
      %v3287 = vpop.f32.mrb[0].mxu0
      %v3288 = vadd.f32 0.0, %v3287
      %3289 = vmatprep.mubr.bf16.mxu0 %v2776
      %3290 = vmatmul.mubr.bf16.gmra.mrb[0].mxu0 %v2775
      %v3291 = vpop.f32.mrb[0].mxu0
      %v3292 = vadd.f32 0.0, %v3291
      %v3293 = vpop.f32.mrb[0].mxu0
      %v3294 = vadd.f32 0.0, %v3293
      %v3295 = vpop.f32.mrb[0].mxu0
      %v3296 = vadd.f32 0.0, %v3295
      %v3297 = vpop.f32.mrb[0].mxu0
      %v3298 = vadd.f32 0.0, %v3297
      %3299 = vmatprep.mubr.bf16.mxu0 %v2778
      %3300 = vmatmul.mubr.bf16.gmra.mrb[0].mxu0 %v2777
      %v3301 = vpop.f32.mrb[0].mxu0
      %v3302 = vadd.f32 0.0, %v3301
      %v3303 = vpop.f32.mrb[0].mxu0
      %v3304 = vadd.f32 0.0, %v3303
      %v3305 = vpop.f32.mrb[0].mxu0
      %v3306 = vadd.f32 0.0, %v3305
      %v3307 = vpop.f32.mrb[0].mxu0
      %v3308 = vadd.f32 0.0, %v3307
      %3309 = vdwg.mxu0
      %v3310 = vadd.f32 %v2625, %v3199
      %v3311 = vadd.f32 %v2626, %v3201
      %v3312 = vadd.f32 %v2627, %v3272
      %v3313 = vadd.f32 %v2628, %v3274
      %v3314 = vadd.f32 %v2629, %v3203
      %v3315 = vadd.f32 %v2630, %v3205
      %v3316 = vadd.f32 %v2631, %v3276
      %v3317 = vadd.f32 %v2632, %v3278
      %v3318 = vadd.f32 %v2633, %v3209
      %v3319 = vadd.f32 %v2634, %v3211
      %v3320 = vadd.f32 %v2635, %v3282
      %v3321 = vadd.f32 %v2636, %v3284
      %v3322 = vadd.f32 %v2637, %v3213
      %v3323 = vadd.f32 %v2638, %v3215
      %v3324 = vadd.f32 %v2639, %v3286
      %v3325 = vadd.f32 %v2640, %v3288
      %v3326 = vadd.f32 %v2641, %v3219
      %v3327 = vadd.f32 %v2642, %v3221
      %v3328 = vadd.f32 %v2643, %v3292
      %v3329 = vadd.f32 %v2644, %v3294
      %v3330 = vadd.f32 %v2645, %v3223
      %v3331 = vadd.f32 %v2646, %v3225
      %v3332 = vadd.f32 %v2647, %v3296
      %v3333 = vadd.f32 %v2648, %v3298
      %v3334 = vadd.f32 %v2649, %v3229
      %v3335 = vadd.f32 %v2650, %v3231
      %v3336 = vadd.f32 %v2651, %v3302
      %v3337 = vadd.f32 %v2652, %v3304
      %v3338 = vadd.f32 %v2653, %v3233
      %v3339 = vadd.f32 %v2654, %v3235
      %v3340 = vadd.f32 %v2655, %v3306
      %v3341 = vadd.f32 %v2656, %v3308
      %s3342 = scalar_lea.vmem %s1, 128
      %v3343 = vld [vmem:[%s3342] sm:$0xf]
      %v3344 = vld [vmem:[%s3342 + $0x4] sm:$0xf]
      %v3345 = vld [vmem:[%s3342 + $0x8] sm:$0xf]
      %v3346 = vld [vmem:[%s3342 + $0xc] sm:$0xf]
      %v3347 = vld [vmem:[%s3342 + $0x10] sm:$0xf]
      %v3348 = vld [vmem:[%s3342 + $0x14] sm:$0xf]
      %v3349 = vld [vmem:[%s3342 + $0x18] sm:$0xf]
      %v3350 = vld [vmem:[%s3342 + $0x1c] sm:$0xf]
      %v3359 = vunpack.c.l.b16 %v3343
      %v3360 = vunpack.c.l.b16 %v3344
      %v3361 = vunpack.c.l.b16 %v3345
      %v3362 = vunpack.c.l.b16 %v3346
      %v3363 = vunpack.c.l.b16 %v3347
      %v3364 = vunpack.c.l.b16 %v3348
      %v3365 = vunpack.c.l.b16 %v3349
      %v3366 = vunpack.c.l.b16 %v3350
      %v3367 = vpack.c.b16 %v3360, %v3359
      %v3368 = vpack.c.b16 %v3362, %v3361
      %v3369 = vpack.c.b16 %v3364, %v3363
      %v3370 = vpack.c.b16 %v3366, %v3365
      %v3372 = vsel %vm688, %v3367, 0
      %v3375 = vsel %vm688, %v3368, 0
      %v3378 = vsel %vm688, %v3369, 0
      %v3381 = vsel %vm688, %v3370, 0
      %3383 = vmatprep.subr.bf16.mxu0 %v671
      %3384 = vmatpush1.bf16.msra.mxu0 %v670
      %3385 = vmatprep.subr.bf16.mxu0 %v673
      %3386 = vmatpush1.bf16.msra.mxu0 %v672
      %3387 = vmatprep.subr.bf16.mxu0 %v675
      %3388 = vmatpush1.bf16.msra.mxu0 %v674
      %3389 = vmatprep.subr.bf16.mxu0 %v677
      %3390 = vmatpush1.bf16.msra.mxu0 %v676
      %3391 = vmatprep.subr.bf16.mxu0 %v706
      %3392 = vmatpush1.bf16.msra.mxu0 %v703
      %3393 = vmatprep.subr.bf16.mxu0 0
      %3394 = vmatpush1.bf16.msra.mxu0 0
      %3395 = vmatprep.subr.bf16.mxu0 0
      %3396 = vmatpush1.bf16.msra.mxu0 0
      %3397 = vmatprep.subr.bf16.mxu0 0
      %3398 = vmatpush1.bf16.msra.mxu0 0
      %3399 = vmatprep.subr.bf16.mxu0 0
      %3400 = vmatpush1.bf16.msra.mxu0 0
      %3401 = vmatprep.subr.bf16.mxu0 0
      %3402 = vmatpush1.bf16.msra.mxu0 0
      %3403 = vmatprep.subr.bf16.mxu0 0
      %3404 = vmatpush1.bf16.msra.mxu0 0
      %3405 = vmatprep.subr.bf16.mxu0 0
      %3406 = vmatpush1.bf16.msra.mxu0 0
      %3407 = vmatprep.subr.bf16.mxu0 0
      %3408 = vmatpush1.bf16.msra.mxu0 0
      %3409 = vmatprep.subr.bf16.mxu0 0
      %3410 = vmatpush1.bf16.msra.mxu0 0
      %3411 = vmatprep.subr.bf16.mxu0 0
      %3412 = vmatpush1.bf16.msra.mxu0 0
      %3413 = vmatprep.subr.bf16.mxu0 0
      %3414 = vmatpush1.bf16.msra.mxu0 0
      %3415 = vmatprep.mubr.bf16.mxu0 0
      %3416 = vmatmul.mubr.bf16.gmra.mrb[0].mxu0 %v3372
      %v3417 = vpop.f32.mrb[0].mxu0
      %v3418 = vadd.f32 0.0, %v3417
      %v3419 = vpop.f32.mrb[0].mxu0
      %v3420 = vadd.f32 0.0, %v3419
      %v3421 = vpop.f32.mrb[0].mxu0
      %v3422 = vadd.f32 0.0, %v3421
      %v3423 = vpop.f32.mrb[0].mxu0
      %v3424 = vadd.f32 0.0, %v3423
      %3425 = vmatprep.mubr.bf16.mxu0 0
      %3426 = vmatmul.mubr.bf16.gmra.mrb[0].mxu0 %v3375
      %v3427 = vpop.f32.mrb[0].mxu0
      %v3428 = vadd.f32 0.0, %v3427
      %v3429 = vpop.f32.mrb[0].mxu0
      %v3430 = vadd.f32 0.0, %v3429
      %v3431 = vpop.f32.mrb[0].mxu0
      %v3432 = vadd.f32 0.0, %v3431
      %v3433 = vpop.f32.mrb[0].mxu0
      %v3434 = vadd.f32 0.0, %v3433
      %3435 = vmatprep.mubr.bf16.mxu0 0
      %3436 = vmatmul.mubr.bf16.gmra.mrb[0].mxu0 %v3378
      %v3437 = vpop.f32.mrb[0].mxu0
      %v3438 = vadd.f32 0.0, %v3437
      %v3439 = vpop.f32.mrb[0].mxu0
      %v3440 = vadd.f32 0.0, %v3439
      %v3441 = vpop.f32.mrb[0].mxu0
      %v3442 = vadd.f32 0.0, %v3441
      %v3443 = vpop.f32.mrb[0].mxu0
      %v3444 = vadd.f32 0.0, %v3443
      %3445 = vmatprep.mubr.bf16.mxu0 0
      %3446 = vmatmul.mubr.bf16.gmra.mrb[0].mxu0 %v3381
      %v3447 = vpop.f32.mrb[0].mxu0
      %v3448 = vadd.f32 0.0, %v3447
      %v3449 = vpop.f32.mrb[0].mxu0
      %v3450 = vadd.f32 0.0, %v3449
      %v3451 = vpop.f32.mrb[0].mxu0
      %v3452 = vadd.f32 0.0, %v3451
      %v3453 = vpop.f32.mrb[0].mxu0
      %v3454 = vadd.f32 0.0, %v3453
      %3455 = vdwg.mxu0
      %v3456 = vpack.c.bf16 %v3422, %v3418
      %v3457 = vpack.c.bf16 %v3424, %v3420
      %v3458 = vpack.c.bf16 %v3432, %v3428
      %v3459 = vpack.c.bf16 %v3434, %v3430
      %v3460 = vpack.c.bf16 %v3442, %v3438
      %v3461 = vpack.c.bf16 %v3444, %v3440
      %v3462 = vpack.c.bf16 %v3452, %v3448
      %v3463 = vpack.c.bf16 %v3454, %v3450
      %s3464 = scalar_lea.vmem %s2, 2048
      %v3465 = vld [vmem:[%s3464] sm:$0xff]
      %v3466 = vld [vmem:[%s3464 + $0x8] sm:$0xff]
      %v3467 = vld [vmem:[%s3464 + $0x10] sm:$0xff]
      %v3468 = vld [vmem:[%s3464 + $0x18] sm:$0xff]
      %v3469 = vld [vmem:[%s3464 + $0x20] sm:$0xff]
      %v3470 = vld [vmem:[%s3464 + $0x28] sm:$0xff]
      %v3471 = vld [vmem:[%s3464 + $0x30] sm:$0xff]
      %v3472 = vld [vmem:[%s3464 + $0x38] sm:$0xff]
      %v3473 = vld [vmem:[%s3464 + $0x40] sm:$0xff]
      %v3474 = vld [vmem:[%s3464 + $0x48] sm:$0xff]
      %v3475 = vld [vmem:[%s3464 + $0x50] sm:$0xff]
      %v3476 = vld [vmem:[%s3464 + $0x58] sm:$0xff]
      %v3477 = vld [vmem:[%s3464 + $0x60] sm:$0xff]
      %v3478 = vld [vmem:[%s3464 + $0x68] sm:$0xff]
      %v3479 = vld [vmem:[%s3464 + $0x70] sm:$0xff]
      %v3480 = vld [vmem:[%s3464 + $0x78] sm:$0xff]
      %v3481 = vld [vmem:[%s3464 + $0x80] sm:$0xff]
      %v3482 = vld [vmem:[%s3464 + $0x88] sm:$0xff]
      %v3483 = vld [vmem:[%s3464 + $0x90] sm:$0xff]
      %v3484 = vld [vmem:[%s3464 + $0x98] sm:$0xff]
      %v3485 = vld [vmem:[%s3464 + $0xa0] sm:$0xff]
      %v3486 = vld [vmem:[%s3464 + $0xa8] sm:$0xff]
      %v3487 = vld [vmem:[%s3464 + $0xb0] sm:$0xff]
      %v3488 = vld [vmem:[%s3464 + $0xb8] sm:$0xff]
      %v3489 = vld [vmem:[%s3464 + $0xc0] sm:$0xff]
      %v3490 = vld [vmem:[%s3464 + $0xc8] sm:$0xff]
      %v3491 = vld [vmem:[%s3464 + $0xd0] sm:$0xff]
      %v3492 = vld [vmem:[%s3464 + $0xd8] sm:$0xff]
      %v3493 = vld [vmem:[%s3464 + $0xe0] sm:$0xff]
      %v3494 = vld [vmem:[%s3464 + $0xe8] sm:$0xff]
      %v3495 = vld [vmem:[%s3464 + $0xf0] sm:$0xff]
      %v3496 = vld [vmem:[%s3464 + $0xf8] sm:$0xff]
      %v3497 = vld [vmem:[%s3464 + $0x100] sm:$0xff]
      %v3498 = vld [vmem:[%s3464 + $0x108] sm:$0xff]
      %v3499 = vld [vmem:[%s3464 + $0x110] sm:$0xff]
      %v3500 = vld [vmem:[%s3464 + $0x118] sm:$0xff]
      %v3501 = vld [vmem:[%s3464 + $0x120] sm:$0xff]
      %v3502 = vld [vmem:[%s3464 + $0x128] sm:$0xff]
      %v3503 = vld [vmem:[%s3464 + $0x130] sm:$0xff]
      %v3504 = vld [vmem:[%s3464 + $0x138] sm:$0xff]
      %v3505 = vld [vmem:[%s3464 + $0x140] sm:$0xff]
      %v3506 = vld [vmem:[%s3464 + $0x148] sm:$0xff]
      %v3507 = vld [vmem:[%s3464 + $0x150] sm:$0xff]
      %v3508 = vld [vmem:[%s3464 + $0x158] sm:$0xff]
      %v3509 = vld [vmem:[%s3464 + $0x160] sm:$0xff]
      %v3510 = vld [vmem:[%s3464 + $0x168] sm:$0xff]
      %v3511 = vld [vmem:[%s3464 + $0x170] sm:$0xff]
      %v3512 = vld [vmem:[%s3464 + $0x178] sm:$0xff]
      %v3513 = vld [vmem:[%s3464 + $0x180] sm:$0xff]
      %v3514 = vld [vmem:[%s3464 + $0x188] sm:$0xff]
      %v3515 = vld [vmem:[%s3464 + $0x190] sm:$0xff]
      %v3516 = vld [vmem:[%s3464 + $0x198] sm:$0xff]
      %v3517 = vld [vmem:[%s3464 + $0x1a0] sm:$0xff]
      %v3518 = vld [vmem:[%s3464 + $0x1a8] sm:$0xff]
      %v3519 = vld [vmem:[%s3464 + $0x1b0] sm:$0xff]
      %v3520 = vld [vmem:[%s3464 + $0x1b8] sm:$0xff]
      %v3521 = vld [vmem:[%s3464 + $0x1c0] sm:$0xff]
      %v3522 = vld [vmem:[%s3464 + $0x1c8] sm:$0xff]
      %v3523 = vld [vmem:[%s3464 + $0x1d0] sm:$0xff]
      %v3524 = vld [vmem:[%s3464 + $0x1d8] sm:$0xff]
      %v3525 = vld [vmem:[%s3464 + $0x1e0] sm:$0xff]
      %v3526 = vld [vmem:[%s3464 + $0x1e8] sm:$0xff]
      %v3527 = vld [vmem:[%s3464 + $0x1f0] sm:$0xff]
      %v3528 = vld [vmem:[%s3464 + $0x1f8] sm:$0xff]
      %v3593 = vunpack.c.l.b16 %v3465
      %v3594 = vunpack.c.h.b16 %v3465
      %v3595 = vunpack.c.l.b16 %v3466
      %v3596 = vunpack.c.h.b16 %v3466
      %v3597 = vunpack.c.l.b16 %v3467
      %v3598 = vunpack.c.h.b16 %v3467
      %v3599 = vunpack.c.l.b16 %v3468
      %v3600 = vunpack.c.h.b16 %v3468
      %v3601 = vunpack.c.l.b16 %v3469
      %v3602 = vunpack.c.h.b16 %v3469
      %v3603 = vunpack.c.l.b16 %v3470
      %v3604 = vunpack.c.h.b16 %v3470
      %v3605 = vunpack.c.l.b16 %v3471
      %v3606 = vunpack.c.h.b16 %v3471
      %v3607 = vunpack.c.l.b16 %v3472
      %v3608 = vunpack.c.h.b16 %v3472
      %v3609 = vunpack.c.l.b16 %v3473
      %v3610 = vunpack.c.h.b16 %v3473
      %v3611 = vunpack.c.l.b16 %v3474
      %v3612 = vunpack.c.h.b16 %v3474
      %v3613 = vunpack.c.l.b16 %v3475
      %v3614 = vunpack.c.h.b16 %v3475
      %v3615 = vunpack.c.l.b16 %v3476
      %v3616 = vunpack.c.h.b16 %v3476
      %v3617 = vunpack.c.l.b16 %v3477
      %v3618 = vunpack.c.h.b16 %v3477
      %v3619 = vunpack.c.l.b16 %v3478
      %v3620 = vunpack.c.h.b16 %v3478
      %v3621 = vunpack.c.l.b16 %v3479
      %v3622 = vunpack.c.h.b16 %v3479
      %v3623 = vunpack.c.l.b16 %v3480
      %v3624 = vunpack.c.h.b16 %v3480
      %v3625 = vunpack.c.l.b16 %v3481
      %v3626 = vunpack.c.h.b16 %v3481
      %v3627 = vunpack.c.l.b16 %v3482
      %v3628 = vunpack.c.h.b16 %v3482
      %v3629 = vunpack.c.l.b16 %v3483
      %v3630 = vunpack.c.h.b16 %v3483
      %v3631 = vunpack.c.l.b16 %v3484
      %v3632 = vunpack.c.h.b16 %v3484
      %v3633 = vunpack.c.l.b16 %v3485
      %v3634 = vunpack.c.h.b16 %v3485
      %v3635 = vunpack.c.l.b16 %v3486
      %v3636 = vunpack.c.h.b16 %v3486
      %v3637 = vunpack.c.l.b16 %v3487
      %v3638 = vunpack.c.h.b16 %v3487
      %v3639 = vunpack.c.l.b16 %v3488
      %v3640 = vunpack.c.h.b16 %v3488
      %v3641 = vunpack.c.l.b16 %v3489
      %v3642 = vunpack.c.h.b16 %v3489
      %v3643 = vunpack.c.l.b16 %v3490
      %v3644 = vunpack.c.h.b16 %v3490
      %v3645 = vunpack.c.l.b16 %v3491
      %v3646 = vunpack.c.h.b16 %v3491
      %v3647 = vunpack.c.l.b16 %v3492
      %v3648 = vunpack.c.h.b16 %v3492
      %v3649 = vunpack.c.l.b16 %v3493
      %v3650 = vunpack.c.h.b16 %v3493
      %v3651 = vunpack.c.l.b16 %v3494
      %v3652 = vunpack.c.h.b16 %v3494
      %v3653 = vunpack.c.l.b16 %v3495
      %v3654 = vunpack.c.h.b16 %v3495
      %v3655 = vunpack.c.l.b16 %v3496
      %v3656 = vunpack.c.h.b16 %v3496
      %v3657 = vunpack.c.l.b16 %v3497
      %v3658 = vunpack.c.h.b16 %v3497
      %v3659 = vunpack.c.l.b16 %v3498
      %v3660 = vunpack.c.h.b16 %v3498
      %v3661 = vunpack.c.l.b16 %v3499
      %v3662 = vunpack.c.h.b16 %v3499
      %v3663 = vunpack.c.l.b16 %v3500
      %v3664 = vunpack.c.h.b16 %v3500
      %v3665 = vunpack.c.l.b16 %v3501
      %v3666 = vunpack.c.h.b16 %v3501
      %v3667 = vunpack.c.l.b16 %v3502
      %v3668 = vunpack.c.h.b16 %v3502
      %v3669 = vunpack.c.l.b16 %v3503
      %v3670 = vunpack.c.h.b16 %v3503
      %v3671 = vunpack.c.l.b16 %v3504
      %v3672 = vunpack.c.h.b16 %v3504
      %v3673 = vunpack.c.l.b16 %v3505
      %v3674 = vunpack.c.h.b16 %v3505
      %v3675 = vunpack.c.l.b16 %v3506
      %v3676 = vunpack.c.h.b16 %v3506
      %v3677 = vunpack.c.l.b16 %v3507
      %v3678 = vunpack.c.h.b16 %v3507
      %v3679 = vunpack.c.l.b16 %v3508
      %v3680 = vunpack.c.h.b16 %v3508
      %v3681 = vunpack.c.l.b16 %v3509
      %v3682 = vunpack.c.h.b16 %v3509
      %v3683 = vunpack.c.l.b16 %v3510
      %v3684 = vunpack.c.h.b16 %v3510
      %v3685 = vunpack.c.l.b16 %v3511
      %v3686 = vunpack.c.h.b16 %v3511
      %v3687 = vunpack.c.l.b16 %v3512
      %v3688 = vunpack.c.h.b16 %v3512
      %v3689 = vunpack.c.l.b16 %v3513
      %v3690 = vunpack.c.h.b16 %v3513
      %v3691 = vunpack.c.l.b16 %v3514
      %v3692 = vunpack.c.h.b16 %v3514
      %v3693 = vunpack.c.l.b16 %v3515
      %v3694 = vunpack.c.h.b16 %v3515
      %v3695 = vunpack.c.l.b16 %v3516
      %v3696 = vunpack.c.h.b16 %v3516
      %v3697 = vunpack.c.l.b16 %v3517
      %v3698 = vunpack.c.h.b16 %v3517
      %v3699 = vunpack.c.l.b16 %v3518
      %v3700 = vunpack.c.h.b16 %v3518
      %v3701 = vunpack.c.l.b16 %v3519
      %v3702 = vunpack.c.h.b16 %v3519
      %v3703 = vunpack.c.l.b16 %v3520
      %v3704 = vunpack.c.h.b16 %v3520
      %v3705 = vunpack.c.l.b16 %v3521
      %v3706 = vunpack.c.h.b16 %v3521
      %v3707 = vunpack.c.l.b16 %v3522
      %v3708 = vunpack.c.h.b16 %v3522
      %v3709 = vunpack.c.l.b16 %v3523
      %v3710 = vunpack.c.h.b16 %v3523
      %v3711 = vunpack.c.l.b16 %v3524
      %v3712 = vunpack.c.h.b16 %v3524
      %v3713 = vunpack.c.l.b16 %v3525
      %v3714 = vunpack.c.h.b16 %v3525
      %v3715 = vunpack.c.l.b16 %v3526
      %v3716 = vunpack.c.h.b16 %v3526
      %v3717 = vunpack.c.l.b16 %v3527
      %v3718 = vunpack.c.h.b16 %v3527
      %v3719 = vunpack.c.l.b16 %v3528
      %v3720 = vunpack.c.h.b16 %v3528
      %v3721 = vpack.c.b16 %v3597, %v3593
      %v3722 = vpack.c.b16 %v3598, %v3594
      %v3723 = vpack.c.b16 %v3599, %v3595
      %v3724 = vpack.c.b16 %v3600, %v3596
      %v3725 = vpack.c.b16 %v3605, %v3601
      %v3726 = vpack.c.b16 %v3606, %v3602
      %v3727 = vpack.c.b16 %v3607, %v3603
      %v3728 = vpack.c.b16 %v3608, %v3604
      %v3729 = vpack.c.b16 %v3613, %v3609
      %v3730 = vpack.c.b16 %v3614, %v3610
      %v3731 = vpack.c.b16 %v3615, %v3611
      %v3732 = vpack.c.b16 %v3616, %v3612
      %v3733 = vpack.c.b16 %v3621, %v3617
      %v3734 = vpack.c.b16 %v3622, %v3618
      %v3735 = vpack.c.b16 %v3623, %v3619
      %v3736 = vpack.c.b16 %v3624, %v3620
      %v3737 = vpack.c.b16 %v3629, %v3625
      %v3738 = vpack.c.b16 %v3630, %v3626
      %v3739 = vpack.c.b16 %v3631, %v3627
      %v3740 = vpack.c.b16 %v3632, %v3628
      %v3741 = vpack.c.b16 %v3637, %v3633
      %v3742 = vpack.c.b16 %v3638, %v3634
      %v3743 = vpack.c.b16 %v3639, %v3635
      %v3744 = vpack.c.b16 %v3640, %v3636
      %v3745 = vpack.c.b16 %v3645, %v3641
      %v3746 = vpack.c.b16 %v3646, %v3642
      %v3747 = vpack.c.b16 %v3647, %v3643
      %v3748 = vpack.c.b16 %v3648, %v3644
      %v3749 = vpack.c.b16 %v3653, %v3649
      %v3750 = vpack.c.b16 %v3654, %v3650
      %v3751 = vpack.c.b16 %v3655, %v3651
      %v3752 = vpack.c.b16 %v3656, %v3652
      %v3753 = vpack.c.b16 %v3661, %v3657
      %v3754 = vpack.c.b16 %v3662, %v3658
      %v3755 = vpack.c.b16 %v3663, %v3659
      %v3756 = vpack.c.b16 %v3664, %v3660
      %v3757 = vpack.c.b16 %v3669, %v3665
      %v3758 = vpack.c.b16 %v3670, %v3666
      %v3759 = vpack.c.b16 %v3671, %v3667
      %v3760 = vpack.c.b16 %v3672, %v3668
      %v3761 = vpack.c.b16 %v3677, %v3673
      %v3762 = vpack.c.b16 %v3678, %v3674
      %v3763 = vpack.c.b16 %v3679, %v3675
      %v3764 = vpack.c.b16 %v3680, %v3676
      %v3765 = vpack.c.b16 %v3685, %v3681
      %v3766 = vpack.c.b16 %v3686, %v3682
      %v3767 = vpack.c.b16 %v3687, %v3683
      %v3768 = vpack.c.b16 %v3688, %v3684
      %v3769 = vpack.c.b16 %v3693, %v3689
      %v3770 = vpack.c.b16 %v3694, %v3690
      %v3771 = vpack.c.b16 %v3695, %v3691
      %v3772 = vpack.c.b16 %v3696, %v3692
      %v3773 = vpack.c.b16 %v3701, %v3697
      %v3774 = vpack.c.b16 %v3702, %v3698
      %v3775 = vpack.c.b16 %v3703, %v3699
      %v3776 = vpack.c.b16 %v3704, %v3700
      %v3777 = vpack.c.b16 %v3709, %v3705
      %v3778 = vpack.c.b16 %v3710, %v3706
      %v3779 = vpack.c.b16 %v3711, %v3707
      %v3780 = vpack.c.b16 %v3712, %v3708
      %v3781 = vpack.c.b16 %v3717, %v3713
      %v3782 = vpack.c.b16 %v3718, %v3714
      %v3783 = vpack.c.b16 %v3719, %v3715
      %v3784 = vpack.c.b16 %v3720, %v3716
      %3849 = vmatprep.subr.bf16.mxu0 %v3722
      %3850 = vmatpush1.bf16.msra.mxu0 %v3721
      %3851 = vmatprep.subr.bf16.mxu0 %v3726
      %3852 = vmatpush1.bf16.msra.mxu0 %v3725
      %3853 = vmatprep.subr.bf16.mxu0 %v3730
      %3854 = vmatpush1.bf16.msra.mxu0 %v3729
      %3855 = vmatprep.subr.bf16.mxu0 %v3734
      %3856 = vmatpush1.bf16.msra.mxu0 %v3733
      %3857 = vmatprep.subr.bf16.mxu0 %v3738
      %3858 = vmatpush1.bf16.msra.mxu0 %v3737
      %3859 = vmatprep.subr.bf16.mxu0 %v3742
      %3860 = vmatpush1.bf16.msra.mxu0 %v3741
      %3861 = vmatprep.subr.bf16.mxu0 %v3746
      %3862 = vmatpush1.bf16.msra.mxu0 %v3745
      %3863 = vmatprep.subr.bf16.mxu0 %v3750
      %3864 = vmatpush1.bf16.msra.mxu0 %v3749
      %3865 = vmatprep.subr.bf16.mxu0 %v3754
      %3866 = vmatpush1.bf16.msra.mxu0 %v3753
      %3867 = vmatprep.subr.bf16.mxu0 %v3758
      %3868 = vmatpush1.bf16.msra.mxu0 %v3757
      %3869 = vmatprep.subr.bf16.mxu0 %v3762
      %3870 = vmatpush1.bf16.msra.mxu0 %v3761
      %3871 = vmatprep.subr.bf16.mxu0 %v3766
      %3872 = vmatpush1.bf16.msra.mxu0 %v3765
      %3873 = vmatprep.subr.bf16.mxu0 %v3770
      %3874 = vmatpush1.bf16.msra.mxu0 %v3769
      %3875 = vmatprep.subr.bf16.mxu0 %v3774
      %3876 = vmatpush1.bf16.msra.mxu0 %v3773
      %3877 = vmatprep.subr.bf16.mxu0 %v3778
      %3878 = vmatpush1.bf16.msra.mxu0 %v3777
      %3879 = vmatprep.subr.bf16.mxu0 %v3782
      %3880 = vmatpush1.bf16.msra.mxu0 %v3781
      %3881 = vmatprep.mubr.bf16.mxu0 %v3457
      %3882 = vmatmul.mubr.bf16.gmra.mrb[0].mxu0 %v3456
      %v3883 = vpop.f32.mrb[0].mxu0
      %v3884 = vadd.f32 0.0, %v3883
      %v3885 = vpop.f32.mrb[0].mxu0
      %v3886 = vadd.f32 0.0, %v3885
      %v3887 = vpop.f32.mrb[0].mxu0
      %v3888 = vadd.f32 0.0, %v3887
      %v3889 = vpop.f32.mrb[0].mxu0
      %v3890 = vadd.f32 0.0, %v3889
      %3891 = vmatprep.mubr.bf16.mxu0 %v3459
      %3892 = vmatmul.mubr.bf16.gmra.mrb[0].mxu0 %v3458
      %v3893 = vpop.f32.mrb[0].mxu0
      %v3894 = vadd.f32 0.0, %v3893
      %v3895 = vpop.f32.mrb[0].mxu0
      %v3896 = vadd.f32 0.0, %v3895
      %v3897 = vpop.f32.mrb[0].mxu0
      %v3898 = vadd.f32 0.0, %v3897
      %v3899 = vpop.f32.mrb[0].mxu0
      %v3900 = vadd.f32 0.0, %v3899
      %3901 = vmatprep.mubr.bf16.mxu0 %v3461
      %3902 = vmatmul.mubr.bf16.gmra.mrb[0].mxu0 %v3460
      %v3903 = vpop.f32.mrb[0].mxu0
      %v3904 = vadd.f32 0.0, %v3903
      %v3905 = vpop.f32.mrb[0].mxu0
      %v3906 = vadd.f32 0.0, %v3905
      %v3907 = vpop.f32.mrb[0].mxu0
      %v3908 = vadd.f32 0.0, %v3907
      %v3909 = vpop.f32.mrb[0].mxu0
      %v3910 = vadd.f32 0.0, %v3909
      %3911 = vmatprep.mubr.bf16.mxu0 %v3463
      %3912 = vmatmul.mubr.bf16.gmra.mrb[0].mxu0 %v3462
      %v3913 = vpop.f32.mrb[0].mxu0
      %v3914 = vadd.f32 0.0, %v3913
      %v3915 = vpop.f32.mrb[0].mxu0
      %v3916 = vadd.f32 0.0, %v3915
      %v3917 = vpop.f32.mrb[0].mxu0
      %v3918 = vadd.f32 0.0, %v3917
      %v3919 = vpop.f32.mrb[0].mxu0
      %v3920 = vadd.f32 0.0, %v3919
      %3921 = vdwg.mxu0
      %3922 = vmatprep.subr.bf16.mxu0 %v3724
      %3923 = vmatpush1.bf16.msra.mxu0 %v3723
      %3924 = vmatprep.subr.bf16.mxu0 %v3728
      %3925 = vmatpush1.bf16.msra.mxu0 %v3727
      %3926 = vmatprep.subr.bf16.mxu0 %v3732
      %3927 = vmatpush1.bf16.msra.mxu0 %v3731
      %3928 = vmatprep.subr.bf16.mxu0 %v3736
      %3929 = vmatpush1.bf16.msra.mxu0 %v3735
      %3930 = vmatprep.subr.bf16.mxu0 %v3740
      %3931 = vmatpush1.bf16.msra.mxu0 %v3739
      %3932 = vmatprep.subr.bf16.mxu0 %v3744
      %3933 = vmatpush1.bf16.msra.mxu0 %v3743
      %3934 = vmatprep.subr.bf16.mxu0 %v3748
      %3935 = vmatpush1.bf16.msra.mxu0 %v3747
      %3936 = vmatprep.subr.bf16.mxu0 %v3752
      %3937 = vmatpush1.bf16.msra.mxu0 %v3751
      %3938 = vmatprep.subr.bf16.mxu0 %v3756
      %3939 = vmatpush1.bf16.msra.mxu0 %v3755
      %3940 = vmatprep.subr.bf16.mxu0 %v3760
      %3941 = vmatpush1.bf16.msra.mxu0 %v3759
      %3942 = vmatprep.subr.bf16.mxu0 %v3764
      %3943 = vmatpush1.bf16.msra.mxu0 %v3763
      %3944 = vmatprep.subr.bf16.mxu0 %v3768
      %3945 = vmatpush1.bf16.msra.mxu0 %v3767
      %3946 = vmatprep.subr.bf16.mxu0 %v3772
      %3947 = vmatpush1.bf16.msra.mxu0 %v3771
      %3948 = vmatprep.subr.bf16.mxu0 %v3776
      %3949 = vmatpush1.bf16.msra.mxu0 %v3775
      %3950 = vmatprep.subr.bf16.mxu0 %v3780
      %3951 = vmatpush1.bf16.msra.mxu0 %v3779
      %3952 = vmatprep.subr.bf16.mxu0 %v3784
      %3953 = vmatpush1.bf16.msra.mxu0 %v3783
      %3954 = vmatprep.mubr.bf16.mxu0 %v3457
      %3955 = vmatmul.mubr.bf16.gmra.mrb[0].mxu0 %v3456
      %v3956 = vpop.f32.mrb[0].mxu0
      %v3957 = vadd.f32 0.0, %v3956
      %v3958 = vpop.f32.mrb[0].mxu0
      %v3959 = vadd.f32 0.0, %v3958
      %v3960 = vpop.f32.mrb[0].mxu0
      %v3961 = vadd.f32 0.0, %v3960
      %v3962 = vpop.f32.mrb[0].mxu0
      %v3963 = vadd.f32 0.0, %v3962
      %3964 = vmatprep.mubr.bf16.mxu0 %v3459
      %3965 = vmatmul.mubr.bf16.gmra.mrb[0].mxu0 %v3458
      %v3966 = vpop.f32.mrb[0].mxu0
      %v3967 = vadd.f32 0.0, %v3966
      %v3968 = vpop.f32.mrb[0].mxu0
      %v3969 = vadd.f32 0.0, %v3968
      %v3970 = vpop.f32.mrb[0].mxu0
      %v3971 = vadd.f32 0.0, %v3970
      %v3972 = vpop.f32.mrb[0].mxu0
      %v3973 = vadd.f32 0.0, %v3972
      %3974 = vmatprep.mubr.bf16.mxu0 %v3461
      %3975 = vmatmul.mubr.bf16.gmra.mrb[0].mxu0 %v3460
      %v3976 = vpop.f32.mrb[0].mxu0
      %v3977 = vadd.f32 0.0, %v3976
      %v3978 = vpop.f32.mrb[0].mxu0
      %v3979 = vadd.f32 0.0, %v3978
      %v3980 = vpop.f32.mrb[0].mxu0
      %v3981 = vadd.f32 0.0, %v3980
      %v3982 = vpop.f32.mrb[0].mxu0
      %v3983 = vadd.f32 0.0, %v3982
      %3984 = vmatprep.mubr.bf16.mxu0 %v3463
      %3985 = vmatmul.mubr.bf16.gmra.mrb[0].mxu0 %v3462
      %v3986 = vpop.f32.mrb[0].mxu0
      %v3987 = vadd.f32 0.0, %v3986
      %v3988 = vpop.f32.mrb[0].mxu0
      %v3989 = vadd.f32 0.0, %v3988
      %v3990 = vpop.f32.mrb[0].mxu0
      %v3991 = vadd.f32 0.0, %v3990
      %v3992 = vpop.f32.mrb[0].mxu0
      %v3993 = vadd.f32 0.0, %v3992
      %3994 = vdwg.mxu0
      %v3995 = vadd.f32 %v3310, %v3884
      %v3996 = vadd.f32 %v3311, %v3886
      %v3997 = vadd.f32 %v3312, %v3957
      %v3998 = vadd.f32 %v3313, %v3959
      %v3999 = vadd.f32 %v3314, %v3888
      %v4000 = vadd.f32 %v3315, %v3890
      %v4001 = vadd.f32 %v3316, %v3961
      %v4002 = vadd.f32 %v3317, %v3963
      %v4003 = vadd.f32 %v3318, %v3894
      %v4004 = vadd.f32 %v3319, %v3896
      %v4005 = vadd.f32 %v3320, %v3967
      %v4006 = vadd.f32 %v3321, %v3969
      %v4007 = vadd.f32 %v3322, %v3898
      %v4008 = vadd.f32 %v3323, %v3900
      %v4009 = vadd.f32 %v3324, %v3971
      %v4010 = vadd.f32 %v3325, %v3973
      %v4011 = vadd.f32 %v3326, %v3904
      %v4012 = vadd.f32 %v3327, %v3906
      %v4013 = vadd.f32 %v3328, %v3977
      %v4014 = vadd.f32 %v3329, %v3979
      %v4015 = vadd.f32 %v3330, %v3908
      %v4016 = vadd.f32 %v3331, %v3910
      %v4017 = vadd.f32 %v3332, %v3981
      %v4018 = vadd.f32 %v3333, %v3983
      %v4019 = vadd.f32 %v3334, %v3914
      %v4020 = vadd.f32 %v3335, %v3916
      %v4021 = vadd.f32 %v3336, %v3987
      %v4022 = vadd.f32 %v3337, %v3989
      %v4023 = vadd.f32 %v3338, %v3918
      %v4024 = vadd.f32 %v3339, %v3920
      %v4025 = vadd.f32 %v3340, %v3991
      %v4026 = vadd.f32 %v3341, %v3993
      %v4027 = vld [vmem:[%s3] sm:$0xf]
      %v4029 = vlaneseq
      %v4030 = vshrl.u32 %v4029, 7
      %v4031 = vsub.s32 0, %v4030
      %v4032 = vrot.slane %v4027, %v4031
      %v4033 = vlaneseq
      %v4034 = vshrl.u32 %v4033, 7
      %v4035 = vsub.s32 1, %v4034
      %v4036 = vrot.slane %v4027, %v4035
      %v4037 = vlaneseq
      %v4038 = vshrl.u32 %v4037, 7
      %v4039 = vsub.s32 2, %v4038
      %v4040 = vrot.slane %v4027, %v4039
      %v4041 = vlaneseq
      %v4042 = vshrl.u32 %v4041, 7
      %v4043 = vsub.s32 3, %v4042
      %v4044 = vrot.slane %v4027, %v4043
      %v4049 = vadd.f32 %v3995, %v4032
      %v4050 = vadd.f32 %v3996, %v4036
      %v4051 = vadd.f32 %v3997, %v4040
      %v4052 = vadd.f32 %v3998, %v4044
      %v4053 = vadd.f32 %v3999, %v4032
      %v4054 = vadd.f32 %v4000, %v4036
      %v4055 = vadd.f32 %v4001, %v4040
      %v4056 = vadd.f32 %v4002, %v4044
      %v4057 = vadd.f32 %v4003, %v4032
      %v4058 = vadd.f32 %v4004, %v4036
      %v4059 = vadd.f32 %v4005, %v4040
      %v4060 = vadd.f32 %v4006, %v4044
      %v4061 = vadd.f32 %v4007, %v4032
      %v4062 = vadd.f32 %v4008, %v4036
      %v4063 = vadd.f32 %v4009, %v4040
      %v4064 = vadd.f32 %v4010, %v4044
      %v4065 = vadd.f32 %v4011, %v4032
      %v4066 = vadd.f32 %v4012, %v4036
      %v4067 = vadd.f32 %v4013, %v4040
      %v4068 = vadd.f32 %v4014, %v4044
      %v4069 = vadd.f32 %v4015, %v4032
      %v4070 = vadd.f32 %v4016, %v4036
      %v4071 = vadd.f32 %v4017, %v4040
      %v4072 = vadd.f32 %v4018, %v4044
      %v4073 = vadd.f32 %v4019, %v4032
      %v4074 = vadd.f32 %v4020, %v4036
      %v4075 = vadd.f32 %v4021, %v4040
      %v4076 = vadd.f32 %v4022, %v4044
      %v4077 = vadd.f32 %v4023, %v4032
      %v4078 = vadd.f32 %v4024, %v4036
      %v4079 = vadd.f32 %v4025, %v4040
      %v4080 = vadd.f32 %v4026, %v4044
      %v4081 = vmax.f32 %v4049, 0.0
      %v4082 = vmax.f32 %v4050, 0.0
      %v4083 = vmax.f32 %v4051, 0.0
      %v4084 = vmax.f32 %v4052, 0.0
      %v4085 = vmax.f32 %v4053, 0.0
      %v4086 = vmax.f32 %v4054, 0.0
      %v4087 = vmax.f32 %v4055, 0.0
      %v4088 = vmax.f32 %v4056, 0.0
      %v4089 = vmax.f32 %v4057, 0.0
      %v4090 = vmax.f32 %v4058, 0.0
      %v4091 = vmax.f32 %v4059, 0.0
      %v4092 = vmax.f32 %v4060, 0.0
      %v4093 = vmax.f32 %v4061, 0.0
      %v4094 = vmax.f32 %v4062, 0.0
      %v4095 = vmax.f32 %v4063, 0.0
      %v4096 = vmax.f32 %v4064, 0.0
      %v4097 = vmax.f32 %v4065, 0.0
      %v4098 = vmax.f32 %v4066, 0.0
      %v4099 = vmax.f32 %v4067, 0.0
      %v4100 = vmax.f32 %v4068, 0.0
      %v4101 = vmax.f32 %v4069, 0.0
      %v4102 = vmax.f32 %v4070, 0.0
      %v4103 = vmax.f32 %v4071, 0.0
      %v4104 = vmax.f32 %v4072, 0.0
      %v4105 = vmax.f32 %v4073, 0.0
      %v4106 = vmax.f32 %v4074, 0.0
      %v4107 = vmax.f32 %v4075, 0.0
      %v4108 = vmax.f32 %v4076, 0.0
      %v4109 = vmax.f32 %v4077, 0.0
      %v4110 = vmax.f32 %v4078, 0.0
      %v4111 = vmax.f32 %v4079, 0.0
      %v4112 = vmax.f32 %v4080, 0.0
      %v4113 = vpack.c.bf16 %v4085, %v4081
      %v4114 = vpack.c.bf16 %v4086, %v4082
      %v4115 = vpack.c.bf16 %v4087, %v4083
      %v4116 = vpack.c.bf16 %v4088, %v4084
      %v4117 = vpack.c.bf16 %v4093, %v4089
      %v4118 = vpack.c.bf16 %v4094, %v4090
      %v4119 = vpack.c.bf16 %v4095, %v4091
      %v4120 = vpack.c.bf16 %v4096, %v4092
      %v4121 = vpack.c.bf16 %v4101, %v4097
      %v4122 = vpack.c.bf16 %v4102, %v4098
      %v4123 = vpack.c.bf16 %v4103, %v4099
      %v4124 = vpack.c.bf16 %v4104, %v4100
      %v4125 = vpack.c.bf16 %v4109, %v4105
      %v4126 = vpack.c.bf16 %v4110, %v4106
      %v4127 = vpack.c.bf16 %v4111, %v4107
      %v4128 = vpack.c.bf16 %v4112, %v4108
      %v4145 = vunpack.c.l.b16 %v4113
      %v4146 = vunpack.c.l.b16 %v4114
      %v4147 = vunpack.c.l.b16 %v4115
      %v4148 = vunpack.c.l.b16 %v4116
      %v4149 = vunpack.c.h.b16 %v4113
      %v4150 = vunpack.c.h.b16 %v4114
      %v4151 = vunpack.c.h.b16 %v4115
      %v4152 = vunpack.c.h.b16 %v4116
      %v4153 = vunpack.c.l.b16 %v4117
      %v4154 = vunpack.c.l.b16 %v4118
      %v4155 = vunpack.c.l.b16 %v4119
      %v4156 = vunpack.c.l.b16 %v4120
      %v4157 = vunpack.c.h.b16 %v4117
      %v4158 = vunpack.c.h.b16 %v4118
      %v4159 = vunpack.c.h.b16 %v4119
      %v4160 = vunpack.c.h.b16 %v4120
      %v4161 = vunpack.c.l.b16 %v4121
      %v4162 = vunpack.c.l.b16 %v4122
      %v4163 = vunpack.c.l.b16 %v4123
      %v4164 = vunpack.c.l.b16 %v4124
      %v4165 = vunpack.c.h.b16 %v4121
      %v4166 = vunpack.c.h.b16 %v4122
      %v4167 = vunpack.c.h.b16 %v4123
      %v4168 = vunpack.c.h.b16 %v4124
      %v4169 = vunpack.c.l.b16 %v4125
      %v4170 = vunpack.c.l.b16 %v4126
      %v4171 = vunpack.c.l.b16 %v4127
      %v4172 = vunpack.c.l.b16 %v4128
      %v4173 = vunpack.c.h.b16 %v4125
      %v4174 = vunpack.c.h.b16 %v4126
      %v4175 = vunpack.c.h.b16 %v4127
      %v4176 = vunpack.c.h.b16 %v4128
      %v4177 = vpack.c.b16 %v4146, %v4145
      %v4178 = vpack.c.b16 %v4148, %v4147
      %v4179 = vpack.c.b16 %v4150, %v4149
      %v4180 = vpack.c.b16 %v4152, %v4151
      %v4181 = vpack.c.b16 %v4154, %v4153
      %v4182 = vpack.c.b16 %v4156, %v4155
      %v4183 = vpack.c.b16 %v4158, %v4157
      %v4184 = vpack.c.b16 %v4160, %v4159
      %v4185 = vpack.c.b16 %v4162, %v4161
      %v4186 = vpack.c.b16 %v4164, %v4163
      %v4187 = vpack.c.b16 %v4166, %v4165
      %v4188 = vpack.c.b16 %v4168, %v4167
      %v4189 = vpack.c.b16 %v4170, %v4169
      %v4190 = vpack.c.b16 %v4172, %v4171
      %v4191 = vpack.c.b16 %v4174, %v4173
      %v4192 = vpack.c.b16 %v4176, %v4175
      %4209 = vst [vmem:[#allocation2] sm:$0xff] %v4177
      %4210 = vst [vmem:[#allocation2 + $0x8] sm:$0xff] %v4178
      %4211 = vst [vmem:[#allocation2 + $0x10] sm:$0xff] %v4179
      %4212 = vst [vmem:[#allocation2 + $0x18] sm:$0xff] %v4180
      %4213 = vst [vmem:[#allocation2 + $0x20] sm:$0xff] %v4181
      %4214 = vst [vmem:[#allocation2 + $0x28] sm:$0xff] %v4182
      %4215 = vst [vmem:[#allocation2 + $0x30] sm:$0xff] %v4183
      %4216 = vst [vmem:[#allocation2 + $0x38] sm:$0xff] %v4184
      %4217 = vst [vmem:[#allocation2 + $0x40] sm:$0xff] %v4185
      %4218 = vst [vmem:[#allocation2 + $0x48] sm:$0xff] %v4186
      %4219 = vst [vmem:[#allocation2 + $0x50] sm:$0xff] %v4187
      %4220 = vst [vmem:[#allocation2 + $0x58] sm:$0xff] %v4188
      %4221 = vst [vmem:[#allocation2 + $0x60] sm:$0xff] %v4189
      %4222 = vst [vmem:[#allocation2 + $0x68] sm:$0xff] %v4190
      %4223 = vst [vmem:[#allocation2 + $0x70] sm:$0xff] %v4191
      %4224 = vst [vmem:[#allocation2 + $0x78] sm:$0xff] %v4192
      %v4225 = vld [vmem:[#allocation2] sm:$0xff]
      %v4226 = vld [vmem:[#allocation2 + $0x8] sm:$0xff]
      %v4227 = vld [vmem:[#allocation2 + $0x10] sm:$0xff]
      %v4228 = vld [vmem:[#allocation2 + $0x18] sm:$0xff]
      %v4229 = vld [vmem:[#allocation2 + $0x20] sm:$0xff]
      %v4230 = vld [vmem:[#allocation2 + $0x28] sm:$0xff]
      %v4231 = vld [vmem:[#allocation2 + $0x30] sm:$0xff]
      %v4232 = vld [vmem:[#allocation2 + $0x38] sm:$0xff]
      %v4233 = vld [vmem:[#allocation2 + $0x40] sm:$0xff]
      %v4234 = vld [vmem:[#allocation2 + $0x48] sm:$0xff]
      %v4235 = vld [vmem:[#allocation2 + $0x50] sm:$0xff]
      %v4236 = vld [vmem:[#allocation2 + $0x58] sm:$0xff]
      %v4237 = vld [vmem:[#allocation2 + $0x60] sm:$0xff]
      %v4238 = vld [vmem:[#allocation2 + $0x68] sm:$0xff]
      %v4239 = vld [vmem:[#allocation2 + $0x70] sm:$0xff]
      %v4240 = vld [vmem:[#allocation2 + $0x78] sm:$0xff]
      %v4241 = vld [vmem:[#allocation2 + $0x80] sm:$0xff]
      %v4242 = vld [vmem:[#allocation2 + $0x88] sm:$0xff]
      %v4243 = vld [vmem:[%s4] sm:$0xf]
      %v4244 = vld [vmem:[%s4 + $0x4] sm:$0xf]
      %v4245 = vld [vmem:[%s4 + $0x8] sm:$0xf]
      %v4246 = vld [vmem:[%s4 + $0xc] sm:$0xf]
      %v4251 = vunpack.c.l.b16 %v4243
      %v4252 = vunpack.c.l.b16 %v4244
      %v4253 = vunpack.c.l.b16 %v4245
      %v4254 = vunpack.c.l.b16 %v4246
      %v4255 = vpack.c.b16 %v4252, %v4251
      %v4256 = vpack.c.b16 %v4254, %v4253
      %v4275 = vunpack.c.l.b16 %v4225
      %v4276 = vunpack.c.h.b16 %v4225
      %v4277 = vunpack.c.l.b16 %v4226
      %v4278 = vunpack.c.h.b16 %v4226
      %v4279 = vunpack.c.l.b16 %v4227
      %v4280 = vunpack.c.h.b16 %v4227
      %v4281 = vunpack.c.l.b16 %v4228
      %v4282 = vunpack.c.h.b16 %v4228
      %v4283 = vunpack.c.l.b16 %v4229
      %v4284 = vunpack.c.h.b16 %v4229
      %v4285 = vunpack.c.l.b16 %v4230
      %v4286 = vunpack.c.h.b16 %v4230
      %v4287 = vunpack.c.l.b16 %v4231
      %v4288 = vunpack.c.h.b16 %v4231
      %v4289 = vunpack.c.l.b16 %v4232
      %v4290 = vunpack.c.h.b16 %v4232
      %v4291 = vunpack.c.l.b16 %v4233
      %v4292 = vunpack.c.h.b16 %v4233
      %v4293 = vunpack.c.l.b16 %v4234
      %v4294 = vunpack.c.h.b16 %v4234
      %v4295 = vunpack.c.l.b16 %v4235
      %v4296 = vunpack.c.h.b16 %v4235
      %v4297 = vunpack.c.l.b16 %v4236
      %v4298 = vunpack.c.h.b16 %v4236
      %v4299 = vunpack.c.l.b16 %v4237
      %v4300 = vunpack.c.h.b16 %v4237
      %v4301 = vunpack.c.l.b16 %v4238
      %v4302 = vunpack.c.h.b16 %v4238
      %v4303 = vunpack.c.l.b16 %v4239
      %v4304 = vunpack.c.h.b16 %v4239
      %v4305 = vunpack.c.l.b16 %v4240
      %v4306 = vunpack.c.h.b16 %v4240
      %v4307 = vunpack.c.l.b16 %v4241
      %v4308 = vunpack.c.h.b16 %v4241
      %v4309 = vunpack.c.l.b16 %v4242
      %v4310 = vunpack.c.h.b16 %v4242
      %v4311 = vpack.c.b16 %v4279, %v4275
      %v4312 = vpack.c.b16 %v4280, %v4276
      %v4313 = vpack.c.b16 %v4281, %v4277
      %v4314 = vpack.c.b16 %v4282, %v4278
      %v4315 = vpack.c.b16 %v4287, %v4283
      %v4316 = vpack.c.b16 %v4288, %v4284
      %v4317 = vpack.c.b16 %v4289, %v4285
      %v4318 = vpack.c.b16 %v4290, %v4286
      %v4319 = vpack.c.b16 %v4295, %v4291
      %v4320 = vpack.c.b16 %v4296, %v4292
      %v4321 = vpack.c.b16 %v4297, %v4293
      %v4322 = vpack.c.b16 %v4298, %v4294
      %v4323 = vpack.c.b16 %v4303, %v4299
      %v4324 = vpack.c.b16 %v4304, %v4300
      %v4325 = vpack.c.b16 %v4305, %v4301
      %v4326 = vpack.c.b16 %v4306, %v4302
      %v4327 = vpack.c.b16 %v4307, %v4307
      %v4328 = vpack.c.b16 %v4308, %v4308
      %v4329 = vpack.c.b16 %v4309, %v4309
      %v4330 = vpack.c.b16 %v4310, %v4310
      %v4348 = vsel %vm688, %v4255, 0
      %v4351 = vsel %vm688, %v4256, 0
      %v4354 = vsel %vm701, %v4327, 0
      %v4357 = vsel %vm701, %v4328, 0
      %v4360 = vsel %vm701, %v4329, 0
      %v4363 = vsel %vm701, %v4330, 0
      %4365 = vmatprep.subr.bf16.mxu0 %v4312
      %4366 = vmatpush1.bf16.msra.mxu0 %v4311
      %4367 = vmatprep.subr.bf16.mxu0 %v4316
      %4368 = vmatpush1.bf16.msra.mxu0 %v4315
      %4369 = vmatprep.subr.bf16.mxu0 %v4320
      %4370 = vmatpush1.bf16.msra.mxu0 %v4319
      %4371 = vmatprep.subr.bf16.mxu0 %v4324
      %4372 = vmatpush1.bf16.msra.mxu0 %v4323
      %4373 = vmatprep.subr.bf16.mxu0 %v4357
      %4374 = vmatpush1.bf16.msra.mxu0 %v4354
      %4375 = vmatprep.subr.bf16.mxu0 0
      %4376 = vmatpush1.bf16.msra.mxu0 0
      %4377 = vmatprep.subr.bf16.mxu0 0
      %4378 = vmatpush1.bf16.msra.mxu0 0
      %4379 = vmatprep.subr.bf16.mxu0 0
      %4380 = vmatpush1.bf16.msra.mxu0 0
      %4381 = vmatprep.subr.bf16.mxu0 0
      %4382 = vmatpush1.bf16.msra.mxu0 0
      %4383 = vmatprep.subr.bf16.mxu0 0
      %4384 = vmatpush1.bf16.msra.mxu0 0
      %4385 = vmatprep.subr.bf16.mxu0 0
      %4386 = vmatpush1.bf16.msra.mxu0 0
      %4387 = vmatprep.subr.bf16.mxu0 0
      %4388 = vmatpush1.bf16.msra.mxu0 0
      %4389 = vmatprep.subr.bf16.mxu0 0
      %4390 = vmatpush1.bf16.msra.mxu0 0
      %4391 = vmatprep.subr.bf16.mxu0 0
      %4392 = vmatpush1.bf16.msra.mxu0 0
      %4393 = vmatprep.subr.bf16.mxu0 0
      %4394 = vmatpush1.bf16.msra.mxu0 0
      %4395 = vmatprep.subr.bf16.mxu0 0
      %4396 = vmatpush1.bf16.msra.mxu0 0
      %4397 = vmatprep.mubr.bf16.mxu0 0
      %4398 = vmatmul.mubr.bf16.gmra.mrb[0].mxu0 %v4348
      %v4399 = vpop.f32.mrb[0].mxu0
      %v4400 = vadd.f32 0.0, %v4399
      %v4401 = vpop.f32.mrb[0].mxu0
      %v4402 = vadd.f32 0.0, %v4401
      %v4403 = vpop.f32.mrb[0].mxu0
      %v4404 = vadd.f32 0.0, %v4403
      %v4405 = vpop.f32.mrb[0].mxu0
      %v4406 = vadd.f32 0.0, %v4405
      %4407 = vmatprep.mubr.bf16.mxu0 0
      %4408 = vmatmul.mubr.bf16.gmra.mrb[0].mxu0 %v4351
      %v4409 = vpop.f32.mrb[0].mxu0
      %v4410 = vadd.f32 0.0, %v4409
      %v4411 = vpop.f32.mrb[0].mxu0
      %v4412 = vadd.f32 0.0, %v4411
      %v4413 = vpop.f32.mrb[0].mxu0
      %v4414 = vadd.f32 0.0, %v4413
      %v4415 = vpop.f32.mrb[0].mxu0
      %v4416 = vadd.f32 0.0, %v4415
      %4417 = vdwg.mxu0
      %4418 = vmatprep.subr.bf16.mxu0 %v4314
      %4419 = vmatpush1.bf16.msra.mxu0 %v4313
      %4420 = vmatprep.subr.bf16.mxu0 %v4318
      %4421 = vmatpush1.bf16.msra.mxu0 %v4317
      %4422 = vmatprep.subr.bf16.mxu0 %v4322
      %4423 = vmatpush1.bf16.msra.mxu0 %v4321
      %4424 = vmatprep.subr.bf16.mxu0 %v4326
      %4425 = vmatpush1.bf16.msra.mxu0 %v4325
      %4426 = vmatprep.subr.bf16.mxu0 %v4363
      %4427 = vmatpush1.bf16.msra.mxu0 %v4360
      %4428 = vmatprep.subr.bf16.mxu0 0
      %4429 = vmatpush1.bf16.msra.mxu0 0
      %4430 = vmatprep.subr.bf16.mxu0 0
      %4431 = vmatpush1.bf16.msra.mxu0 0
      %4432 = vmatprep.subr.bf16.mxu0 0
      %4433 = vmatpush1.bf16.msra.mxu0 0
      %4434 = vmatprep.subr.bf16.mxu0 0
      %4435 = vmatpush1.bf16.msra.mxu0 0
      %4436 = vmatprep.subr.bf16.mxu0 0
      %4437 = vmatpush1.bf16.msra.mxu0 0
      %4438 = vmatprep.subr.bf16.mxu0 0
      %4439 = vmatpush1.bf16.msra.mxu0 0
      %4440 = vmatprep.subr.bf16.mxu0 0
      %4441 = vmatpush1.bf16.msra.mxu0 0
      %4442 = vmatprep.subr.bf16.mxu0 0
      %4443 = vmatpush1.bf16.msra.mxu0 0
      %4444 = vmatprep.subr.bf16.mxu0 0
      %4445 = vmatpush1.bf16.msra.mxu0 0
      %4446 = vmatprep.subr.bf16.mxu0 0
      %4447 = vmatpush1.bf16.msra.mxu0 0
      %4448 = vmatprep.subr.bf16.mxu0 0
      %4449 = vmatpush1.bf16.msra.mxu0 0
      %4450 = vmatprep.mubr.bf16.mxu0 0
      %4451 = vmatmul.mubr.bf16.gmra.mrb[0].mxu0 %v4348
      %v4452 = vpop.f32.mrb[0].mxu0
      %v4453 = vadd.f32 0.0, %v4452
      %v4454 = vpop.f32.mrb[0].mxu0
      %v4455 = vadd.f32 0.0, %v4454
      %v4456 = vpop.f32.mrb[0].mxu0
      %v4457 = vadd.f32 0.0, %v4456
      %v4458 = vpop.f32.mrb[0].mxu0
      %v4459 = vadd.f32 0.0, %v4458
      %4460 = vmatprep.mubr.bf16.mxu0 0
      %4461 = vmatmul.mubr.bf16.gmra.mrb[0].mxu0 %v4351
      %v4462 = vpop.f32.mrb[0].mxu0
      %v4463 = vadd.f32 0.0, %v4462
      %v4464 = vpop.f32.mrb[0].mxu0
      %v4465 = vadd.f32 0.0, %v4464
      %v4466 = vpop.f32.mrb[0].mxu0
      %v4467 = vadd.f32 0.0, %v4466
      %v4468 = vpop.f32.mrb[0].mxu0
      %v4469 = vadd.f32 0.0, %v4468
      %4470 = vdwg.mxu0
      %v4471 = vpack.c.bf16 %v4404, %v4400
      %v4472 = vpack.c.bf16 %v4406, %v4402
      %v4473 = vpack.c.bf16 %v4457, %v4453
      %v4474 = vpack.c.bf16 %v4459, %v4455
      %v4475 = vpack.c.bf16 %v4414, %v4410
      %v4476 = vpack.c.bf16 %v4416, %v4412
      %v4477 = vpack.c.bf16 %v4467, %v4463
      %v4478 = vpack.c.bf16 %v4469, %v4465
      %v4479 = vld [vmem:[%s5] sm:$0xff]
      %v4480 = vld [vmem:[%s5 + $0x8] sm:$0xff]
      %v4481 = vld [vmem:[%s5 + $0x10] sm:$0xff]
      %v4482 = vld [vmem:[%s5 + $0x18] sm:$0xff]
      %v4483 = vld [vmem:[%s5 + $0x20] sm:$0xff]
      %v4484 = vld [vmem:[%s5 + $0x28] sm:$0xff]
      %v4485 = vld [vmem:[%s5 + $0x30] sm:$0xff]
      %v4486 = vld [vmem:[%s5 + $0x38] sm:$0xff]
      %v4487 = vld [vmem:[%s5 + $0x40] sm:$0xff]
      %v4488 = vld [vmem:[%s5 + $0x48] sm:$0xff]
      %v4489 = vld [vmem:[%s5 + $0x50] sm:$0xff]
      %v4490 = vld [vmem:[%s5 + $0x58] sm:$0xff]
      %v4491 = vld [vmem:[%s5 + $0x60] sm:$0xff]
      %v4492 = vld [vmem:[%s5 + $0x68] sm:$0xff]
      %v4493 = vld [vmem:[%s5 + $0x70] sm:$0xff]
      %v4494 = vld [vmem:[%s5 + $0x78] sm:$0xff]
      %v4495 = vld [vmem:[%s5 + $0x80] sm:$0xff]
      %v4496 = vld [vmem:[%s5 + $0x88] sm:$0xff]
      %v4497 = vld [vmem:[%s5 + $0x90] sm:$0xff]
      %v4498 = vld [vmem:[%s5 + $0x98] sm:$0xff]
      %v4499 = vld [vmem:[%s5 + $0xa0] sm:$0xff]
      %v4500 = vld [vmem:[%s5 + $0xa8] sm:$0xff]
      %v4501 = vld [vmem:[%s5 + $0xb0] sm:$0xff]
      %v4502 = vld [vmem:[%s5 + $0xb8] sm:$0xff]
      %v4503 = vld [vmem:[%s5 + $0xc0] sm:$0xff]
      %v4504 = vld [vmem:[%s5 + $0xc8] sm:$0xff]
      %v4505 = vld [vmem:[%s5 + $0xd0] sm:$0xff]
      %v4506 = vld [vmem:[%s5 + $0xd8] sm:$0xff]
      %v4507 = vld [vmem:[%s5 + $0xe0] sm:$0xff]
      %v4508 = vld [vmem:[%s5 + $0xe8] sm:$0xff]
      %v4509 = vld [vmem:[%s5 + $0xf0] sm:$0xff]
      %v4510 = vld [vmem:[%s5 + $0xf8] sm:$0xff]
      %v4511 = vld [vmem:[%s5 + $0x100] sm:$0xff]
      %v4512 = vld [vmem:[%s5 + $0x108] sm:$0xff]
      %v4513 = vld [vmem:[%s5 + $0x110] sm:$0xff]
      %v4514 = vld [vmem:[%s5 + $0x118] sm:$0xff]
      %v4515 = vld [vmem:[%s5 + $0x120] sm:$0xff]
      %v4516 = vld [vmem:[%s5 + $0x128] sm:$0xff]
      %v4517 = vld [vmem:[%s5 + $0x130] sm:$0xff]
      %v4518 = vld [vmem:[%s5 + $0x138] sm:$0xff]
      %v4519 = vld [vmem:[%s5 + $0x140] sm:$0xff]
      %v4520 = vld [vmem:[%s5 + $0x148] sm:$0xff]
      %v4521 = vld [vmem:[%s5 + $0x150] sm:$0xff]
      %v4522 = vld [vmem:[%s5 + $0x158] sm:$0xff]
      %v4523 = vld [vmem:[%s5 + $0x160] sm:$0xff]
      %v4524 = vld [vmem:[%s5 + $0x168] sm:$0xff]
      %v4525 = vld [vmem:[%s5 + $0x170] sm:$0xff]
      %v4526 = vld [vmem:[%s5 + $0x178] sm:$0xff]
      %v4527 = vld [vmem:[%s5 + $0x180] sm:$0xff]
      %v4528 = vld [vmem:[%s5 + $0x188] sm:$0xff]
      %v4529 = vld [vmem:[%s5 + $0x190] sm:$0xff]
      %v4530 = vld [vmem:[%s5 + $0x198] sm:$0xff]
      %v4531 = vld [vmem:[%s5 + $0x1a0] sm:$0xff]
      %v4532 = vld [vmem:[%s5 + $0x1a8] sm:$0xff]
      %v4533 = vld [vmem:[%s5 + $0x1b0] sm:$0xff]
      %v4534 = vld [vmem:[%s5 + $0x1b8] sm:$0xff]
      %v4535 = vld [vmem:[%s5 + $0x1c0] sm:$0xff]
      %v4536 = vld [vmem:[%s5 + $0x1c8] sm:$0xff]
      %v4537 = vld [vmem:[%s5 + $0x1d0] sm:$0xff]
      %v4538 = vld [vmem:[%s5 + $0x1d8] sm:$0xff]
      %v4539 = vld [vmem:[%s5 + $0x1e0] sm:$0xff]
      %v4540 = vld [vmem:[%s5 + $0x1e8] sm:$0xff]
      %v4541 = vld [vmem:[%s5 + $0x1f0] sm:$0xff]
      %v4542 = vld [vmem:[%s5 + $0x1f8] sm:$0xff]
      %s4543 = scalar_lea.vmem %s4, 16
      %v4544 = vld [vmem:[%s4543] sm:$0xf]
      %v4545 = vld [vmem:[%s4543 + $0x4] sm:$0xf]
      %v4546 = vld [vmem:[%s4543 + $0x8] sm:$0xf]
      %v4547 = vld [vmem:[%s4543 + $0xc] sm:$0xf]
      %v4552 = vunpack.c.l.b16 %v4544
      %v4553 = vunpack.c.l.b16 %v4545
      %v4554 = vunpack.c.l.b16 %v4546
      %v4555 = vunpack.c.l.b16 %v4547
      %v4556 = vpack.c.b16 %v4553, %v4552
      %v4557 = vpack.c.b16 %v4555, %v4554
      %v4559 = vsel %vm688, %v4556, 0
      %v4562 = vsel %vm688, %v4557, 0
      %4564 = vmatprep.subr.bf16.mxu0 %v4312
      %4565 = vmatpush1.bf16.msra.mxu0 %v4311
      %4566 = vmatprep.subr.bf16.mxu0 %v4316
      %4567 = vmatpush1.bf16.msra.mxu0 %v4315
      %4568 = vmatprep.subr.bf16.mxu0 %v4320
      %4569 = vmatpush1.bf16.msra.mxu0 %v4319
      %4570 = vmatprep.subr.bf16.mxu0 %v4324
      %4571 = vmatpush1.bf16.msra.mxu0 %v4323
      %4572 = vmatprep.subr.bf16.mxu0 %v4357
      %4573 = vmatpush1.bf16.msra.mxu0 %v4354
      %4574 = vmatprep.subr.bf16.mxu0 0
      %4575 = vmatpush1.bf16.msra.mxu0 0
      %4576 = vmatprep.subr.bf16.mxu0 0
      %4577 = vmatpush1.bf16.msra.mxu0 0
      %4578 = vmatprep.subr.bf16.mxu0 0
      %4579 = vmatpush1.bf16.msra.mxu0 0
      %4580 = vmatprep.subr.bf16.mxu0 0
      %4581 = vmatpush1.bf16.msra.mxu0 0
      %4582 = vmatprep.subr.bf16.mxu0 0
      %4583 = vmatpush1.bf16.msra.mxu0 0
      %4584 = vmatprep.subr.bf16.mxu0 0
      %4585 = vmatpush1.bf16.msra.mxu0 0
      %4586 = vmatprep.subr.bf16.mxu0 0
      %4587 = vmatpush1.bf16.msra.mxu0 0
      %4588 = vmatprep.subr.bf16.mxu0 0
      %4589 = vmatpush1.bf16.msra.mxu0 0
      %4590 = vmatprep.subr.bf16.mxu0 0
      %4591 = vmatpush1.bf16.msra.mxu0 0
      %4592 = vmatprep.subr.bf16.mxu0 0
      %4593 = vmatpush1.bf16.msra.mxu0 0
      %4594 = vmatprep.subr.bf16.mxu0 0
      %4595 = vmatpush1.bf16.msra.mxu0 0
      %4596 = vmatprep.mubr.bf16.mxu0 0
      %4597 = vmatmul.mubr.bf16.gmra.mrb[0].mxu0 %v4559
      %v4598 = vpop.f32.mrb[0].mxu0
      %v4599 = vadd.f32 0.0, %v4598
      %v4600 = vpop.f32.mrb[0].mxu0
      %v4601 = vadd.f32 0.0, %v4600
      %v4602 = vpop.f32.mrb[0].mxu0
      %v4603 = vadd.f32 0.0, %v4602
      %v4604 = vpop.f32.mrb[0].mxu0
      %v4605 = vadd.f32 0.0, %v4604
      %4606 = vmatprep.mubr.bf16.mxu0 0
      %4607 = vmatmul.mubr.bf16.gmra.mrb[0].mxu0 %v4562
      %v4608 = vpop.f32.mrb[0].mxu0
      %v4609 = vadd.f32 0.0, %v4608
      %v4610 = vpop.f32.mrb[0].mxu0
      %v4611 = vadd.f32 0.0, %v4610
      %v4612 = vpop.f32.mrb[0].mxu0
      %v4613 = vadd.f32 0.0, %v4612
      %v4614 = vpop.f32.mrb[0].mxu0
      %v4615 = vadd.f32 0.0, %v4614
      %4616 = vdwg.mxu0
      %4617 = vmatprep.subr.bf16.mxu0 %v4314
      %4618 = vmatpush1.bf16.msra.mxu0 %v4313
      %4619 = vmatprep.subr.bf16.mxu0 %v4318
      %4620 = vmatpush1.bf16.msra.mxu0 %v4317
      %4621 = vmatprep.subr.bf16.mxu0 %v4322
      %4622 = vmatpush1.bf16.msra.mxu0 %v4321
      %4623 = vmatprep.subr.bf16.mxu0 %v4326
      %4624 = vmatpush1.bf16.msra.mxu0 %v4325
      %4625 = vmatprep.subr.bf16.mxu0 %v4363
      %4626 = vmatpush1.bf16.msra.mxu0 %v4360
      %4627 = vmatprep.subr.bf16.mxu0 0
      %4628 = vmatpush1.bf16.msra.mxu0 0
      %4629 = vmatprep.subr.bf16.mxu0 0
      %4630 = vmatpush1.bf16.msra.mxu0 0
      %4631 = vmatprep.subr.bf16.mxu0 0
      %4632 = vmatpush1.bf16.msra.mxu0 0
      %4633 = vmatprep.subr.bf16.mxu0 0
      %4634 = vmatpush1.bf16.msra.mxu0 0
      %4635 = vmatprep.subr.bf16.mxu0 0
      %4636 = vmatpush1.bf16.msra.mxu0 0
      %4637 = vmatprep.subr.bf16.mxu0 0
      %4638 = vmatpush1.bf16.msra.mxu0 0
      %4639 = vmatprep.subr.bf16.mxu0 0
      %4640 = vmatpush1.bf16.msra.mxu0 0
      %4641 = vmatprep.subr.bf16.mxu0 0
      %4642 = vmatpush1.bf16.msra.mxu0 0
      %4643 = vmatprep.subr.bf16.mxu0 0
      %4644 = vmatpush1.bf16.msra.mxu0 0
      %4645 = vmatprep.subr.bf16.mxu0 0
      %4646 = vmatpush1.bf16.msra.mxu0 0
      %4647 = vmatprep.subr.bf16.mxu0 0
      %4648 = vmatpush1.bf16.msra.mxu0 0
      %4649 = vmatprep.mubr.bf16.mxu0 0
      %4650 = vmatmul.mubr.bf16.gmra.mrb[0].mxu0 %v4559
      %v4651 = vpop.f32.mrb[0].mxu0
      %v4652 = vadd.f32 0.0, %v4651
      %v4653 = vpop.f32.mrb[0].mxu0
      %v4654 = vadd.f32 0.0, %v4653
      %v4655 = vpop.f32.mrb[0].mxu0
      %v4656 = vadd.f32 0.0, %v4655
      %v4657 = vpop.f32.mrb[0].mxu0
      %v4658 = vadd.f32 0.0, %v4657
      %4659 = vmatprep.mubr.bf16.mxu0 0
      %4660 = vmatmul.mubr.bf16.gmra.mrb[0].mxu0 %v4562
      %v4661 = vpop.f32.mrb[0].mxu0
      %v4662 = vadd.f32 0.0, %v4661
      %v4663 = vpop.f32.mrb[0].mxu0
      %v4664 = vadd.f32 0.0, %v4663
      %v4665 = vpop.f32.mrb[0].mxu0
      %v4666 = vadd.f32 0.0, %v4665
      %v4667 = vpop.f32.mrb[0].mxu0
      %v4668 = vadd.f32 0.0, %v4667
      %4669 = vdwg.mxu0
      %v4670 = vpack.c.bf16 %v4603, %v4599
      %v4671 = vpack.c.bf16 %v4605, %v4601
      %v4672 = vpack.c.bf16 %v4656, %v4652
      %v4673 = vpack.c.bf16 %v4658, %v4654
      %v4674 = vpack.c.bf16 %v4613, %v4609
      %v4675 = vpack.c.bf16 %v4615, %v4611
      %v4676 = vpack.c.bf16 %v4666, %v4662
      %v4677 = vpack.c.bf16 %v4668, %v4664
      %s4678 = scalar_lea.vmem %s5, 512
      %v4679 = vld [vmem:[%s4678] sm:$0xff]
      %v4680 = vld [vmem:[%s4678 + $0x8] sm:$0xff]
      %v4681 = vld [vmem:[%s4678 + $0x10] sm:$0xff]
      %v4682 = vld [vmem:[%s4678 + $0x18] sm:$0xff]
      %v4683 = vld [vmem:[%s4678 + $0x20] sm:$0xff]
      %v4684 = vld [vmem:[%s4678 + $0x28] sm:$0xff]
      %v4685 = vld [vmem:[%s4678 + $0x30] sm:$0xff]
      %v4686 = vld [vmem:[%s4678 + $0x38] sm:$0xff]
      %v4687 = vld [vmem:[%s4678 + $0x40] sm:$0xff]
      %v4688 = vld [vmem:[%s4678 + $0x48] sm:$0xff]
      %v4689 = vld [vmem:[%s4678 + $0x50] sm:$0xff]
      %v4690 = vld [vmem:[%s4678 + $0x58] sm:$0xff]
      %v4691 = vld [vmem:[%s4678 + $0x60] sm:$0xff]
      %v4692 = vld [vmem:[%s4678 + $0x68] sm:$0xff]
      %v4693 = vld [vmem:[%s4678 + $0x70] sm:$0xff]
      %v4694 = vld [vmem:[%s4678 + $0x78] sm:$0xff]
      %v4695 = vld [vmem:[%s4678 + $0x80] sm:$0xff]
      %v4696 = vld [vmem:[%s4678 + $0x88] sm:$0xff]
      %v4697 = vld [vmem:[%s4678 + $0x90] sm:$0xff]
      %v4698 = vld [vmem:[%s4678 + $0x98] sm:$0xff]
      %v4699 = vld [vmem:[%s4678 + $0xa0] sm:$0xff]
      %v4700 = vld [vmem:[%s4678 + $0xa8] sm:$0xff]
      %v4701 = vld [vmem:[%s4678 + $0xb0] sm:$0xff]
      %v4702 = vld [vmem:[%s4678 + $0xb8] sm:$0xff]
      %v4703 = vld [vmem:[%s4678 + $0xc0] sm:$0xff]
      %v4704 = vld [vmem:[%s4678 + $0xc8] sm:$0xff]
      %v4705 = vld [vmem:[%s4678 + $0xd0] sm:$0xff]
      %v4706 = vld [vmem:[%s4678 + $0xd8] sm:$0xff]
      %v4707 = vld [vmem:[%s4678 + $0xe0] sm:$0xff]
      %v4708 = vld [vmem:[%s4678 + $0xe8] sm:$0xff]
      %v4709 = vld [vmem:[%s4678 + $0xf0] sm:$0xff]
      %v4710 = vld [vmem:[%s4678 + $0xf8] sm:$0xff]
      %v4711 = vld [vmem:[%s4678 + $0x100] sm:$0xff]
      %v4712 = vld [vmem:[%s4678 + $0x108] sm:$0xff]
      %v4713 = vld [vmem:[%s4678 + $0x110] sm:$0xff]
      %v4714 = vld [vmem:[%s4678 + $0x118] sm:$0xff]
      %v4715 = vld [vmem:[%s4678 + $0x120] sm:$0xff]
      %v4716 = vld [vmem:[%s4678 + $0x128] sm:$0xff]
      %v4717 = vld [vmem:[%s4678 + $0x130] sm:$0xff]
      %v4718 = vld [vmem:[%s4678 + $0x138] sm:$0xff]
      %v4719 = vld [vmem:[%s4678 + $0x140] sm:$0xff]
      %v4720 = vld [vmem:[%s4678 + $0x148] sm:$0xff]
      %v4721 = vld [vmem:[%s4678 + $0x150] sm:$0xff]
      %v4722 = vld [vmem:[%s4678 + $0x158] sm:$0xff]
      %v4723 = vld [vmem:[%s4678 + $0x160] sm:$0xff]
      %v4724 = vld [vmem:[%s4678 + $0x168] sm:$0xff]
      %v4725 = vld [vmem:[%s4678 + $0x170] sm:$0xff]
      %v4726 = vld [vmem:[%s4678 + $0x178] sm:$0xff]
      %v4727 = vld [vmem:[%s4678 + $0x180] sm:$0xff]
      %v4728 = vld [vmem:[%s4678 + $0x188] sm:$0xff]
      %v4729 = vld [vmem:[%s4678 + $0x190] sm:$0xff]
      %v4730 = vld [vmem:[%s4678 + $0x198] sm:$0xff]
      %v4731 = vld [vmem:[%s4678 + $0x1a0] sm:$0xff]
      %v4732 = vld [vmem:[%s4678 + $0x1a8] sm:$0xff]
      %v4733 = vld [vmem:[%s4678 + $0x1b0] sm:$0xff]
      %v4734 = vld [vmem:[%s4678 + $0x1b8] sm:$0xff]
      %v4735 = vld [vmem:[%s4678 + $0x1c0] sm:$0xff]
      %v4736 = vld [vmem:[%s4678 + $0x1c8] sm:$0xff]
      %v4737 = vld [vmem:[%s4678 + $0x1d0] sm:$0xff]
      %v4738 = vld [vmem:[%s4678 + $0x1d8] sm:$0xff]
      %v4739 = vld [vmem:[%s4678 + $0x1e0] sm:$0xff]
      %v4740 = vld [vmem:[%s4678 + $0x1e8] sm:$0xff]
      %v4741 = vld [vmem:[%s4678 + $0x1f0] sm:$0xff]
      %v4742 = vld [vmem:[%s4678 + $0x1f8] sm:$0xff]
      %v4807 = vunpack.c.l.b16 %v4679
      %v4808 = vunpack.c.h.b16 %v4679
      %v4809 = vunpack.c.l.b16 %v4680
      %v4810 = vunpack.c.h.b16 %v4680
      %v4811 = vunpack.c.l.b16 %v4681
      %v4812 = vunpack.c.h.b16 %v4681
      %v4813 = vunpack.c.l.b16 %v4682
      %v4814 = vunpack.c.h.b16 %v4682
      %v4815 = vunpack.c.l.b16 %v4683
      %v4816 = vunpack.c.h.b16 %v4683
      %v4817 = vunpack.c.l.b16 %v4684
      %v4818 = vunpack.c.h.b16 %v4684
      %v4819 = vunpack.c.l.b16 %v4685
      %v4820 = vunpack.c.h.b16 %v4685
      %v4821 = vunpack.c.l.b16 %v4686
      %v4822 = vunpack.c.h.b16 %v4686
      %v4823 = vunpack.c.l.b16 %v4687
      %v4824 = vunpack.c.h.b16 %v4687
      %v4825 = vunpack.c.l.b16 %v4688
      %v4826 = vunpack.c.h.b16 %v4688
      %v4827 = vunpack.c.l.b16 %v4689
      %v4828 = vunpack.c.h.b16 %v4689
      %v4829 = vunpack.c.l.b16 %v4690
      %v4830 = vunpack.c.h.b16 %v4690
      %v4831 = vunpack.c.l.b16 %v4691
      %v4832 = vunpack.c.h.b16 %v4691
      %v4833 = vunpack.c.l.b16 %v4692
      %v4834 = vunpack.c.h.b16 %v4692
      %v4835 = vunpack.c.l.b16 %v4693
      %v4836 = vunpack.c.h.b16 %v4693
      %v4837 = vunpack.c.l.b16 %v4694
      %v4838 = vunpack.c.h.b16 %v4694
      %v4839 = vunpack.c.l.b16 %v4695
      %v4840 = vunpack.c.h.b16 %v4695
      %v4841 = vunpack.c.l.b16 %v4696
      %v4842 = vunpack.c.h.b16 %v4696
      %v4843 = vunpack.c.l.b16 %v4697
      %v4844 = vunpack.c.h.b16 %v4697
      %v4845 = vunpack.c.l.b16 %v4698
      %v4846 = vunpack.c.h.b16 %v4698
      %v4847 = vunpack.c.l.b16 %v4699
      %v4848 = vunpack.c.h.b16 %v4699
      %v4849 = vunpack.c.l.b16 %v4700
      %v4850 = vunpack.c.h.b16 %v4700
      %v4851 = vunpack.c.l.b16 %v4701
      %v4852 = vunpack.c.h.b16 %v4701
      %v4853 = vunpack.c.l.b16 %v4702
      %v4854 = vunpack.c.h.b16 %v4702
      %v4855 = vunpack.c.l.b16 %v4703
      %v4856 = vunpack.c.h.b16 %v4703
      %v4857 = vunpack.c.l.b16 %v4704
      %v4858 = vunpack.c.h.b16 %v4704
      %v4859 = vunpack.c.l.b16 %v4705
      %v4860 = vunpack.c.h.b16 %v4705
      %v4861 = vunpack.c.l.b16 %v4706
      %v4862 = vunpack.c.h.b16 %v4706
      %v4863 = vunpack.c.l.b16 %v4707
      %v4864 = vunpack.c.h.b16 %v4707
      %v4865 = vunpack.c.l.b16 %v4708
      %v4866 = vunpack.c.h.b16 %v4708
      %v4867 = vunpack.c.l.b16 %v4709
      %v4868 = vunpack.c.h.b16 %v4709
      %v4869 = vunpack.c.l.b16 %v4710
      %v4870 = vunpack.c.h.b16 %v4710
      %v4871 = vunpack.c.l.b16 %v4711
      %v4872 = vunpack.c.h.b16 %v4711
      %v4873 = vunpack.c.l.b16 %v4712
      %v4874 = vunpack.c.h.b16 %v4712
      %v4875 = vunpack.c.l.b16 %v4713
      %v4876 = vunpack.c.h.b16 %v4713
      %v4877 = vunpack.c.l.b16 %v4714
      %v4878 = vunpack.c.h.b16 %v4714
      %v4879 = vunpack.c.l.b16 %v4715
      %v4880 = vunpack.c.h.b16 %v4715
      %v4881 = vunpack.c.l.b16 %v4716
      %v4882 = vunpack.c.h.b16 %v4716
      %v4883 = vunpack.c.l.b16 %v4717
      %v4884 = vunpack.c.h.b16 %v4717
      %v4885 = vunpack.c.l.b16 %v4718
      %v4886 = vunpack.c.h.b16 %v4718
      %v4887 = vunpack.c.l.b16 %v4719
      %v4888 = vunpack.c.h.b16 %v4719
      %v4889 = vunpack.c.l.b16 %v4720
      %v4890 = vunpack.c.h.b16 %v4720
      %v4891 = vunpack.c.l.b16 %v4721
      %v4892 = vunpack.c.h.b16 %v4721
      %v4893 = vunpack.c.l.b16 %v4722
      %v4894 = vunpack.c.h.b16 %v4722
      %v4895 = vunpack.c.l.b16 %v4723
      %v4896 = vunpack.c.h.b16 %v4723
      %v4897 = vunpack.c.l.b16 %v4724
      %v4898 = vunpack.c.h.b16 %v4724
      %v4899 = vunpack.c.l.b16 %v4725
      %v4900 = vunpack.c.h.b16 %v4725
      %v4901 = vunpack.c.l.b16 %v4726
      %v4902 = vunpack.c.h.b16 %v4726
      %v4903 = vunpack.c.l.b16 %v4727
      %v4904 = vunpack.c.h.b16 %v4727
      %v4905 = vunpack.c.l.b16 %v4728
      %v4906 = vunpack.c.h.b16 %v4728
      %v4907 = vunpack.c.l.b16 %v4729
      %v4908 = vunpack.c.h.b16 %v4729
      %v4909 = vunpack.c.l.b16 %v4730
      %v4910 = vunpack.c.h.b16 %v4730
      %v4911 = vunpack.c.l.b16 %v4731
      %v4912 = vunpack.c.h.b16 %v4731
      %v4913 = vunpack.c.l.b16 %v4732
      %v4914 = vunpack.c.h.b16 %v4732
      %v4915 = vunpack.c.l.b16 %v4733
      %v4916 = vunpack.c.h.b16 %v4733
      %v4917 = vunpack.c.l.b16 %v4734
      %v4918 = vunpack.c.h.b16 %v4734
      %v4919 = vunpack.c.l.b16 %v4735
      %v4920 = vunpack.c.h.b16 %v4735
      %v4921 = vunpack.c.l.b16 %v4736
      %v4922 = vunpack.c.h.b16 %v4736
      %v4923 = vunpack.c.l.b16 %v4737
      %v4924 = vunpack.c.h.b16 %v4737
      %v4925 = vunpack.c.l.b16 %v4738
      %v4926 = vunpack.c.h.b16 %v4738
      %v4927 = vunpack.c.l.b16 %v4739
      %v4928 = vunpack.c.h.b16 %v4739
      %v4929 = vunpack.c.l.b16 %v4740
      %v4930 = vunpack.c.h.b16 %v4740
      %v4931 = vunpack.c.l.b16 %v4741
      %v4932 = vunpack.c.h.b16 %v4741
      %v4933 = vunpack.c.l.b16 %v4742
      %v4934 = vunpack.c.h.b16 %v4742
      %v4935 = vpack.c.b16 %v4809, %v4807
      %v4936 = vpack.c.b16 %v4810, %v4808
      %v4937 = vpack.c.b16 %v4813, %v4811
      %v4938 = vpack.c.b16 %v4814, %v4812
      %v4939 = vpack.c.b16 %v4817, %v4815
      %v4940 = vpack.c.b16 %v4818, %v4816
      %v4941 = vpack.c.b16 %v4821, %v4819
      %v4942 = vpack.c.b16 %v4822, %v4820
      %v4943 = vpack.c.b16 %v4825, %v4823
      %v4944 = vpack.c.b16 %v4826, %v4824
      %v4945 = vpack.c.b16 %v4829, %v4827
      %v4946 = vpack.c.b16 %v4830, %v4828
      %v4947 = vpack.c.b16 %v4833, %v4831
      %v4948 = vpack.c.b16 %v4834, %v4832
      %v4949 = vpack.c.b16 %v4837, %v4835
      %v4950 = vpack.c.b16 %v4838, %v4836
      %v4951 = vpack.c.b16 %v4841, %v4839
      %v4952 = vpack.c.b16 %v4842, %v4840
      %v4953 = vpack.c.b16 %v4845, %v4843
      %v4954 = vpack.c.b16 %v4846, %v4844
      %v4955 = vpack.c.b16 %v4849, %v4847
      %v4956 = vpack.c.b16 %v4850, %v4848
      %v4957 = vpack.c.b16 %v4853, %v4851
      %v4958 = vpack.c.b16 %v4854, %v4852
      %v4959 = vpack.c.b16 %v4857, %v4855
      %v4960 = vpack.c.b16 %v4858, %v4856
      %v4961 = vpack.c.b16 %v4861, %v4859
      %v4962 = vpack.c.b16 %v4862, %v4860
      %v4963 = vpack.c.b16 %v4865, %v4863
      %v4964 = vpack.c.b16 %v4866, %v4864
      %v4965 = vpack.c.b16 %v4869, %v4867
      %v4966 = vpack.c.b16 %v4870, %v4868
      %v4967 = vpack.c.b16 %v4873, %v4871
      %v4968 = vpack.c.b16 %v4874, %v4872
      %v4969 = vpack.c.b16 %v4877, %v4875
      %v4970 = vpack.c.b16 %v4878, %v4876
      %v4971 = vpack.c.b16 %v4881, %v4879
      %v4972 = vpack.c.b16 %v4882, %v4880
      %v4973 = vpack.c.b16 %v4885, %v4883
      %v4974 = vpack.c.b16 %v4886, %v4884
      %v4975 = vpack.c.b16 %v4889, %v4887
      %v4976 = vpack.c.b16 %v4890, %v4888
      %v4977 = vpack.c.b16 %v4893, %v4891
      %v4978 = vpack.c.b16 %v4894, %v4892
      %v4979 = vpack.c.b16 %v4897, %v4895
      %v4980 = vpack.c.b16 %v4898, %v4896
      %v4981 = vpack.c.b16 %v4901, %v4899
      %v4982 = vpack.c.b16 %v4902, %v4900
      %v4983 = vpack.c.b16 %v4905, %v4903
      %v4984 = vpack.c.b16 %v4906, %v4904
      %v4985 = vpack.c.b16 %v4909, %v4907
      %v4986 = vpack.c.b16 %v4910, %v4908
      %v4987 = vpack.c.b16 %v4913, %v4911
      %v4988 = vpack.c.b16 %v4914, %v4912
      %v4989 = vpack.c.b16 %v4917, %v4915
      %v4990 = vpack.c.b16 %v4918, %v4916
      %v4991 = vpack.c.b16 %v4921, %v4919
      %v4992 = vpack.c.b16 %v4922, %v4920
      %v4993 = vpack.c.b16 %v4925, %v4923
      %v4994 = vpack.c.b16 %v4926, %v4924
      %v4995 = vpack.c.b16 %v4929, %v4927
      %v4996 = vpack.c.b16 %v4930, %v4928
      %v4997 = vpack.c.b16 %v4933, %v4931
      %v4998 = vpack.c.b16 %v4934, %v4932
      %5063 = vmatprep.subr.bf16.mxu0 %v4936
      %5064 = vmatpush1.bf16.msra.mxu0 %v4935
      %5065 = vmatprep.subr.bf16.mxu0 %v4938
      %5066 = vmatpush1.bf16.msra.mxu0 %v4937
      %5067 = vmatprep.subr.bf16.mxu0 %v4940
      %5068 = vmatpush1.bf16.msra.mxu0 %v4939
      %5069 = vmatprep.subr.bf16.mxu0 %v4942
      %5070 = vmatpush1.bf16.msra.mxu0 %v4941
      %5071 = vmatprep.subr.bf16.mxu0 %v4944
      %5072 = vmatpush1.bf16.msra.mxu0 %v4943
      %5073 = vmatprep.subr.bf16.mxu0 %v4946
      %5074 = vmatpush1.bf16.msra.mxu0 %v4945
      %5075 = vmatprep.subr.bf16.mxu0 %v4948
      %5076 = vmatpush1.bf16.msra.mxu0 %v4947
      %5077 = vmatprep.subr.bf16.mxu0 %v4950
      %5078 = vmatpush1.bf16.msra.mxu0 %v4949
      %5079 = vmatprep.subr.bf16.mxu0 %v4952
      %5080 = vmatpush1.bf16.msra.mxu0 %v4951
      %5081 = vmatprep.subr.bf16.mxu0 %v4954
      %5082 = vmatpush1.bf16.msra.mxu0 %v4953
      %5083 = vmatprep.subr.bf16.mxu0 %v4956
      %5084 = vmatpush1.bf16.msra.mxu0 %v4955
      %5085 = vmatprep.subr.bf16.mxu0 %v4958
      %5086 = vmatpush1.bf16.msra.mxu0 %v4957
      %5087 = vmatprep.subr.bf16.mxu0 %v4960
      %5088 = vmatpush1.bf16.msra.mxu0 %v4959
      %5089 = vmatprep.subr.bf16.mxu0 %v4962
      %5090 = vmatpush1.bf16.msra.mxu0 %v4961
      %5091 = vmatprep.subr.bf16.mxu0 %v4964
      %5092 = vmatpush1.bf16.msra.mxu0 %v4963
      %5093 = vmatprep.subr.bf16.mxu0 %v4966
      %5094 = vmatpush1.bf16.msra.mxu0 %v4965
      %5095 = vmatprep.mubr.bf16.mxu0 %v4671
      %5096 = vmatmul.mubr.bf16.gmra.mrb[0].mxu0 %v4670
      %v5097 = vpop.f32.mrb[0].mxu0
      %v5098 = vadd.f32 0.0, %v5097
      %v5099 = vpop.f32.mrb[0].mxu0
      %v5100 = vadd.f32 0.0, %v5099
      %v5101 = vpop.f32.mrb[0].mxu0
      %v5102 = vadd.f32 0.0, %v5101
      %v5103 = vpop.f32.mrb[0].mxu0
      %v5104 = vadd.f32 0.0, %v5103
      %5105 = vmatprep.mubr.bf16.mxu0 %v4675
      %5106 = vmatmul.mubr.bf16.gmra.mrb[0].mxu0 %v4674
      %v5107 = vpop.f32.mrb[0].mxu0
      %v5108 = vadd.f32 0.0, %v5107
      %v5109 = vpop.f32.mrb[0].mxu0
      %v5110 = vadd.f32 0.0, %v5109
      %v5111 = vpop.f32.mrb[0].mxu0
      %v5112 = vadd.f32 0.0, %v5111
      %v5113 = vpop.f32.mrb[0].mxu0
      %v5114 = vadd.f32 0.0, %v5113
      %5115 = vdwg.mxu0
      %5116 = vmatprep.subr.bf16.mxu0 %v4968
      %5117 = vmatpush1.bf16.msra.mxu0 %v4967
      %5118 = vmatprep.subr.bf16.mxu0 %v4970
      %5119 = vmatpush1.bf16.msra.mxu0 %v4969
      %5120 = vmatprep.subr.bf16.mxu0 %v4972
      %5121 = vmatpush1.bf16.msra.mxu0 %v4971
      %5122 = vmatprep.subr.bf16.mxu0 %v4974
      %5123 = vmatpush1.bf16.msra.mxu0 %v4973
      %5124 = vmatprep.subr.bf16.mxu0 %v4976
      %5125 = vmatpush1.bf16.msra.mxu0 %v4975
      %5126 = vmatprep.subr.bf16.mxu0 %v4978
      %5127 = vmatpush1.bf16.msra.mxu0 %v4977
      %5128 = vmatprep.subr.bf16.mxu0 %v4980
      %5129 = vmatpush1.bf16.msra.mxu0 %v4979
      %5130 = vmatprep.subr.bf16.mxu0 %v4982
      %5131 = vmatpush1.bf16.msra.mxu0 %v4981
      %5132 = vmatprep.subr.bf16.mxu0 %v4984
      %5133 = vmatpush1.bf16.msra.mxu0 %v4983
      %5134 = vmatprep.subr.bf16.mxu0 %v4986
      %5135 = vmatpush1.bf16.msra.mxu0 %v4985
      %5136 = vmatprep.subr.bf16.mxu0 %v4988
      %5137 = vmatpush1.bf16.msra.mxu0 %v4987
      %5138 = vmatprep.subr.bf16.mxu0 %v4990
      %5139 = vmatpush1.bf16.msra.mxu0 %v4989
      %5140 = vmatprep.subr.bf16.mxu0 %v4992
      %5141 = vmatpush1.bf16.msra.mxu0 %v4991
      %5142 = vmatprep.subr.bf16.mxu0 %v4994
      %5143 = vmatpush1.bf16.msra.mxu0 %v4993
      %5144 = vmatprep.subr.bf16.mxu0 %v4996
      %5145 = vmatpush1.bf16.msra.mxu0 %v4995
      %5146 = vmatprep.subr.bf16.mxu0 %v4998
      %5147 = vmatpush1.bf16.msra.mxu0 %v4997
      %5148 = vmatprep.mubr.bf16.mxu0 %v4673
      %5149 = vmatmul.mubr.bf16.gmra.mrb[0].mxu0 %v4672
      %v5150 = vpop.f32.mrb[0].mxu0
      %v5151 = vadd.f32 %v5098, %v5150
      %v5152 = vpop.f32.mrb[0].mxu0
      %v5153 = vadd.f32 %v5100, %v5152
      %v5154 = vpop.f32.mrb[0].mxu0
      %v5155 = vadd.f32 %v5102, %v5154
      %v5156 = vpop.f32.mrb[0].mxu0
      %v5157 = vadd.f32 %v5104, %v5156
      %5158 = vmatprep.mubr.bf16.mxu0 %v4677
      %5159 = vmatmul.mubr.bf16.gmra.mrb[0].mxu0 %v4676
      %v5160 = vpop.f32.mrb[0].mxu0
      %v5161 = vadd.f32 %v5108, %v5160
      %v5162 = vpop.f32.mrb[0].mxu0
      %v5163 = vadd.f32 %v5110, %v5162
      %v5164 = vpop.f32.mrb[0].mxu0
      %v5165 = vadd.f32 %v5112, %v5164
      %v5166 = vpop.f32.mrb[0].mxu0
      %v5167 = vadd.f32 %v5114, %v5166
      %5168 = vdwg.mxu0
      %v5233 = vunpack.c.l.b16 %v4479
      %v5234 = vunpack.c.h.b16 %v4479
      %v5235 = vunpack.c.l.b16 %v4480
      %v5236 = vunpack.c.h.b16 %v4480
      %v5237 = vunpack.c.l.b16 %v4481
      %v5238 = vunpack.c.h.b16 %v4481
      %v5239 = vunpack.c.l.b16 %v4482
      %v5240 = vunpack.c.h.b16 %v4482
      %v5241 = vunpack.c.l.b16 %v4483
      %v5242 = vunpack.c.h.b16 %v4483
      %v5243 = vunpack.c.l.b16 %v4484
      %v5244 = vunpack.c.h.b16 %v4484
      %v5245 = vunpack.c.l.b16 %v4485
      %v5246 = vunpack.c.h.b16 %v4485
      %v5247 = vunpack.c.l.b16 %v4486
      %v5248 = vunpack.c.h.b16 %v4486
      %v5249 = vunpack.c.l.b16 %v4487
      %v5250 = vunpack.c.h.b16 %v4487
      %v5251 = vunpack.c.l.b16 %v4488
      %v5252 = vunpack.c.h.b16 %v4488
      %v5253 = vunpack.c.l.b16 %v4489
      %v5254 = vunpack.c.h.b16 %v4489
      %v5255 = vunpack.c.l.b16 %v4490
      %v5256 = vunpack.c.h.b16 %v4490
      %v5257 = vunpack.c.l.b16 %v4491
      %v5258 = vunpack.c.h.b16 %v4491
      %v5259 = vunpack.c.l.b16 %v4492
      %v5260 = vunpack.c.h.b16 %v4492
      %v5261 = vunpack.c.l.b16 %v4493
      %v5262 = vunpack.c.h.b16 %v4493
      %v5263 = vunpack.c.l.b16 %v4494
      %v5264 = vunpack.c.h.b16 %v4494
      %v5265 = vunpack.c.l.b16 %v4495
      %v5266 = vunpack.c.h.b16 %v4495
      %v5267 = vunpack.c.l.b16 %v4496
      %v5268 = vunpack.c.h.b16 %v4496
      %v5269 = vunpack.c.l.b16 %v4497
      %v5270 = vunpack.c.h.b16 %v4497
      %v5271 = vunpack.c.l.b16 %v4498
      %v5272 = vunpack.c.h.b16 %v4498
      %v5273 = vunpack.c.l.b16 %v4499
      %v5274 = vunpack.c.h.b16 %v4499
      %v5275 = vunpack.c.l.b16 %v4500
      %v5276 = vunpack.c.h.b16 %v4500
      %v5277 = vunpack.c.l.b16 %v4501
      %v5278 = vunpack.c.h.b16 %v4501
      %v5279 = vunpack.c.l.b16 %v4502
      %v5280 = vunpack.c.h.b16 %v4502
      %v5281 = vunpack.c.l.b16 %v4503
      %v5282 = vunpack.c.h.b16 %v4503
      %v5283 = vunpack.c.l.b16 %v4504
      %v5284 = vunpack.c.h.b16 %v4504
      %v5285 = vunpack.c.l.b16 %v4505
      %v5286 = vunpack.c.h.b16 %v4505
      %v5287 = vunpack.c.l.b16 %v4506
      %v5288 = vunpack.c.h.b16 %v4506
      %v5289 = vunpack.c.l.b16 %v4507
      %v5290 = vunpack.c.h.b16 %v4507
      %v5291 = vunpack.c.l.b16 %v4508
      %v5292 = vunpack.c.h.b16 %v4508
      %v5293 = vunpack.c.l.b16 %v4509
      %v5294 = vunpack.c.h.b16 %v4509
      %v5295 = vunpack.c.l.b16 %v4510
      %v5296 = vunpack.c.h.b16 %v4510
      %v5297 = vunpack.c.l.b16 %v4511
      %v5298 = vunpack.c.h.b16 %v4511
      %v5299 = vunpack.c.l.b16 %v4512
      %v5300 = vunpack.c.h.b16 %v4512
      %v5301 = vunpack.c.l.b16 %v4513
      %v5302 = vunpack.c.h.b16 %v4513
      %v5303 = vunpack.c.l.b16 %v4514
      %v5304 = vunpack.c.h.b16 %v4514
      %v5305 = vunpack.c.l.b16 %v4515
      %v5306 = vunpack.c.h.b16 %v4515
      %v5307 = vunpack.c.l.b16 %v4516
      %v5308 = vunpack.c.h.b16 %v4516
      %v5309 = vunpack.c.l.b16 %v4517
      %v5310 = vunpack.c.h.b16 %v4517
      %v5311 = vunpack.c.l.b16 %v4518
      %v5312 = vunpack.c.h.b16 %v4518
      %v5313 = vunpack.c.l.b16 %v4519
      %v5314 = vunpack.c.h.b16 %v4519
      %v5315 = vunpack.c.l.b16 %v4520
      %v5316 = vunpack.c.h.b16 %v4520
      %v5317 = vunpack.c.l.b16 %v4521
      %v5318 = vunpack.c.h.b16 %v4521
      %v5319 = vunpack.c.l.b16 %v4522
      %v5320 = vunpack.c.h.b16 %v4522
      %v5321 = vunpack.c.l.b16 %v4523
      %v5322 = vunpack.c.h.b16 %v4523
      %v5323 = vunpack.c.l.b16 %v4524
      %v5324 = vunpack.c.h.b16 %v4524
      %v5325 = vunpack.c.l.b16 %v4525
      %v5326 = vunpack.c.h.b16 %v4525
      %v5327 = vunpack.c.l.b16 %v4526
      %v5328 = vunpack.c.h.b16 %v4526
      %v5329 = vunpack.c.l.b16 %v4527
      %v5330 = vunpack.c.h.b16 %v4527
      %v5331 = vunpack.c.l.b16 %v4528
      %v5332 = vunpack.c.h.b16 %v4528
      %v5333 = vunpack.c.l.b16 %v4529
      %v5334 = vunpack.c.h.b16 %v4529
      %v5335 = vunpack.c.l.b16 %v4530
      %v5336 = vunpack.c.h.b16 %v4530
      %v5337 = vunpack.c.l.b16 %v4531
      %v5338 = vunpack.c.h.b16 %v4531
      %v5339 = vunpack.c.l.b16 %v4532
      %v5340 = vunpack.c.h.b16 %v4532
      %v5341 = vunpack.c.l.b16 %v4533
      %v5342 = vunpack.c.h.b16 %v4533
      %v5343 = vunpack.c.l.b16 %v4534
      %v5344 = vunpack.c.h.b16 %v4534
      %v5345 = vunpack.c.l.b16 %v4535
      %v5346 = vunpack.c.h.b16 %v4535
      %v5347 = vunpack.c.l.b16 %v4536
      %v5348 = vunpack.c.h.b16 %v4536
      %v5349 = vunpack.c.l.b16 %v4537
      %v5350 = vunpack.c.h.b16 %v4537
      %v5351 = vunpack.c.l.b16 %v4538
      %v5352 = vunpack.c.h.b16 %v4538
      %v5353 = vunpack.c.l.b16 %v4539
      %v5354 = vunpack.c.h.b16 %v4539
      %v5355 = vunpack.c.l.b16 %v4540
      %v5356 = vunpack.c.h.b16 %v4540
      %v5357 = vunpack.c.l.b16 %v4541
      %v5358 = vunpack.c.h.b16 %v4541
      %v5359 = vunpack.c.l.b16 %v4542
      %v5360 = vunpack.c.h.b16 %v4542
      %v5361 = vpack.c.b16 %v5235, %v5233
      %v5362 = vpack.c.b16 %v5236, %v5234
      %v5363 = vpack.c.b16 %v5239, %v5237
      %v5364 = vpack.c.b16 %v5240, %v5238
      %v5365 = vpack.c.b16 %v5243, %v5241
      %v5366 = vpack.c.b16 %v5244, %v5242
      %v5367 = vpack.c.b16 %v5247, %v5245
      %v5368 = vpack.c.b16 %v5248, %v5246
      %v5369 = vpack.c.b16 %v5251, %v5249
      %v5370 = vpack.c.b16 %v5252, %v5250
      %v5371 = vpack.c.b16 %v5255, %v5253
      %v5372 = vpack.c.b16 %v5256, %v5254
      %v5373 = vpack.c.b16 %v5259, %v5257
      %v5374 = vpack.c.b16 %v5260, %v5258
      %v5375 = vpack.c.b16 %v5263, %v5261
      %v5376 = vpack.c.b16 %v5264, %v5262
      %v5377 = vpack.c.b16 %v5267, %v5265
      %v5378 = vpack.c.b16 %v5268, %v5266
      %v5379 = vpack.c.b16 %v5271, %v5269
      %v5380 = vpack.c.b16 %v5272, %v5270
      %v5381 = vpack.c.b16 %v5275, %v5273
      %v5382 = vpack.c.b16 %v5276, %v5274
      %v5383 = vpack.c.b16 %v5279, %v5277
      %v5384 = vpack.c.b16 %v5280, %v5278
      %v5385 = vpack.c.b16 %v5283, %v5281
      %v5386 = vpack.c.b16 %v5284, %v5282
      %v5387 = vpack.c.b16 %v5287, %v5285
      %v5388 = vpack.c.b16 %v5288, %v5286
      %v5389 = vpack.c.b16 %v5291, %v5289
      %v5390 = vpack.c.b16 %v5292, %v5290
      %v5391 = vpack.c.b16 %v5295, %v5293
      %v5392 = vpack.c.b16 %v5296, %v5294
      %v5393 = vpack.c.b16 %v5299, %v5297
      %v5394 = vpack.c.b16 %v5300, %v5298
      %v5395 = vpack.c.b16 %v5303, %v5301
      %v5396 = vpack.c.b16 %v5304, %v5302
      %v5397 = vpack.c.b16 %v5307, %v5305
      %v5398 = vpack.c.b16 %v5308, %v5306
      %v5399 = vpack.c.b16 %v5311, %v5309
      %v5400 = vpack.c.b16 %v5312, %v5310
      %v5401 = vpack.c.b16 %v5315, %v5313
      %v5402 = vpack.c.b16 %v5316, %v5314
      %v5403 = vpack.c.b16 %v5319, %v5317
      %v5404 = vpack.c.b16 %v5320, %v5318
      %v5405 = vpack.c.b16 %v5323, %v5321
      %v5406 = vpack.c.b16 %v5324, %v5322
      %v5407 = vpack.c.b16 %v5327, %v5325
      %v5408 = vpack.c.b16 %v5328, %v5326
      %v5409 = vpack.c.b16 %v5331, %v5329
      %v5410 = vpack.c.b16 %v5332, %v5330
      %v5411 = vpack.c.b16 %v5335, %v5333
      %v5412 = vpack.c.b16 %v5336, %v5334
      %v5413 = vpack.c.b16 %v5339, %v5337
      %v5414 = vpack.c.b16 %v5340, %v5338
      %v5415 = vpack.c.b16 %v5343, %v5341
      %v5416 = vpack.c.b16 %v5344, %v5342
      %v5417 = vpack.c.b16 %v5347, %v5345
      %v5418 = vpack.c.b16 %v5348, %v5346
      %v5419 = vpack.c.b16 %v5351, %v5349
      %v5420 = vpack.c.b16 %v5352, %v5350
      %v5421 = vpack.c.b16 %v5355, %v5353
      %v5422 = vpack.c.b16 %v5356, %v5354
      %v5423 = vpack.c.b16 %v5359, %v5357
      %v5424 = vpack.c.b16 %v5360, %v5358
      %5489 = vmatprep.subr.bf16.mxu0 %v5362
      %5490 = vmatpush1.bf16.msra.mxu0 %v5361
      %5491 = vmatprep.subr.bf16.mxu0 %v5364
      %5492 = vmatpush1.bf16.msra.mxu0 %v5363
      %5493 = vmatprep.subr.bf16.mxu0 %v5366
      %5494 = vmatpush1.bf16.msra.mxu0 %v5365
      %5495 = vmatprep.subr.bf16.mxu0 %v5368
      %5496 = vmatpush1.bf16.msra.mxu0 %v5367
      %5497 = vmatprep.subr.bf16.mxu0 %v5370
      %5498 = vmatpush1.bf16.msra.mxu0 %v5369
      %5499 = vmatprep.subr.bf16.mxu0 %v5372
      %5500 = vmatpush1.bf16.msra.mxu0 %v5371
      %5501 = vmatprep.subr.bf16.mxu0 %v5374
      %5502 = vmatpush1.bf16.msra.mxu0 %v5373
      %5503 = vmatprep.subr.bf16.mxu0 %v5376
      %5504 = vmatpush1.bf16.msra.mxu0 %v5375
      %5505 = vmatprep.subr.bf16.mxu0 %v5378
      %5506 = vmatpush1.bf16.msra.mxu0 %v5377
      %5507 = vmatprep.subr.bf16.mxu0 %v5380
      %5508 = vmatpush1.bf16.msra.mxu0 %v5379
      %5509 = vmatprep.subr.bf16.mxu0 %v5382
      %5510 = vmatpush1.bf16.msra.mxu0 %v5381
      %5511 = vmatprep.subr.bf16.mxu0 %v5384
      %5512 = vmatpush1.bf16.msra.mxu0 %v5383
      %5513 = vmatprep.subr.bf16.mxu0 %v5386
      %5514 = vmatpush1.bf16.msra.mxu0 %v5385
      %5515 = vmatprep.subr.bf16.mxu0 %v5388
      %5516 = vmatpush1.bf16.msra.mxu0 %v5387
      %5517 = vmatprep.subr.bf16.mxu0 %v5390
      %5518 = vmatpush1.bf16.msra.mxu0 %v5389
      %5519 = vmatprep.subr.bf16.mxu0 %v5392
      %5520 = vmatpush1.bf16.msra.mxu0 %v5391
      %5521 = vmatprep.mubr.bf16.mxu0 %v4472
      %5522 = vmatmul.mubr.bf16.gmra.mrb[0].mxu0 %v4471
      %v5523 = vpop.f32.mrb[0].mxu0
      %v5524 = vadd.f32 %v5151, %v5523
      %v5525 = vpop.f32.mrb[0].mxu0
      %v5526 = vadd.f32 %v5153, %v5525
      %v5527 = vpop.f32.mrb[0].mxu0
      %v5528 = vadd.f32 %v5155, %v5527
      %v5529 = vpop.f32.mrb[0].mxu0
      %v5530 = vadd.f32 %v5157, %v5529
      %5531 = vmatprep.mubr.bf16.mxu0 %v4476
      %5532 = vmatmul.mubr.bf16.gmra.mrb[0].mxu0 %v4475
      %v5533 = vpop.f32.mrb[0].mxu0
      %v5534 = vadd.f32 %v5161, %v5533
      %v5535 = vpop.f32.mrb[0].mxu0
      %v5536 = vadd.f32 %v5163, %v5535
      %v5537 = vpop.f32.mrb[0].mxu0
      %v5538 = vadd.f32 %v5165, %v5537
      %v5539 = vpop.f32.mrb[0].mxu0
      %v5540 = vadd.f32 %v5167, %v5539
      %5541 = vdwg.mxu0
      %5542 = vmatprep.subr.bf16.mxu0 %v5394
      %5543 = vmatpush1.bf16.msra.mxu0 %v5393
      %5544 = vmatprep.subr.bf16.mxu0 %v5396
      %5545 = vmatpush1.bf16.msra.mxu0 %v5395
      %5546 = vmatprep.subr.bf16.mxu0 %v5398
      %5547 = vmatpush1.bf16.msra.mxu0 %v5397
      %5548 = vmatprep.subr.bf16.mxu0 %v5400
      %5549 = vmatpush1.bf16.msra.mxu0 %v5399
      %5550 = vmatprep.subr.bf16.mxu0 %v5402
      %5551 = vmatpush1.bf16.msra.mxu0 %v5401
      %5552 = vmatprep.subr.bf16.mxu0 %v5404
      %5553 = vmatpush1.bf16.msra.mxu0 %v5403
      %5554 = vmatprep.subr.bf16.mxu0 %v5406
      %5555 = vmatpush1.bf16.msra.mxu0 %v5405
      %5556 = vmatprep.subr.bf16.mxu0 %v5408
      %5557 = vmatpush1.bf16.msra.mxu0 %v5407
      %5558 = vmatprep.subr.bf16.mxu0 %v5410
      %5559 = vmatpush1.bf16.msra.mxu0 %v5409
      %5560 = vmatprep.subr.bf16.mxu0 %v5412
      %5561 = vmatpush1.bf16.msra.mxu0 %v5411
      %5562 = vmatprep.subr.bf16.mxu0 %v5414
      %5563 = vmatpush1.bf16.msra.mxu0 %v5413
      %5564 = vmatprep.subr.bf16.mxu0 %v5416
      %5565 = vmatpush1.bf16.msra.mxu0 %v5415
      %5566 = vmatprep.subr.bf16.mxu0 %v5418
      %5567 = vmatpush1.bf16.msra.mxu0 %v5417
      %5568 = vmatprep.subr.bf16.mxu0 %v5420
      %5569 = vmatpush1.bf16.msra.mxu0 %v5419
      %5570 = vmatprep.subr.bf16.mxu0 %v5422
      %5571 = vmatpush1.bf16.msra.mxu0 %v5421
      %5572 = vmatprep.subr.bf16.mxu0 %v5424
      %5573 = vmatpush1.bf16.msra.mxu0 %v5423
      %5574 = vmatprep.mubr.bf16.mxu0 %v4474
      %5575 = vmatmul.mubr.bf16.gmra.mrb[0].mxu0 %v4473
      %v5576 = vpop.f32.mrb[0].mxu0
      %v5577 = vadd.f32 %v5524, %v5576
      %v5578 = vpop.f32.mrb[0].mxu0
      %v5579 = vadd.f32 %v5526, %v5578
      %v5580 = vpop.f32.mrb[0].mxu0
      %v5581 = vadd.f32 %v5528, %v5580
      %v5582 = vpop.f32.mrb[0].mxu0
      %v5583 = vadd.f32 %v5530, %v5582
      %5584 = vmatprep.mubr.bf16.mxu0 %v4478
      %5585 = vmatmul.mubr.bf16.gmra.mrb[0].mxu0 %v4477
      %v5586 = vpop.f32.mrb[0].mxu0
      %v5587 = vadd.f32 %v5534, %v5586
      %v5588 = vpop.f32.mrb[0].mxu0
      %v5589 = vadd.f32 %v5536, %v5588
      %v5590 = vpop.f32.mrb[0].mxu0
      %v5591 = vadd.f32 %v5538, %v5590
      %v5592 = vpop.f32.mrb[0].mxu0
      %v5593 = vadd.f32 %v5540, %v5592
      %5594 = vdwg.mxu0
      %s5595 = scalar_lea.vmem %s4, 32
      %v5596 = vld [vmem:[%s5595] sm:$0xf]
      %v5597 = vld [vmem:[%s5595 + $0x4] sm:$0xf]
      %v5598 = vld [vmem:[%s5595 + $0x8] sm:$0xf]
      %v5599 = vld [vmem:[%s5595 + $0xc] sm:$0xf]
      %v5604 = vunpack.c.l.b16 %v5596
      %v5605 = vunpack.c.l.b16 %v5597
      %v5606 = vunpack.c.l.b16 %v5598
      %v5607 = vunpack.c.l.b16 %v5599
      %v5608 = vpack.c.b16 %v5605, %v5604
      %v5609 = vpack.c.b16 %v5607, %v5606
      %v5611 = vsel %vm688, %v5608, 0
      %v5614 = vsel %vm688, %v5609, 0
      %5616 = vmatprep.subr.bf16.mxu0 %v4312
      %5617 = vmatpush1.bf16.msra.mxu0 %v4311
      %5618 = vmatprep.subr.bf16.mxu0 %v4316
      %5619 = vmatpush1.bf16.msra.mxu0 %v4315
      %5620 = vmatprep.subr.bf16.mxu0 %v4320
      %5621 = vmatpush1.bf16.msra.mxu0 %v4319
      %5622 = vmatprep.subr.bf16.mxu0 %v4324
      %5623 = vmatpush1.bf16.msra.mxu0 %v4323
      %5624 = vmatprep.subr.bf16.mxu0 %v4357
      %5625 = vmatpush1.bf16.msra.mxu0 %v4354
      %5626 = vmatprep.subr.bf16.mxu0 0
      %5627 = vmatpush1.bf16.msra.mxu0 0
      %5628 = vmatprep.subr.bf16.mxu0 0
      %5629 = vmatpush1.bf16.msra.mxu0 0
      %5630 = vmatprep.subr.bf16.mxu0 0
      %5631 = vmatpush1.bf16.msra.mxu0 0
      %5632 = vmatprep.subr.bf16.mxu0 0
      %5633 = vmatpush1.bf16.msra.mxu0 0
      %5634 = vmatprep.subr.bf16.mxu0 0
      %5635 = vmatpush1.bf16.msra.mxu0 0
      %5636 = vmatprep.subr.bf16.mxu0 0
      %5637 = vmatpush1.bf16.msra.mxu0 0
      %5638 = vmatprep.subr.bf16.mxu0 0
      %5639 = vmatpush1.bf16.msra.mxu0 0
      %5640 = vmatprep.subr.bf16.mxu0 0
      %5641 = vmatpush1.bf16.msra.mxu0 0
      %5642 = vmatprep.subr.bf16.mxu0 0
      %5643 = vmatpush1.bf16.msra.mxu0 0
      %5644 = vmatprep.subr.bf16.mxu0 0
      %5645 = vmatpush1.bf16.msra.mxu0 0
      %5646 = vmatprep.subr.bf16.mxu0 0
      %5647 = vmatpush1.bf16.msra.mxu0 0
      %5648 = vmatprep.mubr.bf16.mxu0 0
      %5649 = vmatmul.mubr.bf16.gmra.mrb[0].mxu0 %v5611
      %v5650 = vpop.f32.mrb[0].mxu0
      %v5651 = vadd.f32 0.0, %v5650
      %v5652 = vpop.f32.mrb[0].mxu0
      %v5653 = vadd.f32 0.0, %v5652
      %v5654 = vpop.f32.mrb[0].mxu0
      %v5655 = vadd.f32 0.0, %v5654
      %v5656 = vpop.f32.mrb[0].mxu0
      %v5657 = vadd.f32 0.0, %v5656
      %5658 = vmatprep.mubr.bf16.mxu0 0
      %5659 = vmatmul.mubr.bf16.gmra.mrb[0].mxu0 %v5614
      %v5660 = vpop.f32.mrb[0].mxu0
      %v5661 = vadd.f32 0.0, %v5660
      %v5662 = vpop.f32.mrb[0].mxu0
      %v5663 = vadd.f32 0.0, %v5662
      %v5664 = vpop.f32.mrb[0].mxu0
      %v5665 = vadd.f32 0.0, %v5664
      %v5666 = vpop.f32.mrb[0].mxu0
      %v5667 = vadd.f32 0.0, %v5666
      %5668 = vdwg.mxu0
      %5669 = vmatprep.subr.bf16.mxu0 %v4314
      %5670 = vmatpush1.bf16.msra.mxu0 %v4313
      %5671 = vmatprep.subr.bf16.mxu0 %v4318
      %5672 = vmatpush1.bf16.msra.mxu0 %v4317
      %5673 = vmatprep.subr.bf16.mxu0 %v4322
      %5674 = vmatpush1.bf16.msra.mxu0 %v4321
      %5675 = vmatprep.subr.bf16.mxu0 %v4326
      %5676 = vmatpush1.bf16.msra.mxu0 %v4325
      %5677 = vmatprep.subr.bf16.mxu0 %v4363
      %5678 = vmatpush1.bf16.msra.mxu0 %v4360
      %5679 = vmatprep.subr.bf16.mxu0 0
      %5680 = vmatpush1.bf16.msra.mxu0 0
      %5681 = vmatprep.subr.bf16.mxu0 0
      %5682 = vmatpush1.bf16.msra.mxu0 0
      %5683 = vmatprep.subr.bf16.mxu0 0
      %5684 = vmatpush1.bf16.msra.mxu0 0
      %5685 = vmatprep.subr.bf16.mxu0 0
      %5686 = vmatpush1.bf16.msra.mxu0 0
      %5687 = vmatprep.subr.bf16.mxu0 0
      %5688 = vmatpush1.bf16.msra.mxu0 0
      %5689 = vmatprep.subr.bf16.mxu0 0
      %5690 = vmatpush1.bf16.msra.mxu0 0
      %5691 = vmatprep.subr.bf16.mxu0 0
      %5692 = vmatpush1.bf16.msra.mxu0 0
      %5693 = vmatprep.subr.bf16.mxu0 0
      %5694 = vmatpush1.bf16.msra.mxu0 0
      %5695 = vmatprep.subr.bf16.mxu0 0
      %5696 = vmatpush1.bf16.msra.mxu0 0
      %5697 = vmatprep.subr.bf16.mxu0 0
      %5698 = vmatpush1.bf16.msra.mxu0 0
      %5699 = vmatprep.subr.bf16.mxu0 0
      %5700 = vmatpush1.bf16.msra.mxu0 0
      %5701 = vmatprep.mubr.bf16.mxu0 0
      %5702 = vmatmul.mubr.bf16.gmra.mrb[0].mxu0 %v5611
      %v5703 = vpop.f32.mrb[0].mxu0
      %v5704 = vadd.f32 0.0, %v5703
      %v5705 = vpop.f32.mrb[0].mxu0
      %v5706 = vadd.f32 0.0, %v5705
      %v5707 = vpop.f32.mrb[0].mxu0
      %v5708 = vadd.f32 0.0, %v5707
      %v5709 = vpop.f32.mrb[0].mxu0
      %v5710 = vadd.f32 0.0, %v5709
      %5711 = vmatprep.mubr.bf16.mxu0 0
      %5712 = vmatmul.mubr.bf16.gmra.mrb[0].mxu0 %v5614
      %v5713 = vpop.f32.mrb[0].mxu0
      %v5714 = vadd.f32 0.0, %v5713
      %v5715 = vpop.f32.mrb[0].mxu0
      %v5716 = vadd.f32 0.0, %v5715
      %v5717 = vpop.f32.mrb[0].mxu0
      %v5718 = vadd.f32 0.0, %v5717
      %v5719 = vpop.f32.mrb[0].mxu0
      %v5720 = vadd.f32 0.0, %v5719
      %5721 = vdwg.mxu0
      %v5722 = vpack.c.bf16 %v5655, %v5651
      %v5723 = vpack.c.bf16 %v5657, %v5653
      %v5724 = vpack.c.bf16 %v5708, %v5704
      %v5725 = vpack.c.bf16 %v5710, %v5706
      %v5726 = vpack.c.bf16 %v5665, %v5661
      %v5727 = vpack.c.bf16 %v5667, %v5663
      %v5728 = vpack.c.bf16 %v5718, %v5714
      %v5729 = vpack.c.bf16 %v5720, %v5716
      %s5730 = scalar_lea.vmem %s5, 1024
      %v5731 = vld [vmem:[%s5730] sm:$0xff]
      %v5732 = vld [vmem:[%s5730 + $0x8] sm:$0xff]
      %v5733 = vld [vmem:[%s5730 + $0x10] sm:$0xff]
      %v5734 = vld [vmem:[%s5730 + $0x18] sm:$0xff]
      %v5735 = vld [vmem:[%s5730 + $0x20] sm:$0xff]
      %v5736 = vld [vmem:[%s5730 + $0x28] sm:$0xff]
      %v5737 = vld [vmem:[%s5730 + $0x30] sm:$0xff]
      %v5738 = vld [vmem:[%s5730 + $0x38] sm:$0xff]
      %v5739 = vld [vmem:[%s5730 + $0x40] sm:$0xff]
      %v5740 = vld [vmem:[%s5730 + $0x48] sm:$0xff]
      %v5741 = vld [vmem:[%s5730 + $0x50] sm:$0xff]
      %v5742 = vld [vmem:[%s5730 + $0x58] sm:$0xff]
      %v5743 = vld [vmem:[%s5730 + $0x60] sm:$0xff]
      %v5744 = vld [vmem:[%s5730 + $0x68] sm:$0xff]
      %v5745 = vld [vmem:[%s5730 + $0x70] sm:$0xff]
      %v5746 = vld [vmem:[%s5730 + $0x78] sm:$0xff]
      %v5747 = vld [vmem:[%s5730 + $0x80] sm:$0xff]
      %v5748 = vld [vmem:[%s5730 + $0x88] sm:$0xff]
      %v5749 = vld [vmem:[%s5730 + $0x90] sm:$0xff]
      %v5750 = vld [vmem:[%s5730 + $0x98] sm:$0xff]
      %v5751 = vld [vmem:[%s5730 + $0xa0] sm:$0xff]
      %v5752 = vld [vmem:[%s5730 + $0xa8] sm:$0xff]
      %v5753 = vld [vmem:[%s5730 + $0xb0] sm:$0xff]
      %v5754 = vld [vmem:[%s5730 + $0xb8] sm:$0xff]
      %v5755 = vld [vmem:[%s5730 + $0xc0] sm:$0xff]
      %v5756 = vld [vmem:[%s5730 + $0xc8] sm:$0xff]
      %v5757 = vld [vmem:[%s5730 + $0xd0] sm:$0xff]
      %v5758 = vld [vmem:[%s5730 + $0xd8] sm:$0xff]
      %v5759 = vld [vmem:[%s5730 + $0xe0] sm:$0xff]
      %v5760 = vld [vmem:[%s5730 + $0xe8] sm:$0xff]
      %v5761 = vld [vmem:[%s5730 + $0xf0] sm:$0xff]
      %v5762 = vld [vmem:[%s5730 + $0xf8] sm:$0xff]
      %v5763 = vld [vmem:[%s5730 + $0x100] sm:$0xff]
      %v5764 = vld [vmem:[%s5730 + $0x108] sm:$0xff]
      %v5765 = vld [vmem:[%s5730 + $0x110] sm:$0xff]
      %v5766 = vld [vmem:[%s5730 + $0x118] sm:$0xff]
      %v5767 = vld [vmem:[%s5730 + $0x120] sm:$0xff]
      %v5768 = vld [vmem:[%s5730 + $0x128] sm:$0xff]
      %v5769 = vld [vmem:[%s5730 + $0x130] sm:$0xff]
      %v5770 = vld [vmem:[%s5730 + $0x138] sm:$0xff]
      %v5771 = vld [vmem:[%s5730 + $0x140] sm:$0xff]
      %v5772 = vld [vmem:[%s5730 + $0x148] sm:$0xff]
      %v5773 = vld [vmem:[%s5730 + $0x150] sm:$0xff]
      %v5774 = vld [vmem:[%s5730 + $0x158] sm:$0xff]
      %v5775 = vld [vmem:[%s5730 + $0x160] sm:$0xff]
      %v5776 = vld [vmem:[%s5730 + $0x168] sm:$0xff]
      %v5777 = vld [vmem:[%s5730 + $0x170] sm:$0xff]
      %v5778 = vld [vmem:[%s5730 + $0x178] sm:$0xff]
      %v5779 = vld [vmem:[%s5730 + $0x180] sm:$0xff]
      %v5780 = vld [vmem:[%s5730 + $0x188] sm:$0xff]
      %v5781 = vld [vmem:[%s5730 + $0x190] sm:$0xff]
      %v5782 = vld [vmem:[%s5730 + $0x198] sm:$0xff]
      %v5783 = vld [vmem:[%s5730 + $0x1a0] sm:$0xff]
      %v5784 = vld [vmem:[%s5730 + $0x1a8] sm:$0xff]
      %v5785 = vld [vmem:[%s5730 + $0x1b0] sm:$0xff]
      %v5786 = vld [vmem:[%s5730 + $0x1b8] sm:$0xff]
      %v5787 = vld [vmem:[%s5730 + $0x1c0] sm:$0xff]
      %v5788 = vld [vmem:[%s5730 + $0x1c8] sm:$0xff]
      %v5789 = vld [vmem:[%s5730 + $0x1d0] sm:$0xff]
      %v5790 = vld [vmem:[%s5730 + $0x1d8] sm:$0xff]
      %v5791 = vld [vmem:[%s5730 + $0x1e0] sm:$0xff]
      %v5792 = vld [vmem:[%s5730 + $0x1e8] sm:$0xff]
      %v5793 = vld [vmem:[%s5730 + $0x1f0] sm:$0xff]
      %v5794 = vld [vmem:[%s5730 + $0x1f8] sm:$0xff]
      %v5859 = vunpack.c.l.b16 %v5731
      %v5860 = vunpack.c.h.b16 %v5731
      %v5861 = vunpack.c.l.b16 %v5732
      %v5862 = vunpack.c.h.b16 %v5732
      %v5863 = vunpack.c.l.b16 %v5733
      %v5864 = vunpack.c.h.b16 %v5733
      %v5865 = vunpack.c.l.b16 %v5734
      %v5866 = vunpack.c.h.b16 %v5734
      %v5867 = vunpack.c.l.b16 %v5735
      %v5868 = vunpack.c.h.b16 %v5735
      %v5869 = vunpack.c.l.b16 %v5736
      %v5870 = vunpack.c.h.b16 %v5736
      %v5871 = vunpack.c.l.b16 %v5737
      %v5872 = vunpack.c.h.b16 %v5737
      %v5873 = vunpack.c.l.b16 %v5738
      %v5874 = vunpack.c.h.b16 %v5738
      %v5875 = vunpack.c.l.b16 %v5739
      %v5876 = vunpack.c.h.b16 %v5739
      %v5877 = vunpack.c.l.b16 %v5740
      %v5878 = vunpack.c.h.b16 %v5740
      %v5879 = vunpack.c.l.b16 %v5741
      %v5880 = vunpack.c.h.b16 %v5741
      %v5881 = vunpack.c.l.b16 %v5742
      %v5882 = vunpack.c.h.b16 %v5742
      %v5883 = vunpack.c.l.b16 %v5743
      %v5884 = vunpack.c.h.b16 %v5743
      %v5885 = vunpack.c.l.b16 %v5744
      %v5886 = vunpack.c.h.b16 %v5744
      %v5887 = vunpack.c.l.b16 %v5745
      %v5888 = vunpack.c.h.b16 %v5745
      %v5889 = vunpack.c.l.b16 %v5746
      %v5890 = vunpack.c.h.b16 %v5746
      %v5891 = vunpack.c.l.b16 %v5747
      %v5892 = vunpack.c.h.b16 %v5747
      %v5893 = vunpack.c.l.b16 %v5748
      %v5894 = vunpack.c.h.b16 %v5748
      %v5895 = vunpack.c.l.b16 %v5749
      %v5896 = vunpack.c.h.b16 %v5749
      %v5897 = vunpack.c.l.b16 %v5750
      %v5898 = vunpack.c.h.b16 %v5750
      %v5899 = vunpack.c.l.b16 %v5751
      %v5900 = vunpack.c.h.b16 %v5751
      %v5901 = vunpack.c.l.b16 %v5752
      %v5902 = vunpack.c.h.b16 %v5752
      %v5903 = vunpack.c.l.b16 %v5753
      %v5904 = vunpack.c.h.b16 %v5753
      %v5905 = vunpack.c.l.b16 %v5754
      %v5906 = vunpack.c.h.b16 %v5754
      %v5907 = vunpack.c.l.b16 %v5755
      %v5908 = vunpack.c.h.b16 %v5755
      %v5909 = vunpack.c.l.b16 %v5756
      %v5910 = vunpack.c.h.b16 %v5756
      %v5911 = vunpack.c.l.b16 %v5757
      %v5912 = vunpack.c.h.b16 %v5757
      %v5913 = vunpack.c.l.b16 %v5758
      %v5914 = vunpack.c.h.b16 %v5758
      %v5915 = vunpack.c.l.b16 %v5759
      %v5916 = vunpack.c.h.b16 %v5759
      %v5917 = vunpack.c.l.b16 %v5760
      %v5918 = vunpack.c.h.b16 %v5760
      %v5919 = vunpack.c.l.b16 %v5761
      %v5920 = vunpack.c.h.b16 %v5761
      %v5921 = vunpack.c.l.b16 %v5762
      %v5922 = vunpack.c.h.b16 %v5762
      %v5923 = vunpack.c.l.b16 %v5763
      %v5924 = vunpack.c.h.b16 %v5763
      %v5925 = vunpack.c.l.b16 %v5764
      %v5926 = vunpack.c.h.b16 %v5764
      %v5927 = vunpack.c.l.b16 %v5765
      %v5928 = vunpack.c.h.b16 %v5765
      %v5929 = vunpack.c.l.b16 %v5766
      %v5930 = vunpack.c.h.b16 %v5766
      %v5931 = vunpack.c.l.b16 %v5767
      %v5932 = vunpack.c.h.b16 %v5767
      %v5933 = vunpack.c.l.b16 %v5768
      %v5934 = vunpack.c.h.b16 %v5768
      %v5935 = vunpack.c.l.b16 %v5769
      %v5936 = vunpack.c.h.b16 %v5769
      %v5937 = vunpack.c.l.b16 %v5770
      %v5938 = vunpack.c.h.b16 %v5770
      %v5939 = vunpack.c.l.b16 %v5771
      %v5940 = vunpack.c.h.b16 %v5771
      %v5941 = vunpack.c.l.b16 %v5772
      %v5942 = vunpack.c.h.b16 %v5772
      %v5943 = vunpack.c.l.b16 %v5773
      %v5944 = vunpack.c.h.b16 %v5773
      %v5945 = vunpack.c.l.b16 %v5774
      %v5946 = vunpack.c.h.b16 %v5774
      %v5947 = vunpack.c.l.b16 %v5775
      %v5948 = vunpack.c.h.b16 %v5775
      %v5949 = vunpack.c.l.b16 %v5776
      %v5950 = vunpack.c.h.b16 %v5776
      %v5951 = vunpack.c.l.b16 %v5777
      %v5952 = vunpack.c.h.b16 %v5777
      %v5953 = vunpack.c.l.b16 %v5778
      %v5954 = vunpack.c.h.b16 %v5778
      %v5955 = vunpack.c.l.b16 %v5779
      %v5956 = vunpack.c.h.b16 %v5779
      %v5957 = vunpack.c.l.b16 %v5780
      %v5958 = vunpack.c.h.b16 %v5780
      %v5959 = vunpack.c.l.b16 %v5781
      %v5960 = vunpack.c.h.b16 %v5781
      %v5961 = vunpack.c.l.b16 %v5782
      %v5962 = vunpack.c.h.b16 %v5782
      %v5963 = vunpack.c.l.b16 %v5783
      %v5964 = vunpack.c.h.b16 %v5783
      %v5965 = vunpack.c.l.b16 %v5784
      %v5966 = vunpack.c.h.b16 %v5784
      %v5967 = vunpack.c.l.b16 %v5785
      %v5968 = vunpack.c.h.b16 %v5785
      %v5969 = vunpack.c.l.b16 %v5786
      %v5970 = vunpack.c.h.b16 %v5786
      %v5971 = vunpack.c.l.b16 %v5787
      %v5972 = vunpack.c.h.b16 %v5787
      %v5973 = vunpack.c.l.b16 %v5788
      %v5974 = vunpack.c.h.b16 %v5788
      %v5975 = vunpack.c.l.b16 %v5789
      %v5976 = vunpack.c.h.b16 %v5789
      %v5977 = vunpack.c.l.b16 %v5790
      %v5978 = vunpack.c.h.b16 %v5790
      %v5979 = vunpack.c.l.b16 %v5791
      %v5980 = vunpack.c.h.b16 %v5791
      %v5981 = vunpack.c.l.b16 %v5792
      %v5982 = vunpack.c.h.b16 %v5792
      %v5983 = vunpack.c.l.b16 %v5793
      %v5984 = vunpack.c.h.b16 %v5793
      %v5985 = vunpack.c.l.b16 %v5794
      %v5986 = vunpack.c.h.b16 %v5794
      %v5987 = vpack.c.b16 %v5861, %v5859
      %v5988 = vpack.c.b16 %v5862, %v5860
      %v5989 = vpack.c.b16 %v5865, %v5863
      %v5990 = vpack.c.b16 %v5866, %v5864
      %v5991 = vpack.c.b16 %v5869, %v5867
      %v5992 = vpack.c.b16 %v5870, %v5868
      %v5993 = vpack.c.b16 %v5873, %v5871
      %v5994 = vpack.c.b16 %v5874, %v5872
      %v5995 = vpack.c.b16 %v5877, %v5875
      %v5996 = vpack.c.b16 %v5878, %v5876
      %v5997 = vpack.c.b16 %v5881, %v5879
      %v5998 = vpack.c.b16 %v5882, %v5880
      %v5999 = vpack.c.b16 %v5885, %v5883
      %v6000 = vpack.c.b16 %v5886, %v5884
      %v6001 = vpack.c.b16 %v5889, %v5887
      %v6002 = vpack.c.b16 %v5890, %v5888
      %v6003 = vpack.c.b16 %v5893, %v5891
      %v6004 = vpack.c.b16 %v5894, %v5892
      %v6005 = vpack.c.b16 %v5897, %v5895
      %v6006 = vpack.c.b16 %v5898, %v5896
      %v6007 = vpack.c.b16 %v5901, %v5899
      %v6008 = vpack.c.b16 %v5902, %v5900
      %v6009 = vpack.c.b16 %v5905, %v5903
      %v6010 = vpack.c.b16 %v5906, %v5904
      %v6011 = vpack.c.b16 %v5909, %v5907
      %v6012 = vpack.c.b16 %v5910, %v5908
      %v6013 = vpack.c.b16 %v5913, %v5911
      %v6014 = vpack.c.b16 %v5914, %v5912
      %v6015 = vpack.c.b16 %v5917, %v5915
      %v6016 = vpack.c.b16 %v5918, %v5916
      %v6017 = vpack.c.b16 %v5921, %v5919
      %v6018 = vpack.c.b16 %v5922, %v5920
      %v6019 = vpack.c.b16 %v5925, %v5923
      %v6020 = vpack.c.b16 %v5926, %v5924
      %v6021 = vpack.c.b16 %v5929, %v5927
      %v6022 = vpack.c.b16 %v5930, %v5928
      %v6023 = vpack.c.b16 %v5933, %v5931
      %v6024 = vpack.c.b16 %v5934, %v5932
      %v6025 = vpack.c.b16 %v5937, %v5935
      %v6026 = vpack.c.b16 %v5938, %v5936
      %v6027 = vpack.c.b16 %v5941, %v5939
      %v6028 = vpack.c.b16 %v5942, %v5940
      %v6029 = vpack.c.b16 %v5945, %v5943
      %v6030 = vpack.c.b16 %v5946, %v5944
      %v6031 = vpack.c.b16 %v5949, %v5947
      %v6032 = vpack.c.b16 %v5950, %v5948
      %v6033 = vpack.c.b16 %v5953, %v5951
      %v6034 = vpack.c.b16 %v5954, %v5952
      %v6035 = vpack.c.b16 %v5957, %v5955
      %v6036 = vpack.c.b16 %v5958, %v5956
      %v6037 = vpack.c.b16 %v5961, %v5959
      %v6038 = vpack.c.b16 %v5962, %v5960
      %v6039 = vpack.c.b16 %v5965, %v5963
      %v6040 = vpack.c.b16 %v5966, %v5964
      %v6041 = vpack.c.b16 %v5969, %v5967
      %v6042 = vpack.c.b16 %v5970, %v5968
      %v6043 = vpack.c.b16 %v5973, %v5971
      %v6044 = vpack.c.b16 %v5974, %v5972
      %v6045 = vpack.c.b16 %v5977, %v5975
      %v6046 = vpack.c.b16 %v5978, %v5976
      %v6047 = vpack.c.b16 %v5981, %v5979
      %v6048 = vpack.c.b16 %v5982, %v5980
      %v6049 = vpack.c.b16 %v5985, %v5983
      %v6050 = vpack.c.b16 %v5986, %v5984
      %6115 = vmatprep.subr.bf16.mxu0 %v5988
      %6116 = vmatpush1.bf16.msra.mxu0 %v5987
      %6117 = vmatprep.subr.bf16.mxu0 %v5990
      %6118 = vmatpush1.bf16.msra.mxu0 %v5989
      %6119 = vmatprep.subr.bf16.mxu0 %v5992
      %6120 = vmatpush1.bf16.msra.mxu0 %v5991
      %6121 = vmatprep.subr.bf16.mxu0 %v5994
      %6122 = vmatpush1.bf16.msra.mxu0 %v5993
      %6123 = vmatprep.subr.bf16.mxu0 %v5996
      %6124 = vmatpush1.bf16.msra.mxu0 %v5995
      %6125 = vmatprep.subr.bf16.mxu0 %v5998
      %6126 = vmatpush1.bf16.msra.mxu0 %v5997
      %6127 = vmatprep.subr.bf16.mxu0 %v6000
      %6128 = vmatpush1.bf16.msra.mxu0 %v5999
      %6129 = vmatprep.subr.bf16.mxu0 %v6002
      %6130 = vmatpush1.bf16.msra.mxu0 %v6001
      %6131 = vmatprep.subr.bf16.mxu0 %v6004
      %6132 = vmatpush1.bf16.msra.mxu0 %v6003
      %6133 = vmatprep.subr.bf16.mxu0 %v6006
      %6134 = vmatpush1.bf16.msra.mxu0 %v6005
      %6135 = vmatprep.subr.bf16.mxu0 %v6008
      %6136 = vmatpush1.bf16.msra.mxu0 %v6007
      %6137 = vmatprep.subr.bf16.mxu0 %v6010
      %6138 = vmatpush1.bf16.msra.mxu0 %v6009
      %6139 = vmatprep.subr.bf16.mxu0 %v6012
      %6140 = vmatpush1.bf16.msra.mxu0 %v6011
      %6141 = vmatprep.subr.bf16.mxu0 %v6014
      %6142 = vmatpush1.bf16.msra.mxu0 %v6013
      %6143 = vmatprep.subr.bf16.mxu0 %v6016
      %6144 = vmatpush1.bf16.msra.mxu0 %v6015
      %6145 = vmatprep.subr.bf16.mxu0 %v6018
      %6146 = vmatpush1.bf16.msra.mxu0 %v6017
      %6147 = vmatprep.mubr.bf16.mxu0 %v5723
      %6148 = vmatmul.mubr.bf16.gmra.mrb[0].mxu0 %v5722
      %v6149 = vpop.f32.mrb[0].mxu0
      %v6150 = vadd.f32 0.0, %v6149
      %v6151 = vpop.f32.mrb[0].mxu0
      %v6152 = vadd.f32 0.0, %v6151
      %v6153 = vpop.f32.mrb[0].mxu0
      %v6154 = vadd.f32 0.0, %v6153
      %v6155 = vpop.f32.mrb[0].mxu0
      %v6156 = vadd.f32 0.0, %v6155
      %6157 = vmatprep.mubr.bf16.mxu0 %v5727
      %6158 = vmatmul.mubr.bf16.gmra.mrb[0].mxu0 %v5726
      %v6159 = vpop.f32.mrb[0].mxu0
      %v6160 = vadd.f32 0.0, %v6159
      %v6161 = vpop.f32.mrb[0].mxu0
      %v6162 = vadd.f32 0.0, %v6161
      %v6163 = vpop.f32.mrb[0].mxu0
      %v6164 = vadd.f32 0.0, %v6163
      %v6165 = vpop.f32.mrb[0].mxu0
      %v6166 = vadd.f32 0.0, %v6165
      %6167 = vdwg.mxu0
      %6168 = vmatprep.subr.bf16.mxu0 %v6020
      %6169 = vmatpush1.bf16.msra.mxu0 %v6019
      %6170 = vmatprep.subr.bf16.mxu0 %v6022
      %6171 = vmatpush1.bf16.msra.mxu0 %v6021
      %6172 = vmatprep.subr.bf16.mxu0 %v6024
      %6173 = vmatpush1.bf16.msra.mxu0 %v6023
      %6174 = vmatprep.subr.bf16.mxu0 %v6026
      %6175 = vmatpush1.bf16.msra.mxu0 %v6025
      %6176 = vmatprep.subr.bf16.mxu0 %v6028
      %6177 = vmatpush1.bf16.msra.mxu0 %v6027
      %6178 = vmatprep.subr.bf16.mxu0 %v6030
      %6179 = vmatpush1.bf16.msra.mxu0 %v6029
      %6180 = vmatprep.subr.bf16.mxu0 %v6032
      %6181 = vmatpush1.bf16.msra.mxu0 %v6031
      %6182 = vmatprep.subr.bf16.mxu0 %v6034
      %6183 = vmatpush1.bf16.msra.mxu0 %v6033
      %6184 = vmatprep.subr.bf16.mxu0 %v6036
      %6185 = vmatpush1.bf16.msra.mxu0 %v6035
      %6186 = vmatprep.subr.bf16.mxu0 %v6038
      %6187 = vmatpush1.bf16.msra.mxu0 %v6037
      %6188 = vmatprep.subr.bf16.mxu0 %v6040
      %6189 = vmatpush1.bf16.msra.mxu0 %v6039
      %6190 = vmatprep.subr.bf16.mxu0 %v6042
      %6191 = vmatpush1.bf16.msra.mxu0 %v6041
      %6192 = vmatprep.subr.bf16.mxu0 %v6044
      %6193 = vmatpush1.bf16.msra.mxu0 %v6043
      %6194 = vmatprep.subr.bf16.mxu0 %v6046
      %6195 = vmatpush1.bf16.msra.mxu0 %v6045
      %6196 = vmatprep.subr.bf16.mxu0 %v6048
      %6197 = vmatpush1.bf16.msra.mxu0 %v6047
      %6198 = vmatprep.subr.bf16.mxu0 %v6050
      %6199 = vmatpush1.bf16.msra.mxu0 %v6049
      %6200 = vmatprep.mubr.bf16.mxu0 %v5725
      %6201 = vmatmul.mubr.bf16.gmra.mrb[0].mxu0 %v5724
      %v6202 = vpop.f32.mrb[0].mxu0
      %v6203 = vadd.f32 %v6150, %v6202
      %v6204 = vpop.f32.mrb[0].mxu0
      %v6205 = vadd.f32 %v6152, %v6204
      %v6206 = vpop.f32.mrb[0].mxu0
      %v6207 = vadd.f32 %v6154, %v6206
      %v6208 = vpop.f32.mrb[0].mxu0
      %v6209 = vadd.f32 %v6156, %v6208
      %6210 = vmatprep.mubr.bf16.mxu0 %v5729
      %6211 = vmatmul.mubr.bf16.gmra.mrb[0].mxu0 %v5728
      %v6212 = vpop.f32.mrb[0].mxu0
      %v6213 = vadd.f32 %v6160, %v6212
      %v6214 = vpop.f32.mrb[0].mxu0
      %v6215 = vadd.f32 %v6162, %v6214
      %v6216 = vpop.f32.mrb[0].mxu0
      %v6217 = vadd.f32 %v6164, %v6216
      %v6218 = vpop.f32.mrb[0].mxu0
      %v6219 = vadd.f32 %v6166, %v6218
      %6220 = vdwg.mxu0
      %v6221 = vadd.f32 %v5577, %v6203
      %v6222 = vadd.f32 %v5579, %v6205
      %v6223 = vadd.f32 %v5581, %v6207
      %v6224 = vadd.f32 %v5583, %v6209
      %v6225 = vadd.f32 %v5587, %v6213
      %v6226 = vadd.f32 %v5589, %v6215
      %v6227 = vadd.f32 %v5591, %v6217
      %v6228 = vadd.f32 %v5593, %v6219
      %s6229 = scalar_lea.vmem %s4, 48
      %v6230 = vld [vmem:[%s6229] sm:$0xf]
      %v6231 = vld [vmem:[%s6229 + $0x4] sm:$0xf]
      %v6232 = vld [vmem:[%s6229 + $0x8] sm:$0xf]
      %v6233 = vld [vmem:[%s6229 + $0xc] sm:$0xf]
      %v6238 = vunpack.c.l.b16 %v6230
      %v6239 = vunpack.c.l.b16 %v6231
      %v6240 = vunpack.c.l.b16 %v6232
      %v6241 = vunpack.c.l.b16 %v6233
      %v6242 = vpack.c.b16 %v6239, %v6238
      %v6243 = vpack.c.b16 %v6241, %v6240
      %v6245 = vsel %vm688, %v6242, 0
      %v6248 = vsel %vm688, %v6243, 0
      %6250 = vmatprep.subr.bf16.mxu0 %v4312
      %6251 = vmatpush1.bf16.msra.mxu0 %v4311
      %6252 = vmatprep.subr.bf16.mxu0 %v4316
      %6253 = vmatpush1.bf16.msra.mxu0 %v4315
      %6254 = vmatprep.subr.bf16.mxu0 %v4320
      %6255 = vmatpush1.bf16.msra.mxu0 %v4319
      %6256 = vmatprep.subr.bf16.mxu0 %v4324
      %6257 = vmatpush1.bf16.msra.mxu0 %v4323
      %6258 = vmatprep.subr.bf16.mxu0 %v4357
      %6259 = vmatpush1.bf16.msra.mxu0 %v4354
      %6260 = vmatprep.subr.bf16.mxu0 0
      %6261 = vmatpush1.bf16.msra.mxu0 0
      %6262 = vmatprep.subr.bf16.mxu0 0
      %6263 = vmatpush1.bf16.msra.mxu0 0
      %6264 = vmatprep.subr.bf16.mxu0 0
      %6265 = vmatpush1.bf16.msra.mxu0 0
      %6266 = vmatprep.subr.bf16.mxu0 0
      %6267 = vmatpush1.bf16.msra.mxu0 0
      %6268 = vmatprep.subr.bf16.mxu0 0
      %6269 = vmatpush1.bf16.msra.mxu0 0
      %6270 = vmatprep.subr.bf16.mxu0 0
      %6271 = vmatpush1.bf16.msra.mxu0 0
      %6272 = vmatprep.subr.bf16.mxu0 0
      %6273 = vmatpush1.bf16.msra.mxu0 0
      %6274 = vmatprep.subr.bf16.mxu0 0
      %6275 = vmatpush1.bf16.msra.mxu0 0
      %6276 = vmatprep.subr.bf16.mxu0 0
      %6277 = vmatpush1.bf16.msra.mxu0 0
      %6278 = vmatprep.subr.bf16.mxu0 0
      %6279 = vmatpush1.bf16.msra.mxu0 0
      %6280 = vmatprep.subr.bf16.mxu0 0
      %6281 = vmatpush1.bf16.msra.mxu0 0
      %6282 = vmatprep.mubr.bf16.mxu0 0
      %6283 = vmatmul.mubr.bf16.gmra.mrb[0].mxu0 %v6245
      %v6284 = vpop.f32.mrb[0].mxu0
      %v6285 = vadd.f32 0.0, %v6284
      %v6286 = vpop.f32.mrb[0].mxu0
      %v6287 = vadd.f32 0.0, %v6286
      %v6288 = vpop.f32.mrb[0].mxu0
      %v6289 = vadd.f32 0.0, %v6288
      %v6290 = vpop.f32.mrb[0].mxu0
      %v6291 = vadd.f32 0.0, %v6290
      %6292 = vmatprep.mubr.bf16.mxu0 0
      %6293 = vmatmul.mubr.bf16.gmra.mrb[0].mxu0 %v6248
      %v6294 = vpop.f32.mrb[0].mxu0
      %v6295 = vadd.f32 0.0, %v6294
      %v6296 = vpop.f32.mrb[0].mxu0
      %v6297 = vadd.f32 0.0, %v6296
      %v6298 = vpop.f32.mrb[0].mxu0
      %v6299 = vadd.f32 0.0, %v6298
      %v6300 = vpop.f32.mrb[0].mxu0
      %v6301 = vadd.f32 0.0, %v6300
      %6302 = vdwg.mxu0
      %6303 = vmatprep.subr.bf16.mxu0 %v4314
      %6304 = vmatpush1.bf16.msra.mxu0 %v4313
      %6305 = vmatprep.subr.bf16.mxu0 %v4318
      %6306 = vmatpush1.bf16.msra.mxu0 %v4317
      %6307 = vmatprep.subr.bf16.mxu0 %v4322
      %6308 = vmatpush1.bf16.msra.mxu0 %v4321
      %6309 = vmatprep.subr.bf16.mxu0 %v4326
      %6310 = vmatpush1.bf16.msra.mxu0 %v4325
      %6311 = vmatprep.subr.bf16.mxu0 %v4363
      %6312 = vmatpush1.bf16.msra.mxu0 %v4360
      %6313 = vmatprep.subr.bf16.mxu0 0
      %6314 = vmatpush1.bf16.msra.mxu0 0
      %6315 = vmatprep.subr.bf16.mxu0 0
      %6316 = vmatpush1.bf16.msra.mxu0 0
      %6317 = vmatprep.subr.bf16.mxu0 0
      %6318 = vmatpush1.bf16.msra.mxu0 0
      %6319 = vmatprep.subr.bf16.mxu0 0
      %6320 = vmatpush1.bf16.msra.mxu0 0
      %6321 = vmatprep.subr.bf16.mxu0 0
      %6322 = vmatpush1.bf16.msra.mxu0 0
      %6323 = vmatprep.subr.bf16.mxu0 0
      %6324 = vmatpush1.bf16.msra.mxu0 0
      %6325 = vmatprep.subr.bf16.mxu0 0
      %6326 = vmatpush1.bf16.msra.mxu0 0
      %6327 = vmatprep.subr.bf16.mxu0 0
      %6328 = vmatpush1.bf16.msra.mxu0 0
      %6329 = vmatprep.subr.bf16.mxu0 0
      %6330 = vmatpush1.bf16.msra.mxu0 0
      %6331 = vmatprep.subr.bf16.mxu0 0
      %6332 = vmatpush1.bf16.msra.mxu0 0
      %6333 = vmatprep.subr.bf16.mxu0 0
      %6334 = vmatpush1.bf16.msra.mxu0 0
      %6335 = vmatprep.mubr.bf16.mxu0 0
      %6336 = vmatmul.mubr.bf16.gmra.mrb[0].mxu0 %v6245
      %v6337 = vpop.f32.mrb[0].mxu0
      %v6338 = vadd.f32 0.0, %v6337
      %v6339 = vpop.f32.mrb[0].mxu0
      %v6340 = vadd.f32 0.0, %v6339
      %v6341 = vpop.f32.mrb[0].mxu0
      %v6342 = vadd.f32 0.0, %v6341
      %v6343 = vpop.f32.mrb[0].mxu0
      %v6344 = vadd.f32 0.0, %v6343
      %6345 = vmatprep.mubr.bf16.mxu0 0
      %6346 = vmatmul.mubr.bf16.gmra.mrb[0].mxu0 %v6248
      %v6347 = vpop.f32.mrb[0].mxu0
      %v6348 = vadd.f32 0.0, %v6347
      %v6349 = vpop.f32.mrb[0].mxu0
      %v6350 = vadd.f32 0.0, %v6349
      %v6351 = vpop.f32.mrb[0].mxu0
      %v6352 = vadd.f32 0.0, %v6351
      %v6353 = vpop.f32.mrb[0].mxu0
      %v6354 = vadd.f32 0.0, %v6353
      %6355 = vdwg.mxu0
      %v6356 = vpack.c.bf16 %v6289, %v6285
      %v6357 = vpack.c.bf16 %v6291, %v6287
      %v6358 = vpack.c.bf16 %v6342, %v6338
      %v6359 = vpack.c.bf16 %v6344, %v6340
      %v6360 = vpack.c.bf16 %v6299, %v6295
      %v6361 = vpack.c.bf16 %v6301, %v6297
      %v6362 = vpack.c.bf16 %v6352, %v6348
      %v6363 = vpack.c.bf16 %v6354, %v6350
      %s6364 = scalar_lea.vmem %s5, 1536
      %v6365 = vld [vmem:[%s6364] sm:$0xff]
      %v6366 = vld [vmem:[%s6364 + $0x8] sm:$0xff]
      %v6367 = vld [vmem:[%s6364 + $0x10] sm:$0xff]
      %v6368 = vld [vmem:[%s6364 + $0x18] sm:$0xff]
      %v6369 = vld [vmem:[%s6364 + $0x20] sm:$0xff]
      %v6370 = vld [vmem:[%s6364 + $0x28] sm:$0xff]
      %v6371 = vld [vmem:[%s6364 + $0x30] sm:$0xff]
      %v6372 = vld [vmem:[%s6364 + $0x38] sm:$0xff]
      %v6373 = vld [vmem:[%s6364 + $0x40] sm:$0xff]
      %v6374 = vld [vmem:[%s6364 + $0x48] sm:$0xff]
      %v6375 = vld [vmem:[%s6364 + $0x50] sm:$0xff]
      %v6376 = vld [vmem:[%s6364 + $0x58] sm:$0xff]
      %v6377 = vld [vmem:[%s6364 + $0x60] sm:$0xff]
      %v6378 = vld [vmem:[%s6364 + $0x68] sm:$0xff]
      %v6379 = vld [vmem:[%s6364 + $0x70] sm:$0xff]
      %v6380 = vld [vmem:[%s6364 + $0x78] sm:$0xff]
      %v6381 = vld [vmem:[%s6364 + $0x80] sm:$0xff]
      %v6382 = vld [vmem:[%s6364 + $0x88] sm:$0xff]
      %v6383 = vld [vmem:[%s6364 + $0x90] sm:$0xff]
      %v6384 = vld [vmem:[%s6364 + $0x98] sm:$0xff]
      %v6385 = vld [vmem:[%s6364 + $0xa0] sm:$0xff]
      %v6386 = vld [vmem:[%s6364 + $0xa8] sm:$0xff]
      %v6387 = vld [vmem:[%s6364 + $0xb0] sm:$0xff]
      %v6388 = vld [vmem:[%s6364 + $0xb8] sm:$0xff]
      %v6389 = vld [vmem:[%s6364 + $0xc0] sm:$0xff]
      %v6390 = vld [vmem:[%s6364 + $0xc8] sm:$0xff]
      %v6391 = vld [vmem:[%s6364 + $0xd0] sm:$0xff]
      %v6392 = vld [vmem:[%s6364 + $0xd8] sm:$0xff]
      %v6393 = vld [vmem:[%s6364 + $0xe0] sm:$0xff]
      %v6394 = vld [vmem:[%s6364 + $0xe8] sm:$0xff]
      %v6395 = vld [vmem:[%s6364 + $0xf0] sm:$0xff]
      %v6396 = vld [vmem:[%s6364 + $0xf8] sm:$0xff]
      %v6397 = vld [vmem:[%s6364 + $0x100] sm:$0xff]
      %v6398 = vld [vmem:[%s6364 + $0x108] sm:$0xff]
      %v6399 = vld [vmem:[%s6364 + $0x110] sm:$0xff]
      %v6400 = vld [vmem:[%s6364 + $0x118] sm:$0xff]
      %v6401 = vld [vmem:[%s6364 + $0x120] sm:$0xff]
      %v6402 = vld [vmem:[%s6364 + $0x128] sm:$0xff]
      %v6403 = vld [vmem:[%s6364 + $0x130] sm:$0xff]
      %v6404 = vld [vmem:[%s6364 + $0x138] sm:$0xff]
      %v6405 = vld [vmem:[%s6364 + $0x140] sm:$0xff]
      %v6406 = vld [vmem:[%s6364 + $0x148] sm:$0xff]
      %v6407 = vld [vmem:[%s6364 + $0x150] sm:$0xff]
      %v6408 = vld [vmem:[%s6364 + $0x158] sm:$0xff]
      %v6409 = vld [vmem:[%s6364 + $0x160] sm:$0xff]
      %v6410 = vld [vmem:[%s6364 + $0x168] sm:$0xff]
      %v6411 = vld [vmem:[%s6364 + $0x170] sm:$0xff]
      %v6412 = vld [vmem:[%s6364 + $0x178] sm:$0xff]
      %v6413 = vld [vmem:[%s6364 + $0x180] sm:$0xff]
      %v6414 = vld [vmem:[%s6364 + $0x188] sm:$0xff]
      %v6415 = vld [vmem:[%s6364 + $0x190] sm:$0xff]
      %v6416 = vld [vmem:[%s6364 + $0x198] sm:$0xff]
      %v6417 = vld [vmem:[%s6364 + $0x1a0] sm:$0xff]
      %v6418 = vld [vmem:[%s6364 + $0x1a8] sm:$0xff]
      %v6419 = vld [vmem:[%s6364 + $0x1b0] sm:$0xff]
      %v6420 = vld [vmem:[%s6364 + $0x1b8] sm:$0xff]
      %v6421 = vld [vmem:[%s6364 + $0x1c0] sm:$0xff]
      %v6422 = vld [vmem:[%s6364 + $0x1c8] sm:$0xff]
      %v6423 = vld [vmem:[%s6364 + $0x1d0] sm:$0xff]
      %v6424 = vld [vmem:[%s6364 + $0x1d8] sm:$0xff]
      %v6425 = vld [vmem:[%s6364 + $0x1e0] sm:$0xff]
      %v6426 = vld [vmem:[%s6364 + $0x1e8] sm:$0xff]
      %v6427 = vld [vmem:[%s6364 + $0x1f0] sm:$0xff]
      %v6428 = vld [vmem:[%s6364 + $0x1f8] sm:$0xff]
      %v6493 = vunpack.c.l.b16 %v6365
      %v6494 = vunpack.c.h.b16 %v6365
      %v6495 = vunpack.c.l.b16 %v6366
      %v6496 = vunpack.c.h.b16 %v6366
      %v6497 = vunpack.c.l.b16 %v6367
      %v6498 = vunpack.c.h.b16 %v6367
      %v6499 = vunpack.c.l.b16 %v6368
      %v6500 = vunpack.c.h.b16 %v6368
      %v6501 = vunpack.c.l.b16 %v6369
      %v6502 = vunpack.c.h.b16 %v6369
      %v6503 = vunpack.c.l.b16 %v6370
      %v6504 = vunpack.c.h.b16 %v6370
      %v6505 = vunpack.c.l.b16 %v6371
      %v6506 = vunpack.c.h.b16 %v6371
      %v6507 = vunpack.c.l.b16 %v6372
      %v6508 = vunpack.c.h.b16 %v6372
      %v6509 = vunpack.c.l.b16 %v6373
      %v6510 = vunpack.c.h.b16 %v6373
      %v6511 = vunpack.c.l.b16 %v6374
      %v6512 = vunpack.c.h.b16 %v6374
      %v6513 = vunpack.c.l.b16 %v6375
      %v6514 = vunpack.c.h.b16 %v6375
      %v6515 = vunpack.c.l.b16 %v6376
      %v6516 = vunpack.c.h.b16 %v6376
      %v6517 = vunpack.c.l.b16 %v6377
      %v6518 = vunpack.c.h.b16 %v6377
      %v6519 = vunpack.c.l.b16 %v6378
      %v6520 = vunpack.c.h.b16 %v6378
      %v6521 = vunpack.c.l.b16 %v6379
      %v6522 = vunpack.c.h.b16 %v6379
      %v6523 = vunpack.c.l.b16 %v6380
      %v6524 = vunpack.c.h.b16 %v6380
      %v6525 = vunpack.c.l.b16 %v6381
      %v6526 = vunpack.c.h.b16 %v6381
      %v6527 = vunpack.c.l.b16 %v6382
      %v6528 = vunpack.c.h.b16 %v6382
      %v6529 = vunpack.c.l.b16 %v6383
      %v6530 = vunpack.c.h.b16 %v6383
      %v6531 = vunpack.c.l.b16 %v6384
      %v6532 = vunpack.c.h.b16 %v6384
      %v6533 = vunpack.c.l.b16 %v6385
      %v6534 = vunpack.c.h.b16 %v6385
      %v6535 = vunpack.c.l.b16 %v6386
      %v6536 = vunpack.c.h.b16 %v6386
      %v6537 = vunpack.c.l.b16 %v6387
      %v6538 = vunpack.c.h.b16 %v6387
      %v6539 = vunpack.c.l.b16 %v6388
      %v6540 = vunpack.c.h.b16 %v6388
      %v6541 = vunpack.c.l.b16 %v6389
      %v6542 = vunpack.c.h.b16 %v6389
      %v6543 = vunpack.c.l.b16 %v6390
      %v6544 = vunpack.c.h.b16 %v6390
      %v6545 = vunpack.c.l.b16 %v6391
      %v6546 = vunpack.c.h.b16 %v6391
      %v6547 = vunpack.c.l.b16 %v6392
      %v6548 = vunpack.c.h.b16 %v6392
      %v6549 = vunpack.c.l.b16 %v6393
      %v6550 = vunpack.c.h.b16 %v6393
      %v6551 = vunpack.c.l.b16 %v6394
      %v6552 = vunpack.c.h.b16 %v6394
      %v6553 = vunpack.c.l.b16 %v6395
      %v6554 = vunpack.c.h.b16 %v6395
      %v6555 = vunpack.c.l.b16 %v6396
      %v6556 = vunpack.c.h.b16 %v6396
      %v6557 = vunpack.c.l.b16 %v6397
      %v6558 = vunpack.c.h.b16 %v6397
      %v6559 = vunpack.c.l.b16 %v6398
      %v6560 = vunpack.c.h.b16 %v6398
      %v6561 = vunpack.c.l.b16 %v6399
      %v6562 = vunpack.c.h.b16 %v6399
      %v6563 = vunpack.c.l.b16 %v6400
      %v6564 = vunpack.c.h.b16 %v6400
      %v6565 = vunpack.c.l.b16 %v6401
      %v6566 = vunpack.c.h.b16 %v6401
      %v6567 = vunpack.c.l.b16 %v6402
      %v6568 = vunpack.c.h.b16 %v6402
      %v6569 = vunpack.c.l.b16 %v6403
      %v6570 = vunpack.c.h.b16 %v6403
      %v6571 = vunpack.c.l.b16 %v6404
      %v6572 = vunpack.c.h.b16 %v6404
      %v6573 = vunpack.c.l.b16 %v6405
      %v6574 = vunpack.c.h.b16 %v6405
      %v6575 = vunpack.c.l.b16 %v6406
      %v6576 = vunpack.c.h.b16 %v6406
      %v6577 = vunpack.c.l.b16 %v6407
      %v6578 = vunpack.c.h.b16 %v6407
      %v6579 = vunpack.c.l.b16 %v6408
      %v6580 = vunpack.c.h.b16 %v6408
      %v6581 = vunpack.c.l.b16 %v6409
      %v6582 = vunpack.c.h.b16 %v6409
      %v6583 = vunpack.c.l.b16 %v6410
      %v6584 = vunpack.c.h.b16 %v6410
      %v6585 = vunpack.c.l.b16 %v6411
      %v6586 = vunpack.c.h.b16 %v6411
      %v6587 = vunpack.c.l.b16 %v6412
      %v6588 = vunpack.c.h.b16 %v6412
      %v6589 = vunpack.c.l.b16 %v6413
      %v6590 = vunpack.c.h.b16 %v6413
      %v6591 = vunpack.c.l.b16 %v6414
      %v6592 = vunpack.c.h.b16 %v6414
      %v6593 = vunpack.c.l.b16 %v6415
      %v6594 = vunpack.c.h.b16 %v6415
      %v6595 = vunpack.c.l.b16 %v6416
      %v6596 = vunpack.c.h.b16 %v6416
      %v6597 = vunpack.c.l.b16 %v6417
      %v6598 = vunpack.c.h.b16 %v6417
      %v6599 = vunpack.c.l.b16 %v6418
      %v6600 = vunpack.c.h.b16 %v6418
      %v6601 = vunpack.c.l.b16 %v6419
      %v6602 = vunpack.c.h.b16 %v6419
      %v6603 = vunpack.c.l.b16 %v6420
      %v6604 = vunpack.c.h.b16 %v6420
      %v6605 = vunpack.c.l.b16 %v6421
      %v6606 = vunpack.c.h.b16 %v6421
      %v6607 = vunpack.c.l.b16 %v6422
      %v6608 = vunpack.c.h.b16 %v6422
      %v6609 = vunpack.c.l.b16 %v6423
      %v6610 = vunpack.c.h.b16 %v6423
      %v6611 = vunpack.c.l.b16 %v6424
      %v6612 = vunpack.c.h.b16 %v6424
      %v6613 = vunpack.c.l.b16 %v6425
      %v6614 = vunpack.c.h.b16 %v6425
      %v6615 = vunpack.c.l.b16 %v6426
      %v6616 = vunpack.c.h.b16 %v6426
      %v6617 = vunpack.c.l.b16 %v6427
      %v6618 = vunpack.c.h.b16 %v6427
      %v6619 = vunpack.c.l.b16 %v6428
      %v6620 = vunpack.c.h.b16 %v6428
      %v6621 = vpack.c.b16 %v6495, %v6493
      %v6622 = vpack.c.b16 %v6496, %v6494
      %v6623 = vpack.c.b16 %v6499, %v6497
      %v6624 = vpack.c.b16 %v6500, %v6498
      %v6625 = vpack.c.b16 %v6503, %v6501
      %v6626 = vpack.c.b16 %v6504, %v6502
      %v6627 = vpack.c.b16 %v6507, %v6505
      %v6628 = vpack.c.b16 %v6508, %v6506
      %v6629 = vpack.c.b16 %v6511, %v6509
      %v6630 = vpack.c.b16 %v6512, %v6510
      %v6631 = vpack.c.b16 %v6515, %v6513
      %v6632 = vpack.c.b16 %v6516, %v6514
      %v6633 = vpack.c.b16 %v6519, %v6517
      %v6634 = vpack.c.b16 %v6520, %v6518
      %v6635 = vpack.c.b16 %v6523, %v6521
      %v6636 = vpack.c.b16 %v6524, %v6522
      %v6637 = vpack.c.b16 %v6527, %v6525
      %v6638 = vpack.c.b16 %v6528, %v6526
      %v6639 = vpack.c.b16 %v6531, %v6529
      %v6640 = vpack.c.b16 %v6532, %v6530
      %v6641 = vpack.c.b16 %v6535, %v6533
      %v6642 = vpack.c.b16 %v6536, %v6534
      %v6643 = vpack.c.b16 %v6539, %v6537
      %v6644 = vpack.c.b16 %v6540, %v6538
      %v6645 = vpack.c.b16 %v6543, %v6541
      %v6646 = vpack.c.b16 %v6544, %v6542
      %v6647 = vpack.c.b16 %v6547, %v6545
      %v6648 = vpack.c.b16 %v6548, %v6546
      %v6649 = vpack.c.b16 %v6551, %v6549
      %v6650 = vpack.c.b16 %v6552, %v6550
      %v6651 = vpack.c.b16 %v6555, %v6553
      %v6652 = vpack.c.b16 %v6556, %v6554
      %v6653 = vpack.c.b16 %v6559, %v6557
      %v6654 = vpack.c.b16 %v6560, %v6558
      %v6655 = vpack.c.b16 %v6563, %v6561
      %v6656 = vpack.c.b16 %v6564, %v6562
      %v6657 = vpack.c.b16 %v6567, %v6565
      %v6658 = vpack.c.b16 %v6568, %v6566
      %v6659 = vpack.c.b16 %v6571, %v6569
      %v6660 = vpack.c.b16 %v6572, %v6570
      %v6661 = vpack.c.b16 %v6575, %v6573
      %v6662 = vpack.c.b16 %v6576, %v6574
      %v6663 = vpack.c.b16 %v6579, %v6577
      %v6664 = vpack.c.b16 %v6580, %v6578
      %v6665 = vpack.c.b16 %v6583, %v6581
      %v6666 = vpack.c.b16 %v6584, %v6582
      %v6667 = vpack.c.b16 %v6587, %v6585
      %v6668 = vpack.c.b16 %v6588, %v6586
      %v6669 = vpack.c.b16 %v6591, %v6589
      %v6670 = vpack.c.b16 %v6592, %v6590
      %v6671 = vpack.c.b16 %v6595, %v6593
      %v6672 = vpack.c.b16 %v6596, %v6594
      %v6673 = vpack.c.b16 %v6599, %v6597
      %v6674 = vpack.c.b16 %v6600, %v6598
      %v6675 = vpack.c.b16 %v6603, %v6601
      %v6676 = vpack.c.b16 %v6604, %v6602
      %v6677 = vpack.c.b16 %v6607, %v6605
      %v6678 = vpack.c.b16 %v6608, %v6606
      %v6679 = vpack.c.b16 %v6611, %v6609
      %v6680 = vpack.c.b16 %v6612, %v6610
      %v6681 = vpack.c.b16 %v6615, %v6613
      %v6682 = vpack.c.b16 %v6616, %v6614
      %v6683 = vpack.c.b16 %v6619, %v6617
      %v6684 = vpack.c.b16 %v6620, %v6618
      %6749 = vmatprep.subr.bf16.mxu0 %v6622
      %6750 = vmatpush1.bf16.msra.mxu0 %v6621
      %6751 = vmatprep.subr.bf16.mxu0 %v6624
      %6752 = vmatpush1.bf16.msra.mxu0 %v6623
      %6753 = vmatprep.subr.bf16.mxu0 %v6626
      %6754 = vmatpush1.bf16.msra.mxu0 %v6625
      %6755 = vmatprep.subr.bf16.mxu0 %v6628
      %6756 = vmatpush1.bf16.msra.mxu0 %v6627
      %6757 = vmatprep.subr.bf16.mxu0 %v6630
      %6758 = vmatpush1.bf16.msra.mxu0 %v6629
      %6759 = vmatprep.subr.bf16.mxu0 %v6632
      %6760 = vmatpush1.bf16.msra.mxu0 %v6631
      %6761 = vmatprep.subr.bf16.mxu0 %v6634
      %6762 = vmatpush1.bf16.msra.mxu0 %v6633
      %6763 = vmatprep.subr.bf16.mxu0 %v6636
      %6764 = vmatpush1.bf16.msra.mxu0 %v6635
      %6765 = vmatprep.subr.bf16.mxu0 %v6638
      %6766 = vmatpush1.bf16.msra.mxu0 %v6637
      %6767 = vmatprep.subr.bf16.mxu0 %v6640
      %6768 = vmatpush1.bf16.msra.mxu0 %v6639
      %6769 = vmatprep.subr.bf16.mxu0 %v6642
      %6770 = vmatpush1.bf16.msra.mxu0 %v6641
      %6771 = vmatprep.subr.bf16.mxu0 %v6644
      %6772 = vmatpush1.bf16.msra.mxu0 %v6643
      %6773 = vmatprep.subr.bf16.mxu0 %v6646
      %6774 = vmatpush1.bf16.msra.mxu0 %v6645
      %6775 = vmatprep.subr.bf16.mxu0 %v6648
      %6776 = vmatpush1.bf16.msra.mxu0 %v6647
      %6777 = vmatprep.subr.bf16.mxu0 %v6650
      %6778 = vmatpush1.bf16.msra.mxu0 %v6649
      %6779 = vmatprep.subr.bf16.mxu0 %v6652
      %6780 = vmatpush1.bf16.msra.mxu0 %v6651
      %6781 = vmatprep.mubr.bf16.mxu0 %v6357
      %6782 = vmatmul.mubr.bf16.gmra.mrb[0].mxu0 %v6356
      %v6783 = vpop.f32.mrb[0].mxu0
      %v6784 = vadd.f32 0.0, %v6783
      %v6785 = vpop.f32.mrb[0].mxu0
      %v6786 = vadd.f32 0.0, %v6785
      %v6787 = vpop.f32.mrb[0].mxu0
      %v6788 = vadd.f32 0.0, %v6787
      %v6789 = vpop.f32.mrb[0].mxu0
      %v6790 = vadd.f32 0.0, %v6789
      %6791 = vmatprep.mubr.bf16.mxu0 %v6361
      %6792 = vmatmul.mubr.bf16.gmra.mrb[0].mxu0 %v6360
      %v6793 = vpop.f32.mrb[0].mxu0
      %v6794 = vadd.f32 0.0, %v6793
      %v6795 = vpop.f32.mrb[0].mxu0
      %v6796 = vadd.f32 0.0, %v6795
      %v6797 = vpop.f32.mrb[0].mxu0
      %v6798 = vadd.f32 0.0, %v6797
      %v6799 = vpop.f32.mrb[0].mxu0
      %v6800 = vadd.f32 0.0, %v6799
      %6801 = vdwg.mxu0
      %6802 = vmatprep.subr.bf16.mxu0 %v6654
      %6803 = vmatpush1.bf16.msra.mxu0 %v6653
      %6804 = vmatprep.subr.bf16.mxu0 %v6656
      %6805 = vmatpush1.bf16.msra.mxu0 %v6655
      %6806 = vmatprep.subr.bf16.mxu0 %v6658
      %6807 = vmatpush1.bf16.msra.mxu0 %v6657
      %6808 = vmatprep.subr.bf16.mxu0 %v6660
      %6809 = vmatpush1.bf16.msra.mxu0 %v6659
      %6810 = vmatprep.subr.bf16.mxu0 %v6662
      %6811 = vmatpush1.bf16.msra.mxu0 %v6661
      %6812 = vmatprep.subr.bf16.mxu0 %v6664
      %6813 = vmatpush1.bf16.msra.mxu0 %v6663
      %6814 = vmatprep.subr.bf16.mxu0 %v6666
      %6815 = vmatpush1.bf16.msra.mxu0 %v6665
      %6816 = vmatprep.subr.bf16.mxu0 %v6668
      %6817 = vmatpush1.bf16.msra.mxu0 %v6667
      %6818 = vmatprep.subr.bf16.mxu0 %v6670
      %6819 = vmatpush1.bf16.msra.mxu0 %v6669
      %6820 = vmatprep.subr.bf16.mxu0 %v6672
      %6821 = vmatpush1.bf16.msra.mxu0 %v6671
      %6822 = vmatprep.subr.bf16.mxu0 %v6674
      %6823 = vmatpush1.bf16.msra.mxu0 %v6673
      %6824 = vmatprep.subr.bf16.mxu0 %v6676
      %6825 = vmatpush1.bf16.msra.mxu0 %v6675
      %6826 = vmatprep.subr.bf16.mxu0 %v6678
      %6827 = vmatpush1.bf16.msra.mxu0 %v6677
      %6828 = vmatprep.subr.bf16.mxu0 %v6680
      %6829 = vmatpush1.bf16.msra.mxu0 %v6679
      %6830 = vmatprep.subr.bf16.mxu0 %v6682
      %6831 = vmatpush1.bf16.msra.mxu0 %v6681
      %6832 = vmatprep.subr.bf16.mxu0 %v6684
      %6833 = vmatpush1.bf16.msra.mxu0 %v6683
      %6834 = vmatprep.mubr.bf16.mxu0 %v6359
      %6835 = vmatmul.mubr.bf16.gmra.mrb[0].mxu0 %v6358
      %v6836 = vpop.f32.mrb[0].mxu0
      %v6837 = vadd.f32 %v6784, %v6836
      %v6838 = vpop.f32.mrb[0].mxu0
      %v6839 = vadd.f32 %v6786, %v6838
      %v6840 = vpop.f32.mrb[0].mxu0
      %v6841 = vadd.f32 %v6788, %v6840
      %v6842 = vpop.f32.mrb[0].mxu0
      %v6843 = vadd.f32 %v6790, %v6842
      %6844 = vmatprep.mubr.bf16.mxu0 %v6363
      %6845 = vmatmul.mubr.bf16.gmra.mrb[0].mxu0 %v6362
      %v6846 = vpop.f32.mrb[0].mxu0
      %v6847 = vadd.f32 %v6794, %v6846
      %v6848 = vpop.f32.mrb[0].mxu0
      %v6849 = vadd.f32 %v6796, %v6848
      %v6850 = vpop.f32.mrb[0].mxu0
      %v6851 = vadd.f32 %v6798, %v6850
      %v6852 = vpop.f32.mrb[0].mxu0
      %v6853 = vadd.f32 %v6800, %v6852
      %6854 = vdwg.mxu0
      %v6855 = vadd.f32 %v6221, %v6837
      %v6856 = vadd.f32 %v6222, %v6839
      %v6857 = vadd.f32 %v6223, %v6841
      %v6858 = vadd.f32 %v6224, %v6843
      %v6859 = vadd.f32 %v6225, %v6847
      %v6860 = vadd.f32 %v6226, %v6849
      %v6861 = vadd.f32 %v6227, %v6851
      %v6862 = vadd.f32 %v6228, %v6853
      %v6863 = vld [vmem:[%s6] sm:$0x3]
      %v6865 = vlaneseq
      %v6866 = vshrl.u32 %v6865, 7
      %v6867 = vsub.s32 0, %v6866
      %v6868 = vrot.slane %v6863, %v6867
      %v6869 = vlaneseq
      %v6870 = vshrl.u32 %v6869, 7
      %v6871 = vsub.s32 1, %v6870
      %v6872 = vrot.slane %v6863, %v6871
      %v6875 = vadd.f32 %v6855, %v6868
      %v6876 = vadd.f32 %v6856, %v6872
      %v6877 = vadd.f32 %v6857, %v6868
      %v6878 = vadd.f32 %v6858, %v6872
      %v6879 = vadd.f32 %v6859, %v6868
      %v6880 = vadd.f32 %v6860, %v6872
      %v6881 = vadd.f32 %v6861, %v6868
      %v6882 = vadd.f32 %v6862, %v6872
      %v6883 = vmax.f32 %v6875, 0.0
      %v6884 = vmax.f32 %v6876, 0.0
      %v6885 = vmax.f32 %v6877, 0.0
      %v6886 = vmax.f32 %v6878, 0.0
      %v6887 = vmax.f32 %v6879, 0.0
      %v6888 = vmax.f32 %v6880, 0.0
      %v6889 = vmax.f32 %v6881, 0.0
      %v6890 = vmax.f32 %v6882, 0.0
      %v6891 = vpack.c.bf16 %v6885, %v6883
      %v6892 = vpack.c.bf16 %v6886, %v6884
      %v6893 = vpack.c.bf16 %v6889, %v6887
      %v6894 = vpack.c.bf16 %v6890, %v6888
      %v6899 = vunpack.c.l.b16 %v6891
      %v6900 = vunpack.c.l.b16 %v6892
      %v6901 = vunpack.c.h.b16 %v6891
      %v6902 = vunpack.c.h.b16 %v6892
      %v6903 = vunpack.c.l.b16 %v6893
      %v6904 = vunpack.c.l.b16 %v6894
      %v6905 = vunpack.c.h.b16 %v6893
      %v6906 = vunpack.c.h.b16 %v6894
      %v6907 = vpack.c.b16 %v6900, %v6899
      %v6908 = vpack.c.b16 %v6902, %v6901
      %v6909 = vpack.c.b16 %v6904, %v6903
      %v6910 = vpack.c.b16 %v6906, %v6905
      %6915 = vst [vmem:[#allocation3] sm:$0xff] %v6907
      %6916 = vst [vmem:[#allocation3 + $0x8] sm:$0xff] %v6908
      %6917 = vst [vmem:[#allocation3 + $0x10] sm:$0xff] %v6909
      %6918 = vst [vmem:[#allocation3 + $0x18] sm:$0xff] %v6910
      %v6919 = vld [vmem:[#allocation3] sm:$0xff]
      %v6920 = vld [vmem:[#allocation3 + $0x8] sm:$0xff]
      %v6921 = vld [vmem:[#allocation3 + $0x10] sm:$0xff]
      %v6922 = vld [vmem:[#allocation3 + $0x18] sm:$0xff]
      %v6923 = vld [vmem:[#allocation3 + $0x20] sm:$0xff]
      %v6924 = vld [vmem:[%s7] sm:$0xf]
      %v6925 = vld [vmem:[%s7 + $0x4] sm:$0xf]
      %v6928 = vunpack.c.l.b16 %v6924
      %v6929 = vunpack.c.l.b16 %v6925
      %v6930 = vpack.c.b16 %v6929, %v6928
      %v6936 = vunpack.c.l.b16 %v6919
      %v6937 = vunpack.c.h.b16 %v6919
      %v6938 = vunpack.c.l.b16 %v6920
      %v6939 = vunpack.c.h.b16 %v6920
      %v6940 = vunpack.c.l.b16 %v6921
      %v6941 = vunpack.c.h.b16 %v6921
      %v6942 = vunpack.c.l.b16 %v6922
      %v6943 = vunpack.c.h.b16 %v6922
      %v6944 = vunpack.c.l.b16 %v6923
      %v6945 = vunpack.c.h.b16 %v6923
      %v6946 = vpack.c.b16 %v6938, %v6936
      %v6947 = vpack.c.b16 %v6939, %v6937
      %v6948 = vpack.c.b16 %v6942, %v6940
      %v6949 = vpack.c.b16 %v6943, %v6941
      %v6950 = vpack.c.b16 %v6944, %v6944
      %v6951 = vpack.c.b16 %v6945, %v6945
      %vm6956 = vcmask 326656
      %v6958 = vsel %vm6956, %v6930, 0
      %v6961 = vsel %vm701, %v6950, 0
      %v6964 = vsel %vm701, %v6951, 0
      %6966 = vmatprep.subr.bf16.mxu0 %v6947
      %6967 = vmatpush1.bf16.msra.mxu0 %v6946
      %6968 = vmatprep.subr.bf16.mxu0 %v6949
      %6969 = vmatpush1.bf16.msra.mxu0 %v6948
      %6970 = vmatprep.subr.bf16.mxu0 %v6964
      %6971 = vmatpush1.bf16.msra.mxu0 %v6961
      %6972 = vmatprep.subr.bf16.mxu0 0
      %6973 = vmatpush1.bf16.msra.mxu0 0
      %6974 = vmatprep.subr.bf16.mxu0 0
      %6975 = vmatpush1.bf16.msra.mxu0 0
      %6976 = vmatprep.subr.bf16.mxu0 0
      %6977 = vmatpush1.bf16.msra.mxu0 0
      %6978 = vmatprep.subr.bf16.mxu0 0
      %6979 = vmatpush1.bf16.msra.mxu0 0
      %6980 = vmatprep.subr.bf16.mxu0 0
      %6981 = vmatpush1.bf16.msra.mxu0 0
      %6982 = vmatprep.subr.bf16.mxu0 0
      %6983 = vmatpush1.bf16.msra.mxu0 0
      %6984 = vmatprep.subr.bf16.mxu0 0
      %6985 = vmatpush1.bf16.msra.mxu0 0
      %6986 = vmatprep.subr.bf16.mxu0 0
      %6987 = vmatpush1.bf16.msra.mxu0 0
      %6988 = vmatprep.subr.bf16.mxu0 0
      %6989 = vmatpush1.bf16.msra.mxu0 0
      %6990 = vmatprep.subr.bf16.mxu0 0
      %6991 = vmatpush1.bf16.msra.mxu0 0
      %6992 = vmatprep.subr.bf16.mxu0 0
      %6993 = vmatpush1.bf16.msra.mxu0 0
      %6994 = vmatprep.subr.bf16.mxu0 0
      %6995 = vmatpush1.bf16.msra.mxu0 0
      %6996 = vmatprep.subr.bf16.mxu0 0
      %6997 = vmatpush1.bf16.msra.mxu0 0
      %6998 = vmatprep.mubr.bf16.mxu0 0
      %6999 = vmatmul.mubr.bf16.gmra.mrb[0].mxu0 %v6958
      %v7000 = vpop.f32.mrb[0].mxu0
      %v7001 = vadd.f32 0.0, %v7000
      %v7002 = vpop.f32.mrb[0].mxu0
      %v7003 = vadd.f32 0.0, %v7002
      %v7004 = vpop.f32.mrb[0].mxu0
      %v7005 = vadd.f32 0.0, %v7004
      %v7006 = vpop.f32.mrb[0].mxu0
      %v7007 = vadd.f32 0.0, %v7006
      %7008 = vdwg.mxu0
      %v7009 = vpack.c.bf16 %v7005, %v7001
      %v7010 = vpack.c.bf16 %v7007, %v7003
      %v7011 = vld [vmem:[%s8] sm:$0xff]
      %v7012 = vld [vmem:[%s8 + $0x8] sm:$0xff]
      %v7013 = vld [vmem:[%s8 + $0x10] sm:$0xff]
      %v7014 = vld [vmem:[%s8 + $0x18] sm:$0xff]
      %v7015 = vld [vmem:[%s8 + $0x20] sm:$0xff]
      %v7016 = vld [vmem:[%s8 + $0x28] sm:$0xff]
      %v7017 = vld [vmem:[%s8 + $0x30] sm:$0xff]
      %v7018 = vld [vmem:[%s8 + $0x38] sm:$0xff]
      %v7019 = vld [vmem:[%s8 + $0x40] sm:$0xff]
      %v7020 = vld [vmem:[%s8 + $0x48] sm:$0xff]
      %v7021 = vld [vmem:[%s8 + $0x50] sm:$0xff]
      %v7022 = vld [vmem:[%s8 + $0x58] sm:$0xff]
      %v7023 = vld [vmem:[%s8 + $0x60] sm:$0xff]
      %v7024 = vld [vmem:[%s8 + $0x68] sm:$0xff]
      %v7025 = vld [vmem:[%s8 + $0x70] sm:$0xff]
      %v7026 = vld [vmem:[%s8 + $0x78] sm:$0xff]
      %v7027 = vld [vmem:[%s8 + $0x80] sm:$0xff]
      %v7028 = vld [vmem:[%s8 + $0x88] sm:$0xff]
      %v7029 = vld [vmem:[%s8 + $0x90] sm:$0xff]
      %v7030 = vld [vmem:[%s8 + $0x98] sm:$0xff]
      %v7031 = vld [vmem:[%s8 + $0xa0] sm:$0xff]
      %v7032 = vld [vmem:[%s8 + $0xa8] sm:$0xff]
      %v7033 = vld [vmem:[%s8 + $0xb0] sm:$0xff]
      %v7034 = vld [vmem:[%s8 + $0xb8] sm:$0xff]
      %v7035 = vld [vmem:[%s8 + $0xc0] sm:$0xff]
      %v7036 = vld [vmem:[%s8 + $0xc8] sm:$0xff]
      %v7037 = vld [vmem:[%s8 + $0xd0] sm:$0xff]
      %v7038 = vld [vmem:[%s8 + $0xd8] sm:$0xff]
      %v7039 = vld [vmem:[%s8 + $0xe0] sm:$0xff]
      %v7040 = vld [vmem:[%s8 + $0xe8] sm:$0xff]
      %v7041 = vld [vmem:[%s8 + $0xf0] sm:$0xff]
      %v7042 = vld [vmem:[%s8 + $0xf8] sm:$0xff]
      %s7043 = scalar_lea.vmem %s7, 8
      %v7044 = vld [vmem:[%s7043] sm:$0xf]
      %v7045 = vld [vmem:[%s7043 + $0x4] sm:$0xf]
      %v7048 = vunpack.c.l.b16 %v7044
      %v7049 = vunpack.c.l.b16 %v7045
      %v7050 = vpack.c.b16 %v7049, %v7048
      %v7052 = vsel %vm6956, %v7050, 0
      %7054 = vmatprep.subr.bf16.mxu0 %v6947
      %7055 = vmatpush1.bf16.msra.mxu0 %v6946
      %7056 = vmatprep.subr.bf16.mxu0 %v6949
      %7057 = vmatpush1.bf16.msra.mxu0 %v6948
      %7058 = vmatprep.subr.bf16.mxu0 %v6964
      %7059 = vmatpush1.bf16.msra.mxu0 %v6961
      %7060 = vmatprep.subr.bf16.mxu0 0
      %7061 = vmatpush1.bf16.msra.mxu0 0
      %7062 = vmatprep.subr.bf16.mxu0 0
      %7063 = vmatpush1.bf16.msra.mxu0 0
      %7064 = vmatprep.subr.bf16.mxu0 0
      %7065 = vmatpush1.bf16.msra.mxu0 0
      %7066 = vmatprep.subr.bf16.mxu0 0
      %7067 = vmatpush1.bf16.msra.mxu0 0
      %7068 = vmatprep.subr.bf16.mxu0 0
      %7069 = vmatpush1.bf16.msra.mxu0 0
      %7070 = vmatprep.subr.bf16.mxu0 0
      %7071 = vmatpush1.bf16.msra.mxu0 0
      %7072 = vmatprep.subr.bf16.mxu0 0
      %7073 = vmatpush1.bf16.msra.mxu0 0
      %7074 = vmatprep.subr.bf16.mxu0 0
      %7075 = vmatpush1.bf16.msra.mxu0 0
      %7076 = vmatprep.subr.bf16.mxu0 0
      %7077 = vmatpush1.bf16.msra.mxu0 0
      %7078 = vmatprep.subr.bf16.mxu0 0
      %7079 = vmatpush1.bf16.msra.mxu0 0
      %7080 = vmatprep.subr.bf16.mxu0 0
      %7081 = vmatpush1.bf16.msra.mxu0 0
      %7082 = vmatprep.subr.bf16.mxu0 0
      %7083 = vmatpush1.bf16.msra.mxu0 0
      %7084 = vmatprep.subr.bf16.mxu0 0
      %7085 = vmatpush1.bf16.msra.mxu0 0
      %7086 = vmatprep.mubr.bf16.mxu0 0
      %7087 = vmatmul.mubr.bf16.gmra.mrb[0].mxu0 %v7052
      %v7088 = vpop.f32.mrb[0].mxu0
      %v7089 = vadd.f32 0.0, %v7088
      %v7090 = vpop.f32.mrb[0].mxu0
      %v7091 = vadd.f32 0.0, %v7090
      %v7092 = vpop.f32.mrb[0].mxu0
      %v7093 = vadd.f32 0.0, %v7092
      %v7094 = vpop.f32.mrb[0].mxu0
      %v7095 = vadd.f32 0.0, %v7094
      %7096 = vdwg.mxu0
      %v7097 = vpack.c.bf16 %v7093, %v7089
      %v7098 = vpack.c.bf16 %v7095, %v7091
      %s7099 = scalar_lea.vmem %s8, 256
      %v7100 = vld [vmem:[%s7099] sm:$0xff]
      %v7101 = vld [vmem:[%s7099 + $0x8] sm:$0xff]
      %v7102 = vld [vmem:[%s7099 + $0x10] sm:$0xff]
      %v7103 = vld [vmem:[%s7099 + $0x18] sm:$0xff]
      %v7104 = vld [vmem:[%s7099 + $0x20] sm:$0xff]
      %v7105 = vld [vmem:[%s7099 + $0x28] sm:$0xff]
      %v7106 = vld [vmem:[%s7099 + $0x30] sm:$0xff]
      %v7107 = vld [vmem:[%s7099 + $0x38] sm:$0xff]
      %v7108 = vld [vmem:[%s7099 + $0x40] sm:$0xff]
      %v7109 = vld [vmem:[%s7099 + $0x48] sm:$0xff]
      %v7110 = vld [vmem:[%s7099 + $0x50] sm:$0xff]
      %v7111 = vld [vmem:[%s7099 + $0x58] sm:$0xff]
      %v7112 = vld [vmem:[%s7099 + $0x60] sm:$0xff]
      %v7113 = vld [vmem:[%s7099 + $0x68] sm:$0xff]
      %v7114 = vld [vmem:[%s7099 + $0x70] sm:$0xff]
      %v7115 = vld [vmem:[%s7099 + $0x78] sm:$0xff]
      %v7116 = vld [vmem:[%s7099 + $0x80] sm:$0xff]
      %v7117 = vld [vmem:[%s7099 + $0x88] sm:$0xff]
      %v7118 = vld [vmem:[%s7099 + $0x90] sm:$0xff]
      %v7119 = vld [vmem:[%s7099 + $0x98] sm:$0xff]
      %v7120 = vld [vmem:[%s7099 + $0xa0] sm:$0xff]
      %v7121 = vld [vmem:[%s7099 + $0xa8] sm:$0xff]
      %v7122 = vld [vmem:[%s7099 + $0xb0] sm:$0xff]
      %v7123 = vld [vmem:[%s7099 + $0xb8] sm:$0xff]
      %v7124 = vld [vmem:[%s7099 + $0xc0] sm:$0xff]
      %v7125 = vld [vmem:[%s7099 + $0xc8] sm:$0xff]
      %v7126 = vld [vmem:[%s7099 + $0xd0] sm:$0xff]
      %v7127 = vld [vmem:[%s7099 + $0xd8] sm:$0xff]
      %v7128 = vld [vmem:[%s7099 + $0xe0] sm:$0xff]
      %v7129 = vld [vmem:[%s7099 + $0xe8] sm:$0xff]
      %v7130 = vld [vmem:[%s7099 + $0xf0] sm:$0xff]
      %v7131 = vld [vmem:[%s7099 + $0xf8] sm:$0xff]
      %v7164 = vunpack.c.l.b16 %v7100
      %v7165 = vunpack.c.h.b16 %v7100
      %v7166 = vunpack.c.l.b16 %v7101
      %v7167 = vunpack.c.h.b16 %v7101
      %v7168 = vunpack.c.l.b16 %v7102
      %v7169 = vunpack.c.h.b16 %v7102
      %v7170 = vunpack.c.l.b16 %v7103
      %v7171 = vunpack.c.h.b16 %v7103
      %v7172 = vunpack.c.l.b16 %v7104
      %v7173 = vunpack.c.h.b16 %v7104
      %v7174 = vunpack.c.l.b16 %v7105
      %v7175 = vunpack.c.h.b16 %v7105
      %v7176 = vunpack.c.l.b16 %v7106
      %v7177 = vunpack.c.h.b16 %v7106
      %v7178 = vunpack.c.l.b16 %v7107
      %v7179 = vunpack.c.h.b16 %v7107
      %v7180 = vunpack.c.l.b16 %v7108
      %v7181 = vunpack.c.h.b16 %v7108
      %v7182 = vunpack.c.l.b16 %v7109
      %v7183 = vunpack.c.h.b16 %v7109
      %v7184 = vunpack.c.l.b16 %v7110
      %v7185 = vunpack.c.h.b16 %v7110
      %v7186 = vunpack.c.l.b16 %v7111
      %v7187 = vunpack.c.h.b16 %v7111
      %v7188 = vunpack.c.l.b16 %v7112
      %v7189 = vunpack.c.h.b16 %v7112
      %v7190 = vunpack.c.l.b16 %v7113
      %v7191 = vunpack.c.h.b16 %v7113
      %v7192 = vunpack.c.l.b16 %v7114
      %v7193 = vunpack.c.h.b16 %v7114
      %v7194 = vunpack.c.l.b16 %v7115
      %v7195 = vunpack.c.h.b16 %v7115
      %v7196 = vunpack.c.l.b16 %v7116
      %v7197 = vunpack.c.h.b16 %v7116
      %v7198 = vunpack.c.l.b16 %v7117
      %v7199 = vunpack.c.h.b16 %v7117
      %v7200 = vunpack.c.l.b16 %v7118
      %v7201 = vunpack.c.h.b16 %v7118
      %v7202 = vunpack.c.l.b16 %v7119
      %v7203 = vunpack.c.h.b16 %v7119
      %v7204 = vunpack.c.l.b16 %v7120
      %v7205 = vunpack.c.h.b16 %v7120
      %v7206 = vunpack.c.l.b16 %v7121
      %v7207 = vunpack.c.h.b16 %v7121
      %v7208 = vunpack.c.l.b16 %v7122
      %v7209 = vunpack.c.h.b16 %v7122
      %v7210 = vunpack.c.l.b16 %v7123
      %v7211 = vunpack.c.h.b16 %v7123
      %v7212 = vunpack.c.l.b16 %v7124
      %v7213 = vunpack.c.h.b16 %v7124
      %v7214 = vunpack.c.l.b16 %v7125
      %v7215 = vunpack.c.h.b16 %v7125
      %v7216 = vunpack.c.l.b16 %v7126
      %v7217 = vunpack.c.h.b16 %v7126
      %v7218 = vunpack.c.l.b16 %v7127
      %v7219 = vunpack.c.h.b16 %v7127
      %v7220 = vunpack.c.l.b16 %v7128
      %v7221 = vunpack.c.h.b16 %v7128
      %v7222 = vunpack.c.l.b16 %v7129
      %v7223 = vunpack.c.h.b16 %v7129
      %v7224 = vunpack.c.l.b16 %v7130
      %v7225 = vunpack.c.h.b16 %v7130
      %v7226 = vunpack.c.l.b16 %v7131
      %v7227 = vunpack.c.h.b16 %v7131
      %v7228 = vpack.c.b16 %v7166, %v7164
      %v7229 = vpack.c.b16 %v7167, %v7165
      %v7230 = vpack.c.b16 %v7170, %v7168
      %v7231 = vpack.c.b16 %v7171, %v7169
      %v7232 = vpack.c.b16 %v7174, %v7172
      %v7233 = vpack.c.b16 %v7175, %v7173
      %v7234 = vpack.c.b16 %v7178, %v7176
      %v7235 = vpack.c.b16 %v7179, %v7177
      %v7236 = vpack.c.b16 %v7182, %v7180
      %v7237 = vpack.c.b16 %v7183, %v7181
      %v7238 = vpack.c.b16 %v7186, %v7184
      %v7239 = vpack.c.b16 %v7187, %v7185
      %v7240 = vpack.c.b16 %v7190, %v7188
      %v7241 = vpack.c.b16 %v7191, %v7189
      %v7242 = vpack.c.b16 %v7194, %v7192
      %v7243 = vpack.c.b16 %v7195, %v7193
      %v7244 = vpack.c.b16 %v7198, %v7196
      %v7245 = vpack.c.b16 %v7199, %v7197
      %v7246 = vpack.c.b16 %v7202, %v7200
      %v7247 = vpack.c.b16 %v7203, %v7201
      %v7248 = vpack.c.b16 %v7206, %v7204
      %v7249 = vpack.c.b16 %v7207, %v7205
      %v7250 = vpack.c.b16 %v7210, %v7208
      %v7251 = vpack.c.b16 %v7211, %v7209
      %v7252 = vpack.c.b16 %v7214, %v7212
      %v7253 = vpack.c.b16 %v7215, %v7213
      %v7254 = vpack.c.b16 %v7218, %v7216
      %v7255 = vpack.c.b16 %v7219, %v7217
      %v7256 = vpack.c.b16 %v7222, %v7220
      %v7257 = vpack.c.b16 %v7223, %v7221
      %v7258 = vpack.c.b16 %v7226, %v7224
      %v7259 = vpack.c.b16 %v7227, %v7225
      %7292 = vmatprep.subr.bf16.mxu0 %v7229
      %7293 = vmatpush1.bf16.msra.mxu0 %v7228
      %7294 = vmatprep.subr.bf16.mxu0 %v7231
      %7295 = vmatpush1.bf16.msra.mxu0 %v7230
      %7296 = vmatprep.subr.bf16.mxu0 %v7233
      %7297 = vmatpush1.bf16.msra.mxu0 %v7232
      %7298 = vmatprep.subr.bf16.mxu0 %v7235
      %7299 = vmatpush1.bf16.msra.mxu0 %v7234
      %7300 = vmatprep.subr.bf16.mxu0 %v7237
      %7301 = vmatpush1.bf16.msra.mxu0 %v7236
      %7302 = vmatprep.subr.bf16.mxu0 %v7239
      %7303 = vmatpush1.bf16.msra.mxu0 %v7238
      %7304 = vmatprep.subr.bf16.mxu0 %v7241
      %7305 = vmatpush1.bf16.msra.mxu0 %v7240
      %7306 = vmatprep.subr.bf16.mxu0 %v7243
      %7307 = vmatpush1.bf16.msra.mxu0 %v7242
      %7308 = vmatprep.subr.bf16.mxu0 %v7245
      %7309 = vmatpush1.bf16.msra.mxu0 %v7244
      %7310 = vmatprep.subr.bf16.mxu0 %v7247
      %7311 = vmatpush1.bf16.msra.mxu0 %v7246
      %7312 = vmatprep.subr.bf16.mxu0 %v7249
      %7313 = vmatpush1.bf16.msra.mxu0 %v7248
      %7314 = vmatprep.subr.bf16.mxu0 %v7251
      %7315 = vmatpush1.bf16.msra.mxu0 %v7250
      %7316 = vmatprep.subr.bf16.mxu0 %v7253
      %7317 = vmatpush1.bf16.msra.mxu0 %v7252
      %7318 = vmatprep.subr.bf16.mxu0 %v7255
      %7319 = vmatpush1.bf16.msra.mxu0 %v7254
      %7320 = vmatprep.subr.bf16.mxu0 %v7257
      %7321 = vmatpush1.bf16.msra.mxu0 %v7256
      %7322 = vmatprep.subr.bf16.mxu0 %v7259
      %7323 = vmatpush1.bf16.msra.mxu0 %v7258
      %7324 = vmatprep.mubr.bf16.mxu0 %v7098
      %7325 = vmatmul.mubr.bf16.gmra.mrb[0].mxu0 %v7097
      %v7326 = vpop.f32.mrb[0].mxu0
      %v7327 = vadd.f32 0.0, %v7326
      %v7328 = vpop.f32.mrb[0].mxu0
      %v7329 = vadd.f32 0.0, %v7328
      %v7330 = vpop.f32.mrb[0].mxu0
      %v7331 = vadd.f32 0.0, %v7330
      %v7332 = vpop.f32.mrb[0].mxu0
      %v7333 = vadd.f32 0.0, %v7332
      %7334 = vdwg.mxu0
      %v7367 = vunpack.c.l.b16 %v7011
      %v7368 = vunpack.c.h.b16 %v7011
      %v7369 = vunpack.c.l.b16 %v7012
      %v7370 = vunpack.c.h.b16 %v7012
      %v7371 = vunpack.c.l.b16 %v7013
      %v7372 = vunpack.c.h.b16 %v7013
      %v7373 = vunpack.c.l.b16 %v7014
      %v7374 = vunpack.c.h.b16 %v7014
      %v7375 = vunpack.c.l.b16 %v7015
      %v7376 = vunpack.c.h.b16 %v7015
      %v7377 = vunpack.c.l.b16 %v7016
      %v7378 = vunpack.c.h.b16 %v7016
      %v7379 = vunpack.c.l.b16 %v7017
      %v7380 = vunpack.c.h.b16 %v7017
      %v7381 = vunpack.c.l.b16 %v7018
      %v7382 = vunpack.c.h.b16 %v7018
      %v7383 = vunpack.c.l.b16 %v7019
      %v7384 = vunpack.c.h.b16 %v7019
      %v7385 = vunpack.c.l.b16 %v7020
      %v7386 = vunpack.c.h.b16 %v7020
      %v7387 = vunpack.c.l.b16 %v7021
      %v7388 = vunpack.c.h.b16 %v7021
      %v7389 = vunpack.c.l.b16 %v7022
      %v7390 = vunpack.c.h.b16 %v7022
      %v7391 = vunpack.c.l.b16 %v7023
      %v7392 = vunpack.c.h.b16 %v7023
      %v7393 = vunpack.c.l.b16 %v7024
      %v7394 = vunpack.c.h.b16 %v7024
      %v7395 = vunpack.c.l.b16 %v7025
      %v7396 = vunpack.c.h.b16 %v7025
      %v7397 = vunpack.c.l.b16 %v7026
      %v7398 = vunpack.c.h.b16 %v7026
      %v7399 = vunpack.c.l.b16 %v7027
      %v7400 = vunpack.c.h.b16 %v7027
      %v7401 = vunpack.c.l.b16 %v7028
      %v7402 = vunpack.c.h.b16 %v7028
      %v7403 = vunpack.c.l.b16 %v7029
      %v7404 = vunpack.c.h.b16 %v7029
      %v7405 = vunpack.c.l.b16 %v7030
      %v7406 = vunpack.c.h.b16 %v7030
      %v7407 = vunpack.c.l.b16 %v7031
      %v7408 = vunpack.c.h.b16 %v7031
      %v7409 = vunpack.c.l.b16 %v7032
      %v7410 = vunpack.c.h.b16 %v7032
      %v7411 = vunpack.c.l.b16 %v7033
      %v7412 = vunpack.c.h.b16 %v7033
      %v7413 = vunpack.c.l.b16 %v7034
      %v7414 = vunpack.c.h.b16 %v7034
      %v7415 = vunpack.c.l.b16 %v7035
      %v7416 = vunpack.c.h.b16 %v7035
      %v7417 = vunpack.c.l.b16 %v7036
      %v7418 = vunpack.c.h.b16 %v7036
      %v7419 = vunpack.c.l.b16 %v7037
      %v7420 = vunpack.c.h.b16 %v7037
      %v7421 = vunpack.c.l.b16 %v7038
      %v7422 = vunpack.c.h.b16 %v7038
      %v7423 = vunpack.c.l.b16 %v7039
      %v7424 = vunpack.c.h.b16 %v7039
      %v7425 = vunpack.c.l.b16 %v7040
      %v7426 = vunpack.c.h.b16 %v7040
      %v7427 = vunpack.c.l.b16 %v7041
      %v7428 = vunpack.c.h.b16 %v7041
      %v7429 = vunpack.c.l.b16 %v7042
      %v7430 = vunpack.c.h.b16 %v7042
      %v7431 = vpack.c.b16 %v7369, %v7367
      %v7432 = vpack.c.b16 %v7370, %v7368
      %v7433 = vpack.c.b16 %v7373, %v7371
      %v7434 = vpack.c.b16 %v7374, %v7372
      %v7435 = vpack.c.b16 %v7377, %v7375
      %v7436 = vpack.c.b16 %v7378, %v7376
      %v7437 = vpack.c.b16 %v7381, %v7379
      %v7438 = vpack.c.b16 %v7382, %v7380
      %v7439 = vpack.c.b16 %v7385, %v7383
      %v7440 = vpack.c.b16 %v7386, %v7384
      %v7441 = vpack.c.b16 %v7389, %v7387
      %v7442 = vpack.c.b16 %v7390, %v7388
      %v7443 = vpack.c.b16 %v7393, %v7391
      %v7444 = vpack.c.b16 %v7394, %v7392
      %v7445 = vpack.c.b16 %v7397, %v7395
      %v7446 = vpack.c.b16 %v7398, %v7396
      %v7447 = vpack.c.b16 %v7401, %v7399
      %v7448 = vpack.c.b16 %v7402, %v7400
      %v7449 = vpack.c.b16 %v7405, %v7403
      %v7450 = vpack.c.b16 %v7406, %v7404
      %v7451 = vpack.c.b16 %v7409, %v7407
      %v7452 = vpack.c.b16 %v7410, %v7408
      %v7453 = vpack.c.b16 %v7413, %v7411
      %v7454 = vpack.c.b16 %v7414, %v7412
      %v7455 = vpack.c.b16 %v7417, %v7415
      %v7456 = vpack.c.b16 %v7418, %v7416
      %v7457 = vpack.c.b16 %v7421, %v7419
      %v7458 = vpack.c.b16 %v7422, %v7420
      %v7459 = vpack.c.b16 %v7425, %v7423
      %v7460 = vpack.c.b16 %v7426, %v7424
      %v7461 = vpack.c.b16 %v7429, %v7427
      %v7462 = vpack.c.b16 %v7430, %v7428
      %7495 = vmatprep.subr.bf16.mxu0 %v7432
      %7496 = vmatpush1.bf16.msra.mxu0 %v7431
      %7497 = vmatprep.subr.bf16.mxu0 %v7434
      %7498 = vmatpush1.bf16.msra.mxu0 %v7433
      %7499 = vmatprep.subr.bf16.mxu0 %v7436
      %7500 = vmatpush1.bf16.msra.mxu0 %v7435
      %7501 = vmatprep.subr.bf16.mxu0 %v7438
      %7502 = vmatpush1.bf16.msra.mxu0 %v7437
      %7503 = vmatprep.subr.bf16.mxu0 %v7440
      %7504 = vmatpush1.bf16.msra.mxu0 %v7439
      %7505 = vmatprep.subr.bf16.mxu0 %v7442
      %7506 = vmatpush1.bf16.msra.mxu0 %v7441
      %7507 = vmatprep.subr.bf16.mxu0 %v7444
      %7508 = vmatpush1.bf16.msra.mxu0 %v7443
      %7509 = vmatprep.subr.bf16.mxu0 %v7446
      %7510 = vmatpush1.bf16.msra.mxu0 %v7445
      %7511 = vmatprep.subr.bf16.mxu0 %v7448
      %7512 = vmatpush1.bf16.msra.mxu0 %v7447
      %7513 = vmatprep.subr.bf16.mxu0 %v7450
      %7514 = vmatpush1.bf16.msra.mxu0 %v7449
      %7515 = vmatprep.subr.bf16.mxu0 %v7452
      %7516 = vmatpush1.bf16.msra.mxu0 %v7451
      %7517 = vmatprep.subr.bf16.mxu0 %v7454
      %7518 = vmatpush1.bf16.msra.mxu0 %v7453
      %7519 = vmatprep.subr.bf16.mxu0 %v7456
      %7520 = vmatpush1.bf16.msra.mxu0 %v7455
      %7521 = vmatprep.subr.bf16.mxu0 %v7458
      %7522 = vmatpush1.bf16.msra.mxu0 %v7457
      %7523 = vmatprep.subr.bf16.mxu0 %v7460
      %7524 = vmatpush1.bf16.msra.mxu0 %v7459
      %7525 = vmatprep.subr.bf16.mxu0 %v7462
      %7526 = vmatpush1.bf16.msra.mxu0 %v7461
      %7527 = vmatprep.mubr.bf16.mxu0 %v7010
      %7528 = vmatmul.mubr.bf16.gmra.mrb[0].mxu0 %v7009
      %v7529 = vpop.f32.mrb[0].mxu0
      %v7530 = vadd.f32 %v7327, %v7529
      %v7531 = vpop.f32.mrb[0].mxu0
      %v7532 = vadd.f32 %v7329, %v7531
      %v7533 = vpop.f32.mrb[0].mxu0
      %v7534 = vadd.f32 %v7331, %v7533
      %v7535 = vpop.f32.mrb[0].mxu0
      %v7536 = vadd.f32 %v7333, %v7535
      %7537 = vdwg.mxu0
      %s7538 = scalar_lea.vmem %s7, 16
      %v7539 = vld [vmem:[%s7538] sm:$0xf]
      %v7540 = vld [vmem:[%s7538 + $0x4] sm:$0xf]
      %v7543 = vunpack.c.l.b16 %v7539
      %v7544 = vunpack.c.l.b16 %v7540
      %v7545 = vpack.c.b16 %v7544, %v7543
      %v7547 = vsel %vm6956, %v7545, 0
      %7549 = vmatprep.subr.bf16.mxu0 %v6947
      %7550 = vmatpush1.bf16.msra.mxu0 %v6946
      %7551 = vmatprep.subr.bf16.mxu0 %v6949
      %7552 = vmatpush1.bf16.msra.mxu0 %v6948
      %7553 = vmatprep.subr.bf16.mxu0 %v6964
      %7554 = vmatpush1.bf16.msra.mxu0 %v6961
      %7555 = vmatprep.subr.bf16.mxu0 0
      %7556 = vmatpush1.bf16.msra.mxu0 0
      %7557 = vmatprep.subr.bf16.mxu0 0
      %7558 = vmatpush1.bf16.msra.mxu0 0
      %7559 = vmatprep.subr.bf16.mxu0 0
      %7560 = vmatpush1.bf16.msra.mxu0 0
      %7561 = vmatprep.subr.bf16.mxu0 0
      %7562 = vmatpush1.bf16.msra.mxu0 0
      %7563 = vmatprep.subr.bf16.mxu0 0
      %7564 = vmatpush1.bf16.msra.mxu0 0
      %7565 = vmatprep.subr.bf16.mxu0 0
      %7566 = vmatpush1.bf16.msra.mxu0 0
      %7567 = vmatprep.subr.bf16.mxu0 0
      %7568 = vmatpush1.bf16.msra.mxu0 0
      %7569 = vmatprep.subr.bf16.mxu0 0
      %7570 = vmatpush1.bf16.msra.mxu0 0
      %7571 = vmatprep.subr.bf16.mxu0 0
      %7572 = vmatpush1.bf16.msra.mxu0 0
      %7573 = vmatprep.subr.bf16.mxu0 0
      %7574 = vmatpush1.bf16.msra.mxu0 0
      %7575 = vmatprep.subr.bf16.mxu0 0
      %7576 = vmatpush1.bf16.msra.mxu0 0
      %7577 = vmatprep.subr.bf16.mxu0 0
      %7578 = vmatpush1.bf16.msra.mxu0 0
      %7579 = vmatprep.subr.bf16.mxu0 0
      %7580 = vmatpush1.bf16.msra.mxu0 0
      %7581 = vmatprep.mubr.bf16.mxu0 0
      %7582 = vmatmul.mubr.bf16.gmra.mrb[0].mxu0 %v7547
      %v7583 = vpop.f32.mrb[0].mxu0
      %v7584 = vadd.f32 0.0, %v7583
      %v7585 = vpop.f32.mrb[0].mxu0
      %v7586 = vadd.f32 0.0, %v7585
      %v7587 = vpop.f32.mrb[0].mxu0
      %v7588 = vadd.f32 0.0, %v7587
      %v7589 = vpop.f32.mrb[0].mxu0
      %v7590 = vadd.f32 0.0, %v7589
      %7591 = vdwg.mxu0
      %v7592 = vpack.c.bf16 %v7588, %v7584
      %v7593 = vpack.c.bf16 %v7590, %v7586
      %s7594 = scalar_lea.vmem %s8, 512
      %v7595 = vld [vmem:[%s7594] sm:$0xff]
      %v7596 = vld [vmem:[%s7594 + $0x8] sm:$0xff]
      %v7597 = vld [vmem:[%s7594 + $0x10] sm:$0xff]
      %v7598 = vld [vmem:[%s7594 + $0x18] sm:$0xff]
      %v7599 = vld [vmem:[%s7594 + $0x20] sm:$0xff]
      %v7600 = vld [vmem:[%s7594 + $0x28] sm:$0xff]
      %v7601 = vld [vmem:[%s7594 + $0x30] sm:$0xff]
      %v7602 = vld [vmem:[%s7594 + $0x38] sm:$0xff]
      %v7603 = vld [vmem:[%s7594 + $0x40] sm:$0xff]
      %v7604 = vld [vmem:[%s7594 + $0x48] sm:$0xff]
      %v7605 = vld [vmem:[%s7594 + $0x50] sm:$0xff]
      %v7606 = vld [vmem:[%s7594 + $0x58] sm:$0xff]
      %v7607 = vld [vmem:[%s7594 + $0x60] sm:$0xff]
      %v7608 = vld [vmem:[%s7594 + $0x68] sm:$0xff]
      %v7609 = vld [vmem:[%s7594 + $0x70] sm:$0xff]
      %v7610 = vld [vmem:[%s7594 + $0x78] sm:$0xff]
      %v7611 = vld [vmem:[%s7594 + $0x80] sm:$0xff]
      %v7612 = vld [vmem:[%s7594 + $0x88] sm:$0xff]
      %v7613 = vld [vmem:[%s7594 + $0x90] sm:$0xff]
      %v7614 = vld [vmem:[%s7594 + $0x98] sm:$0xff]
      %v7615 = vld [vmem:[%s7594 + $0xa0] sm:$0xff]
      %v7616 = vld [vmem:[%s7594 + $0xa8] sm:$0xff]
      %v7617 = vld [vmem:[%s7594 + $0xb0] sm:$0xff]
      %v7618 = vld [vmem:[%s7594 + $0xb8] sm:$0xff]
      %v7619 = vld [vmem:[%s7594 + $0xc0] sm:$0xff]
      %v7620 = vld [vmem:[%s7594 + $0xc8] sm:$0xff]
      %v7621 = vld [vmem:[%s7594 + $0xd0] sm:$0xff]
      %v7622 = vld [vmem:[%s7594 + $0xd8] sm:$0xff]
      %v7623 = vld [vmem:[%s7594 + $0xe0] sm:$0xff]
      %v7624 = vld [vmem:[%s7594 + $0xe8] sm:$0xff]
      %v7625 = vld [vmem:[%s7594 + $0xf0] sm:$0xff]
      %v7626 = vld [vmem:[%s7594 + $0xf8] sm:$0xff]
      %v7659 = vunpack.c.l.b16 %v7595
      %v7660 = vunpack.c.h.b16 %v7595
      %v7661 = vunpack.c.l.b16 %v7596
      %v7662 = vunpack.c.h.b16 %v7596
      %v7663 = vunpack.c.l.b16 %v7597
      %v7664 = vunpack.c.h.b16 %v7597
      %v7665 = vunpack.c.l.b16 %v7598
      %v7666 = vunpack.c.h.b16 %v7598
      %v7667 = vunpack.c.l.b16 %v7599
      %v7668 = vunpack.c.h.b16 %v7599
      %v7669 = vunpack.c.l.b16 %v7600
      %v7670 = vunpack.c.h.b16 %v7600
      %v7671 = vunpack.c.l.b16 %v7601
      %v7672 = vunpack.c.h.b16 %v7601
      %v7673 = vunpack.c.l.b16 %v7602
      %v7674 = vunpack.c.h.b16 %v7602
      %v7675 = vunpack.c.l.b16 %v7603
      %v7676 = vunpack.c.h.b16 %v7603
      %v7677 = vunpack.c.l.b16 %v7604
      %v7678 = vunpack.c.h.b16 %v7604
      %v7679 = vunpack.c.l.b16 %v7605
      %v7680 = vunpack.c.h.b16 %v7605
      %v7681 = vunpack.c.l.b16 %v7606
      %v7682 = vunpack.c.h.b16 %v7606
      %v7683 = vunpack.c.l.b16 %v7607
      %v7684 = vunpack.c.h.b16 %v7607
      %v7685 = vunpack.c.l.b16 %v7608
      %v7686 = vunpack.c.h.b16 %v7608
      %v7687 = vunpack.c.l.b16 %v7609
      %v7688 = vunpack.c.h.b16 %v7609
      %v7689 = vunpack.c.l.b16 %v7610
      %v7690 = vunpack.c.h.b16 %v7610
      %v7691 = vunpack.c.l.b16 %v7611
      %v7692 = vunpack.c.h.b16 %v7611
      %v7693 = vunpack.c.l.b16 %v7612
      %v7694 = vunpack.c.h.b16 %v7612
      %v7695 = vunpack.c.l.b16 %v7613
      %v7696 = vunpack.c.h.b16 %v7613
      %v7697 = vunpack.c.l.b16 %v7614
      %v7698 = vunpack.c.h.b16 %v7614
      %v7699 = vunpack.c.l.b16 %v7615
      %v7700 = vunpack.c.h.b16 %v7615
      %v7701 = vunpack.c.l.b16 %v7616
      %v7702 = vunpack.c.h.b16 %v7616
      %v7703 = vunpack.c.l.b16 %v7617
      %v7704 = vunpack.c.h.b16 %v7617
      %v7705 = vunpack.c.l.b16 %v7618
      %v7706 = vunpack.c.h.b16 %v7618
      %v7707 = vunpack.c.l.b16 %v7619
      %v7708 = vunpack.c.h.b16 %v7619
      %v7709 = vunpack.c.l.b16 %v7620
      %v7710 = vunpack.c.h.b16 %v7620
      %v7711 = vunpack.c.l.b16 %v7621
      %v7712 = vunpack.c.h.b16 %v7621
      %v7713 = vunpack.c.l.b16 %v7622
      %v7714 = vunpack.c.h.b16 %v7622
      %v7715 = vunpack.c.l.b16 %v7623
      %v7716 = vunpack.c.h.b16 %v7623
      %v7717 = vunpack.c.l.b16 %v7624
      %v7718 = vunpack.c.h.b16 %v7624
      %v7719 = vunpack.c.l.b16 %v7625
      %v7720 = vunpack.c.h.b16 %v7625
      %v7721 = vunpack.c.l.b16 %v7626
      %v7722 = vunpack.c.h.b16 %v7626
      %v7723 = vpack.c.b16 %v7661, %v7659
      %v7724 = vpack.c.b16 %v7662, %v7660
      %v7725 = vpack.c.b16 %v7665, %v7663
      %v7726 = vpack.c.b16 %v7666, %v7664
      %v7727 = vpack.c.b16 %v7669, %v7667
      %v7728 = vpack.c.b16 %v7670, %v7668
      %v7729 = vpack.c.b16 %v7673, %v7671
      %v7730 = vpack.c.b16 %v7674, %v7672
      %v7731 = vpack.c.b16 %v7677, %v7675
      %v7732 = vpack.c.b16 %v7678, %v7676
      %v7733 = vpack.c.b16 %v7681, %v7679
      %v7734 = vpack.c.b16 %v7682, %v7680
      %v7735 = vpack.c.b16 %v7685, %v7683
      %v7736 = vpack.c.b16 %v7686, %v7684
      %v7737 = vpack.c.b16 %v7689, %v7687
      %v7738 = vpack.c.b16 %v7690, %v7688
      %v7739 = vpack.c.b16 %v7693, %v7691
      %v7740 = vpack.c.b16 %v7694, %v7692
      %v7741 = vpack.c.b16 %v7697, %v7695
      %v7742 = vpack.c.b16 %v7698, %v7696
      %v7743 = vpack.c.b16 %v7701, %v7699
      %v7744 = vpack.c.b16 %v7702, %v7700
      %v7745 = vpack.c.b16 %v7705, %v7703
      %v7746 = vpack.c.b16 %v7706, %v7704
      %v7747 = vpack.c.b16 %v7709, %v7707
      %v7748 = vpack.c.b16 %v7710, %v7708
      %v7749 = vpack.c.b16 %v7713, %v7711
      %v7750 = vpack.c.b16 %v7714, %v7712
      %v7751 = vpack.c.b16 %v7717, %v7715
      %v7752 = vpack.c.b16 %v7718, %v7716
      %v7753 = vpack.c.b16 %v7721, %v7719
      %v7754 = vpack.c.b16 %v7722, %v7720
      %7787 = vmatprep.subr.bf16.mxu0 %v7724
      %7788 = vmatpush1.bf16.msra.mxu0 %v7723
      %7789 = vmatprep.subr.bf16.mxu0 %v7726
      %7790 = vmatpush1.bf16.msra.mxu0 %v7725
      %7791 = vmatprep.subr.bf16.mxu0 %v7728
      %7792 = vmatpush1.bf16.msra.mxu0 %v7727
      %7793 = vmatprep.subr.bf16.mxu0 %v7730
      %7794 = vmatpush1.bf16.msra.mxu0 %v7729
      %7795 = vmatprep.subr.bf16.mxu0 %v7732
      %7796 = vmatpush1.bf16.msra.mxu0 %v7731
      %7797 = vmatprep.subr.bf16.mxu0 %v7734
      %7798 = vmatpush1.bf16.msra.mxu0 %v7733
      %7799 = vmatprep.subr.bf16.mxu0 %v7736
      %7800 = vmatpush1.bf16.msra.mxu0 %v7735
      %7801 = vmatprep.subr.bf16.mxu0 %v7738
      %7802 = vmatpush1.bf16.msra.mxu0 %v7737
      %7803 = vmatprep.subr.bf16.mxu0 %v7740
      %7804 = vmatpush1.bf16.msra.mxu0 %v7739
      %7805 = vmatprep.subr.bf16.mxu0 %v7742
      %7806 = vmatpush1.bf16.msra.mxu0 %v7741
      %7807 = vmatprep.subr.bf16.mxu0 %v7744
      %7808 = vmatpush1.bf16.msra.mxu0 %v7743
      %7809 = vmatprep.subr.bf16.mxu0 %v7746
      %7810 = vmatpush1.bf16.msra.mxu0 %v7745
      %7811 = vmatprep.subr.bf16.mxu0 %v7748
      %7812 = vmatpush1.bf16.msra.mxu0 %v7747
      %7813 = vmatprep.subr.bf16.mxu0 %v7750
      %7814 = vmatpush1.bf16.msra.mxu0 %v7749
      %7815 = vmatprep.subr.bf16.mxu0 %v7752
      %7816 = vmatpush1.bf16.msra.mxu0 %v7751
      %7817 = vmatprep.subr.bf16.mxu0 %v7754
      %7818 = vmatpush1.bf16.msra.mxu0 %v7753
      %7819 = vmatprep.mubr.bf16.mxu0 %v7593
      %7820 = vmatmul.mubr.bf16.gmra.mrb[0].mxu0 %v7592
      %v7821 = vpop.f32.mrb[0].mxu0
      %v7822 = vadd.f32 0.0, %v7821
      %v7823 = vpop.f32.mrb[0].mxu0
      %v7824 = vadd.f32 0.0, %v7823
      %v7825 = vpop.f32.mrb[0].mxu0
      %v7826 = vadd.f32 0.0, %v7825
      %v7827 = vpop.f32.mrb[0].mxu0
      %v7828 = vadd.f32 0.0, %v7827
      %7829 = vdwg.mxu0
      %v7830 = vadd.f32 %v7530, %v7822
      %v7831 = vadd.f32 %v7532, %v7824
      %v7832 = vadd.f32 %v7534, %v7826
      %v7833 = vadd.f32 %v7536, %v7828
      %s7834 = scalar_lea.vmem %s7, 24
      %v7835 = vld [vmem:[%s7834] sm:$0xf]
      %v7836 = vld [vmem:[%s7834 + $0x4] sm:$0xf]
      %v7839 = vunpack.c.l.b16 %v7835
      %v7840 = vunpack.c.l.b16 %v7836
      %v7841 = vpack.c.b16 %v7840, %v7839
      %v7843 = vsel %vm6956, %v7841, 0
      %7845 = vmatprep.subr.bf16.mxu0 %v6947
      %7846 = vmatpush1.bf16.msra.mxu0 %v6946
      %7847 = vmatprep.subr.bf16.mxu0 %v6949
      %7848 = vmatpush1.bf16.msra.mxu0 %v6948
      %7849 = vmatprep.subr.bf16.mxu0 %v6964
      %7850 = vmatpush1.bf16.msra.mxu0 %v6961
      %7851 = vmatprep.subr.bf16.mxu0 0
      %7852 = vmatpush1.bf16.msra.mxu0 0
      %7853 = vmatprep.subr.bf16.mxu0 0
      %7854 = vmatpush1.bf16.msra.mxu0 0
      %7855 = vmatprep.subr.bf16.mxu0 0
      %7856 = vmatpush1.bf16.msra.mxu0 0
      %7857 = vmatprep.subr.bf16.mxu0 0
      %7858 = vmatpush1.bf16.msra.mxu0 0
      %7859 = vmatprep.subr.bf16.mxu0 0
      %7860 = vmatpush1.bf16.msra.mxu0 0
      %7861 = vmatprep.subr.bf16.mxu0 0
      %7862 = vmatpush1.bf16.msra.mxu0 0
      %7863 = vmatprep.subr.bf16.mxu0 0
      %7864 = vmatpush1.bf16.msra.mxu0 0
      %7865 = vmatprep.subr.bf16.mxu0 0
      %7866 = vmatpush1.bf16.msra.mxu0 0
      %7867 = vmatprep.subr.bf16.mxu0 0
      %7868 = vmatpush1.bf16.msra.mxu0 0
      %7869 = vmatprep.subr.bf16.mxu0 0
      %7870 = vmatpush1.bf16.msra.mxu0 0
      %7871 = vmatprep.subr.bf16.mxu0 0
      %7872 = vmatpush1.bf16.msra.mxu0 0
      %7873 = vmatprep.subr.bf16.mxu0 0
      %7874 = vmatpush1.bf16.msra.mxu0 0
      %7875 = vmatprep.subr.bf16.mxu0 0
      %7876 = vmatpush1.bf16.msra.mxu0 0
      %7877 = vmatprep.mubr.bf16.mxu0 0
      %7878 = vmatmul.mubr.bf16.gmra.mrb[0].mxu0 %v7843
      %v7879 = vpop.f32.mrb[0].mxu0
      %v7880 = vadd.f32 0.0, %v7879
      %v7881 = vpop.f32.mrb[0].mxu0
      %v7882 = vadd.f32 0.0, %v7881
      %v7883 = vpop.f32.mrb[0].mxu0
      %v7884 = vadd.f32 0.0, %v7883
      %v7885 = vpop.f32.mrb[0].mxu0
      %v7886 = vadd.f32 0.0, %v7885
      %7887 = vdwg.mxu0
      %v7888 = vpack.c.bf16 %v7884, %v7880
      %v7889 = vpack.c.bf16 %v7886, %v7882
      %s7890 = scalar_lea.vmem %s8, 768
      %v7891 = vld [vmem:[%s7890] sm:$0xff]
      %v7892 = vld [vmem:[%s7890 + $0x8] sm:$0xff]
      %v7893 = vld [vmem:[%s7890 + $0x10] sm:$0xff]
      %v7894 = vld [vmem:[%s7890 + $0x18] sm:$0xff]
      %v7895 = vld [vmem:[%s7890 + $0x20] sm:$0xff]
      %v7896 = vld [vmem:[%s7890 + $0x28] sm:$0xff]
      %v7897 = vld [vmem:[%s7890 + $0x30] sm:$0xff]
      %v7898 = vld [vmem:[%s7890 + $0x38] sm:$0xff]
      %v7899 = vld [vmem:[%s7890 + $0x40] sm:$0xff]
      %v7900 = vld [vmem:[%s7890 + $0x48] sm:$0xff]
      %v7901 = vld [vmem:[%s7890 + $0x50] sm:$0xff]
      %v7902 = vld [vmem:[%s7890 + $0x58] sm:$0xff]
      %v7903 = vld [vmem:[%s7890 + $0x60] sm:$0xff]
      %v7904 = vld [vmem:[%s7890 + $0x68] sm:$0xff]
      %v7905 = vld [vmem:[%s7890 + $0x70] sm:$0xff]
      %v7906 = vld [vmem:[%s7890 + $0x78] sm:$0xff]
      %v7907 = vld [vmem:[%s7890 + $0x80] sm:$0xff]
      %v7908 = vld [vmem:[%s7890 + $0x88] sm:$0xff]
      %v7909 = vld [vmem:[%s7890 + $0x90] sm:$0xff]
      %v7910 = vld [vmem:[%s7890 + $0x98] sm:$0xff]
      %v7911 = vld [vmem:[%s7890 + $0xa0] sm:$0xff]
      %v7912 = vld [vmem:[%s7890 + $0xa8] sm:$0xff]
      %v7913 = vld [vmem:[%s7890 + $0xb0] sm:$0xff]
      %v7914 = vld [vmem:[%s7890 + $0xb8] sm:$0xff]
      %v7915 = vld [vmem:[%s7890 + $0xc0] sm:$0xff]
      %v7916 = vld [vmem:[%s7890 + $0xc8] sm:$0xff]
      %v7917 = vld [vmem:[%s7890 + $0xd0] sm:$0xff]
      %v7918 = vld [vmem:[%s7890 + $0xd8] sm:$0xff]
      %v7919 = vld [vmem:[%s7890 + $0xe0] sm:$0xff]
      %v7920 = vld [vmem:[%s7890 + $0xe8] sm:$0xff]
      %v7921 = vld [vmem:[%s7890 + $0xf0] sm:$0xff]
      %v7922 = vld [vmem:[%s7890 + $0xf8] sm:$0xff]
      %v7955 = vunpack.c.l.b16 %v7891
      %v7956 = vunpack.c.h.b16 %v7891
      %v7957 = vunpack.c.l.b16 %v7892
      %v7958 = vunpack.c.h.b16 %v7892
      %v7959 = vunpack.c.l.b16 %v7893
      %v7960 = vunpack.c.h.b16 %v7893
      %v7961 = vunpack.c.l.b16 %v7894
      %v7962 = vunpack.c.h.b16 %v7894
      %v7963 = vunpack.c.l.b16 %v7895
      %v7964 = vunpack.c.h.b16 %v7895
      %v7965 = vunpack.c.l.b16 %v7896
      %v7966 = vunpack.c.h.b16 %v7896
      %v7967 = vunpack.c.l.b16 %v7897
      %v7968 = vunpack.c.h.b16 %v7897
      %v7969 = vunpack.c.l.b16 %v7898
      %v7970 = vunpack.c.h.b16 %v7898
      %v7971 = vunpack.c.l.b16 %v7899
      %v7972 = vunpack.c.h.b16 %v7899
      %v7973 = vunpack.c.l.b16 %v7900
      %v7974 = vunpack.c.h.b16 %v7900
      %v7975 = vunpack.c.l.b16 %v7901
      %v7976 = vunpack.c.h.b16 %v7901
      %v7977 = vunpack.c.l.b16 %v7902
      %v7978 = vunpack.c.h.b16 %v7902
      %v7979 = vunpack.c.l.b16 %v7903
      %v7980 = vunpack.c.h.b16 %v7903
      %v7981 = vunpack.c.l.b16 %v7904
      %v7982 = vunpack.c.h.b16 %v7904
      %v7983 = vunpack.c.l.b16 %v7905
      %v7984 = vunpack.c.h.b16 %v7905
      %v7985 = vunpack.c.l.b16 %v7906
      %v7986 = vunpack.c.h.b16 %v7906
      %v7987 = vunpack.c.l.b16 %v7907
      %v7988 = vunpack.c.h.b16 %v7907
      %v7989 = vunpack.c.l.b16 %v7908
      %v7990 = vunpack.c.h.b16 %v7908
      %v7991 = vunpack.c.l.b16 %v7909
      %v7992 = vunpack.c.h.b16 %v7909
      %v7993 = vunpack.c.l.b16 %v7910
      %v7994 = vunpack.c.h.b16 %v7910
      %v7995 = vunpack.c.l.b16 %v7911
      %v7996 = vunpack.c.h.b16 %v7911
      %v7997 = vunpack.c.l.b16 %v7912
      %v7998 = vunpack.c.h.b16 %v7912
      %v7999 = vunpack.c.l.b16 %v7913
      %v8000 = vunpack.c.h.b16 %v7913
      %v8001 = vunpack.c.l.b16 %v7914
      %v8002 = vunpack.c.h.b16 %v7914
      %v8003 = vunpack.c.l.b16 %v7915
      %v8004 = vunpack.c.h.b16 %v7915
      %v8005 = vunpack.c.l.b16 %v7916
      %v8006 = vunpack.c.h.b16 %v7916
      %v8007 = vunpack.c.l.b16 %v7917
      %v8008 = vunpack.c.h.b16 %v7917
      %v8009 = vunpack.c.l.b16 %v7918
      %v8010 = vunpack.c.h.b16 %v7918
      %v8011 = vunpack.c.l.b16 %v7919
      %v8012 = vunpack.c.h.b16 %v7919
      %v8013 = vunpack.c.l.b16 %v7920
      %v8014 = vunpack.c.h.b16 %v7920
      %v8015 = vunpack.c.l.b16 %v7921
      %v8016 = vunpack.c.h.b16 %v7921
      %v8017 = vunpack.c.l.b16 %v7922
      %v8018 = vunpack.c.h.b16 %v7922
      %v8019 = vpack.c.b16 %v7957, %v7955
      %v8020 = vpack.c.b16 %v7958, %v7956
      %v8021 = vpack.c.b16 %v7961, %v7959
      %v8022 = vpack.c.b16 %v7962, %v7960
      %v8023 = vpack.c.b16 %v7965, %v7963
      %v8024 = vpack.c.b16 %v7966, %v7964
      %v8025 = vpack.c.b16 %v7969, %v7967
      %v8026 = vpack.c.b16 %v7970, %v7968
      %v8027 = vpack.c.b16 %v7973, %v7971
      %v8028 = vpack.c.b16 %v7974, %v7972
      %v8029 = vpack.c.b16 %v7977, %v7975
      %v8030 = vpack.c.b16 %v7978, %v7976
      %v8031 = vpack.c.b16 %v7981, %v7979
      %v8032 = vpack.c.b16 %v7982, %v7980
      %v8033 = vpack.c.b16 %v7985, %v7983
      %v8034 = vpack.c.b16 %v7986, %v7984
      %v8035 = vpack.c.b16 %v7989, %v7987
      %v8036 = vpack.c.b16 %v7990, %v7988
      %v8037 = vpack.c.b16 %v7993, %v7991
      %v8038 = vpack.c.b16 %v7994, %v7992
      %v8039 = vpack.c.b16 %v7997, %v7995
      %v8040 = vpack.c.b16 %v7998, %v7996
      %v8041 = vpack.c.b16 %v8001, %v7999
      %v8042 = vpack.c.b16 %v8002, %v8000
      %v8043 = vpack.c.b16 %v8005, %v8003
      %v8044 = vpack.c.b16 %v8006, %v8004
      %v8045 = vpack.c.b16 %v8009, %v8007
      %v8046 = vpack.c.b16 %v8010, %v8008
      %v8047 = vpack.c.b16 %v8013, %v8011
      %v8048 = vpack.c.b16 %v8014, %v8012
      %v8049 = vpack.c.b16 %v8017, %v8015
      %v8050 = vpack.c.b16 %v8018, %v8016
      %8083 = vmatprep.subr.bf16.mxu0 %v8020
      %8084 = vmatpush1.bf16.msra.mxu0 %v8019
      %8085 = vmatprep.subr.bf16.mxu0 %v8022
      %8086 = vmatpush1.bf16.msra.mxu0 %v8021
      %8087 = vmatprep.subr.bf16.mxu0 %v8024
      %8088 = vmatpush1.bf16.msra.mxu0 %v8023
      %8089 = vmatprep.subr.bf16.mxu0 %v8026
      %8090 = vmatpush1.bf16.msra.mxu0 %v8025
      %8091 = vmatprep.subr.bf16.mxu0 %v8028
      %8092 = vmatpush1.bf16.msra.mxu0 %v8027
      %8093 = vmatprep.subr.bf16.mxu0 %v8030
      %8094 = vmatpush1.bf16.msra.mxu0 %v8029
      %8095 = vmatprep.subr.bf16.mxu0 %v8032
      %8096 = vmatpush1.bf16.msra.mxu0 %v8031
      %8097 = vmatprep.subr.bf16.mxu0 %v8034
      %8098 = vmatpush1.bf16.msra.mxu0 %v8033
      %8099 = vmatprep.subr.bf16.mxu0 %v8036
      %8100 = vmatpush1.bf16.msra.mxu0 %v8035
      %8101 = vmatprep.subr.bf16.mxu0 %v8038
      %8102 = vmatpush1.bf16.msra.mxu0 %v8037
      %8103 = vmatprep.subr.bf16.mxu0 %v8040
      %8104 = vmatpush1.bf16.msra.mxu0 %v8039
      %8105 = vmatprep.subr.bf16.mxu0 %v8042
      %8106 = vmatpush1.bf16.msra.mxu0 %v8041
      %8107 = vmatprep.subr.bf16.mxu0 %v8044
      %8108 = vmatpush1.bf16.msra.mxu0 %v8043
      %8109 = vmatprep.subr.bf16.mxu0 %v8046
      %8110 = vmatpush1.bf16.msra.mxu0 %v8045
      %8111 = vmatprep.subr.bf16.mxu0 %v8048
      %8112 = vmatpush1.bf16.msra.mxu0 %v8047
      %8113 = vmatprep.subr.bf16.mxu0 %v8050
      %8114 = vmatpush1.bf16.msra.mxu0 %v8049
      %8115 = vmatprep.mubr.bf16.mxu0 %v7889
      %8116 = vmatmul.mubr.bf16.gmra.mrb[0].mxu0 %v7888
      %v8117 = vpop.f32.mrb[0].mxu0
      %v8118 = vadd.f32 0.0, %v8117
      %v8119 = vpop.f32.mrb[0].mxu0
      %v8120 = vadd.f32 0.0, %v8119
      %v8121 = vpop.f32.mrb[0].mxu0
      %v8122 = vadd.f32 0.0, %v8121
      %v8123 = vpop.f32.mrb[0].mxu0
      %v8124 = vadd.f32 0.0, %v8123
      %8125 = vdwg.mxu0
      %v8126 = vadd.f32 %v7830, %v8118
      %v8127 = vadd.f32 %v7831, %v8120
      %v8128 = vadd.f32 %v7832, %v8122
      %v8129 = vadd.f32 %v7833, %v8124
      %v8130 = vld [vmem:[%s9] sm:$0x3]
      %v8132 = vlaneseq
      %v8133 = vshrl.u32 %v8132, 7
      %v8134 = vsub.s32 0, %v8133
      %v8135 = vrot.slane %v8130, %v8134
      %v8136 = vlaneseq
      %v8137 = vshrl.u32 %v8136, 7
      %v8138 = vsub.s32 1, %v8137
      %v8139 = vrot.slane %v8130, %v8138
      %v8142 = vadd.f32 %v8126, %v8135
      %v8143 = vadd.f32 %v8127, %v8139
      %v8144 = vadd.f32 %v8128, %v8135
      %v8145 = vadd.f32 %v8129, %v8139
      %v8146 = vmax.f32 %v8142, 0.0
      %v8147 = vmax.f32 %v8143, 0.0
      %v8148 = vmax.f32 %v8144, 0.0
      %v8149 = vmax.f32 %v8145, 0.0
      %v8150 = vpack.c.bf16 %v8148, %v8146
      %v8151 = vpack.c.bf16 %v8149, %v8147
      %v8154 = vunpack.c.l.b16 %v8150
      %v8155 = vunpack.c.l.b16 %v8151
      %v8156 = vunpack.c.h.b16 %v8150
      %v8157 = vunpack.c.h.b16 %v8151
      %v8158 = vpack.c.b16 %v8155, %v8154
      %v8159 = vpack.c.b16 %v8157, %v8156
      %8162 = vst [vmem:[#allocation4] sm:$0xff] %v8158
      %8163 = vst [vmem:[#allocation4 + $0x8] sm:$0xff] %v8159
      %v8164 = vld [vmem:[#allocation4] sm:$0xff]
      %v8165 = vld [vmem:[#allocation4 + $0x8] sm:$0xff]
      %v8166 = vld [vmem:[#allocation4 + $0x10] sm:$0xff]
      %v8167 = vld [vmem:[%s10] sm:$0xf]
      %v8171 = vunpack.c.l.b16 %v8164
      %v8172 = vunpack.c.h.b16 %v8164
      %v8173 = vunpack.c.l.b16 %v8165
      %v8174 = vunpack.c.h.b16 %v8165
      %v8175 = vunpack.c.l.b16 %v8166
      %v8176 = vunpack.c.h.b16 %v8166
      %v8177 = vpack.c.b16 %v8173, %v8171
      %v8178 = vpack.c.b16 %v8174, %v8172
      %v8179 = vpack.c.b16 %v8175, %v8175
      %v8180 = vpack.c.b16 %v8176, %v8176
      %vm8183 = vcmask 195584
      %v8185 = vsel %vm8183, %v8167, 0
      %v8188 = vsel %vm701, %v8179, 0
      %v8191 = vsel %vm701, %v8180, 0
      %8193 = vmatprep.subr.bf16.mxu0 %v8178
      %8194 = vmatpush1.bf16.msra.mxu0 %v8177
      %8195 = vmatprep.subr.bf16.mxu0 %v8191
      %8196 = vmatpush1.bf16.msra.mxu0 %v8188
      %8197 = vmatprep.subr.bf16.mxu0 0
      %8198 = vmatpush1.bf16.msra.mxu0 0
      %8199 = vmatprep.subr.bf16.mxu0 0
      %8200 = vmatpush1.bf16.msra.mxu0 0
      %8201 = vmatprep.subr.bf16.mxu0 0
      %8202 = vmatpush1.bf16.msra.mxu0 0
      %8203 = vmatprep.subr.bf16.mxu0 0
      %8204 = vmatpush1.bf16.msra.mxu0 0
      %8205 = vmatprep.subr.bf16.mxu0 0
      %8206 = vmatpush1.bf16.msra.mxu0 0
      %8207 = vmatprep.subr.bf16.mxu0 0
      %8208 = vmatpush1.bf16.msra.mxu0 0
      %8209 = vmatprep.subr.bf16.mxu0 0
      %8210 = vmatpush1.bf16.msra.mxu0 0
      %8211 = vmatprep.subr.bf16.mxu0 0
      %8212 = vmatpush1.bf16.msra.mxu0 0
      %8213 = vmatprep.subr.bf16.mxu0 0
      %8214 = vmatpush1.bf16.msra.mxu0 0
      %8215 = vmatprep.subr.bf16.mxu0 0
      %8216 = vmatpush1.bf16.msra.mxu0 0
      %8217 = vmatprep.subr.bf16.mxu0 0
      %8218 = vmatpush1.bf16.msra.mxu0 0
      %8219 = vmatprep.subr.bf16.mxu0 0
      %8220 = vmatpush1.bf16.msra.mxu0 0
      %8221 = vmatprep.subr.bf16.mxu0 0
      %8222 = vmatpush1.bf16.msra.mxu0 0
      %8223 = vmatprep.subr.bf16.mxu0 0
      %8224 = vmatpush1.bf16.msra.mxu0 0
      %8225 = vmatprep.mubr.bf16.mxu0 0
      %8226 = vmatmul.mubr.bf16.gmra.mrb[0].mxu0 %v8185
      %v8227 = vpop.f32.mrb[0].mxu0
      %v8228 = vadd.f32 0.0, %v8227
      %v8229 = vpop.f32.mrb[0].mxu0
      %v8230 = vadd.f32 0.0, %v8229
      %v8231 = vpop.f32.mrb[0].mxu0
      %v8232 = vpop.f32.mrb[0].mxu0
      %8233 = vdwg.mxu0
      %v8234 = vpack.c.bf16 %v8228, %v8228
      %v8235 = vpack.c.bf16 %v8230, %v8230
      %v8236 = vld [vmem:[%s11] sm:$0xff]
      %v8237 = vld [vmem:[%s11 + $0x8] sm:$0xff]
      %v8238 = vld [vmem:[%s11 + $0x10] sm:$0xff]
      %v8239 = vld [vmem:[%s11 + $0x18] sm:$0xff]
      %v8240 = vld [vmem:[%s11 + $0x20] sm:$0xff]
      %v8241 = vld [vmem:[%s11 + $0x28] sm:$0xff]
      %v8242 = vld [vmem:[%s11 + $0x30] sm:$0xff]
      %v8243 = vld [vmem:[%s11 + $0x38] sm:$0xff]
      %v8244 = vld [vmem:[%s11 + $0x40] sm:$0xff]
      %v8245 = vld [vmem:[%s11 + $0x48] sm:$0xff]
      %v8246 = vld [vmem:[%s11 + $0x50] sm:$0xff]
      %v8247 = vld [vmem:[%s11 + $0x58] sm:$0xff]
      %v8248 = vld [vmem:[%s11 + $0x60] sm:$0xff]
      %v8249 = vld [vmem:[%s11 + $0x68] sm:$0xff]
      %v8250 = vld [vmem:[%s11 + $0x70] sm:$0xff]
      %v8251 = vld [vmem:[%s11 + $0x78] sm:$0xff]
      %v8252 = vld [vmem:[%s11 + $0x80] sm:$0xff]
      %v8253 = vld [vmem:[%s11 + $0x88] sm:$0xff]
      %v8254 = vld [vmem:[%s11 + $0x90] sm:$0xff]
      %v8255 = vld [vmem:[%s11 + $0x98] sm:$0xff]
      %v8256 = vld [vmem:[%s11 + $0xa0] sm:$0xff]
      %v8257 = vld [vmem:[%s11 + $0xa8] sm:$0xff]
      %v8258 = vld [vmem:[%s11 + $0xb0] sm:$0xff]
      %v8259 = vld [vmem:[%s11 + $0xb8] sm:$0xff]
      %v8260 = vld [vmem:[%s11 + $0xc0] sm:$0xff]
      %v8261 = vld [vmem:[%s11 + $0xc8] sm:$0xff]
      %v8262 = vld [vmem:[%s11 + $0xd0] sm:$0xff]
      %v8263 = vld [vmem:[%s11 + $0xd8] sm:$0xff]
      %v8264 = vld [vmem:[%s11 + $0xe0] sm:$0xff]
      %v8265 = vld [vmem:[%s11 + $0xe8] sm:$0xff]
      %v8266 = vld [vmem:[%s11 + $0xf0] sm:$0xff]
      %v8267 = vld [vmem:[%s11 + $0xf8] sm:$0xff]
      %s8268 = scalar_lea.vmem %s10, 4
      %v8269 = vld [vmem:[%s8268] sm:$0xf]
      %v8271 = vsel %vm8183, %v8269, 0
      %8273 = vmatprep.subr.bf16.mxu0 %v8178
      %8274 = vmatpush1.bf16.msra.mxu0 %v8177
      %8275 = vmatprep.subr.bf16.mxu0 %v8191
      %8276 = vmatpush1.bf16.msra.mxu0 %v8188
      %8277 = vmatprep.subr.bf16.mxu0 0
      %8278 = vmatpush1.bf16.msra.mxu0 0
      %8279 = vmatprep.subr.bf16.mxu0 0
      %8280 = vmatpush1.bf16.msra.mxu0 0
      %8281 = vmatprep.subr.bf16.mxu0 0
      %8282 = vmatpush1.bf16.msra.mxu0 0
      %8283 = vmatprep.subr.bf16.mxu0 0
      %8284 = vmatpush1.bf16.msra.mxu0 0
      %8285 = vmatprep.subr.bf16.mxu0 0
      %8286 = vmatpush1.bf16.msra.mxu0 0
      %8287 = vmatprep.subr.bf16.mxu0 0
      %8288 = vmatpush1.bf16.msra.mxu0 0
      %8289 = vmatprep.subr.bf16.mxu0 0
      %8290 = vmatpush1.bf16.msra.mxu0 0
      %8291 = vmatprep.subr.bf16.mxu0 0
      %8292 = vmatpush1.bf16.msra.mxu0 0
      %8293 = vmatprep.subr.bf16.mxu0 0
      %8294 = vmatpush1.bf16.msra.mxu0 0
      %8295 = vmatprep.subr.bf16.mxu0 0
      %8296 = vmatpush1.bf16.msra.mxu0 0
      %8297 = vmatprep.subr.bf16.mxu0 0
      %8298 = vmatpush1.bf16.msra.mxu0 0
      %8299 = vmatprep.subr.bf16.mxu0 0
      %8300 = vmatpush1.bf16.msra.mxu0 0
      %8301 = vmatprep.subr.bf16.mxu0 0
      %8302 = vmatpush1.bf16.msra.mxu0 0
      %8303 = vmatprep.subr.bf16.mxu0 0
      %8304 = vmatpush1.bf16.msra.mxu0 0
      %8305 = vmatprep.mubr.bf16.mxu0 0
      %8306 = vmatmul.mubr.bf16.gmra.mrb[0].mxu0 %v8271
      %v8307 = vpop.f32.mrb[0].mxu0
      %v8308 = vadd.f32 0.0, %v8307
      %v8309 = vpop.f32.mrb[0].mxu0
      %v8310 = vadd.f32 0.0, %v8309
      %v8311 = vpop.f32.mrb[0].mxu0
      %v8312 = vpop.f32.mrb[0].mxu0
      %8313 = vdwg.mxu0
      %v8314 = vpack.c.bf16 %v8308, %v8308
      %v8315 = vpack.c.bf16 %v8310, %v8310
      %s8316 = scalar_lea.vmem %s11, 256
      %v8317 = vld [vmem:[%s8316] sm:$0xff]
      %v8318 = vld [vmem:[%s8316 + $0x8] sm:$0xff]
      %v8319 = vld [vmem:[%s8316 + $0x10] sm:$0xff]
      %v8320 = vld [vmem:[%s8316 + $0x18] sm:$0xff]
      %v8321 = vld [vmem:[%s8316 + $0x20] sm:$0xff]
      %v8322 = vld [vmem:[%s8316 + $0x28] sm:$0xff]
      %v8323 = vld [vmem:[%s8316 + $0x30] sm:$0xff]
      %v8324 = vld [vmem:[%s8316 + $0x38] sm:$0xff]
      %v8325 = vld [vmem:[%s8316 + $0x40] sm:$0xff]
      %v8326 = vld [vmem:[%s8316 + $0x48] sm:$0xff]
      %v8327 = vld [vmem:[%s8316 + $0x50] sm:$0xff]
      %v8328 = vld [vmem:[%s8316 + $0x58] sm:$0xff]
      %v8329 = vld [vmem:[%s8316 + $0x60] sm:$0xff]
      %v8330 = vld [vmem:[%s8316 + $0x68] sm:$0xff]
      %v8331 = vld [vmem:[%s8316 + $0x70] sm:$0xff]
      %v8332 = vld [vmem:[%s8316 + $0x78] sm:$0xff]
      %v8333 = vld [vmem:[%s8316 + $0x80] sm:$0xff]
      %v8334 = vld [vmem:[%s8316 + $0x88] sm:$0xff]
      %v8335 = vld [vmem:[%s8316 + $0x90] sm:$0xff]
      %v8336 = vld [vmem:[%s8316 + $0x98] sm:$0xff]
      %v8337 = vld [vmem:[%s8316 + $0xa0] sm:$0xff]
      %v8338 = vld [vmem:[%s8316 + $0xa8] sm:$0xff]
      %v8339 = vld [vmem:[%s8316 + $0xb0] sm:$0xff]
      %v8340 = vld [vmem:[%s8316 + $0xb8] sm:$0xff]
      %v8341 = vld [vmem:[%s8316 + $0xc0] sm:$0xff]
      %v8342 = vld [vmem:[%s8316 + $0xc8] sm:$0xff]
      %v8343 = vld [vmem:[%s8316 + $0xd0] sm:$0xff]
      %v8344 = vld [vmem:[%s8316 + $0xd8] sm:$0xff]
      %v8345 = vld [vmem:[%s8316 + $0xe0] sm:$0xff]
      %v8346 = vld [vmem:[%s8316 + $0xe8] sm:$0xff]
      %v8347 = vld [vmem:[%s8316 + $0xf0] sm:$0xff]
      %v8348 = vld [vmem:[%s8316 + $0xf8] sm:$0xff]
      %v8381 = vunpack.c.l.b16 %v8317
      %v8382 = vunpack.c.h.b16 %v8317
      %v8383 = vunpack.c.l.b16 %v8318
      %v8384 = vunpack.c.h.b16 %v8318
      %v8385 = vunpack.c.l.b16 %v8319
      %v8386 = vunpack.c.h.b16 %v8319
      %v8387 = vunpack.c.l.b16 %v8320
      %v8388 = vunpack.c.h.b16 %v8320
      %v8389 = vunpack.c.l.b16 %v8321
      %v8390 = vunpack.c.h.b16 %v8321
      %v8391 = vunpack.c.l.b16 %v8322
      %v8392 = vunpack.c.h.b16 %v8322
      %v8393 = vunpack.c.l.b16 %v8323
      %v8394 = vunpack.c.h.b16 %v8323
      %v8395 = vunpack.c.l.b16 %v8324
      %v8396 = vunpack.c.h.b16 %v8324
      %v8397 = vunpack.c.l.b16 %v8325
      %v8398 = vunpack.c.h.b16 %v8325
      %v8399 = vunpack.c.l.b16 %v8326
      %v8400 = vunpack.c.h.b16 %v8326
      %v8401 = vunpack.c.l.b16 %v8327
      %v8402 = vunpack.c.h.b16 %v8327
      %v8403 = vunpack.c.l.b16 %v8328
      %v8404 = vunpack.c.h.b16 %v8328
      %v8405 = vunpack.c.l.b16 %v8329
      %v8406 = vunpack.c.h.b16 %v8329
      %v8407 = vunpack.c.l.b16 %v8330
      %v8408 = vunpack.c.h.b16 %v8330
      %v8409 = vunpack.c.l.b16 %v8331
      %v8410 = vunpack.c.h.b16 %v8331
      %v8411 = vunpack.c.l.b16 %v8332
      %v8412 = vunpack.c.h.b16 %v8332
      %v8413 = vunpack.c.l.b16 %v8333
      %v8414 = vunpack.c.h.b16 %v8333
      %v8415 = vunpack.c.l.b16 %v8334
      %v8416 = vunpack.c.h.b16 %v8334
      %v8417 = vunpack.c.l.b16 %v8335
      %v8418 = vunpack.c.h.b16 %v8335
      %v8419 = vunpack.c.l.b16 %v8336
      %v8420 = vunpack.c.h.b16 %v8336
      %v8421 = vunpack.c.l.b16 %v8337
      %v8422 = vunpack.c.h.b16 %v8337
      %v8423 = vunpack.c.l.b16 %v8338
      %v8424 = vunpack.c.h.b16 %v8338
      %v8425 = vunpack.c.l.b16 %v8339
      %v8426 = vunpack.c.h.b16 %v8339
      %v8427 = vunpack.c.l.b16 %v8340
      %v8428 = vunpack.c.h.b16 %v8340
      %v8429 = vunpack.c.l.b16 %v8341
      %v8430 = vunpack.c.h.b16 %v8341
      %v8431 = vunpack.c.l.b16 %v8342
      %v8432 = vunpack.c.h.b16 %v8342
      %v8433 = vunpack.c.l.b16 %v8343
      %v8434 = vunpack.c.h.b16 %v8343
      %v8435 = vunpack.c.l.b16 %v8344
      %v8436 = vunpack.c.h.b16 %v8344
      %v8437 = vunpack.c.l.b16 %v8345
      %v8438 = vunpack.c.h.b16 %v8345
      %v8439 = vunpack.c.l.b16 %v8346
      %v8440 = vunpack.c.h.b16 %v8346
      %v8441 = vunpack.c.l.b16 %v8347
      %v8442 = vunpack.c.h.b16 %v8347
      %v8443 = vunpack.c.l.b16 %v8348
      %v8444 = vunpack.c.h.b16 %v8348
      %v8445 = vpack.c.b16 %v8383, %v8381
      %v8446 = vpack.c.b16 %v8384, %v8382
      %v8447 = vpack.c.b16 %v8387, %v8385
      %v8448 = vpack.c.b16 %v8388, %v8386
      %v8449 = vpack.c.b16 %v8391, %v8389
      %v8450 = vpack.c.b16 %v8392, %v8390
      %v8451 = vpack.c.b16 %v8395, %v8393
      %v8452 = vpack.c.b16 %v8396, %v8394
      %v8453 = vpack.c.b16 %v8399, %v8397
      %v8454 = vpack.c.b16 %v8400, %v8398
      %v8455 = vpack.c.b16 %v8403, %v8401
      %v8456 = vpack.c.b16 %v8404, %v8402
      %v8457 = vpack.c.b16 %v8407, %v8405
      %v8458 = vpack.c.b16 %v8408, %v8406
      %v8459 = vpack.c.b16 %v8411, %v8409
      %v8460 = vpack.c.b16 %v8412, %v8410
      %v8461 = vpack.c.b16 %v8415, %v8413
      %v8462 = vpack.c.b16 %v8416, %v8414
      %v8463 = vpack.c.b16 %v8419, %v8417
      %v8464 = vpack.c.b16 %v8420, %v8418
      %v8465 = vpack.c.b16 %v8423, %v8421
      %v8466 = vpack.c.b16 %v8424, %v8422
      %v8467 = vpack.c.b16 %v8427, %v8425
      %v8468 = vpack.c.b16 %v8428, %v8426
      %v8469 = vpack.c.b16 %v8431, %v8429
      %v8470 = vpack.c.b16 %v8432, %v8430
      %v8471 = vpack.c.b16 %v8435, %v8433
      %v8472 = vpack.c.b16 %v8436, %v8434
      %v8473 = vpack.c.b16 %v8439, %v8437
      %v8474 = vpack.c.b16 %v8440, %v8438
      %v8475 = vpack.c.b16 %v8443, %v8441
      %v8476 = vpack.c.b16 %v8444, %v8442
      %8509 = vmatprep.subr.bf16.mxu0 %v8446
      %8510 = vmatpush1.bf16.msra.mxu0 %v8445
      %8511 = vmatprep.subr.bf16.mxu0 %v8448
      %8512 = vmatpush1.bf16.msra.mxu0 %v8447
      %8513 = vmatprep.subr.bf16.mxu0 %v8450
      %8514 = vmatpush1.bf16.msra.mxu0 %v8449
      %8515 = vmatprep.subr.bf16.mxu0 %v8452
      %8516 = vmatpush1.bf16.msra.mxu0 %v8451
      %8517 = vmatprep.subr.bf16.mxu0 %v8454
      %8518 = vmatpush1.bf16.msra.mxu0 %v8453
      %8519 = vmatprep.subr.bf16.mxu0 %v8456
      %8520 = vmatpush1.bf16.msra.mxu0 %v8455
      %8521 = vmatprep.subr.bf16.mxu0 %v8458
      %8522 = vmatpush1.bf16.msra.mxu0 %v8457
      %8523 = vmatprep.subr.bf16.mxu0 %v8460
      %8524 = vmatpush1.bf16.msra.mxu0 %v8459
      %8525 = vmatprep.subr.bf16.mxu0 %v8462
      %8526 = vmatpush1.bf16.msra.mxu0 %v8461
      %8527 = vmatprep.subr.bf16.mxu0 %v8464
      %8528 = vmatpush1.bf16.msra.mxu0 %v8463
      %8529 = vmatprep.subr.bf16.mxu0 %v8466
      %8530 = vmatpush1.bf16.msra.mxu0 %v8465
      %8531 = vmatprep.subr.bf16.mxu0 %v8468
      %8532 = vmatpush1.bf16.msra.mxu0 %v8467
      %8533 = vmatprep.subr.bf16.mxu0 %v8470
      %8534 = vmatpush1.bf16.msra.mxu0 %v8469
      %8535 = vmatprep.subr.bf16.mxu0 %v8472
      %8536 = vmatpush1.bf16.msra.mxu0 %v8471
      %8537 = vmatprep.subr.bf16.mxu0 %v8474
      %8538 = vmatpush1.bf16.msra.mxu0 %v8473
      %8539 = vmatprep.subr.bf16.mxu0 %v8476
      %8540 = vmatpush1.bf16.msra.mxu0 %v8475
      %8541 = vmatprep.mubr.bf16.mxu0 %v8315
      %8542 = vmatmul.mubr.bf16.gmra.mrb[0].mxu0 %v8314
      %v8543 = vpop.f32.mrb[0].mxu0
      %v8544 = vadd.f32 0.0, %v8543
      %v8545 = vpop.f32.mrb[0].mxu0
      %v8546 = vadd.f32 0.0, %v8545
      %v8547 = vpop.f32.mrb[0].mxu0
      %v8548 = vpop.f32.mrb[0].mxu0
      %8549 = vdwg.mxu0
      %v8582 = vunpack.c.l.b16 %v8236
      %v8583 = vunpack.c.h.b16 %v8236
      %v8584 = vunpack.c.l.b16 %v8237
      %v8585 = vunpack.c.h.b16 %v8237
      %v8586 = vunpack.c.l.b16 %v8238
      %v8587 = vunpack.c.h.b16 %v8238
      %v8588 = vunpack.c.l.b16 %v8239
      %v8589 = vunpack.c.h.b16 %v8239
      %v8590 = vunpack.c.l.b16 %v8240
      %v8591 = vunpack.c.h.b16 %v8240
      %v8592 = vunpack.c.l.b16 %v8241
      %v8593 = vunpack.c.h.b16 %v8241
      %v8594 = vunpack.c.l.b16 %v8242
      %v8595 = vunpack.c.h.b16 %v8242
      %v8596 = vunpack.c.l.b16 %v8243
      %v8597 = vunpack.c.h.b16 %v8243
      %v8598 = vunpack.c.l.b16 %v8244
      %v8599 = vunpack.c.h.b16 %v8244
      %v8600 = vunpack.c.l.b16 %v8245
      %v8601 = vunpack.c.h.b16 %v8245
      %v8602 = vunpack.c.l.b16 %v8246
      %v8603 = vunpack.c.h.b16 %v8246
      %v8604 = vunpack.c.l.b16 %v8247
      %v8605 = vunpack.c.h.b16 %v8247
      %v8606 = vunpack.c.l.b16 %v8248
      %v8607 = vunpack.c.h.b16 %v8248
      %v8608 = vunpack.c.l.b16 %v8249
      %v8609 = vunpack.c.h.b16 %v8249
      %v8610 = vunpack.c.l.b16 %v8250
      %v8611 = vunpack.c.h.b16 %v8250
      %v8612 = vunpack.c.l.b16 %v8251
      %v8613 = vunpack.c.h.b16 %v8251
      %v8614 = vunpack.c.l.b16 %v8252
      %v8615 = vunpack.c.h.b16 %v8252
      %v8616 = vunpack.c.l.b16 %v8253
      %v8617 = vunpack.c.h.b16 %v8253
      %v8618 = vunpack.c.l.b16 %v8254
      %v8619 = vunpack.c.h.b16 %v8254
      %v8620 = vunpack.c.l.b16 %v8255
      %v8621 = vunpack.c.h.b16 %v8255
      %v8622 = vunpack.c.l.b16 %v8256
      %v8623 = vunpack.c.h.b16 %v8256
      %v8624 = vunpack.c.l.b16 %v8257
      %v8625 = vunpack.c.h.b16 %v8257
      %v8626 = vunpack.c.l.b16 %v8258
      %v8627 = vunpack.c.h.b16 %v8258
      %v8628 = vunpack.c.l.b16 %v8259
      %v8629 = vunpack.c.h.b16 %v8259
      %v8630 = vunpack.c.l.b16 %v8260
      %v8631 = vunpack.c.h.b16 %v8260
      %v8632 = vunpack.c.l.b16 %v8261
      %v8633 = vunpack.c.h.b16 %v8261
      %v8634 = vunpack.c.l.b16 %v8262
      %v8635 = vunpack.c.h.b16 %v8262
      %v8636 = vunpack.c.l.b16 %v8263
      %v8637 = vunpack.c.h.b16 %v8263
      %v8638 = vunpack.c.l.b16 %v8264
      %v8639 = vunpack.c.h.b16 %v8264
      %v8640 = vunpack.c.l.b16 %v8265
      %v8641 = vunpack.c.h.b16 %v8265
      %v8642 = vunpack.c.l.b16 %v8266
      %v8643 = vunpack.c.h.b16 %v8266
      %v8644 = vunpack.c.l.b16 %v8267
      %v8645 = vunpack.c.h.b16 %v8267
      %v8646 = vpack.c.b16 %v8584, %v8582
      %v8647 = vpack.c.b16 %v8585, %v8583
      %v8648 = vpack.c.b16 %v8588, %v8586
      %v8649 = vpack.c.b16 %v8589, %v8587
      %v8650 = vpack.c.b16 %v8592, %v8590
      %v8651 = vpack.c.b16 %v8593, %v8591
      %v8652 = vpack.c.b16 %v8596, %v8594
      %v8653 = vpack.c.b16 %v8597, %v8595
      %v8654 = vpack.c.b16 %v8600, %v8598
      %v8655 = vpack.c.b16 %v8601, %v8599
      %v8656 = vpack.c.b16 %v8604, %v8602
      %v8657 = vpack.c.b16 %v8605, %v8603
      %v8658 = vpack.c.b16 %v8608, %v8606
      %v8659 = vpack.c.b16 %v8609, %v8607
      %v8660 = vpack.c.b16 %v8612, %v8610
      %v8661 = vpack.c.b16 %v8613, %v8611
      %v8662 = vpack.c.b16 %v8616, %v8614
      %v8663 = vpack.c.b16 %v8617, %v8615
      %v8664 = vpack.c.b16 %v8620, %v8618
      %v8665 = vpack.c.b16 %v8621, %v8619
      %v8666 = vpack.c.b16 %v8624, %v8622
      %v8667 = vpack.c.b16 %v8625, %v8623
      %v8668 = vpack.c.b16 %v8628, %v8626
      %v8669 = vpack.c.b16 %v8629, %v8627
      %v8670 = vpack.c.b16 %v8632, %v8630
      %v8671 = vpack.c.b16 %v8633, %v8631
      %v8672 = vpack.c.b16 %v8636, %v8634
      %v8673 = vpack.c.b16 %v8637, %v8635
      %v8674 = vpack.c.b16 %v8640, %v8638
      %v8675 = vpack.c.b16 %v8641, %v8639
      %v8676 = vpack.c.b16 %v8644, %v8642
      %v8677 = vpack.c.b16 %v8645, %v8643
      %8710 = vmatprep.subr.bf16.mxu0 %v8647
      %8711 = vmatpush1.bf16.msra.mxu0 %v8646
      %8712 = vmatprep.subr.bf16.mxu0 %v8649
      %8713 = vmatpush1.bf16.msra.mxu0 %v8648
      %8714 = vmatprep.subr.bf16.mxu0 %v8651
      %8715 = vmatpush1.bf16.msra.mxu0 %v8650
      %8716 = vmatprep.subr.bf16.mxu0 %v8653
      %8717 = vmatpush1.bf16.msra.mxu0 %v8652
      %8718 = vmatprep.subr.bf16.mxu0 %v8655
      %8719 = vmatpush1.bf16.msra.mxu0 %v8654
      %8720 = vmatprep.subr.bf16.mxu0 %v8657
      %8721 = vmatpush1.bf16.msra.mxu0 %v8656
      %8722 = vmatprep.subr.bf16.mxu0 %v8659
      %8723 = vmatpush1.bf16.msra.mxu0 %v8658
      %8724 = vmatprep.subr.bf16.mxu0 %v8661
      %8725 = vmatpush1.bf16.msra.mxu0 %v8660
      %8726 = vmatprep.subr.bf16.mxu0 %v8663
      %8727 = vmatpush1.bf16.msra.mxu0 %v8662
      %8728 = vmatprep.subr.bf16.mxu0 %v8665
      %8729 = vmatpush1.bf16.msra.mxu0 %v8664
      %8730 = vmatprep.subr.bf16.mxu0 %v8667
      %8731 = vmatpush1.bf16.msra.mxu0 %v8666
      %8732 = vmatprep.subr.bf16.mxu0 %v8669
      %8733 = vmatpush1.bf16.msra.mxu0 %v8668
      %8734 = vmatprep.subr.bf16.mxu0 %v8671
      %8735 = vmatpush1.bf16.msra.mxu0 %v8670
      %8736 = vmatprep.subr.bf16.mxu0 %v8673
      %8737 = vmatpush1.bf16.msra.mxu0 %v8672
      %8738 = vmatprep.subr.bf16.mxu0 %v8675
      %8739 = vmatpush1.bf16.msra.mxu0 %v8674
      %8740 = vmatprep.subr.bf16.mxu0 %v8677
      %8741 = vmatpush1.bf16.msra.mxu0 %v8676
      %8742 = vmatprep.mubr.bf16.mxu0 %v8235
      %8743 = vmatmul.mubr.bf16.gmra.mrb[0].mxu0 %v8234
      %v8744 = vpop.f32.mrb[0].mxu0
      %v8745 = vadd.f32 %v8544, %v8744
      %v8746 = vpop.f32.mrb[0].mxu0
      %v8747 = vadd.f32 %v8546, %v8746
      %v8748 = vpop.f32.mrb[0].mxu0
      %v8749 = vpop.f32.mrb[0].mxu0
      %8750 = vdwg.mxu0
      %s8751 = scalar_lea.vmem %s10, 8
      %v8752 = vld [vmem:[%s8751] sm:$0xf]
      %v8754 = vsel %vm8183, %v8752, 0
      %8756 = vmatprep.subr.bf16.mxu0 %v8178
      %8757 = vmatpush1.bf16.msra.mxu0 %v8177
      %8758 = vmatprep.subr.bf16.mxu0 %v8191
      %8759 = vmatpush1.bf16.msra.mxu0 %v8188
      %8760 = vmatprep.subr.bf16.mxu0 0
      %8761 = vmatpush1.bf16.msra.mxu0 0
      %8762 = vmatprep.subr.bf16.mxu0 0
      %8763 = vmatpush1.bf16.msra.mxu0 0
      %8764 = vmatprep.subr.bf16.mxu0 0
      %8765 = vmatpush1.bf16.msra.mxu0 0
      %8766 = vmatprep.subr.bf16.mxu0 0
      %8767 = vmatpush1.bf16.msra.mxu0 0
      %8768 = vmatprep.subr.bf16.mxu0 0
      %8769 = vmatpush1.bf16.msra.mxu0 0
      %8770 = vmatprep.subr.bf16.mxu0 0
      %8771 = vmatpush1.bf16.msra.mxu0 0
      %8772 = vmatprep.subr.bf16.mxu0 0
      %8773 = vmatpush1.bf16.msra.mxu0 0
      %8774 = vmatprep.subr.bf16.mxu0 0
      %8775 = vmatpush1.bf16.msra.mxu0 0
      %8776 = vmatprep.subr.bf16.mxu0 0
      %8777 = vmatpush1.bf16.msra.mxu0 0
      %8778 = vmatprep.subr.bf16.mxu0 0
      %8779 = vmatpush1.bf16.msra.mxu0 0
      %8780 = vmatprep.subr.bf16.mxu0 0
      %8781 = vmatpush1.bf16.msra.mxu0 0
      %8782 = vmatprep.subr.bf16.mxu0 0
      %8783 = vmatpush1.bf16.msra.mxu0 0
      %8784 = vmatprep.subr.bf16.mxu0 0
      %8785 = vmatpush1.bf16.msra.mxu0 0
      %8786 = vmatprep.subr.bf16.mxu0 0
      %8787 = vmatpush1.bf16.msra.mxu0 0
      %8788 = vmatprep.mubr.bf16.mxu0 0
      %8789 = vmatmul.mubr.bf16.gmra.mrb[0].mxu0 %v8754
      %v8790 = vpop.f32.mrb[0].mxu0
      %v8791 = vadd.f32 0.0, %v8790
      %v8792 = vpop.f32.mrb[0].mxu0
      %v8793 = vadd.f32 0.0, %v8792
      %v8794 = vpop.f32.mrb[0].mxu0
      %v8795 = vpop.f32.mrb[0].mxu0
      %8796 = vdwg.mxu0
      %v8797 = vpack.c.bf16 %v8791, %v8791
      %v8798 = vpack.c.bf16 %v8793, %v8793
      %s8799 = scalar_lea.vmem %s11, 512
      %v8800 = vld [vmem:[%s8799] sm:$0xff]
      %v8801 = vld [vmem:[%s8799 + $0x8] sm:$0xff]
      %v8802 = vld [vmem:[%s8799 + $0x10] sm:$0xff]
      %v8803 = vld [vmem:[%s8799 + $0x18] sm:$0xff]
      %v8804 = vld [vmem:[%s8799 + $0x20] sm:$0xff]
      %v8805 = vld [vmem:[%s8799 + $0x28] sm:$0xff]
      %v8806 = vld [vmem:[%s8799 + $0x30] sm:$0xff]
      %v8807 = vld [vmem:[%s8799 + $0x38] sm:$0xff]
      %v8808 = vld [vmem:[%s8799 + $0x40] sm:$0xff]
      %v8809 = vld [vmem:[%s8799 + $0x48] sm:$0xff]
      %v8810 = vld [vmem:[%s8799 + $0x50] sm:$0xff]
      %v8811 = vld [vmem:[%s8799 + $0x58] sm:$0xff]
      %v8812 = vld [vmem:[%s8799 + $0x60] sm:$0xff]
      %v8813 = vld [vmem:[%s8799 + $0x68] sm:$0xff]
      %v8814 = vld [vmem:[%s8799 + $0x70] sm:$0xff]
      %v8815 = vld [vmem:[%s8799 + $0x78] sm:$0xff]
      %v8816 = vld [vmem:[%s8799 + $0x80] sm:$0xff]
      %v8817 = vld [vmem:[%s8799 + $0x88] sm:$0xff]
      %v8818 = vld [vmem:[%s8799 + $0x90] sm:$0xff]
      %v8819 = vld [vmem:[%s8799 + $0x98] sm:$0xff]
      %v8820 = vld [vmem:[%s8799 + $0xa0] sm:$0xff]
      %v8821 = vld [vmem:[%s8799 + $0xa8] sm:$0xff]
      %v8822 = vld [vmem:[%s8799 + $0xb0] sm:$0xff]
      %v8823 = vld [vmem:[%s8799 + $0xb8] sm:$0xff]
      %v8824 = vld [vmem:[%s8799 + $0xc0] sm:$0xff]
      %v8825 = vld [vmem:[%s8799 + $0xc8] sm:$0xff]
      %v8826 = vld [vmem:[%s8799 + $0xd0] sm:$0xff]
      %v8827 = vld [vmem:[%s8799 + $0xd8] sm:$0xff]
      %v8828 = vld [vmem:[%s8799 + $0xe0] sm:$0xff]
      %v8829 = vld [vmem:[%s8799 + $0xe8] sm:$0xff]
      %v8830 = vld [vmem:[%s8799 + $0xf0] sm:$0xff]
      %v8831 = vld [vmem:[%s8799 + $0xf8] sm:$0xff]
      %v8864 = vunpack.c.l.b16 %v8800
      %v8865 = vunpack.c.h.b16 %v8800
      %v8866 = vunpack.c.l.b16 %v8801
      %v8867 = vunpack.c.h.b16 %v8801
      %v8868 = vunpack.c.l.b16 %v8802
      %v8869 = vunpack.c.h.b16 %v8802
      %v8870 = vunpack.c.l.b16 %v8803
      %v8871 = vunpack.c.h.b16 %v8803
      %v8872 = vunpack.c.l.b16 %v8804
      %v8873 = vunpack.c.h.b16 %v8804
      %v8874 = vunpack.c.l.b16 %v8805
      %v8875 = vunpack.c.h.b16 %v8805
      %v8876 = vunpack.c.l.b16 %v8806
      %v8877 = vunpack.c.h.b16 %v8806
      %v8878 = vunpack.c.l.b16 %v8807
      %v8879 = vunpack.c.h.b16 %v8807
      %v8880 = vunpack.c.l.b16 %v8808
      %v8881 = vunpack.c.h.b16 %v8808
      %v8882 = vunpack.c.l.b16 %v8809
      %v8883 = vunpack.c.h.b16 %v8809
      %v8884 = vunpack.c.l.b16 %v8810
      %v8885 = vunpack.c.h.b16 %v8810
      %v8886 = vunpack.c.l.b16 %v8811
      %v8887 = vunpack.c.h.b16 %v8811
      %v8888 = vunpack.c.l.b16 %v8812
      %v8889 = vunpack.c.h.b16 %v8812
      %v8890 = vunpack.c.l.b16 %v8813
      %v8891 = vunpack.c.h.b16 %v8813
      %v8892 = vunpack.c.l.b16 %v8814
      %v8893 = vunpack.c.h.b16 %v8814
      %v8894 = vunpack.c.l.b16 %v8815
      %v8895 = vunpack.c.h.b16 %v8815
      %v8896 = vunpack.c.l.b16 %v8816
      %v8897 = vunpack.c.h.b16 %v8816
      %v8898 = vunpack.c.l.b16 %v8817
      %v8899 = vunpack.c.h.b16 %v8817
      %v8900 = vunpack.c.l.b16 %v8818
      %v8901 = vunpack.c.h.b16 %v8818
      %v8902 = vunpack.c.l.b16 %v8819
      %v8903 = vunpack.c.h.b16 %v8819
      %v8904 = vunpack.c.l.b16 %v8820
      %v8905 = vunpack.c.h.b16 %v8820
      %v8906 = vunpack.c.l.b16 %v8821
      %v8907 = vunpack.c.h.b16 %v8821
      %v8908 = vunpack.c.l.b16 %v8822
      %v8909 = vunpack.c.h.b16 %v8822
      %v8910 = vunpack.c.l.b16 %v8823
      %v8911 = vunpack.c.h.b16 %v8823
      %v8912 = vunpack.c.l.b16 %v8824
      %v8913 = vunpack.c.h.b16 %v8824
      %v8914 = vunpack.c.l.b16 %v8825
      %v8915 = vunpack.c.h.b16 %v8825
      %v8916 = vunpack.c.l.b16 %v8826
      %v8917 = vunpack.c.h.b16 %v8826
      %v8918 = vunpack.c.l.b16 %v8827
      %v8919 = vunpack.c.h.b16 %v8827
      %v8920 = vunpack.c.l.b16 %v8828
      %v8921 = vunpack.c.h.b16 %v8828
      %v8922 = vunpack.c.l.b16 %v8829
      %v8923 = vunpack.c.h.b16 %v8829
      %v8924 = vunpack.c.l.b16 %v8830
      %v8925 = vunpack.c.h.b16 %v8830
      %v8926 = vunpack.c.l.b16 %v8831
      %v8927 = vunpack.c.h.b16 %v8831
      %v8928 = vpack.c.b16 %v8866, %v8864
      %v8929 = vpack.c.b16 %v8867, %v8865
      %v8930 = vpack.c.b16 %v8870, %v8868
      %v8931 = vpack.c.b16 %v8871, %v8869
      %v8932 = vpack.c.b16 %v8874, %v8872
      %v8933 = vpack.c.b16 %v8875, %v8873
      %v8934 = vpack.c.b16 %v8878, %v8876
      %v8935 = vpack.c.b16 %v8879, %v8877
      %v8936 = vpack.c.b16 %v8882, %v8880
      %v8937 = vpack.c.b16 %v8883, %v8881
      %v8938 = vpack.c.b16 %v8886, %v8884
      %v8939 = vpack.c.b16 %v8887, %v8885
      %v8940 = vpack.c.b16 %v8890, %v8888
      %v8941 = vpack.c.b16 %v8891, %v8889
      %v8942 = vpack.c.b16 %v8894, %v8892
      %v8943 = vpack.c.b16 %v8895, %v8893
      %v8944 = vpack.c.b16 %v8898, %v8896
      %v8945 = vpack.c.b16 %v8899, %v8897
      %v8946 = vpack.c.b16 %v8902, %v8900
      %v8947 = vpack.c.b16 %v8903, %v8901
      %v8948 = vpack.c.b16 %v8906, %v8904
      %v8949 = vpack.c.b16 %v8907, %v8905
      %v8950 = vpack.c.b16 %v8910, %v8908
      %v8951 = vpack.c.b16 %v8911, %v8909
      %v8952 = vpack.c.b16 %v8914, %v8912
      %v8953 = vpack.c.b16 %v8915, %v8913
      %v8954 = vpack.c.b16 %v8918, %v8916
      %v8955 = vpack.c.b16 %v8919, %v8917
      %v8956 = vpack.c.b16 %v8922, %v8920
      %v8957 = vpack.c.b16 %v8923, %v8921
      %v8958 = vpack.c.b16 %v8926, %v8924
      %v8959 = vpack.c.b16 %v8927, %v8925
      %8992 = vmatprep.subr.bf16.mxu0 %v8929
      %8993 = vmatpush1.bf16.msra.mxu0 %v8928
      %8994 = vmatprep.subr.bf16.mxu0 %v8931
      %8995 = vmatpush1.bf16.msra.mxu0 %v8930
      %8996 = vmatprep.subr.bf16.mxu0 %v8933
      %8997 = vmatpush1.bf16.msra.mxu0 %v8932
      %8998 = vmatprep.subr.bf16.mxu0 %v8935
      %8999 = vmatpush1.bf16.msra.mxu0 %v8934
      %9000 = vmatprep.subr.bf16.mxu0 %v8937
      %9001 = vmatpush1.bf16.msra.mxu0 %v8936
      %9002 = vmatprep.subr.bf16.mxu0 %v8939
      %9003 = vmatpush1.bf16.msra.mxu0 %v8938
      %9004 = vmatprep.subr.bf16.mxu0 %v8941
      %9005 = vmatpush1.bf16.msra.mxu0 %v8940
      %9006 = vmatprep.subr.bf16.mxu0 %v8943
      %9007 = vmatpush1.bf16.msra.mxu0 %v8942
      %9008 = vmatprep.subr.bf16.mxu0 %v8945
      %9009 = vmatpush1.bf16.msra.mxu0 %v8944
      %9010 = vmatprep.subr.bf16.mxu0 %v8947
      %9011 = vmatpush1.bf16.msra.mxu0 %v8946
      %9012 = vmatprep.subr.bf16.mxu0 %v8949
      %9013 = vmatpush1.bf16.msra.mxu0 %v8948
      %9014 = vmatprep.subr.bf16.mxu0 %v8951
      %9015 = vmatpush1.bf16.msra.mxu0 %v8950
      %9016 = vmatprep.subr.bf16.mxu0 %v8953
      %9017 = vmatpush1.bf16.msra.mxu0 %v8952
      %9018 = vmatprep.subr.bf16.mxu0 %v8955
      %9019 = vmatpush1.bf16.msra.mxu0 %v8954
      %9020 = vmatprep.subr.bf16.mxu0 %v8957
      %9021 = vmatpush1.bf16.msra.mxu0 %v8956
      %9022 = vmatprep.subr.bf16.mxu0 %v8959
      %9023 = vmatpush1.bf16.msra.mxu0 %v8958
      %9024 = vmatprep.mubr.bf16.mxu0 %v8798
      %9025 = vmatmul.mubr.bf16.gmra.mrb[0].mxu0 %v8797
      %v9026 = vpop.f32.mrb[0].mxu0
      %v9027 = vadd.f32 0.0, %v9026
      %v9028 = vpop.f32.mrb[0].mxu0
      %v9029 = vadd.f32 0.0, %v9028
      %v9030 = vpop.f32.mrb[0].mxu0
      %v9031 = vpop.f32.mrb[0].mxu0
      %9032 = vdwg.mxu0
      %v9033 = vadd.f32 %v8745, %v9027
      %v9034 = vadd.f32 %v8747, %v9029
      %s9035 = scalar_lea.vmem %s10, 12
      %v9036 = vld [vmem:[%s9035] sm:$0xf]
      %v9038 = vsel %vm8183, %v9036, 0
      %9040 = vmatprep.subr.bf16.mxu0 %v8178
      %9041 = vmatpush1.bf16.msra.mxu0 %v8177
      %9042 = vmatprep.subr.bf16.mxu0 %v8191
      %9043 = vmatpush1.bf16.msra.mxu0 %v8188
      %9044 = vmatprep.subr.bf16.mxu0 0
      %9045 = vmatpush1.bf16.msra.mxu0 0
      %9046 = vmatprep.subr.bf16.mxu0 0
      %9047 = vmatpush1.bf16.msra.mxu0 0
      %9048 = vmatprep.subr.bf16.mxu0 0
      %9049 = vmatpush1.bf16.msra.mxu0 0
      %9050 = vmatprep.subr.bf16.mxu0 0
      %9051 = vmatpush1.bf16.msra.mxu0 0
      %9052 = vmatprep.subr.bf16.mxu0 0
      %9053 = vmatpush1.bf16.msra.mxu0 0
      %9054 = vmatprep.subr.bf16.mxu0 0
      %9055 = vmatpush1.bf16.msra.mxu0 0
      %9056 = vmatprep.subr.bf16.mxu0 0
      %9057 = vmatpush1.bf16.msra.mxu0 0
      %9058 = vmatprep.subr.bf16.mxu0 0
      %9059 = vmatpush1.bf16.msra.mxu0 0
      %9060 = vmatprep.subr.bf16.mxu0 0
      %9061 = vmatpush1.bf16.msra.mxu0 0
      %9062 = vmatprep.subr.bf16.mxu0 0
      %9063 = vmatpush1.bf16.msra.mxu0 0
      %9064 = vmatprep.subr.bf16.mxu0 0
      %9065 = vmatpush1.bf16.msra.mxu0 0
      %9066 = vmatprep.subr.bf16.mxu0 0
      %9067 = vmatpush1.bf16.msra.mxu0 0
      %9068 = vmatprep.subr.bf16.mxu0 0
      %9069 = vmatpush1.bf16.msra.mxu0 0
      %9070 = vmatprep.subr.bf16.mxu0 0
      %9071 = vmatpush1.bf16.msra.mxu0 0
      %9072 = vmatprep.mubr.bf16.mxu0 0
      %9073 = vmatmul.mubr.bf16.gmra.mrb[0].mxu0 %v9038
      %v9074 = vpop.f32.mrb[0].mxu0
      %v9075 = vadd.f32 0.0, %v9074
      %v9076 = vpop.f32.mrb[0].mxu0
      %v9077 = vadd.f32 0.0, %v9076
      %v9078 = vpop.f32.mrb[0].mxu0
      %v9079 = vpop.f32.mrb[0].mxu0
      %9080 = vdwg.mxu0
      %v9081 = vpack.c.bf16 %v9075, %v9075
      %v9082 = vpack.c.bf16 %v9077, %v9077
      %s9083 = scalar_lea.vmem %s11, 768
      %v9084 = vld [vmem:[%s9083] sm:$0xff]
      %v9085 = vld [vmem:[%s9083 + $0x8] sm:$0xff]
      %v9086 = vld [vmem:[%s9083 + $0x10] sm:$0xff]
      %v9087 = vld [vmem:[%s9083 + $0x18] sm:$0xff]
      %v9088 = vld [vmem:[%s9083 + $0x20] sm:$0xff]
      %v9089 = vld [vmem:[%s9083 + $0x28] sm:$0xff]
      %v9090 = vld [vmem:[%s9083 + $0x30] sm:$0xff]
      %v9091 = vld [vmem:[%s9083 + $0x38] sm:$0xff]
      %v9092 = vld [vmem:[%s9083 + $0x40] sm:$0xff]
      %v9093 = vld [vmem:[%s9083 + $0x48] sm:$0xff]
      %v9094 = vld [vmem:[%s9083 + $0x50] sm:$0xff]
      %v9095 = vld [vmem:[%s9083 + $0x58] sm:$0xff]
      %v9096 = vld [vmem:[%s9083 + $0x60] sm:$0xff]
      %v9097 = vld [vmem:[%s9083 + $0x68] sm:$0xff]
      %v9098 = vld [vmem:[%s9083 + $0x70] sm:$0xff]
      %v9099 = vld [vmem:[%s9083 + $0x78] sm:$0xff]
      %v9100 = vld [vmem:[%s9083 + $0x80] sm:$0xff]
      %v9101 = vld [vmem:[%s9083 + $0x88] sm:$0xff]
      %v9102 = vld [vmem:[%s9083 + $0x90] sm:$0xff]
      %v9103 = vld [vmem:[%s9083 + $0x98] sm:$0xff]
      %v9104 = vld [vmem:[%s9083 + $0xa0] sm:$0xff]
      %v9105 = vld [vmem:[%s9083 + $0xa8] sm:$0xff]
      %v9106 = vld [vmem:[%s9083 + $0xb0] sm:$0xff]
      %v9107 = vld [vmem:[%s9083 + $0xb8] sm:$0xff]
      %v9108 = vld [vmem:[%s9083 + $0xc0] sm:$0xff]
      %v9109 = vld [vmem:[%s9083 + $0xc8] sm:$0xff]
      %v9110 = vld [vmem:[%s9083 + $0xd0] sm:$0xff]
      %v9111 = vld [vmem:[%s9083 + $0xd8] sm:$0xff]
      %v9112 = vld [vmem:[%s9083 + $0xe0] sm:$0xff]
      %v9113 = vld [vmem:[%s9083 + $0xe8] sm:$0xff]
      %v9114 = vld [vmem:[%s9083 + $0xf0] sm:$0xff]
      %v9115 = vld [vmem:[%s9083 + $0xf8] sm:$0xff]
      %v9148 = vunpack.c.l.b16 %v9084
      %v9149 = vunpack.c.h.b16 %v9084
      %v9150 = vunpack.c.l.b16 %v9085
      %v9151 = vunpack.c.h.b16 %v9085
      %v9152 = vunpack.c.l.b16 %v9086
      %v9153 = vunpack.c.h.b16 %v9086
      %v9154 = vunpack.c.l.b16 %v9087
      %v9155 = vunpack.c.h.b16 %v9087
      %v9156 = vunpack.c.l.b16 %v9088
      %v9157 = vunpack.c.h.b16 %v9088
      %v9158 = vunpack.c.l.b16 %v9089
      %v9159 = vunpack.c.h.b16 %v9089
      %v9160 = vunpack.c.l.b16 %v9090
      %v9161 = vunpack.c.h.b16 %v9090
      %v9162 = vunpack.c.l.b16 %v9091
      %v9163 = vunpack.c.h.b16 %v9091
      %v9164 = vunpack.c.l.b16 %v9092
      %v9165 = vunpack.c.h.b16 %v9092
      %v9166 = vunpack.c.l.b16 %v9093
      %v9167 = vunpack.c.h.b16 %v9093
      %v9168 = vunpack.c.l.b16 %v9094
      %v9169 = vunpack.c.h.b16 %v9094
      %v9170 = vunpack.c.l.b16 %v9095
      %v9171 = vunpack.c.h.b16 %v9095
      %v9172 = vunpack.c.l.b16 %v9096
      %v9173 = vunpack.c.h.b16 %v9096
      %v9174 = vunpack.c.l.b16 %v9097
      %v9175 = vunpack.c.h.b16 %v9097
      %v9176 = vunpack.c.l.b16 %v9098
      %v9177 = vunpack.c.h.b16 %v9098
      %v9178 = vunpack.c.l.b16 %v9099
      %v9179 = vunpack.c.h.b16 %v9099
      %v9180 = vunpack.c.l.b16 %v9100
      %v9181 = vunpack.c.h.b16 %v9100
      %v9182 = vunpack.c.l.b16 %v9101
      %v9183 = vunpack.c.h.b16 %v9101
      %v9184 = vunpack.c.l.b16 %v9102
      %v9185 = vunpack.c.h.b16 %v9102
      %v9186 = vunpack.c.l.b16 %v9103
      %v9187 = vunpack.c.h.b16 %v9103
      %v9188 = vunpack.c.l.b16 %v9104
      %v9189 = vunpack.c.h.b16 %v9104
      %v9190 = vunpack.c.l.b16 %v9105
      %v9191 = vunpack.c.h.b16 %v9105
      %v9192 = vunpack.c.l.b16 %v9106
      %v9193 = vunpack.c.h.b16 %v9106
      %v9194 = vunpack.c.l.b16 %v9107
      %v9195 = vunpack.c.h.b16 %v9107
      %v9196 = vunpack.c.l.b16 %v9108
      %v9197 = vunpack.c.h.b16 %v9108
      %v9198 = vunpack.c.l.b16 %v9109
      %v9199 = vunpack.c.h.b16 %v9109
      %v9200 = vunpack.c.l.b16 %v9110
      %v9201 = vunpack.c.h.b16 %v9110
      %v9202 = vunpack.c.l.b16 %v9111
      %v9203 = vunpack.c.h.b16 %v9111
      %v9204 = vunpack.c.l.b16 %v9112
      %v9205 = vunpack.c.h.b16 %v9112
      %v9206 = vunpack.c.l.b16 %v9113
      %v9207 = vunpack.c.h.b16 %v9113
      %v9208 = vunpack.c.l.b16 %v9114
      %v9209 = vunpack.c.h.b16 %v9114
      %v9210 = vunpack.c.l.b16 %v9115
      %v9211 = vunpack.c.h.b16 %v9115
      %v9212 = vpack.c.b16 %v9150, %v9148
      %v9213 = vpack.c.b16 %v9151, %v9149
      %v9214 = vpack.c.b16 %v9154, %v9152
      %v9215 = vpack.c.b16 %v9155, %v9153
      %v9216 = vpack.c.b16 %v9158, %v9156
      %v9217 = vpack.c.b16 %v9159, %v9157
      %v9218 = vpack.c.b16 %v9162, %v9160
      %v9219 = vpack.c.b16 %v9163, %v9161
      %v9220 = vpack.c.b16 %v9166, %v9164
      %v9221 = vpack.c.b16 %v9167, %v9165
      %v9222 = vpack.c.b16 %v9170, %v9168
      %v9223 = vpack.c.b16 %v9171, %v9169
      %v9224 = vpack.c.b16 %v9174, %v9172
      %v9225 = vpack.c.b16 %v9175, %v9173
      %v9226 = vpack.c.b16 %v9178, %v9176
      %v9227 = vpack.c.b16 %v9179, %v9177
      %v9228 = vpack.c.b16 %v9182, %v9180
      %v9229 = vpack.c.b16 %v9183, %v9181
      %v9230 = vpack.c.b16 %v9186, %v9184
      %v9231 = vpack.c.b16 %v9187, %v9185
      %v9232 = vpack.c.b16 %v9190, %v9188
      %v9233 = vpack.c.b16 %v9191, %v9189
      %v9234 = vpack.c.b16 %v9194, %v9192
      %v9235 = vpack.c.b16 %v9195, %v9193
      %v9236 = vpack.c.b16 %v9198, %v9196
      %v9237 = vpack.c.b16 %v9199, %v9197
      %v9238 = vpack.c.b16 %v9202, %v9200
      %v9239 = vpack.c.b16 %v9203, %v9201
      %v9240 = vpack.c.b16 %v9206, %v9204
      %v9241 = vpack.c.b16 %v9207, %v9205
      %v9242 = vpack.c.b16 %v9210, %v9208
      %v9243 = vpack.c.b16 %v9211, %v9209
      %9276 = vmatprep.subr.bf16.mxu0 %v9213
      %9277 = vmatpush1.bf16.msra.mxu0 %v9212
      %9278 = vmatprep.subr.bf16.mxu0 %v9215
      %9279 = vmatpush1.bf16.msra.mxu0 %v9214
      %9280 = vmatprep.subr.bf16.mxu0 %v9217
      %9281 = vmatpush1.bf16.msra.mxu0 %v9216
      %9282 = vmatprep.subr.bf16.mxu0 %v9219
      %9283 = vmatpush1.bf16.msra.mxu0 %v9218
      %9284 = vmatprep.subr.bf16.mxu0 %v9221
      %9285 = vmatpush1.bf16.msra.mxu0 %v9220
      %9286 = vmatprep.subr.bf16.mxu0 %v9223
      %9287 = vmatpush1.bf16.msra.mxu0 %v9222
      %9288 = vmatprep.subr.bf16.mxu0 %v9225
      %9289 = vmatpush1.bf16.msra.mxu0 %v9224
      %9290 = vmatprep.subr.bf16.mxu0 %v9227
      %9291 = vmatpush1.bf16.msra.mxu0 %v9226
      %9292 = vmatprep.subr.bf16.mxu0 %v9229
      %9293 = vmatpush1.bf16.msra.mxu0 %v9228
      %9294 = vmatprep.subr.bf16.mxu0 %v9231
      %9295 = vmatpush1.bf16.msra.mxu0 %v9230
      %9296 = vmatprep.subr.bf16.mxu0 %v9233
      %9297 = vmatpush1.bf16.msra.mxu0 %v9232
      %9298 = vmatprep.subr.bf16.mxu0 %v9235
      %9299 = vmatpush1.bf16.msra.mxu0 %v9234
      %9300 = vmatprep.subr.bf16.mxu0 %v9237
      %9301 = vmatpush1.bf16.msra.mxu0 %v9236
      %9302 = vmatprep.subr.bf16.mxu0 %v9239
      %9303 = vmatpush1.bf16.msra.mxu0 %v9238
      %9304 = vmatprep.subr.bf16.mxu0 %v9241
      %9305 = vmatpush1.bf16.msra.mxu0 %v9240
      %9306 = vmatprep.subr.bf16.mxu0 %v9243
      %9307 = vmatpush1.bf16.msra.mxu0 %v9242
      %9308 = vmatprep.mubr.bf16.mxu0 %v9082
      %9309 = vmatmul.mubr.bf16.gmra.mrb[0].mxu0 %v9081
      %v9310 = vpop.f32.mrb[0].mxu0
      %v9311 = vadd.f32 0.0, %v9310
      %v9312 = vpop.f32.mrb[0].mxu0
      %v9313 = vadd.f32 0.0, %v9312
      %v9314 = vpop.f32.mrb[0].mxu0
      %v9315 = vpop.f32.mrb[0].mxu0
      %9316 = vdwg.mxu0
      %v9317 = vadd.f32 %v9033, %v9311
      %v9318 = vadd.f32 %v9034, %v9313
      %v9319 = vld [vmem:[%s12] sm:$0x3]
      %v9321 = vlaneseq
      %v9322 = vshrl.u32 %v9321, 7
      %v9323 = vsub.s32 0, %v9322
      %v9324 = vrot.slane %v9319, %v9323
      %v9325 = vlaneseq
      %v9326 = vshrl.u32 %v9325, 7
      %v9327 = vsub.s32 1, %v9326
      %v9328 = vrot.slane %v9319, %v9327
      %v9331 = vadd.f32 %v9317, %v9324
      %v9332 = vadd.f32 %v9318, %v9328
      %v9333 = vmax.f32 %v9331, 0.0
      %v9334 = vmax.f32 %v9332, 0.0
      %v9335 = vpack.c.bf16 %v9333, %v9333
      %v9336 = vpack.c.bf16 %v9334, %v9334
      %9337 = vst [vmem:[#allocation5] sm:$0xf] %v9335
      %9338 = vst [vmem:[#allocation5 + $0x8] sm:$0xf] %v9336
      %v9339 = vld [vmem:[#allocation5] sm:$0xff]
      %v9340 = vld [vmem:[#allocation5 + $0x8] sm:$0xff]
      %v9341 = vld [vmem:[%s13] sm:$0x3]
      %vm9342 = vcmask 130048
      %v9344 = vsel %vm9342, %v9341, 0
      %9346 = vmatprep.subr.bf16.mxu0 %v9340
      %9347 = vmatpush1.bf16.msra.mxu0 %v9339
      %9348 = vmatprep.subr.bf16.mxu0 0
      %9349 = vmatpush1.bf16.msra.mxu0 0
      %9350 = vmatprep.subr.bf16.mxu0 0
      %9351 = vmatpush1.bf16.msra.mxu0 0
      %9352 = vmatprep.subr.bf16.mxu0 0
      %9353 = vmatpush1.bf16.msra.mxu0 0
      %9354 = vmatprep.subr.bf16.mxu0 0
      %9355 = vmatpush1.bf16.msra.mxu0 0
      %9356 = vmatprep.subr.bf16.mxu0 0
      %9357 = vmatpush1.bf16.msra.mxu0 0
      %9358 = vmatprep.subr.bf16.mxu0 0
      %9359 = vmatpush1.bf16.msra.mxu0 0
      %9360 = vmatprep.subr.bf16.mxu0 0
      %9361 = vmatpush1.bf16.msra.mxu0 0
      %9362 = vmatprep.subr.bf16.mxu0 0
      %9363 = vmatpush1.bf16.msra.mxu0 0
      %9364 = vmatprep.subr.bf16.mxu0 0
      %9365 = vmatpush1.bf16.msra.mxu0 0
      %9366 = vmatprep.subr.bf16.mxu0 0
      %9367 = vmatpush1.bf16.msra.mxu0 0
      %9368 = vmatprep.subr.bf16.mxu0 0
      %9369 = vmatpush1.bf16.msra.mxu0 0
      %9370 = vmatprep.subr.bf16.mxu0 0
      %9371 = vmatpush1.bf16.msra.mxu0 0
      %9372 = vmatprep.subr.bf16.mxu0 0
      %9373 = vmatpush1.bf16.msra.mxu0 0
      %9374 = vmatprep.subr.bf16.mxu0 0
      %9375 = vmatpush1.bf16.msra.mxu0 0
      %9376 = vmatprep.subr.bf16.mxu0 0
      %9377 = vmatpush1.bf16.msra.mxu0 0
      %9378 = vmatprep.mubr.bf16.mxu0 0
      %9379 = vmatmul.mubr.bf16.gmra.mrb[0].mxu0 %v9344
      %v9380 = vpop.f32.mrb[0].mxu0
      %v9381 = vadd.f32 0.0, %v9380
      %v9382 = vpop.f32.mrb[0].mxu0
      %v9383 = vadd.f32 0.0, %v9382
      %v9384 = vpop.f32.mrb[0].mxu0
      %v9385 = vpop.f32.mrb[0].mxu0
      %9386 = vdwg.mxu0
      %v9387 = vpack.c.bf16 %v9381, %v9381
      %v9388 = vpack.c.bf16 %v9383, %v9383
      %v9389 = vld [vmem:[%s14] sm:$0xff]
      %v9390 = vld [vmem:[%s14 + $0x8] sm:$0xff]
      %v9391 = vld [vmem:[%s14 + $0x10] sm:$0xff]
      %v9392 = vld [vmem:[%s14 + $0x18] sm:$0xff]
      %v9393 = vld [vmem:[%s14 + $0x20] sm:$0xff]
      %v9394 = vld [vmem:[%s14 + $0x28] sm:$0xff]
      %v9395 = vld [vmem:[%s14 + $0x30] sm:$0xff]
      %v9396 = vld [vmem:[%s14 + $0x38] sm:$0xff]
      %v9397 = vld [vmem:[%s14 + $0x40] sm:$0xff]
      %v9398 = vld [vmem:[%s14 + $0x48] sm:$0xff]
      %v9399 = vld [vmem:[%s14 + $0x50] sm:$0xff]
      %v9400 = vld [vmem:[%s14 + $0x58] sm:$0xff]
      %v9401 = vld [vmem:[%s14 + $0x60] sm:$0xff]
      %v9402 = vld [vmem:[%s14 + $0x68] sm:$0xff]
      %v9403 = vld [vmem:[%s14 + $0x70] sm:$0xff]
      %v9404 = vld [vmem:[%s14 + $0x78] sm:$0xff]
      %v9405 = vld [vmem:[%s14 + $0x80] sm:$0xff]
      %v9406 = vld [vmem:[%s14 + $0x88] sm:$0xff]
      %v9407 = vld [vmem:[%s14 + $0x90] sm:$0xff]
      %v9408 = vld [vmem:[%s14 + $0x98] sm:$0xff]
      %v9409 = vld [vmem:[%s14 + $0xa0] sm:$0xff]
      %v9410 = vld [vmem:[%s14 + $0xa8] sm:$0xff]
      %v9411 = vld [vmem:[%s14 + $0xb0] sm:$0xff]
      %v9412 = vld [vmem:[%s14 + $0xb8] sm:$0xff]
      %v9413 = vld [vmem:[%s14 + $0xc0] sm:$0xff]
      %v9414 = vld [vmem:[%s14 + $0xc8] sm:$0xff]
      %v9415 = vld [vmem:[%s14 + $0xd0] sm:$0xff]
      %v9416 = vld [vmem:[%s14 + $0xd8] sm:$0xff]
      %v9417 = vld [vmem:[%s14 + $0xe0] sm:$0xff]
      %v9418 = vld [vmem:[%s14 + $0xe8] sm:$0xff]
      %v9419 = vld [vmem:[%s14 + $0xf0] sm:$0xff]
      %v9420 = vld [vmem:[%s14 + $0xf8] sm:$0xff]
      %s9421 = scalar_lea.vmem %s13, 2
      %v9422 = vld [vmem:[%s9421] sm:$0x3]
      %v9424 = vsel %vm9342, %v9422, 0
      %9426 = vmatprep.subr.bf16.mxu0 %v9340
      %9427 = vmatpush1.bf16.msra.mxu0 %v9339
      %9428 = vmatprep.subr.bf16.mxu0 0
      %9429 = vmatpush1.bf16.msra.mxu0 0
      %9430 = vmatprep.subr.bf16.mxu0 0
      %9431 = vmatpush1.bf16.msra.mxu0 0
      %9432 = vmatprep.subr.bf16.mxu0 0
      %9433 = vmatpush1.bf16.msra.mxu0 0
      %9434 = vmatprep.subr.bf16.mxu0 0
      %9435 = vmatpush1.bf16.msra.mxu0 0
      %9436 = vmatprep.subr.bf16.mxu0 0
      %9437 = vmatpush1.bf16.msra.mxu0 0
      %9438 = vmatprep.subr.bf16.mxu0 0
      %9439 = vmatpush1.bf16.msra.mxu0 0
      %9440 = vmatprep.subr.bf16.mxu0 0
      %9441 = vmatpush1.bf16.msra.mxu0 0
      %9442 = vmatprep.subr.bf16.mxu0 0
      %9443 = vmatpush1.bf16.msra.mxu0 0
      %9444 = vmatprep.subr.bf16.mxu0 0
      %9445 = vmatpush1.bf16.msra.mxu0 0
      %9446 = vmatprep.subr.bf16.mxu0 0
      %9447 = vmatpush1.bf16.msra.mxu0 0
      %9448 = vmatprep.subr.bf16.mxu0 0
      %9449 = vmatpush1.bf16.msra.mxu0 0
      %9450 = vmatprep.subr.bf16.mxu0 0
      %9451 = vmatpush1.bf16.msra.mxu0 0
      %9452 = vmatprep.subr.bf16.mxu0 0
      %9453 = vmatpush1.bf16.msra.mxu0 0
      %9454 = vmatprep.subr.bf16.mxu0 0
      %9455 = vmatpush1.bf16.msra.mxu0 0
      %9456 = vmatprep.subr.bf16.mxu0 0
      %9457 = vmatpush1.bf16.msra.mxu0 0
      %9458 = vmatprep.mubr.bf16.mxu0 0
      %9459 = vmatmul.mubr.bf16.gmra.mrb[0].mxu0 %v9424
      %v9460 = vpop.f32.mrb[0].mxu0
      %v9461 = vadd.f32 0.0, %v9460
      %v9462 = vpop.f32.mrb[0].mxu0
      %v9463 = vadd.f32 0.0, %v9462
      %v9464 = vpop.f32.mrb[0].mxu0
      %v9465 = vpop.f32.mrb[0].mxu0
      %9466 = vdwg.mxu0
      %v9467 = vpack.c.bf16 %v9461, %v9461
      %v9468 = vpack.c.bf16 %v9463, %v9463
      %s9469 = scalar_lea.vmem %s14, 256
      %v9470 = vld [vmem:[%s9469] sm:$0xff]
      %v9471 = vld [vmem:[%s9469 + $0x8] sm:$0xff]
      %v9472 = vld [vmem:[%s9469 + $0x10] sm:$0xff]
      %v9473 = vld [vmem:[%s9469 + $0x18] sm:$0xff]
      %v9474 = vld [vmem:[%s9469 + $0x20] sm:$0xff]
      %v9475 = vld [vmem:[%s9469 + $0x28] sm:$0xff]
      %v9476 = vld [vmem:[%s9469 + $0x30] sm:$0xff]
      %v9477 = vld [vmem:[%s9469 + $0x38] sm:$0xff]
      %v9478 = vld [vmem:[%s9469 + $0x40] sm:$0xff]
      %v9479 = vld [vmem:[%s9469 + $0x48] sm:$0xff]
      %v9480 = vld [vmem:[%s9469 + $0x50] sm:$0xff]
      %v9481 = vld [vmem:[%s9469 + $0x58] sm:$0xff]
      %v9482 = vld [vmem:[%s9469 + $0x60] sm:$0xff]
      %v9483 = vld [vmem:[%s9469 + $0x68] sm:$0xff]
      %v9484 = vld [vmem:[%s9469 + $0x70] sm:$0xff]
      %v9485 = vld [vmem:[%s9469 + $0x78] sm:$0xff]
      %v9486 = vld [vmem:[%s9469 + $0x80] sm:$0xff]
      %v9487 = vld [vmem:[%s9469 + $0x88] sm:$0xff]
      %v9488 = vld [vmem:[%s9469 + $0x90] sm:$0xff]
      %v9489 = vld [vmem:[%s9469 + $0x98] sm:$0xff]
      %v9490 = vld [vmem:[%s9469 + $0xa0] sm:$0xff]
      %v9491 = vld [vmem:[%s9469 + $0xa8] sm:$0xff]
      %v9492 = vld [vmem:[%s9469 + $0xb0] sm:$0xff]
      %v9493 = vld [vmem:[%s9469 + $0xb8] sm:$0xff]
      %v9494 = vld [vmem:[%s9469 + $0xc0] sm:$0xff]
      %v9495 = vld [vmem:[%s9469 + $0xc8] sm:$0xff]
      %v9496 = vld [vmem:[%s9469 + $0xd0] sm:$0xff]
      %v9497 = vld [vmem:[%s9469 + $0xd8] sm:$0xff]
      %v9498 = vld [vmem:[%s9469 + $0xe0] sm:$0xff]
      %v9499 = vld [vmem:[%s9469 + $0xe8] sm:$0xff]
      %v9500 = vld [vmem:[%s9469 + $0xf0] sm:$0xff]
      %v9501 = vld [vmem:[%s9469 + $0xf8] sm:$0xff]
      %v9534 = vunpack.c.l.b16 %v9470
      %v9535 = vunpack.c.h.b16 %v9470
      %v9536 = vunpack.c.l.b16 %v9471
      %v9537 = vunpack.c.h.b16 %v9471
      %v9538 = vunpack.c.l.b16 %v9472
      %v9539 = vunpack.c.h.b16 %v9472
      %v9540 = vunpack.c.l.b16 %v9473
      %v9541 = vunpack.c.h.b16 %v9473
      %v9542 = vunpack.c.l.b16 %v9474
      %v9543 = vunpack.c.h.b16 %v9474
      %v9544 = vunpack.c.l.b16 %v9475
      %v9545 = vunpack.c.h.b16 %v9475
      %v9546 = vunpack.c.l.b16 %v9476
      %v9547 = vunpack.c.h.b16 %v9476
      %v9548 = vunpack.c.l.b16 %v9477
      %v9549 = vunpack.c.h.b16 %v9477
      %v9550 = vunpack.c.l.b16 %v9478
      %v9551 = vunpack.c.h.b16 %v9478
      %v9552 = vunpack.c.l.b16 %v9479
      %v9553 = vunpack.c.h.b16 %v9479
      %v9554 = vunpack.c.l.b16 %v9480
      %v9555 = vunpack.c.h.b16 %v9480
      %v9556 = vunpack.c.l.b16 %v9481
      %v9557 = vunpack.c.h.b16 %v9481
      %v9558 = vunpack.c.l.b16 %v9482
      %v9559 = vunpack.c.h.b16 %v9482
      %v9560 = vunpack.c.l.b16 %v9483
      %v9561 = vunpack.c.h.b16 %v9483
      %v9562 = vunpack.c.l.b16 %v9484
      %v9563 = vunpack.c.h.b16 %v9484
      %v9564 = vunpack.c.l.b16 %v9485
      %v9565 = vunpack.c.h.b16 %v9485
      %v9566 = vunpack.c.l.b16 %v9486
      %v9567 = vunpack.c.h.b16 %v9486
      %v9568 = vunpack.c.l.b16 %v9487
      %v9569 = vunpack.c.h.b16 %v9487
      %v9570 = vunpack.c.l.b16 %v9488
      %v9571 = vunpack.c.h.b16 %v9488
      %v9572 = vunpack.c.l.b16 %v9489
      %v9573 = vunpack.c.h.b16 %v9489
      %v9574 = vunpack.c.l.b16 %v9490
      %v9575 = vunpack.c.h.b16 %v9490
      %v9576 = vunpack.c.l.b16 %v9491
      %v9577 = vunpack.c.h.b16 %v9491
      %v9578 = vunpack.c.l.b16 %v9492
      %v9579 = vunpack.c.h.b16 %v9492
      %v9580 = vunpack.c.l.b16 %v9493
      %v9581 = vunpack.c.h.b16 %v9493
      %v9582 = vunpack.c.l.b16 %v9494
      %v9583 = vunpack.c.h.b16 %v9494
      %v9584 = vunpack.c.l.b16 %v9495
      %v9585 = vunpack.c.h.b16 %v9495
      %v9586 = vunpack.c.l.b16 %v9496
      %v9587 = vunpack.c.h.b16 %v9496
      %v9588 = vunpack.c.l.b16 %v9497
      %v9589 = vunpack.c.h.b16 %v9497
      %v9590 = vunpack.c.l.b16 %v9498
      %v9591 = vunpack.c.h.b16 %v9498
      %v9592 = vunpack.c.l.b16 %v9499
      %v9593 = vunpack.c.h.b16 %v9499
      %v9594 = vunpack.c.l.b16 %v9500
      %v9595 = vunpack.c.h.b16 %v9500
      %v9596 = vunpack.c.l.b16 %v9501
      %v9597 = vunpack.c.h.b16 %v9501
      %v9598 = vpack.c.b16 %v9536, %v9534
      %v9599 = vpack.c.b16 %v9537, %v9535
      %v9600 = vpack.c.b16 %v9540, %v9538
      %v9601 = vpack.c.b16 %v9541, %v9539
      %v9602 = vpack.c.b16 %v9544, %v9542
      %v9603 = vpack.c.b16 %v9545, %v9543
      %v9604 = vpack.c.b16 %v9548, %v9546
      %v9605 = vpack.c.b16 %v9549, %v9547
      %v9606 = vpack.c.b16 %v9552, %v9550
      %v9607 = vpack.c.b16 %v9553, %v9551
      %v9608 = vpack.c.b16 %v9556, %v9554
      %v9609 = vpack.c.b16 %v9557, %v9555
      %v9610 = vpack.c.b16 %v9560, %v9558
      %v9611 = vpack.c.b16 %v9561, %v9559
      %v9612 = vpack.c.b16 %v9564, %v9562
      %v9613 = vpack.c.b16 %v9565, %v9563
      %v9614 = vpack.c.b16 %v9568, %v9566
      %v9615 = vpack.c.b16 %v9569, %v9567
      %v9616 = vpack.c.b16 %v9572, %v9570
      %v9617 = vpack.c.b16 %v9573, %v9571
      %v9618 = vpack.c.b16 %v9576, %v9574
      %v9619 = vpack.c.b16 %v9577, %v9575
      %v9620 = vpack.c.b16 %v9580, %v9578
      %v9621 = vpack.c.b16 %v9581, %v9579
      %v9622 = vpack.c.b16 %v9584, %v9582
      %v9623 = vpack.c.b16 %v9585, %v9583
      %v9624 = vpack.c.b16 %v9588, %v9586
      %v9625 = vpack.c.b16 %v9589, %v9587
      %v9626 = vpack.c.b16 %v9592, %v9590
      %v9627 = vpack.c.b16 %v9593, %v9591
      %v9628 = vpack.c.b16 %v9596, %v9594
      %v9629 = vpack.c.b16 %v9597, %v9595
      %9662 = vmatprep.subr.bf16.mxu0 %v9599
      %9663 = vmatpush1.bf16.msra.mxu0 %v9598
      %9664 = vmatprep.subr.bf16.mxu0 %v9601
      %9665 = vmatpush1.bf16.msra.mxu0 %v9600
      %9666 = vmatprep.subr.bf16.mxu0 %v9603
      %9667 = vmatpush1.bf16.msra.mxu0 %v9602
      %9668 = vmatprep.subr.bf16.mxu0 %v9605
      %9669 = vmatpush1.bf16.msra.mxu0 %v9604
      %9670 = vmatprep.subr.bf16.mxu0 %v9607
      %9671 = vmatpush1.bf16.msra.mxu0 %v9606
      %9672 = vmatprep.subr.bf16.mxu0 %v9609
      %9673 = vmatpush1.bf16.msra.mxu0 %v9608
      %9674 = vmatprep.subr.bf16.mxu0 %v9611
      %9675 = vmatpush1.bf16.msra.mxu0 %v9610
      %9676 = vmatprep.subr.bf16.mxu0 %v9613
      %9677 = vmatpush1.bf16.msra.mxu0 %v9612
      %9678 = vmatprep.subr.bf16.mxu0 %v9615
      %9679 = vmatpush1.bf16.msra.mxu0 %v9614
      %9680 = vmatprep.subr.bf16.mxu0 %v9617
      %9681 = vmatpush1.bf16.msra.mxu0 %v9616
      %9682 = vmatprep.subr.bf16.mxu0 %v9619
      %9683 = vmatpush1.bf16.msra.mxu0 %v9618
      %9684 = vmatprep.subr.bf16.mxu0 %v9621
      %9685 = vmatpush1.bf16.msra.mxu0 %v9620
      %9686 = vmatprep.subr.bf16.mxu0 %v9623
      %9687 = vmatpush1.bf16.msra.mxu0 %v9622
      %9688 = vmatprep.subr.bf16.mxu0 %v9625
      %9689 = vmatpush1.bf16.msra.mxu0 %v9624
      %9690 = vmatprep.subr.bf16.mxu0 %v9627
      %9691 = vmatpush1.bf16.msra.mxu0 %v9626
      %9692 = vmatprep.subr.bf16.mxu0 %v9629
      %9693 = vmatpush1.bf16.msra.mxu0 %v9628
      %9694 = vmatprep.mubr.bf16.mxu0 %v9468
      %9695 = vmatmul.mubr.bf16.gmra.mrb[0].mxu0 %v9467
      %v9696 = vpop.f32.mrb[0].mxu0
      %v9697 = vadd.f32 0.0, %v9696
      %v9698 = vpop.f32.mrb[0].mxu0
      %v9699 = vadd.f32 0.0, %v9698
      %v9700 = vpop.f32.mrb[0].mxu0
      %v9701 = vpop.f32.mrb[0].mxu0
      %9702 = vdwg.mxu0
      %v9735 = vunpack.c.l.b16 %v9389
      %v9736 = vunpack.c.h.b16 %v9389
      %v9737 = vunpack.c.l.b16 %v9390
      %v9738 = vunpack.c.h.b16 %v9390
      %v9739 = vunpack.c.l.b16 %v9391
      %v9740 = vunpack.c.h.b16 %v9391
      %v9741 = vunpack.c.l.b16 %v9392
      %v9742 = vunpack.c.h.b16 %v9392
      %v9743 = vunpack.c.l.b16 %v9393
      %v9744 = vunpack.c.h.b16 %v9393
      %v9745 = vunpack.c.l.b16 %v9394
      %v9746 = vunpack.c.h.b16 %v9394
      %v9747 = vunpack.c.l.b16 %v9395
      %v9748 = vunpack.c.h.b16 %v9395
      %v9749 = vunpack.c.l.b16 %v9396
      %v9750 = vunpack.c.h.b16 %v9396
      %v9751 = vunpack.c.l.b16 %v9397
      %v9752 = vunpack.c.h.b16 %v9397
      %v9753 = vunpack.c.l.b16 %v9398
      %v9754 = vunpack.c.h.b16 %v9398
      %v9755 = vunpack.c.l.b16 %v9399
      %v9756 = vunpack.c.h.b16 %v9399
      %v9757 = vunpack.c.l.b16 %v9400
      %v9758 = vunpack.c.h.b16 %v9400
      %v9759 = vunpack.c.l.b16 %v9401
      %v9760 = vunpack.c.h.b16 %v9401
      %v9761 = vunpack.c.l.b16 %v9402
      %v9762 = vunpack.c.h.b16 %v9402
      %v9763 = vunpack.c.l.b16 %v9403
      %v9764 = vunpack.c.h.b16 %v9403
      %v9765 = vunpack.c.l.b16 %v9404
      %v9766 = vunpack.c.h.b16 %v9404
      %v9767 = vunpack.c.l.b16 %v9405
      %v9768 = vunpack.c.h.b16 %v9405
      %v9769 = vunpack.c.l.b16 %v9406
      %v9770 = vunpack.c.h.b16 %v9406
      %v9771 = vunpack.c.l.b16 %v9407
      %v9772 = vunpack.c.h.b16 %v9407
      %v9773 = vunpack.c.l.b16 %v9408
      %v9774 = vunpack.c.h.b16 %v9408
      %v9775 = vunpack.c.l.b16 %v9409
      %v9776 = vunpack.c.h.b16 %v9409
      %v9777 = vunpack.c.l.b16 %v9410
      %v9778 = vunpack.c.h.b16 %v9410
      %v9779 = vunpack.c.l.b16 %v9411
      %v9780 = vunpack.c.h.b16 %v9411
      %v9781 = vunpack.c.l.b16 %v9412
      %v9782 = vunpack.c.h.b16 %v9412
      %v9783 = vunpack.c.l.b16 %v9413
      %v9784 = vunpack.c.h.b16 %v9413
      %v9785 = vunpack.c.l.b16 %v9414
      %v9786 = vunpack.c.h.b16 %v9414
      %v9787 = vunpack.c.l.b16 %v9415
      %v9788 = vunpack.c.h.b16 %v9415
      %v9789 = vunpack.c.l.b16 %v9416
      %v9790 = vunpack.c.h.b16 %v9416
      %v9791 = vunpack.c.l.b16 %v9417
      %v9792 = vunpack.c.h.b16 %v9417
      %v9793 = vunpack.c.l.b16 %v9418
      %v9794 = vunpack.c.h.b16 %v9418
      %v9795 = vunpack.c.l.b16 %v9419
      %v9796 = vunpack.c.h.b16 %v9419
      %v9797 = vunpack.c.l.b16 %v9420
      %v9798 = vunpack.c.h.b16 %v9420
      %v9799 = vpack.c.b16 %v9737, %v9735
      %v9800 = vpack.c.b16 %v9738, %v9736
      %v9801 = vpack.c.b16 %v9741, %v9739
      %v9802 = vpack.c.b16 %v9742, %v9740
      %v9803 = vpack.c.b16 %v9745, %v9743
      %v9804 = vpack.c.b16 %v9746, %v9744
      %v9805 = vpack.c.b16 %v9749, %v9747
      %v9806 = vpack.c.b16 %v9750, %v9748
      %v9807 = vpack.c.b16 %v9753, %v9751
      %v9808 = vpack.c.b16 %v9754, %v9752
      %v9809 = vpack.c.b16 %v9757, %v9755
      %v9810 = vpack.c.b16 %v9758, %v9756
      %v9811 = vpack.c.b16 %v9761, %v9759
      %v9812 = vpack.c.b16 %v9762, %v9760
      %v9813 = vpack.c.b16 %v9765, %v9763
      %v9814 = vpack.c.b16 %v9766, %v9764
      %v9815 = vpack.c.b16 %v9769, %v9767
      %v9816 = vpack.c.b16 %v9770, %v9768
      %v9817 = vpack.c.b16 %v9773, %v9771
      %v9818 = vpack.c.b16 %v9774, %v9772
      %v9819 = vpack.c.b16 %v9777, %v9775
      %v9820 = vpack.c.b16 %v9778, %v9776
      %v9821 = vpack.c.b16 %v9781, %v9779
      %v9822 = vpack.c.b16 %v9782, %v9780
      %v9823 = vpack.c.b16 %v9785, %v9783
      %v9824 = vpack.c.b16 %v9786, %v9784
      %v9825 = vpack.c.b16 %v9789, %v9787
      %v9826 = vpack.c.b16 %v9790, %v9788
      %v9827 = vpack.c.b16 %v9793, %v9791
      %v9828 = vpack.c.b16 %v9794, %v9792
      %v9829 = vpack.c.b16 %v9797, %v9795
      %v9830 = vpack.c.b16 %v9798, %v9796
      %9863 = vmatprep.subr.bf16.mxu0 %v9800
      %9864 = vmatpush1.bf16.msra.mxu0 %v9799
      %9865 = vmatprep.subr.bf16.mxu0 %v9802
      %9866 = vmatpush1.bf16.msra.mxu0 %v9801
      %9867 = vmatprep.subr.bf16.mxu0 %v9804
      %9868 = vmatpush1.bf16.msra.mxu0 %v9803
      %9869 = vmatprep.subr.bf16.mxu0 %v9806
      %9870 = vmatpush1.bf16.msra.mxu0 %v9805
      %9871 = vmatprep.subr.bf16.mxu0 %v9808
      %9872 = vmatpush1.bf16.msra.mxu0 %v9807
      %9873 = vmatprep.subr.bf16.mxu0 %v9810
      %9874 = vmatpush1.bf16.msra.mxu0 %v9809
      %9875 = vmatprep.subr.bf16.mxu0 %v9812
      %9876 = vmatpush1.bf16.msra.mxu0 %v9811
      %9877 = vmatprep.subr.bf16.mxu0 %v9814
      %9878 = vmatpush1.bf16.msra.mxu0 %v9813
      %9879 = vmatprep.subr.bf16.mxu0 %v9816
      %9880 = vmatpush1.bf16.msra.mxu0 %v9815
      %9881 = vmatprep.subr.bf16.mxu0 %v9818
      %9882 = vmatpush1.bf16.msra.mxu0 %v9817
      %9883 = vmatprep.subr.bf16.mxu0 %v9820
      %9884 = vmatpush1.bf16.msra.mxu0 %v9819
      %9885 = vmatprep.subr.bf16.mxu0 %v9822
      %9886 = vmatpush1.bf16.msra.mxu0 %v9821
      %9887 = vmatprep.subr.bf16.mxu0 %v9824
      %9888 = vmatpush1.bf16.msra.mxu0 %v9823
      %9889 = vmatprep.subr.bf16.mxu0 %v9826
      %9890 = vmatpush1.bf16.msra.mxu0 %v9825
      %9891 = vmatprep.subr.bf16.mxu0 %v9828
      %9892 = vmatpush1.bf16.msra.mxu0 %v9827
      %9893 = vmatprep.subr.bf16.mxu0 %v9830
      %9894 = vmatpush1.bf16.msra.mxu0 %v9829
      %9895 = vmatprep.mubr.bf16.mxu0 %v9388
      %9896 = vmatmul.mubr.bf16.gmra.mrb[0].mxu0 %v9387
      %v9897 = vpop.f32.mrb[0].mxu0
      %v9898 = vadd.f32 %v9697, %v9897
      %v9899 = vpop.f32.mrb[0].mxu0
      %v9900 = vadd.f32 %v9699, %v9899
      %v9901 = vpop.f32.mrb[0].mxu0
      %v9902 = vpop.f32.mrb[0].mxu0
      %9903 = vdwg.mxu0
      %s9904 = scalar_lea.vmem %s13, 4
      %v9905 = vld [vmem:[%s9904] sm:$0x3]
      %v9907 = vsel %vm9342, %v9905, 0
      %9909 = vmatprep.subr.bf16.mxu0 %v9340
      %9910 = vmatpush1.bf16.msra.mxu0 %v9339
      %9911 = vmatprep.subr.bf16.mxu0 0
      %9912 = vmatpush1.bf16.msra.mxu0 0
      %9913 = vmatprep.subr.bf16.mxu0 0
      %9914 = vmatpush1.bf16.msra.mxu0 0
      %9915 = vmatprep.subr.bf16.mxu0 0
      %9916 = vmatpush1.bf16.msra.mxu0 0
      %9917 = vmatprep.subr.bf16.mxu0 0
      %9918 = vmatpush1.bf16.msra.mxu0 0
      %9919 = vmatprep.subr.bf16.mxu0 0
      %9920 = vmatpush1.bf16.msra.mxu0 0
      %9921 = vmatprep.subr.bf16.mxu0 0
      %9922 = vmatpush1.bf16.msra.mxu0 0
      %9923 = vmatprep.subr.bf16.mxu0 0
      %9924 = vmatpush1.bf16.msra.mxu0 0
      %9925 = vmatprep.subr.bf16.mxu0 0
      %9926 = vmatpush1.bf16.msra.mxu0 0
      %9927 = vmatprep.subr.bf16.mxu0 0
      %9928 = vmatpush1.bf16.msra.mxu0 0
      %9929 = vmatprep.subr.bf16.mxu0 0
      %9930 = vmatpush1.bf16.msra.mxu0 0
      %9931 = vmatprep.subr.bf16.mxu0 0
      %9932 = vmatpush1.bf16.msra.mxu0 0
      %9933 = vmatprep.subr.bf16.mxu0 0
      %9934 = vmatpush1.bf16.msra.mxu0 0
      %9935 = vmatprep.subr.bf16.mxu0 0
      %9936 = vmatpush1.bf16.msra.mxu0 0
      %9937 = vmatprep.subr.bf16.mxu0 0
      %9938 = vmatpush1.bf16.msra.mxu0 0
      %9939 = vmatprep.subr.bf16.mxu0 0
      %9940 = vmatpush1.bf16.msra.mxu0 0
      %9941 = vmatprep.mubr.bf16.mxu0 0
      %9942 = vmatmul.mubr.bf16.gmra.mrb[0].mxu0 %v9907
      %v9943 = vpop.f32.mrb[0].mxu0
      %v9944 = vadd.f32 0.0, %v9943
      %v9945 = vpop.f32.mrb[0].mxu0
      %v9946 = vadd.f32 0.0, %v9945
      %v9947 = vpop.f32.mrb[0].mxu0
      %v9948 = vpop.f32.mrb[0].mxu0
      %9949 = vdwg.mxu0
      %v9950 = vpack.c.bf16 %v9944, %v9944
      %v9951 = vpack.c.bf16 %v9946, %v9946
      %s9952 = scalar_lea.vmem %s14, 512
      %v9953 = vld [vmem:[%s9952] sm:$0xff]
      %v9954 = vld [vmem:[%s9952 + $0x8] sm:$0xff]
      %v9955 = vld [vmem:[%s9952 + $0x10] sm:$0xff]
      %v9956 = vld [vmem:[%s9952 + $0x18] sm:$0xff]
      %v9957 = vld [vmem:[%s9952 + $0x20] sm:$0xff]
      %v9958 = vld [vmem:[%s9952 + $0x28] sm:$0xff]
      %v9959 = vld [vmem:[%s9952 + $0x30] sm:$0xff]
      %v9960 = vld [vmem:[%s9952 + $0x38] sm:$0xff]
      %v9961 = vld [vmem:[%s9952 + $0x40] sm:$0xff]
      %v9962 = vld [vmem:[%s9952 + $0x48] sm:$0xff]
      %v9963 = vld [vmem:[%s9952 + $0x50] sm:$0xff]
      %v9964 = vld [vmem:[%s9952 + $0x58] sm:$0xff]
      %v9965 = vld [vmem:[%s9952 + $0x60] sm:$0xff]
      %v9966 = vld [vmem:[%s9952 + $0x68] sm:$0xff]
      %v9967 = vld [vmem:[%s9952 + $0x70] sm:$0xff]
      %v9968 = vld [vmem:[%s9952 + $0x78] sm:$0xff]
      %v9969 = vld [vmem:[%s9952 + $0x80] sm:$0xff]
      %v9970 = vld [vmem:[%s9952 + $0x88] sm:$0xff]
      %v9971 = vld [vmem:[%s9952 + $0x90] sm:$0xff]
      %v9972 = vld [vmem:[%s9952 + $0x98] sm:$0xff]
      %v9973 = vld [vmem:[%s9952 + $0xa0] sm:$0xff]
      %v9974 = vld [vmem:[%s9952 + $0xa8] sm:$0xff]
      %v9975 = vld [vmem:[%s9952 + $0xb0] sm:$0xff]
      %v9976 = vld [vmem:[%s9952 + $0xb8] sm:$0xff]
      %v9977 = vld [vmem:[%s9952 + $0xc0] sm:$0xff]
      %v9978 = vld [vmem:[%s9952 + $0xc8] sm:$0xff]
      %v9979 = vld [vmem:[%s9952 + $0xd0] sm:$0xff]
      %v9980 = vld [vmem:[%s9952 + $0xd8] sm:$0xff]
      %v9981 = vld [vmem:[%s9952 + $0xe0] sm:$0xff]
      %v9982 = vld [vmem:[%s9952 + $0xe8] sm:$0xff]
      %v9983 = vld [vmem:[%s9952 + $0xf0] sm:$0xff]
      %v9984 = vld [vmem:[%s9952 + $0xf8] sm:$0xff]
      %v10017 = vunpack.c.l.b16 %v9953
      %v10018 = vunpack.c.h.b16 %v9953
      %v10019 = vunpack.c.l.b16 %v9954
      %v10020 = vunpack.c.h.b16 %v9954
      %v10021 = vunpack.c.l.b16 %v9955
      %v10022 = vunpack.c.h.b16 %v9955
      %v10023 = vunpack.c.l.b16 %v9956
      %v10024 = vunpack.c.h.b16 %v9956
      %v10025 = vunpack.c.l.b16 %v9957
      %v10026 = vunpack.c.h.b16 %v9957
      %v10027 = vunpack.c.l.b16 %v9958
      %v10028 = vunpack.c.h.b16 %v9958
      %v10029 = vunpack.c.l.b16 %v9959
      %v10030 = vunpack.c.h.b16 %v9959
      %v10031 = vunpack.c.l.b16 %v9960
      %v10032 = vunpack.c.h.b16 %v9960
      %v10033 = vunpack.c.l.b16 %v9961
      %v10034 = vunpack.c.h.b16 %v9961
      %v10035 = vunpack.c.l.b16 %v9962
      %v10036 = vunpack.c.h.b16 %v9962
      %v10037 = vunpack.c.l.b16 %v9963
      %v10038 = vunpack.c.h.b16 %v9963
      %v10039 = vunpack.c.l.b16 %v9964
      %v10040 = vunpack.c.h.b16 %v9964
      %v10041 = vunpack.c.l.b16 %v9965
      %v10042 = vunpack.c.h.b16 %v9965
      %v10043 = vunpack.c.l.b16 %v9966
      %v10044 = vunpack.c.h.b16 %v9966
      %v10045 = vunpack.c.l.b16 %v9967
      %v10046 = vunpack.c.h.b16 %v9967
      %v10047 = vunpack.c.l.b16 %v9968
      %v10048 = vunpack.c.h.b16 %v9968
      %v10049 = vunpack.c.l.b16 %v9969
      %v10050 = vunpack.c.h.b16 %v9969
      %v10051 = vunpack.c.l.b16 %v9970
      %v10052 = vunpack.c.h.b16 %v9970
      %v10053 = vunpack.c.l.b16 %v9971
      %v10054 = vunpack.c.h.b16 %v9971
      %v10055 = vunpack.c.l.b16 %v9972
      %v10056 = vunpack.c.h.b16 %v9972
      %v10057 = vunpack.c.l.b16 %v9973
      %v10058 = vunpack.c.h.b16 %v9973
      %v10059 = vunpack.c.l.b16 %v9974
      %v10060 = vunpack.c.h.b16 %v9974
      %v10061 = vunpack.c.l.b16 %v9975
      %v10062 = vunpack.c.h.b16 %v9975
      %v10063 = vunpack.c.l.b16 %v9976
      %v10064 = vunpack.c.h.b16 %v9976
      %v10065 = vunpack.c.l.b16 %v9977
      %v10066 = vunpack.c.h.b16 %v9977
      %v10067 = vunpack.c.l.b16 %v9978
      %v10068 = vunpack.c.h.b16 %v9978
      %v10069 = vunpack.c.l.b16 %v9979
      %v10070 = vunpack.c.h.b16 %v9979
      %v10071 = vunpack.c.l.b16 %v9980
      %v10072 = vunpack.c.h.b16 %v9980
      %v10073 = vunpack.c.l.b16 %v9981
      %v10074 = vunpack.c.h.b16 %v9981
      %v10075 = vunpack.c.l.b16 %v9982
      %v10076 = vunpack.c.h.b16 %v9982
      %v10077 = vunpack.c.l.b16 %v9983
      %v10078 = vunpack.c.h.b16 %v9983
      %v10079 = vunpack.c.l.b16 %v9984
      %v10080 = vunpack.c.h.b16 %v9984
      %v10081 = vpack.c.b16 %v10019, %v10017
      %v10082 = vpack.c.b16 %v10020, %v10018
      %v10083 = vpack.c.b16 %v10023, %v10021
      %v10084 = vpack.c.b16 %v10024, %v10022
      %v10085 = vpack.c.b16 %v10027, %v10025
      %v10086 = vpack.c.b16 %v10028, %v10026
      %v10087 = vpack.c.b16 %v10031, %v10029
      %v10088 = vpack.c.b16 %v10032, %v10030
      %v10089 = vpack.c.b16 %v10035, %v10033
      %v10090 = vpack.c.b16 %v10036, %v10034
      %v10091 = vpack.c.b16 %v10039, %v10037
      %v10092 = vpack.c.b16 %v10040, %v10038
      %v10093 = vpack.c.b16 %v10043, %v10041
      %v10094 = vpack.c.b16 %v10044, %v10042
      %v10095 = vpack.c.b16 %v10047, %v10045
      %v10096 = vpack.c.b16 %v10048, %v10046
      %v10097 = vpack.c.b16 %v10051, %v10049
      %v10098 = vpack.c.b16 %v10052, %v10050
      %v10099 = vpack.c.b16 %v10055, %v10053
      %v10100 = vpack.c.b16 %v10056, %v10054
      %v10101 = vpack.c.b16 %v10059, %v10057
      %v10102 = vpack.c.b16 %v10060, %v10058
      %v10103 = vpack.c.b16 %v10063, %v10061
      %v10104 = vpack.c.b16 %v10064, %v10062
      %v10105 = vpack.c.b16 %v10067, %v10065
      %v10106 = vpack.c.b16 %v10068, %v10066
      %v10107 = vpack.c.b16 %v10071, %v10069
      %v10108 = vpack.c.b16 %v10072, %v10070
      %v10109 = vpack.c.b16 %v10075, %v10073
      %v10110 = vpack.c.b16 %v10076, %v10074
      %v10111 = vpack.c.b16 %v10079, %v10077
      %v10112 = vpack.c.b16 %v10080, %v10078
      %10145 = vmatprep.subr.bf16.mxu0 %v10082
      %10146 = vmatpush1.bf16.msra.mxu0 %v10081
      %10147 = vmatprep.subr.bf16.mxu0 %v10084
      %10148 = vmatpush1.bf16.msra.mxu0 %v10083
      %10149 = vmatprep.subr.bf16.mxu0 %v10086
      %10150 = vmatpush1.bf16.msra.mxu0 %v10085
      %10151 = vmatprep.subr.bf16.mxu0 %v10088
      %10152 = vmatpush1.bf16.msra.mxu0 %v10087
      %10153 = vmatprep.subr.bf16.mxu0 %v10090
      %10154 = vmatpush1.bf16.msra.mxu0 %v10089
      %10155 = vmatprep.subr.bf16.mxu0 %v10092
      %10156 = vmatpush1.bf16.msra.mxu0 %v10091
      %10157 = vmatprep.subr.bf16.mxu0 %v10094
      %10158 = vmatpush1.bf16.msra.mxu0 %v10093
      %10159 = vmatprep.subr.bf16.mxu0 %v10096
      %10160 = vmatpush1.bf16.msra.mxu0 %v10095
      %10161 = vmatprep.subr.bf16.mxu0 %v10098
      %10162 = vmatpush1.bf16.msra.mxu0 %v10097
      %10163 = vmatprep.subr.bf16.mxu0 %v10100
      %10164 = vmatpush1.bf16.msra.mxu0 %v10099
      %10165 = vmatprep.subr.bf16.mxu0 %v10102
      %10166 = vmatpush1.bf16.msra.mxu0 %v10101
      %10167 = vmatprep.subr.bf16.mxu0 %v10104
      %10168 = vmatpush1.bf16.msra.mxu0 %v10103
      %10169 = vmatprep.subr.bf16.mxu0 %v10106
      %10170 = vmatpush1.bf16.msra.mxu0 %v10105
      %10171 = vmatprep.subr.bf16.mxu0 %v10108
      %10172 = vmatpush1.bf16.msra.mxu0 %v10107
      %10173 = vmatprep.subr.bf16.mxu0 %v10110
      %10174 = vmatpush1.bf16.msra.mxu0 %v10109
      %10175 = vmatprep.subr.bf16.mxu0 %v10112
      %10176 = vmatpush1.bf16.msra.mxu0 %v10111
      %10177 = vmatprep.mubr.bf16.mxu0 %v9951
      %10178 = vmatmul.mubr.bf16.gmra.mrb[0].mxu0 %v9950
      %v10179 = vpop.f32.mrb[0].mxu0
      %v10180 = vadd.f32 0.0, %v10179
      %v10181 = vpop.f32.mrb[0].mxu0
      %v10182 = vadd.f32 0.0, %v10181
      %v10183 = vpop.f32.mrb[0].mxu0
      %v10184 = vpop.f32.mrb[0].mxu0
      %10185 = vdwg.mxu0
      %v10186 = vadd.f32 %v9898, %v10180
      %v10187 = vadd.f32 %v9900, %v10182
      %s10188 = scalar_lea.vmem %s13, 6
      %v10189 = vld [vmem:[%s10188] sm:$0x3]
      %v10191 = vsel %vm9342, %v10189, 0
      %10193 = vmatprep.subr.bf16.mxu0 %v9340
      %10194 = vmatpush1.bf16.msra.mxu0 %v9339
      %10195 = vmatprep.subr.bf16.mxu0 0
      %10196 = vmatpush1.bf16.msra.mxu0 0
      %10197 = vmatprep.subr.bf16.mxu0 0
      %10198 = vmatpush1.bf16.msra.mxu0 0
      %10199 = vmatprep.subr.bf16.mxu0 0
      %10200 = vmatpush1.bf16.msra.mxu0 0
      %10201 = vmatprep.subr.bf16.mxu0 0
      %10202 = vmatpush1.bf16.msra.mxu0 0
      %10203 = vmatprep.subr.bf16.mxu0 0
      %10204 = vmatpush1.bf16.msra.mxu0 0
      %10205 = vmatprep.subr.bf16.mxu0 0
      %10206 = vmatpush1.bf16.msra.mxu0 0
      %10207 = vmatprep.subr.bf16.mxu0 0
      %10208 = vmatpush1.bf16.msra.mxu0 0
      %10209 = vmatprep.subr.bf16.mxu0 0
      %10210 = vmatpush1.bf16.msra.mxu0 0
      %10211 = vmatprep.subr.bf16.mxu0 0
      %10212 = vmatpush1.bf16.msra.mxu0 0
      %10213 = vmatprep.subr.bf16.mxu0 0
      %10214 = vmatpush1.bf16.msra.mxu0 0
      %10215 = vmatprep.subr.bf16.mxu0 0
      %10216 = vmatpush1.bf16.msra.mxu0 0
      %10217 = vmatprep.subr.bf16.mxu0 0
      %10218 = vmatpush1.bf16.msra.mxu0 0
      %10219 = vmatprep.subr.bf16.mxu0 0
      %10220 = vmatpush1.bf16.msra.mxu0 0
      %10221 = vmatprep.subr.bf16.mxu0 0
      %10222 = vmatpush1.bf16.msra.mxu0 0
      %10223 = vmatprep.subr.bf16.mxu0 0
      %10224 = vmatpush1.bf16.msra.mxu0 0
      %10225 = vmatprep.mubr.bf16.mxu0 0
      %10226 = vmatmul.mubr.bf16.gmra.mrb[0].mxu0 %v10191
      %v10227 = vpop.f32.mrb[0].mxu0
      %v10228 = vadd.f32 0.0, %v10227
      %v10229 = vpop.f32.mrb[0].mxu0
      %v10230 = vadd.f32 0.0, %v10229
      %v10231 = vpop.f32.mrb[0].mxu0
      %v10232 = vpop.f32.mrb[0].mxu0
      %10233 = vdwg.mxu0
      %v10234 = vpack.c.bf16 %v10228, %v10228
      %v10235 = vpack.c.bf16 %v10230, %v10230
      %s10236 = scalar_lea.vmem %s14, 768
      %v10237 = vld [vmem:[%s10236] sm:$0xff]
      %v10238 = vld [vmem:[%s10236 + $0x8] sm:$0xff]
      %v10239 = vld [vmem:[%s10236 + $0x10] sm:$0xff]
      %v10240 = vld [vmem:[%s10236 + $0x18] sm:$0xff]
      %v10241 = vld [vmem:[%s10236 + $0x20] sm:$0xff]
      %v10242 = vld [vmem:[%s10236 + $0x28] sm:$0xff]
      %v10243 = vld [vmem:[%s10236 + $0x30] sm:$0xff]
      %v10244 = vld [vmem:[%s10236 + $0x38] sm:$0xff]
      %v10245 = vld [vmem:[%s10236 + $0x40] sm:$0xff]
      %v10246 = vld [vmem:[%s10236 + $0x48] sm:$0xff]
      %v10247 = vld [vmem:[%s10236 + $0x50] sm:$0xff]
      %v10248 = vld [vmem:[%s10236 + $0x58] sm:$0xff]
      %v10249 = vld [vmem:[%s10236 + $0x60] sm:$0xff]
      %v10250 = vld [vmem:[%s10236 + $0x68] sm:$0xff]
      %v10251 = vld [vmem:[%s10236 + $0x70] sm:$0xff]
      %v10252 = vld [vmem:[%s10236 + $0x78] sm:$0xff]
      %v10253 = vld [vmem:[%s10236 + $0x80] sm:$0xff]
      %v10254 = vld [vmem:[%s10236 + $0x88] sm:$0xff]
      %v10255 = vld [vmem:[%s10236 + $0x90] sm:$0xff]
      %v10256 = vld [vmem:[%s10236 + $0x98] sm:$0xff]
      %v10257 = vld [vmem:[%s10236 + $0xa0] sm:$0xff]
      %v10258 = vld [vmem:[%s10236 + $0xa8] sm:$0xff]
      %v10259 = vld [vmem:[%s10236 + $0xb0] sm:$0xff]
      %v10260 = vld [vmem:[%s10236 + $0xb8] sm:$0xff]
      %v10261 = vld [vmem:[%s10236 + $0xc0] sm:$0xff]
      %v10262 = vld [vmem:[%s10236 + $0xc8] sm:$0xff]
      %v10263 = vld [vmem:[%s10236 + $0xd0] sm:$0xff]
      %v10264 = vld [vmem:[%s10236 + $0xd8] sm:$0xff]
      %v10265 = vld [vmem:[%s10236 + $0xe0] sm:$0xff]
      %v10266 = vld [vmem:[%s10236 + $0xe8] sm:$0xff]
      %v10267 = vld [vmem:[%s10236 + $0xf0] sm:$0xff]
      %v10268 = vld [vmem:[%s10236 + $0xf8] sm:$0xff]
      %v10301 = vunpack.c.l.b16 %v10237
      %v10302 = vunpack.c.h.b16 %v10237
      %v10303 = vunpack.c.l.b16 %v10238
      %v10304 = vunpack.c.h.b16 %v10238
      %v10305 = vunpack.c.l.b16 %v10239
      %v10306 = vunpack.c.h.b16 %v10239
      %v10307 = vunpack.c.l.b16 %v10240
      %v10308 = vunpack.c.h.b16 %v10240
      %v10309 = vunpack.c.l.b16 %v10241
      %v10310 = vunpack.c.h.b16 %v10241
      %v10311 = vunpack.c.l.b16 %v10242
      %v10312 = vunpack.c.h.b16 %v10242
      %v10313 = vunpack.c.l.b16 %v10243
      %v10314 = vunpack.c.h.b16 %v10243
      %v10315 = vunpack.c.l.b16 %v10244
      %v10316 = vunpack.c.h.b16 %v10244
      %v10317 = vunpack.c.l.b16 %v10245
      %v10318 = vunpack.c.h.b16 %v10245
      %v10319 = vunpack.c.l.b16 %v10246
      %v10320 = vunpack.c.h.b16 %v10246
      %v10321 = vunpack.c.l.b16 %v10247
      %v10322 = vunpack.c.h.b16 %v10247
      %v10323 = vunpack.c.l.b16 %v10248
      %v10324 = vunpack.c.h.b16 %v10248
      %v10325 = vunpack.c.l.b16 %v10249
      %v10326 = vunpack.c.h.b16 %v10249
      %v10327 = vunpack.c.l.b16 %v10250
      %v10328 = vunpack.c.h.b16 %v10250
      %v10329 = vunpack.c.l.b16 %v10251
      %v10330 = vunpack.c.h.b16 %v10251
      %v10331 = vunpack.c.l.b16 %v10252
      %v10332 = vunpack.c.h.b16 %v10252
      %v10333 = vunpack.c.l.b16 %v10253
      %v10334 = vunpack.c.h.b16 %v10253
      %v10335 = vunpack.c.l.b16 %v10254
      %v10336 = vunpack.c.h.b16 %v10254
      %v10337 = vunpack.c.l.b16 %v10255
      %v10338 = vunpack.c.h.b16 %v10255
      %v10339 = vunpack.c.l.b16 %v10256
      %v10340 = vunpack.c.h.b16 %v10256
      %v10341 = vunpack.c.l.b16 %v10257
      %v10342 = vunpack.c.h.b16 %v10257
      %v10343 = vunpack.c.l.b16 %v10258
      %v10344 = vunpack.c.h.b16 %v10258
      %v10345 = vunpack.c.l.b16 %v10259
      %v10346 = vunpack.c.h.b16 %v10259
      %v10347 = vunpack.c.l.b16 %v10260
      %v10348 = vunpack.c.h.b16 %v10260
      %v10349 = vunpack.c.l.b16 %v10261
      %v10350 = vunpack.c.h.b16 %v10261
      %v10351 = vunpack.c.l.b16 %v10262
      %v10352 = vunpack.c.h.b16 %v10262
      %v10353 = vunpack.c.l.b16 %v10263
      %v10354 = vunpack.c.h.b16 %v10263
      %v10355 = vunpack.c.l.b16 %v10264
      %v10356 = vunpack.c.h.b16 %v10264
      %v10357 = vunpack.c.l.b16 %v10265
      %v10358 = vunpack.c.h.b16 %v10265
      %v10359 = vunpack.c.l.b16 %v10266
      %v10360 = vunpack.c.h.b16 %v10266
      %v10361 = vunpack.c.l.b16 %v10267
      %v10362 = vunpack.c.h.b16 %v10267
      %v10363 = vunpack.c.l.b16 %v10268
      %v10364 = vunpack.c.h.b16 %v10268
      %v10365 = vpack.c.b16 %v10303, %v10301
      %v10366 = vpack.c.b16 %v10304, %v10302
      %v10367 = vpack.c.b16 %v10307, %v10305
      %v10368 = vpack.c.b16 %v10308, %v10306
      %v10369 = vpack.c.b16 %v10311, %v10309
      %v10370 = vpack.c.b16 %v10312, %v10310
      %v10371 = vpack.c.b16 %v10315, %v10313
      %v10372 = vpack.c.b16 %v10316, %v10314
      %v10373 = vpack.c.b16 %v10319, %v10317
      %v10374 = vpack.c.b16 %v10320, %v10318
      %v10375 = vpack.c.b16 %v10323, %v10321
      %v10376 = vpack.c.b16 %v10324, %v10322
      %v10377 = vpack.c.b16 %v10327, %v10325
      %v10378 = vpack.c.b16 %v10328, %v10326
      %v10379 = vpack.c.b16 %v10331, %v10329
      %v10380 = vpack.c.b16 %v10332, %v10330
      %v10381 = vpack.c.b16 %v10335, %v10333
      %v10382 = vpack.c.b16 %v10336, %v10334
      %v10383 = vpack.c.b16 %v10339, %v10337
      %v10384 = vpack.c.b16 %v10340, %v10338
      %v10385 = vpack.c.b16 %v10343, %v10341
      %v10386 = vpack.c.b16 %v10344, %v10342
      %v10387 = vpack.c.b16 %v10347, %v10345
      %v10388 = vpack.c.b16 %v10348, %v10346
      %v10389 = vpack.c.b16 %v10351, %v10349
      %v10390 = vpack.c.b16 %v10352, %v10350
      %v10391 = vpack.c.b16 %v10355, %v10353
      %v10392 = vpack.c.b16 %v10356, %v10354
      %v10393 = vpack.c.b16 %v10359, %v10357
      %v10394 = vpack.c.b16 %v10360, %v10358
      %v10395 = vpack.c.b16 %v10363, %v10361
      %v10396 = vpack.c.b16 %v10364, %v10362
      %10429 = vmatprep.subr.bf16.mxu0 %v10366
      %10430 = vmatpush1.bf16.msra.mxu0 %v10365
      %10431 = vmatprep.subr.bf16.mxu0 %v10368
      %10432 = vmatpush1.bf16.msra.mxu0 %v10367
      %10433 = vmatprep.subr.bf16.mxu0 %v10370
      %10434 = vmatpush1.bf16.msra.mxu0 %v10369
      %10435 = vmatprep.subr.bf16.mxu0 %v10372
      %10436 = vmatpush1.bf16.msra.mxu0 %v10371
      %10437 = vmatprep.subr.bf16.mxu0 %v10374
      %10438 = vmatpush1.bf16.msra.mxu0 %v10373
      %10439 = vmatprep.subr.bf16.mxu0 %v10376
      %10440 = vmatpush1.bf16.msra.mxu0 %v10375
      %10441 = vmatprep.subr.bf16.mxu0 %v10378
      %10442 = vmatpush1.bf16.msra.mxu0 %v10377
      %10443 = vmatprep.subr.bf16.mxu0 %v10380
      %10444 = vmatpush1.bf16.msra.mxu0 %v10379
      %10445 = vmatprep.subr.bf16.mxu0 %v10382
      %10446 = vmatpush1.bf16.msra.mxu0 %v10381
      %10447 = vmatprep.subr.bf16.mxu0 %v10384
      %10448 = vmatpush1.bf16.msra.mxu0 %v10383
      %10449 = vmatprep.subr.bf16.mxu0 %v10386
      %10450 = vmatpush1.bf16.msra.mxu0 %v10385
      %10451 = vmatprep.subr.bf16.mxu0 %v10388
      %10452 = vmatpush1.bf16.msra.mxu0 %v10387
      %10453 = vmatprep.subr.bf16.mxu0 %v10390
      %10454 = vmatpush1.bf16.msra.mxu0 %v10389
      %10455 = vmatprep.subr.bf16.mxu0 %v10392
      %10456 = vmatpush1.bf16.msra.mxu0 %v10391
      %10457 = vmatprep.subr.bf16.mxu0 %v10394
      %10458 = vmatpush1.bf16.msra.mxu0 %v10393
      %10459 = vmatprep.subr.bf16.mxu0 %v10396
      %10460 = vmatpush1.bf16.msra.mxu0 %v10395
      %10461 = vmatprep.mubr.bf16.mxu0 %v10235
      %10462 = vmatmul.mubr.bf16.gmra.mrb[0].mxu0 %v10234
      %v10463 = vpop.f32.mrb[0].mxu0
      %v10464 = vadd.f32 0.0, %v10463
      %v10465 = vpop.f32.mrb[0].mxu0
      %v10466 = vadd.f32 0.0, %v10465
      %v10467 = vpop.f32.mrb[0].mxu0
      %v10468 = vpop.f32.mrb[0].mxu0
      %10469 = vdwg.mxu0
      %v10470 = vadd.f32 %v10186, %v10464
      %v10471 = vadd.f32 %v10187, %v10466
      %v10472 = vld [vmem:[%s15] sm:$0x3]
      %v10474 = vlaneseq
      %v10475 = vshrl.u32 %v10474, 7
      %v10476 = vsub.s32 0, %v10475
      %v10477 = vrot.slane %v10472, %v10476
      %v10478 = vlaneseq
      %v10479 = vshrl.u32 %v10478, 7
      %v10480 = vsub.s32 1, %v10479
      %v10481 = vrot.slane %v10472, %v10480
      %v10484 = vadd.f32 %v10470, %v10477
      %v10485 = vadd.f32 %v10471, %v10481
      %v10486 = vmax.f32 %v10484, 0.0
      %v10487 = vmax.f32 %v10485, 0.0
      %v10488 = vpack.c.bf16 %v10486, %v10486
      %v10489 = vpack.c.bf16 %v10487, %v10487
      %v10492 = vunpack.c.l.b16 %v10488
      %v10493 = vunpack.c.l.b16 %v10489
      %v10494 = vpack.c.b16 %v10493, %v10492
      %10496 = vst [vmem:[#allocation6] sm:$0x33] %v10494
      %v10497 = vld [vmem:[#allocation6] sm:$0xff]
      %v10498 = vunpack.c.l.bf16 %v10497
      %v10499 = vunpack.c.h.bf16 %v10497
      %v10500 = vld [vmem:[%s16] sm:$0xf]
      %v10501 = vunpack.c.l.bf16 %v10500
      %v10503 = vcombine.high %v10501, %v10501
      %v10505 = vmul.f32 %v10498, %v10501
      %v10506 = vmul.f32 %v10499, %v10503
      %v10507 = vsel %vm701, %v10505, 0.0
      %v10508 = vsel %vm701, %v10506, 0.0
      %v10509 = vadd.f32 %v10507, %v10508
      %10510 = vadd.xlane.f32.xlu0 %v10509
      %v10511 = vpop.xlane.xlu0 %10510
      %v10512 = vsel %vm701, %v10511, 0.0
      %v10513 = vrot.slane %v10512, 4
      %v10514 = vadd.f32 %v10512, %v10513
      %v10515 = vrot.slane %v10514, 2
      %v10516 = vadd.f32 %v10514, %v10515
      %v10517 = vrot.slane %v10516, 1
      %v10518 = vadd.f32 %v10516, %v10517
      %v10519 = vld [vmem:[#allocation7] sm:$0x1]
      %v10520 = vadd.f32 %v10518, %v10519
      %v10521 = vmax.f32 %v10520, 0.0
      %v10523 = vlaneseq
      %v10524 = vshrl.u32 %v10523, 7
      %v10525 = vsub.s32 0, %v10524
      %v10526 = vrot.slane %v10521, %v10525
      %10527 = vset.pattern.permute.xlu0 0
      %10528 = vperm.xlu0 %10527, %v10526
      %v10529 = vpop.permute.xlu0 %10528
      %10531 = vst [vmem:[%s575] sm:$0xff] %v10529
      %p10532 = scmp.lt.s32.totalorder %s31, 1
      %s10533 = scalar_select %p10532, %s31, 1
      %s10534 = smul.addr %s10533, 8
      %s10535 = scalar_lea.vmem %s18, %s10534
      // Predicated region
      $region93: #{forward.1} parent=91 // pred_check
        %p10536 = pneg %p432
      $region94: #{forward.1} parent=91 // pred_check_branch
        %10538 = sbr.rel (%p10536) target = $region96
      $region95: #{forward.1} parent=91 // pred_region
        _
      $region96: #{forward.1} parent=91 // pred_fallthru
        _
    $region92: #{forward.1} parent=5 // pred_fallthru
      _
    %p10539 = scmp.le.s32.totalorder 2, %s26
    // Predicated region
    $region97: #{forward.1} parent=5 // pred_check
      %p10540 = pneg %p10539
    $region98: #{forward.1} parent=5 // pred_check_branch
      %10542 = sbr.rel (%p10540) target = $region100
    $region99: #{forward.1} parent=5 // pred_region
      %s10543 = ssub.s32 %s26, 2
      // Predicated region
      $region101: #{forward.1} parent=99 // pred_check
        %p10544 = pneg %p438
      $region102: #{forward.1} parent=99 // pred_check_branch
        %10546 = sbr.rel (%p10544) target = $region104
      $region103: #{forward.1} parent=99 // pred_region
        %p10547 = scmp.lt.s32.totalorder %s32, 1
        %s10548 = scalar_select %p10547, %s32, 1
        %s10549 = smul.addr %s10548, 8
        %s10550 = scalar_lea.vmem %s18, %s10549
      $region104: #{forward.1} parent=99 // pred_fallthru
        _
    $region100: #{forward.1} parent=5 // pred_fallthru
      _
  $region6: #{forward.1} parent=0 // loop_footer
    %s30 = sadd.s32 1, %s26
  $region7: #{forward.1} parent=0 // loop_footer_branch
    %25 = sbr.rel target = $region3
  $region8: #{forward.1} parent=0 // loop_exit
    _

</llo_original>
